<compile_context>
chip_gen: v6e
topology: v6e:2x2x1
jax: 0.10.0
libtpu: 0.0.40
codegen_flags: <defaults>
</compile_context>

<pallas_src>
import numpy as np
import jax
import jax.numpy as jnp
from jax.experimental import pallas as pl
from jax.experimental.pallas import tpu as pltpu


# ---------------------------------------------------------------------------
# Small static helpers
# ---------------------------------------------------------------------------
def _round_up(x, m):
    return ((x + m - 1) // m) * m


def _pick_batch_tile(b, max_tile=512):
    """Batch tile: multiple of 8, <= max_tile; >=2 grid steps when B >= 16."""
    n_steps = max(1, -(-b // max_tile))
    if b >= 16 and n_steps < 2:
        n_steps = 2                      # let both v7x TensorCores work
    tb = _round_up(-(-b // n_steps), 8)
    b_pad = _round_up(b, tb)
    return tb, b_pad


# ---------------------------------------------------------------------------
# Fused whole-network kernel (per batch tile)
# ---------------------------------------------------------------------------
def _lenet_fused_kernel(x_ref, w1_ref, b1_ref, w2_ref, b2_ref,
                        wf_ref, bf_ref, wc_ref, bc_ref, o_ref):
    """x_ref:(tb,784) bf16; w1:(784,3584) w2:(896,1024) wf:(256,128) wc:(128,128)
    all bf16; biases f32; o_ref:(tb,128) f32 (first 10 columns = logits)."""
    x = x_ref[...]                                                      # bf16

    # conv1 + bias + ReLU + 2x2 avg-pool : one tall GEMM, 4 aligned lane slices
    z1 = jnp.dot(x, w1_ref[...], preferred_element_type=jnp.float32)   # (tb,3584)
    b1 = b1_ref[...]
    h1 = jnp.maximum(z1[:, 0:896] + b1, 0.0)
    for win in range(1, 4):                 # 0.25 already folded into w1/b1
        h1 = h1 + jnp.maximum(z1[:, win * 896:(win + 1) * 896] + b1, 0.0)

    # conv2 + bias + ReLU + 2x2 avg-pool
    z2 = jnp.dot(h1.astype(jnp.bfloat16), w2_ref[...],
                 preferred_element_type=jnp.float32)                   # (tb,1024)
    b2 = b2_ref[...]
    h2 = jnp.maximum(z2[:, 0:256] + b2, 0.0)
    for win in range(1, 4):
        h2 = h2 + jnp.maximum(z2[:, win * 256:(win + 1) * 256] + b2, 0.0)

    # fc1 + ReLU
    h3 = jnp.dot(h2.astype(jnp.bfloat16), wf_ref[...],
                 preferred_element_type=jnp.float32)
    h3 = jnp.maximum(h3 + bf_ref[...], 0.0)

    # classifier
    o = jnp.dot(h3.astype(jnp.bfloat16), wc_ref[...],
                preferred_element_type=jnp.float32)
    o_ref[...] = (o + bc_ref[...]).astype(o_ref.dtype)


def lenet_forward(x_flat, prep, *, max_tile=512):
    """x_flat: (B, 784) bf16 -> (B, 10) f32 logits. One pallas_call."""
    B = x_flat.shape[0]
    tb, b_pad = _pick_batch_tile(B, max_tile)
    if b_pad != B:
        x_flat = jnp.pad(x_flat, ((0, b_pad - B), (0, 0)))
    out = pl.pallas_call(
        _lenet_fused_kernel,
        out_shape=jax.ShapeDtypeStruct((b_pad, 128), jnp.float32),
        grid=(b_pad // tb,),
        in_specs=[
            pl.BlockSpec((tb, 784), lambda i: (i, 0)),       # input pixels
            pl.BlockSpec((784, 3584), lambda i: (0, 0)),     # conv1 big matrix
            pl.BlockSpec((1, 896), lambda i: (0, 0)),        # conv1 bias (x0.25)
            pl.BlockSpec((896, 1024), lambda i: (0, 0)),     # conv2 big matrix
            pl.BlockSpec((1, 256), lambda i: (0, 0)),        # conv2 bias (x0.25)
            pl.BlockSpec((256, 128), lambda i: (0, 0)),      # fc1 weight
            pl.BlockSpec((1, 128), lambda i: (0, 0)),        # fc1 bias
            pl.BlockSpec((128, 128), lambda i: (0, 0)),      # classifier weight
            pl.BlockSpec((1, 128), lambda i: (0, 0)),        # classifier bias
        ],
        out_specs=pl.BlockSpec((tb, 128), lambda i: (i, 0)),
        compiler_params=pltpu.CompilerParams(
            dimension_semantics=("parallel",),
            vmem_limit_bytes=48 * 1024 * 1024),
    )(x_flat, prep["w1"], prep["b1"], prep["w2"], prep["b2"],
      prep["wf"], prep["bf"], prep["wc"], prep["bc"])
    return out[:B, :10]


# ---------------------------------------------------------------------------
# Parameters: PyTorch layouts, converted once to the fused-kernel layouts
# ---------------------------------------------------------------------------
def init_params(key):
    ks = jax.random.split(key, 8)

    def uni(k, shape, fan_in):
        bound = 1.0 / jnp.sqrt(float(fan_in))
        return jax.random.uniform(k, shape, jnp.float32, -bound, bound)

    return {
        "conv1_w": uni(ks[0], (6, 1, 5, 5), 25),      # [out, in, kh, kw]
        "conv1_b": uni(ks[1], (6,), 25),
        "conv2_w": uni(ks[2], (16, 6, 5, 5), 150),
        "conv2_b": uni(ks[3], (16,), 150),
        "fc1_w":   uni(ks[4], (120, 256), 256),       # [out, in], in = (c,y,x)
        "fc1_b":   uni(ks[5], (120,), 256),
        "cls_w":   uni(ks[6], (10, 120), 120),
        "cls_b":   uni(ks[7], (10,), 120),
    }


def prepare_params(p):
    """Build the dense conv GEMM matrices (0.25 pool factor folded in) and the
    lane-padded fc weights, all converted from PyTorch layouts."""
    w1 = np.asarray(p["conv1_w"], np.float32)
    b1 = np.asarray(p["conv1_b"], np.float32)
    w2 = np.asarray(p["conv2_w"], np.float32)
    b2 = np.asarray(p["conv2_b"], np.float32)

    # conv1: rows = input pixel (y*28+x); cols = (tap wy*2+wx, py, px, co),
    # each 864-wide tap group padded to 896 lanes.  0.25 folded into w and b.
    W1 = np.zeros((28, 28, 2, 2, 12, 12, 6), np.float32)
    for wy in range(2):
        for wx in range(2):
            for ky in range(5):
                for kx in range(5):
                    for py in range(12):
                        for px in range(12):
                            W1[2 * py + wy + ky, 2 * px + wx + kx,
                               wy, wx, py, px, :] = 0.25 * w1[:, 0, ky, kx]
    W1 = np.pad(W1.reshape(784, 4, 864), ((0, 0), (0, 0), (0, 32)))
    W1 = W1.reshape(784, 4 * 896)
    b1c = np.zeros((1, 896), np.float32)
    b1c[0, :864] = np.tile(0.25 * b1, 144)

    # conv2: rows = pooled conv1 feature (y,x,c) (864 valid + 32 zero pad);
    # cols = (tap, py, px, co), each tap group 256 wide.  0.25 folded in.
    W2 = np.zeros((12, 12, 6, 2, 2, 4, 4, 16), np.float32)
    for wy in range(2):
        for wx in range(2):
            for ky in range(5):
                for kx in range(5):
                    for py in range(4):
                        for px in range(4):
                            W2[2 * py + wy + ky, 2 * px + wx + kx, :,
                               wy, wx, py, px, :] = 0.25 * w2[:, :, ky, kx].T
    W2 = np.pad(W2.reshape(864, 4, 256), ((0, 32), (0, 0), (0, 0)))
    W2 = W2.reshape(896, 4 * 256)
    b2c = np.tile(0.25 * b2, 16).reshape(1, 256)

    # fc1: torch inputs are channel-major (c,y,x); kernel flatten is (y,x,c).
    wf = np.asarray(p["fc1_w"], np.float32).T.reshape(16, 4, 4, 120)   # (c,y,x,o)
    wf = np.transpose(wf, (1, 2, 0, 3)).reshape(256, 120)              # ((y,x,c),o)
    wf = np.pad(wf, ((0, 0), (0, 8)))
    bf = np.pad(np.asarray(p["fc1_b"], np.float32).reshape(1, 120),
                ((0, 0), (0, 8)))

    # classifier: pad input rows 120->128 (fc1 pad cols are exactly 0) and
    # output cols 10->128 (lane-dense output).
    wc = np.pad(np.asarray(p["cls_w"], np.float32).T, ((0, 8), (0, 118)))
    bc = np.pad(np.asarray(p["cls_b"], np.float32).reshape(1, 10),
                ((0, 0), (0, 118)))

    return {
        "w1": jnp.asarray(W1, jnp.bfloat16), "b1": jnp.asarray(b1c),
        "w2": jnp.asarray(W2, jnp.bfloat16), "b2": jnp.asarray(b2c),
        "wf": jnp.asarray(wf, jnp.bfloat16), "bf": jnp.asarray(bf),
        "wc": jnp.asarray(wc, jnp.bfloat16), "bc": jnp.asarray(bc),
    }


# ---------------------------------------------------------------------------
# Full forward pass (single pallas_call)
# ---------------------------------------------------------------------------
@jax.jit
def full_model_with_extractor(x_nchw, prep):
    B, C, H, W = x_nchw.shape
    assert (C, H, W) == (1, 28, 28), "view(-1, 16*4*4) implies 1x28x28 inputs"
    # C == 1, so the NCHW flatten is already row-major (y, x).
    x = x_nchw.reshape(B, H * W).astype(jnp.bfloat16)
    return lenet_forward(x, prep)                                      # (B, 10)


# ---------------------------------------------------------------------------
# Pure-JAX f32 reference (mirrors the PyTorch module) for a sanity check
# ---------------------------------------------------------------------------
def _reference_forward(x_nchw, p):
    dn = ("NCHW", "OIHW", "NCHW")
    hp = jax.lax.Precision.HIGHEST
    h = jax.lax.conv_general_dilated(x_nchw, p["conv1_w"], (1, 1), "VALID",
                                     dimension_numbers=dn, precision=hp)
    h = jax.nn.relu(h + p["conv1_b"][None, :, None, None])
    B, C, H, W = h.shape
    h = h.reshape(B, C, H // 2, 2, W // 2, 2).mean(axis=(3, 5))
    h = jax.lax.conv_general_dilated(h, p["conv2_w"], (1, 1), "VALID",
                                     dimension_numbers=dn, precision=hp)
    h = jax.nn.relu(h + p["conv2_b"][None, :, None, None])
    B, C, H, W = h.shape
    h = h.reshape(B, C, H // 2, 2, W // 2, 2).mean(axis=(3, 5))
    h = h.reshape(B, -1)                                   # (c,y,x) like torch
    h = jax.nn.relu(jnp.dot(h, p["fc1_w"].T, precision=hp) + p["fc1_b"])
    return jnp.dot(h, p["cls_w"].T, precision=hp) + p["cls_b"]


# ---------------------------------------------------------------------------
if __name__ == "__main__":
    key = jax.random.PRNGKey(0)
    k_x, k_p = jax.random.split(key)

    # Input shape forced by view(-1, 16*4*4): 28x28 single-channel, batch=2.
    x = jax.random.normal(k_x, (2, 1, 28, 28), dtype=jnp.float32)
    params = init_params(k_p)
    prepared = prepare_params(params)

    logits = full_model_with_extractor(x, prepared)
    jax.block_until_ready(logits)
    assert logits.shape == (2, 10) and logits.dtype == jnp.float32

    ref = _reference_forward(x, params)
    err = float(jnp.max(jnp.abs(logits - ref)))
    assert err < 0.1, f"max |pallas - reference| = {err}"

    print("KERNEL_OK")
</pallas_src>

<mosaic_0001>
module attributes {stable_mosaic.version = 11 : i64} {
  func.func @_lenet_fused_kernel(%arg0: i32, %arg1: memref<8x784xbf16, #tpu.memory_space<vmem>>, %arg2: memref<784x3584xbf16, #tpu.memory_space<vmem>>, %arg3: memref<1x896xf32, #tpu.memory_space<vmem>>, %arg4: memref<896x1024xbf16, #tpu.memory_space<vmem>>, %arg5: memref<1x256xf32, #tpu.memory_space<vmem>>, %arg6: memref<256x128xbf16, #tpu.memory_space<vmem>>, %arg7: memref<1x128xf32, #tpu.memory_space<vmem>>, %arg8: memref<128x128xbf16, #tpu.memory_space<vmem>>, %arg9: memref<1x128xf32, #tpu.memory_space<vmem>>, %arg10: memref<8x128xf32, #tpu.memory_space<vmem>>) attributes {dimension_semantics = [#tpu.dimension_semantics<parallel>], iteration_bounds = array<i64: 1>, scalar_prefetch = 0 : i64, scratch_operands = 0 : i64, tpu.core_type = #tpu.core_type<tc>, window_params = [{transform_indices = @transform_0, window_bounds = array<i64: 8, 784>}, {pipeline_mode = #tpu.pipeline_mode<synchronous>, transform_indices = @transform_1, window_bounds = array<i64: 784, 3584>}, {pipeline_mode = #tpu.pipeline_mode<synchronous>, transform_indices = @transform_2, window_bounds = array<i64: 1, 896>}, {pipeline_mode = #tpu.pipeline_mode<synchronous>, transform_indices = @transform_3, window_bounds = array<i64: 896, 1024>}, {pipeline_mode = #tpu.pipeline_mode<synchronous>, transform_indices = @transform_4, window_bounds = array<i64: 1, 256>}, {pipeline_mode = #tpu.pipeline_mode<synchronous>, transform_indices = @transform_5, window_bounds = array<i64: 256, 128>}, {pipeline_mode = #tpu.pipeline_mode<synchronous>, transform_indices = @transform_6, window_bounds = array<i64: 1, 128>}, {pipeline_mode = #tpu.pipeline_mode<synchronous>, transform_indices = @transform_7, window_bounds = array<i64: 128, 128>}, {pipeline_mode = #tpu.pipeline_mode<synchronous>, transform_indices = @transform_8, window_bounds = array<i64: 1, 128>}, {transform_indices = @transform_9, window_bounds = array<i64: 8, 128>}]} {
    %c0 = arith.constant 0 : index
    %c0_0 = arith.constant 0 : index
    %0 = vector.load %arg1[%c0, %c0_0] : memref<8x784xbf16, #tpu.memory_space<vmem>>, vector<8x784xbf16>
    %c0_1 = arith.constant 0 : index
    %c0_2 = arith.constant 0 : index
    %1 = vector.load %arg2[%c0_1, %c0_2] : memref<784x3584xbf16, #tpu.memory_space<vmem>>, vector<784x3584xbf16>
    %cst = arith.constant dense<0.000000e+00> : vector<8x3584xf32>
    %2 = tpu.matmul %0, %1, %cst {dimension_numbers = #tpu.dot_dimension_numbers<[1], [0], [0], [1], [0, 0, 1, 1], [], []>} : vector<8x784xbf16>, vector<784x3584xbf16>, vector<8x3584xf32> -> vector<8x3584xf32>
    %c0_3 = arith.constant 0 : index
    %c0_4 = arith.constant 0 : index
    %3 = vector.load %arg3[%c0_3, %c0_4] : memref<1x896xf32, #tpu.memory_space<vmem>>, vector<1x896xf32>
    %4 = vector.extract_strided_slice %2 {offsets = [0, 0], sizes = [8, 896], strides = [1, 1]} : vector<8x3584xf32> to vector<8x896xf32>
    %5 = vector.broadcast %3 : vector<1x896xf32> to vector<8x896xf32>
    %6 = arith.addf %4, %5 : vector<8x896xf32>
    %cst_5 = arith.constant 0.000000e+00 : f32
    %7 = vector.broadcast %cst_5 : f32 to vector<8x896xf32>
    %8 = arith.maximumf %6, %7 : vector<8x896xf32>
    %9 = vector.extract_strided_slice %2 {offsets = [0, 896], sizes = [8, 896], strides = [1, 1]} : vector<8x3584xf32> to vector<8x896xf32>
    %10 = vector.broadcast %3 : vector<1x896xf32> to vector<8x896xf32>
    %11 = arith.addf %9, %10 : vector<8x896xf32>
    %cst_6 = arith.constant 0.000000e+00 : f32
    %12 = vector.broadcast %cst_6 : f32 to vector<8x896xf32>
    %13 = arith.maximumf %11, %12 : vector<8x896xf32>
    %14 = arith.addf %8, %13 : vector<8x896xf32>
    %15 = vector.extract_strided_slice %2 {offsets = [0, 1792], sizes = [8, 896], strides = [1, 1]} : vector<8x3584xf32> to vector<8x896xf32>
    %16 = vector.broadcast %3 : vector<1x896xf32> to vector<8x896xf32>
    %17 = arith.addf %15, %16 : vector<8x896xf32>
    %cst_7 = arith.constant 0.000000e+00 : f32
    %18 = vector.broadcast %cst_7 : f32 to vector<8x896xf32>
    %19 = arith.maximumf %17, %18 : vector<8x896xf32>
    %20 = arith.addf %14, %19 : vector<8x896xf32>
    %21 = vector.extract_strided_slice %2 {offsets = [0, 2688], sizes = [8, 896], strides = [1, 1]} : vector<8x3584xf32> to vector<8x896xf32>
    %22 = vector.broadcast %3 : vector<1x896xf32> to vector<8x896xf32>
    %23 = arith.addf %21, %22 : vector<8x896xf32>
    %cst_8 = arith.constant 0.000000e+00 : f32
    %24 = vector.broadcast %cst_8 : f32 to vector<8x896xf32>
    %25 = arith.maximumf %23, %24 : vector<8x896xf32>
    %26 = arith.addf %20, %25 : vector<8x896xf32>
    %27 = arith.truncf %26 : vector<8x896xf32> to vector<8x896xbf16>
    %c0_9 = arith.constant 0 : index
    %c0_10 = arith.constant 0 : index
    %28 = vector.load %arg4[%c0_9, %c0_10] : memref<896x1024xbf16, #tpu.memory_space<vmem>>, vector<896x1024xbf16>
    %cst_11 = arith.constant dense<0.000000e+00> : vector<8x1024xf32>
    %29 = tpu.matmul %27, %28, %cst_11 {dimension_numbers = #tpu.dot_dimension_numbers<[1], [0], [0], [1], [0, 0, 1, 1], [], []>} : vector<8x896xbf16>, vector<896x1024xbf16>, vector<8x1024xf32> -> vector<8x1024xf32>
    %c0_12 = arith.constant 0 : index
    %c0_13 = arith.constant 0 : index
    %30 = vector.load %arg5[%c0_12, %c0_13] : memref<1x256xf32, #tpu.memory_space<vmem>>, vector<1x256xf32>
    %31 = vector.extract_strided_slice %29 {offsets = [0, 0], sizes = [8, 256], strides = [1, 1]} : vector<8x1024xf32> to vector<8x256xf32>
    %32 = vector.broadcast %30 : vector<1x256xf32> to vector<8x256xf32>
    %33 = arith.addf %31, %32 : vector<8x256xf32>
    %cst_14 = arith.constant 0.000000e+00 : f32
    %34 = vector.broadcast %cst_14 : f32 to vector<8x256xf32>
    %35 = arith.maximumf %33, %34 : vector<8x256xf32>
    %36 = vector.extract_strided_slice %29 {offsets = [0, 256], sizes = [8, 256], strides = [1, 1]} : vector<8x1024xf32> to vector<8x256xf32>
    %37 = vector.broadcast %30 : vector<1x256xf32> to vector<8x256xf32>
    %38 = arith.addf %36, %37 : vector<8x256xf32>
    %cst_15 = arith.constant 0.000000e+00 : f32
    %39 = vector.broadcast %cst_15 : f32 to vector<8x256xf32>
    %40 = arith.maximumf %38, %39 : vector<8x256xf32>
    %41 = arith.addf %35, %40 : vector<8x256xf32>
    %42 = vector.extract_strided_slice %29 {offsets = [0, 512], sizes = [8, 256], strides = [1, 1]} : vector<8x1024xf32> to vector<8x256xf32>
    %43 = vector.broadcast %30 : vector<1x256xf32> to vector<8x256xf32>
    %44 = arith.addf %42, %43 : vector<8x256xf32>
    %cst_16 = arith.constant 0.000000e+00 : f32
    %45 = vector.broadcast %cst_16 : f32 to vector<8x256xf32>
    %46 = arith.maximumf %44, %45 : vector<8x256xf32>
    %47 = arith.addf %41, %46 : vector<8x256xf32>
    %48 = vector.extract_strided_slice %29 {offsets = [0, 768], sizes = [8, 256], strides = [1, 1]} : vector<8x1024xf32> to vector<8x256xf32>
    %49 = vector.broadcast %30 : vector<1x256xf32> to vector<8x256xf32>
    %50 = arith.addf %48, %49 : vector<8x256xf32>
    %cst_17 = arith.constant 0.000000e+00 : f32
    %51 = vector.broadcast %cst_17 : f32 to vector<8x256xf32>
    %52 = arith.maximumf %50, %51 : vector<8x256xf32>
    %53 = arith.addf %47, %52 : vector<8x256xf32>
    %54 = arith.truncf %53 : vector<8x256xf32> to vector<8x256xbf16>
    %c0_18 = arith.constant 0 : index
    %c0_19 = arith.constant 0 : index
    %55 = vector.load %arg6[%c0_18, %c0_19] : memref<256x128xbf16, #tpu.memory_space<vmem>>, vector<256x128xbf16>
    %cst_20 = arith.constant dense<0.000000e+00> : vector<8x128xf32>
    %56 = tpu.matmul %54, %55, %cst_20 {dimension_numbers = #tpu.dot_dimension_numbers<[1], [0], [0], [1], [0, 0, 1, 1], [], []>} : vector<8x256xbf16>, vector<256x128xbf16>, vector<8x128xf32> -> vector<8x128xf32>
    %c0_21 = arith.constant 0 : index
    %c0_22 = arith.constant 0 : index
    %57 = vector.load %arg7[%c0_21, %c0_22] : memref<1x128xf32, #tpu.memory_space<vmem>>, vector<1x128xf32>
    %58 = vector.broadcast %57 : vector<1x128xf32> to vector<8x128xf32>
    %59 = arith.addf %56, %58 : vector<8x128xf32>
    %cst_23 = arith.constant 0.000000e+00 : f32
    %60 = vector.broadcast %cst_23 : f32 to vector<8x128xf32>
    %61 = arith.maximumf %59, %60 : vector<8x128xf32>
    %62 = arith.truncf %61 : vector<8x128xf32> to vector<8x128xbf16>
    %c0_24 = arith.constant 0 : index
    %c0_25 = arith.constant 0 : index
    %63 = vector.load %arg8[%c0_24, %c0_25] : memref<128x128xbf16, #tpu.memory_space<vmem>>, vector<128x128xbf16>
    %cst_26 = arith.constant dense<0.000000e+00> : vector<8x128xf32>
    %64 = tpu.matmul %62, %63, %cst_26 {dimension_numbers = #tpu.dot_dimension_numbers<[1], [0], [0], [1], [0, 0, 1, 1], [], []>} : vector<8x128xbf16>, vector<128x128xbf16>, vector<8x128xf32> -> vector<8x128xf32>
    %c0_27 = arith.constant 0 : index
    %c0_28 = arith.constant 0 : index
    %65 = vector.load %arg9[%c0_27, %c0_28] : memref<1x128xf32, #tpu.memory_space<vmem>>, vector<1x128xf32>
    %66 = vector.broadcast %65 : vector<1x128xf32> to vector<8x128xf32>
    %67 = arith.addf %64, %66 : vector<8x128xf32>
    %c0_29 = arith.constant 0 : index
    %c0_30 = arith.constant 0 : index
    %68 = vector.load %arg10[%c0_29, %c0_30] : memref<8x128xf32, #tpu.memory_space<vmem>>, vector<8x128xf32>
    tpu.vector_store %arg10[%c0_29, %c0_30], %67 {strides = array<i32>} : memref<8x128xf32, #tpu.memory_space<vmem>>, vector<8x128xf32>,
    return
  }
  func.func @transform_0(%arg0: i32) -> (i32, i32) {
    %c0_i32 = arith.constant 0 : i32
    %c0_i32_0 = arith.constant 0 : i32
    return %arg0, %c0_i32 : i32, i32
  }
  func.func @transform_1(%arg0: i32) -> (i32, i32) {
    %c0_i32 = arith.constant 0 : i32
    %c0_i32_0 = arith.constant 0 : i32
    %c0_i32_1 = arith.constant 0 : i32
    return %c0_i32, %c0_i32_0 : i32, i32
  }
  func.func @transform_2(%arg0: i32) -> (i32, i32) {
    %c0_i32 = arith.constant 0 : i32
    %c0_i32_0 = arith.constant 0 : i32
    %c0_i32_1 = arith.constant 0 : i32
    return %c0_i32, %c0_i32_0 : i32, i32
  }
  func.func @transform_3(%arg0: i32) -> (i32, i32) {
    %c0_i32 = arith.constant 0 : i32
    %c0_i32_0 = arith.constant 0 : i32
    %c0_i32_1 = arith.constant 0 : i32
    return %c0_i32, %c0_i32_0 : i32, i32
  }
  func.func @transform_4(%arg0: i32) -> (i32, i32) {
    %c0_i32 = arith.constant 0 : i32
    %c0_i32_0 = arith.constant 0 : i32
    %c0_i32_1 = arith.constant 0 : i32
    return %c0_i32, %c0_i32_0 : i32, i32
  }
  func.func @transform_5(%arg0: i32) -> (i32, i32) {
    %c0_i32 = arith.constant 0 : i32
    %c0_i32_0 = arith.constant 0 : i32
    %c0_i32_1 = arith.constant 0 : i32
    return %c0_i32, %c0_i32_0 : i32, i32
  }
  func.func @transform_6(%arg0: i32) -> (i32, i32) {
    %c0_i32 = arith.constant 0 : i32
    %c0_i32_0 = arith.constant 0 : i32
    %c0_i32_1 = arith.constant 0 : i32
    return %c0_i32, %c0_i32_0 : i32, i32
  }
  func.func @transform_7(%arg0: i32) -> (i32, i32) {
    %c0_i32 = arith.constant 0 : i32
    %c0_i32_0 = arith.constant 0 : i32
    %c0_i32_1 = arith.constant 0 : i32
    return %c0_i32, %c0_i32_0 : i32, i32
  }
  func.func @transform_8(%arg0: i32) -> (i32, i32) {
    %c0_i32 = arith.constant 0 : i32
    %c0_i32_0 = arith.constant 0 : i32
    %c0_i32_1 = arith.constant 0 : i32
    return %c0_i32, %c0_i32_0 : i32, i32
  }
  func.func @transform_9(%arg0: i32) -> (i32, i32) {
    %c0_i32 = arith.constant 0 : i32
    %c0_i32_0 = arith.constant 0 : i32
    return %arg0, %c0_i32 : i32, i32
  }
}

</mosaic_0001>

<llo_original>
// kernel: full_model_with_extractor.1
$region0: #{full_model_with_extractor.1}
  #allocation0 [shape = 'u32[]', space=smem, size = 0x4, offset = 0x4, fixed_abs, tag = 'smem constant byte address 0x4 - core index']
  #allocation1 [shape = 'u32[144,128]{1,0:T(1,128)}', space=vmem, size = 0x12000, scoped, tag = 'internal scratch']
  %s0 = inlined_call_operand.vmem [shape: bf16[8,784], index: 0, kind: input, shape index: {}]
  %s1 = inlined_call_operand.hbm [shape: bf16[784,3584], index: 1, kind: input, shape index: {}]
  %s2 = inlined_call_operand.hbm [shape: f32[1,896], index: 2, kind: input, shape index: {}]
  %s3 = inlined_call_operand.hbm [shape: bf16[896,1024], index: 3, kind: input, shape index: {}]
  %s4 = inlined_call_operand.hbm [shape: f32[1,256], index: 4, kind: input, shape index: {}]
  %s5 = inlined_call_operand.hbm [shape: bf16[256,128], index: 5, kind: input, shape index: {}]
  %s6 = inlined_call_operand.hbm [shape: f32[1,128], index: 6, kind: input, shape index: {}]
  %s7 = inlined_call_operand.hbm [shape: bf16[128,128], index: 7, kind: input, shape index: {}]
  %s8 = inlined_call_operand.hbm [shape: f32[1,128], index: 8, kind: input, shape index: {}]
  %s9 = inlined_call_operand.vmem [shape: f32[8,128], index: 9, kind: output, shape index: {}]
  %s10 = sld [smem:[#allocation0]]
  $region78: #{full_model_with_extractor.1} parent=0
    _
  %s12 = ssub.s32 1, %s10
  %s13 = scalar_select 0, %s12, %s10
  $region1: #{full_model_with_extractor.1} parent=0
    #allocation2 [shape = 'u8[5619712]{0}', space=vmem, size = 0x55c000, scoped, tag = 'input window, operand 1, single buffered']
    #allocation3 [shape = 's32[1]{0}', space=sflag, size = 0x4, scoped, tag = 'scoped memory for full_model_with_extractor.1']
    #allocation4 [shape = 'u8[3584]{0}', space=vmem, size = 0x1000, scoped, tag = 'input window, operand 2, single buffered']
    #allocation5 [shape = 's32[1]{0}', space=sflag, size = 0x4, scoped, tag = 'scoped memory for full_model_with_extractor.1']
    #allocation6 [shape = 'u8[1835008]{0}', space=vmem, size = 0x1c0000, scoped, tag = 'input window, operand 3, single buffered']
    #allocation7 [shape = 'u8[1024]{0}', space=vmem, size = 0x400, scoped, tag = 'input window, operand 4, single buffered']
    #allocation8 [shape = 's32[1]{0}', space=sflag, size = 0x4, scoped, tag = 'scoped memory for full_model_with_extractor.1']
    #allocation9 [shape = 'u8[65536]{0}', space=vmem, size = 0x10000, scoped, tag = 'input window, operand 5, single buffered']
    #allocation10 [shape = 'u8[512]{0}', space=vmem, size = 0x400, scoped, tag = 'input window, operand 6, single buffered']
    #allocation11 [shape = 's32[1]{0}', space=sflag, size = 0x4, scoped, tag = 'scoped memory for full_model_with_extractor.1']
    #allocation12 [shape = 'u8[32768]{0}', space=vmem, size = 0x8000, scoped, tag = 'input window, operand 7, single buffered']
    #allocation13 [shape = 'u8[512]{0}', space=vmem, size = 0x400, scoped, tag = 'input window, operand 8, single buffered']
    #allocation14 [shape = 's32[1]{0}', space=sflag, size = 0x4, scoped, tag = 'scoped memory for full_model_with_extractor.1']
    %14 = vsyncpa [#allocation3], 0
    %15 = vsyncpa [#allocation5], 0
    %16 = vsyncpa [#allocation8], 0
    %17 = vsyncpa [#allocation11], 0
    %18 = vsyncpa [#allocation14], 0
    // Predicated region
    $region2: #{full_model_with_extractor.1} parent=1 // pred_check
      _
    $region3: #{full_model_with_extractor.1} parent=1 // pred_check_branch
      %20 = sbr.rel (0) target = $region5
    $region4: #{full_model_with_extractor.1} parent=1 // pred_region
      _
    $region5: #{full_model_with_extractor.1} parent=1 // pred_fallthru
      _
    // Predicated region
    $region6: #{full_model_with_extractor.1} parent=1 // pred_check
      _
    $region7: #{full_model_with_extractor.1} parent=1 // pred_check_branch
      %22 = sbr.rel (0) target = $region9
    $region8: #{full_model_with_extractor.1} parent=1 // pred_region
      %s24 = ssub.s32 175616, 175616
      %25 = vsyncadd [#allocation3], %s24
      %s26 = sshll.u32 [#allocation2], 4
      %s27 = int_to_ptr.vmem [resolvable:$true] %s26
      %32 = dma.hbm_to_vmem [thread:$0]  %s1, 175616, %s27, [#allocation3], 1792, 1792, 112
    $region9: #{full_model_with_extractor.1} parent=1 // pred_fallthru
      _
    // Predicated region
    $region10: #{full_model_with_extractor.1} parent=1 // pred_check
      _
    $region11: #{full_model_with_extractor.1} parent=1 // pred_check_branch
      %34 = sbr.rel (0) target = $region13
    $region12: #{full_model_with_extractor.1} parent=1 // pred_region
      %s36 = ssub.s32 112, 112
      %37 = vsyncadd [#allocation5], %s36
      %s39 = sshll.u32 [#allocation4], 4
      %s40 = int_to_ptr.vmem [resolvable:$true] %s39
      %42 = dma.hbm_to_vmem [thread:$0]  %s2, 112, %s40, [#allocation5]
    $region13: #{full_model_with_extractor.1} parent=1 // pred_fallthru
      _
    // Predicated region
    $region14: #{full_model_with_extractor.1} parent=1 // pred_check
      _
    $region15: #{full_model_with_extractor.1} parent=1 // pred_check_branch
      %44 = sbr.rel (0) target = $region17
    $region16: #{full_model_with_extractor.1} parent=1 // pred_region
      %s46 = ssub.s32 57344, 57344
      %47 = vsyncadd [#allocation5], %s46
      %s48 = sshll.u32 [#allocation6], 4
      %s49 = int_to_ptr.vmem [resolvable:$true] %s48
      %54 = dma.hbm_to_vmem [thread:$0]  %s3, 57344, %s49, [#allocation5], 512, 512, 32
    $region17: #{full_model_with_extractor.1} parent=1 // pred_fallthru
      _
    // Predicated region
    $region18: #{full_model_with_extractor.1} parent=1 // pred_check
      _
    $region19: #{full_model_with_extractor.1} parent=1 // pred_check_branch
      %56 = sbr.rel (0) target = $region21
    $region20: #{full_model_with_extractor.1} parent=1 // pred_region
      %s58 = ssub.s32 32, 32
      %59 = vsyncadd [#allocation8], %s58
      %s61 = sshll.u32 [#allocation7], 4
      %s62 = int_to_ptr.vmem [resolvable:$true] %s61
      %64 = dma.hbm_to_vmem [thread:$0]  %s4, 32, %s62, [#allocation8]
    $region21: #{full_model_with_extractor.1} parent=1 // pred_fallthru
      _
    // Predicated region
    $region22: #{full_model_with_extractor.1} parent=1 // pred_check
      _
    $region23: #{full_model_with_extractor.1} parent=1 // pred_check_branch
      %66 = sbr.rel (0) target = $region25
    $region24: #{full_model_with_extractor.1} parent=1 // pred_region
      %s68 = ssub.s32 2048, 2048
      %69 = vsyncadd [#allocation8], %s68
      %s70 = sshll.u32 [#allocation9], 4
      %s71 = int_to_ptr.vmem [resolvable:$true] %s70
      %76 = dma.hbm_to_vmem [thread:$0]  %s5, 2048, %s71, [#allocation8], 64, 64, 4
    $region25: #{full_model_with_extractor.1} parent=1 // pred_fallthru
      _
    // Predicated region
    $region26: #{full_model_with_extractor.1} parent=1 // pred_check
      _
    $region27: #{full_model_with_extractor.1} parent=1 // pred_check_branch
      %78 = sbr.rel (0) target = $region29
    $region28: #{full_model_with_extractor.1} parent=1 // pred_region
      %s80 = ssub.s32 16, 16
      %81 = vsyncadd [#allocation11], %s80
      %s83 = sshll.u32 [#allocation10], 4
      %s84 = int_to_ptr.vmem [resolvable:$true] %s83
      %86 = dma.hbm_to_vmem [thread:$0]  %s6, 16, %s84, [#allocation11]
    $region29: #{full_model_with_extractor.1} parent=1 // pred_fallthru
      _
    // Predicated region
    $region30: #{full_model_with_extractor.1} parent=1 // pred_check
      _
    $region31: #{full_model_with_extractor.1} parent=1 // pred_check_branch
      %88 = sbr.rel (0) target = $region33
    $region32: #{full_model_with_extractor.1} parent=1 // pred_region
      %s90 = ssub.s32 1024, 1024
      %91 = vsyncadd [#allocation11], %s90
      %s92 = sshll.u32 [#allocation12], 4
      %s93 = int_to_ptr.vmem [resolvable:$true] %s92
      %98 = dma.hbm_to_vmem [thread:$0]  %s7, 1024, %s93, [#allocation11], 64, 64, 4
    $region33: #{full_model_with_extractor.1} parent=1 // pred_fallthru
      _
    // Predicated region
    $region34: #{full_model_with_extractor.1} parent=1 // pred_check
      _
    $region35: #{full_model_with_extractor.1} parent=1 // pred_check_branch
      %100 = sbr.rel (0) target = $region37
    $region36: #{full_model_with_extractor.1} parent=1 // pred_region
      %s102 = ssub.s32 16, 16
      %103 = vsyncadd [#allocation14], %s102
      %s105 = sshll.u32 [#allocation13], 4
      %s106 = int_to_ptr.vmem [resolvable:$true] %s105
      %108 = dma.hbm_to_vmem [thread:$0]  %s8, 16, %s106, [#allocation14]
    $region37: #{full_model_with_extractor.1} parent=1 // pred_fallthru
      _
    // Predicated region
    $region38: #{full_model_with_extractor.1} parent=1 // pred_check
      _
    $region39: #{full_model_with_extractor.1} parent=1 // pred_check_branch
      %110 = sbr.rel (0) target = $region41
    $region40: #{full_model_with_extractor.1} parent=1 // pred_region
      %111 = dma.done [#allocation3], 175616
    $region41: #{full_model_with_extractor.1} parent=1 // pred_fallthru
      _
    // Predicated region
    $region42: #{full_model_with_extractor.1} parent=1 // pred_check
      _
    $region43: #{full_model_with_extractor.1} parent=1 // pred_check_branch
      %113 = sbr.rel (0) target = $region45
    $region44: #{full_model_with_extractor.1} parent=1 // pred_region
      %114 = dma.done [#allocation5], 112
    $region45: #{full_model_with_extractor.1} parent=1 // pred_fallthru
      _
    // Predicated region
    $region46: #{full_model_with_extractor.1} parent=1 // pred_check
      _
    $region47: #{full_model_with_extractor.1} parent=1 // pred_check_branch
      %116 = sbr.rel (0) target = $region49
    $region48: #{full_model_with_extractor.1} parent=1 // pred_region
      %117 = dma.done [#allocation5], 57344
    $region49: #{full_model_with_extractor.1} parent=1 // pred_fallthru
      _
    // Predicated region
    $region50: #{full_model_with_extractor.1} parent=1 // pred_check
      _
    $region51: #{full_model_with_extractor.1} parent=1 // pred_check_branch
      %119 = sbr.rel (0) target = $region53
    $region52: #{full_model_with_extractor.1} parent=1 // pred_region
      %120 = dma.done [#allocation8], 32
    $region53: #{full_model_with_extractor.1} parent=1 // pred_fallthru
      _
    // Predicated region
    $region54: #{full_model_with_extractor.1} parent=1 // pred_check
      _
    $region55: #{full_model_with_extractor.1} parent=1 // pred_check_branch
      %122 = sbr.rel (0) target = $region57
    $region56: #{full_model_with_extractor.1} parent=1 // pred_region
      %123 = dma.done [#allocation8], 2048
    $region57: #{full_model_with_extractor.1} parent=1 // pred_fallthru
      _
    // Predicated region
    $region58: #{full_model_with_extractor.1} parent=1 // pred_check
      _
    $region59: #{full_model_with_extractor.1} parent=1 // pred_check_branch
      %125 = sbr.rel (0) target = $region61
    $region60: #{full_model_with_extractor.1} parent=1 // pred_region
      %126 = dma.done [#allocation11], 16
    $region61: #{full_model_with_extractor.1} parent=1 // pred_fallthru
      _
    // Predicated region
    $region62: #{full_model_with_extractor.1} parent=1 // pred_check
      _
    $region63: #{full_model_with_extractor.1} parent=1 // pred_check_branch
      %128 = sbr.rel (0) target = $region65
    $region64: #{full_model_with_extractor.1} parent=1 // pred_region
      %129 = dma.done [#allocation11], 1024
    $region65: #{full_model_with_extractor.1} parent=1 // pred_fallthru
      _
    // Predicated region
    $region66: #{full_model_with_extractor.1} parent=1 // pred_check
      _
    $region67: #{full_model_with_extractor.1} parent=1 // pred_check_branch
      %131 = sbr.rel (0) target = $region69
    $region68: #{full_model_with_extractor.1} parent=1 // pred_region
      %132 = dma.done [#allocation14], 16
    $region69: #{full_model_with_extractor.1} parent=1 // pred_fallthru
      _
    %v134 = vld [vmem:[%s0] sm:$0xff]
    %v135 = vld [vmem:[%s0 + $0x8] sm:$0xff]
    %v136 = vld [vmem:[%s0 + $0x10] sm:$0xff]
    %v137 = vld [vmem:[%s0 + $0x18] sm:$0xf]
    %v138 = vld [vmem:[#allocation2] sm:$0xff]
    %v139 = vld [vmem:[#allocation2 + $0x8] sm:$0xff]
    %v140 = vld [vmem:[#allocation2 + $0x10] sm:$0xff]
    %v141 = vld [vmem:[#allocation2 + $0x18] sm:$0xff]
    %v142 = vld [vmem:[#allocation2 + $0x20] sm:$0xff]
    %v143 = vld [vmem:[#allocation2 + $0x28] sm:$0xff]
    %v144 = vld [vmem:[#allocation2 + $0x30] sm:$0xff]
    %v145 = vld [vmem:[#allocation2 + $0x38] sm:$0xff]
    %v146 = vld [vmem:[#allocation2 + $0x40] sm:$0xff]
    %v147 = vld [vmem:[#allocation2 + $0x48] sm:$0xff]
    %v148 = vld [vmem:[#allocation2 + $0x50] sm:$0xff]
    %v149 = vld [vmem:[#allocation2 + $0x58] sm:$0xff]
    %v150 = vld [vmem:[#allocation2 + $0x60] sm:$0xff]
    %v151 = vld [vmem:[#allocation2 + $0x68] sm:$0xff]
    %v152 = vld [vmem:[#allocation2 + $0x70] sm:$0xff]
    %v153 = vld [vmem:[#allocation2 + $0x78] sm:$0xff]
    %v154 = vld [vmem:[#allocation2 + $0x80] sm:$0xff]
    %v155 = vld [vmem:[#allocation2 + $0x88] sm:$0xff]
    %v156 = vld [vmem:[#allocation2 + $0x90] sm:$0xff]
    %v157 = vld [vmem:[#allocation2 + $0x98] sm:$0xff]
    %v158 = vld [vmem:[#allocation2 + $0xa0] sm:$0xff]
    %v159 = vld [vmem:[#allocation2 + $0xa8] sm:$0xff]
    %v160 = vld [vmem:[#allocation2 + $0xb0] sm:$0xff]
    %v161 = vld [vmem:[#allocation2 + $0xb8] sm:$0xff]
    %v162 = vld [vmem:[#allocation2 + $0xc0] sm:$0xff]
    %v163 = vld [vmem:[#allocation2 + $0xc8] sm:$0xff]
    %v164 = vld [vmem:[#allocation2 + $0xd0] sm:$0xff]
    %v165 = vld [vmem:[#allocation2 + $0xd8] sm:$0xff]
    %v166 = vld [vmem:[#allocation2 + $0xe0] sm:$0xff]
    %v167 = vld [vmem:[#allocation2 + $0xe8] sm:$0xff]
    %v168 = vld [vmem:[#allocation2 + $0xf0] sm:$0xff]
    %v169 = vld [vmem:[#allocation2 + $0xf8] sm:$0xff]
    %v170 = vld [vmem:[#allocation2 + $0x100] sm:$0xff]
    %v171 = vld [vmem:[#allocation2 + $0x108] sm:$0xff]
    %v172 = vld [vmem:[#allocation2 + $0x110] sm:$0xff]
    %v173 = vld [vmem:[#allocation2 + $0x118] sm:$0xff]
    %v174 = vld [vmem:[#allocation2 + $0x120] sm:$0xff]
    %v175 = vld [vmem:[#allocation2 + $0x128] sm:$0xff]
    %v176 = vld [vmem:[#allocation2 + $0x130] sm:$0xff]
    %v177 = vld [vmem:[#allocation2 + $0x138] sm:$0xff]
    %v178 = vld [vmem:[#allocation2 + $0x140] sm:$0xff]
    %v179 = vld [vmem:[#allocation2 + $0x148] sm:$0xff]
    %v180 = vld [vmem:[#allocation2 + $0x150] sm:$0xff]
    %v181 = vld [vmem:[#allocation2 + $0x158] sm:$0xff]
    %v182 = vld [vmem:[#allocation2 + $0x160] sm:$0xff]
    %v183 = vld [vmem:[#allocation2 + $0x168] sm:$0xff]
    %v184 = vld [vmem:[#allocation2 + $0x170] sm:$0xff]
    %v185 = vld [vmem:[#allocation2 + $0x178] sm:$0xff]
    %v186 = vld [vmem:[#allocation2 + $0x180] sm:$0xff]
    %v187 = vld [vmem:[#allocation2 + $0x188] sm:$0xff]
    %v188 = vld [vmem:[#allocation2 + $0x190] sm:$0xff]
    %v189 = vld [vmem:[#allocation2 + $0x198] sm:$0xff]
    %v190 = vld [vmem:[#allocation2 + $0x1a0] sm:$0xff]
    %v191 = vld [vmem:[#allocation2 + $0x1a8] sm:$0xff]
    %v192 = vld [vmem:[#allocation2 + $0x1b0] sm:$0xff]
    %v193 = vld [vmem:[#allocation2 + $0x1b8] sm:$0xff]
    %v194 = vld [vmem:[#allocation2 + $0x1c0] sm:$0xff]
    %v195 = vld [vmem:[#allocation2 + $0x1c8] sm:$0xff]
    %v196 = vld [vmem:[#allocation2 + $0x1d0] sm:$0xff]
    %v197 = vld [vmem:[#allocation2 + $0x1d8] sm:$0xff]
    %v198 = vld [vmem:[#allocation2 + $0x1e0] sm:$0xff]
    %v199 = vld [vmem:[#allocation2 + $0x1e8] sm:$0xff]
    %v200 = vld [vmem:[#allocation2 + $0x1f0] sm:$0xff]
    %v201 = vld [vmem:[#allocation2 + $0x1f8] sm:$0xff]
    %v202 = vld [vmem:[#allocation2 + $0x200] sm:$0xff]
    %v203 = vld [vmem:[#allocation2 + $0x208] sm:$0xff]
    %v204 = vld [vmem:[#allocation2 + $0x210] sm:$0xff]
    %v205 = vld [vmem:[#allocation2 + $0x218] sm:$0xff]
    %v206 = vld [vmem:[#allocation2 + $0x220] sm:$0xff]
    %v207 = vld [vmem:[#allocation2 + $0x228] sm:$0xff]
    %v208 = vld [vmem:[#allocation2 + $0x230] sm:$0xff]
    %v209 = vld [vmem:[#allocation2 + $0x238] sm:$0xff]
    %v210 = vld [vmem:[#allocation2 + $0x240] sm:$0xff]
    %v211 = vld [vmem:[#allocation2 + $0x248] sm:$0xff]
    %v212 = vld [vmem:[#allocation2 + $0x250] sm:$0xff]
    %v213 = vld [vmem:[#allocation2 + $0x258] sm:$0xff]
    %v214 = vld [vmem:[#allocation2 + $0x260] sm:$0xff]
    %v215 = vld [vmem:[#allocation2 + $0x268] sm:$0xff]
    %v216 = vld [vmem:[#allocation2 + $0x270] sm:$0xff]
    %v217 = vld [vmem:[#allocation2 + $0x278] sm:$0xff]
    %v218 = vld [vmem:[#allocation2 + $0x280] sm:$0xff]
    %v219 = vld [vmem:[#allocation2 + $0x288] sm:$0xff]
    %v220 = vld [vmem:[#allocation2 + $0x290] sm:$0xff]
    %v221 = vld [vmem:[#allocation2 + $0x298] sm:$0xff]
    %v222 = vld [vmem:[#allocation2 + $0x2a0] sm:$0xff]
    %v223 = vld [vmem:[#allocation2 + $0x2a8] sm:$0xff]
    %v224 = vld [vmem:[#allocation2 + $0x2b0] sm:$0xff]
    %v225 = vld [vmem:[#allocation2 + $0x2b8] sm:$0xff]
    %v226 = vld [vmem:[#allocation2 + $0x2c0] sm:$0xff]
    %v227 = vld [vmem:[#allocation2 + $0x2c8] sm:$0xff]
    %v228 = vld [vmem:[#allocation2 + $0x2d0] sm:$0xff]
    %v229 = vld [vmem:[#allocation2 + $0x2d8] sm:$0xff]
    %v230 = vld [vmem:[#allocation2 + $0x2e0] sm:$0xff]
    %v231 = vld [vmem:[#allocation2 + $0x2e8] sm:$0xff]
    %v232 = vld [vmem:[#allocation2 + $0x2f0] sm:$0xff]
    %v233 = vld [vmem:[#allocation2 + $0x2f8] sm:$0xff]
    %v234 = vld [vmem:[#allocation2 + $0x300] sm:$0xff]
    %v235 = vld [vmem:[#allocation2 + $0x308] sm:$0xff]
    %v236 = vld [vmem:[#allocation2 + $0x310] sm:$0xff]
    %v237 = vld [vmem:[#allocation2 + $0x318] sm:$0xff]
    %v238 = vld [vmem:[#allocation2 + $0x320] sm:$0xff]
    %v239 = vld [vmem:[#allocation2 + $0x328] sm:$0xff]
    %v240 = vld [vmem:[#allocation2 + $0x330] sm:$0xff]
    %v241 = vld [vmem:[#allocation2 + $0x338] sm:$0xff]
    %v242 = vld [vmem:[#allocation2 + $0x340] sm:$0xff]
    %v243 = vld [vmem:[#allocation2 + $0x348] sm:$0xff]
    %v244 = vld [vmem:[#allocation2 + $0x350] sm:$0xff]
    %v245 = vld [vmem:[#allocation2 + $0x358] sm:$0xff]
    %v246 = vld [vmem:[#allocation2 + $0x360] sm:$0xff]
    %v247 = vld [vmem:[#allocation2 + $0x368] sm:$0xff]
    %v248 = vld [vmem:[#allocation2 + $0x370] sm:$0xff]
    %v249 = vld [vmem:[#allocation2 + $0x378] sm:$0xff]
    %v250 = vld [vmem:[#allocation2 + $0x380] sm:$0xff]
    %v251 = vld [vmem:[#allocation2 + $0x388] sm:$0xff]
    %v252 = vld [vmem:[#allocation2 + $0x390] sm:$0xff]
    %v253 = vld [vmem:[#allocation2 + $0x398] sm:$0xff]
    %v254 = vld [vmem:[#allocation2 + $0x3a0] sm:$0xff]
    %v255 = vld [vmem:[#allocation2 + $0x3a8] sm:$0xff]
    %v256 = vld [vmem:[#allocation2 + $0x3b0] sm:$0xff]
    %v257 = vld [vmem:[#allocation2 + $0x3b8] sm:$0xff]
    %v258 = vld [vmem:[#allocation2 + $0x3c0] sm:$0xff]
    %v259 = vld [vmem:[#allocation2 + $0x3c8] sm:$0xff]
    %v260 = vld [vmem:[#allocation2 + $0x3d0] sm:$0xff]
    %v261 = vld [vmem:[#allocation2 + $0x3d8] sm:$0xff]
    %v262 = vld [vmem:[#allocation2 + $0x3e0] sm:$0xff]
    %v263 = vld [vmem:[#allocation2 + $0x3e8] sm:$0xff]
    %v264 = vld [vmem:[#allocation2 + $0x3f0] sm:$0xff]
    %v265 = vld [vmem:[#allocation2 + $0x3f8] sm:$0xff]
    %v266 = vld [vmem:[#allocation2 + $0x400] sm:$0xff]
    %v267 = vld [vmem:[#allocation2 + $0x408] sm:$0xff]
    %v268 = vld [vmem:[#allocation2 + $0x410] sm:$0xff]
    %v269 = vld [vmem:[#allocation2 + $0x418] sm:$0xff]
    %v270 = vld [vmem:[#allocation2 + $0x420] sm:$0xff]
    %v271 = vld [vmem:[#allocation2 + $0x428] sm:$0xff]
    %v272 = vld [vmem:[#allocation2 + $0x430] sm:$0xff]
    %v273 = vld [vmem:[#allocation2 + $0x438] sm:$0xff]
    %v274 = vld [vmem:[#allocation2 + $0x440] sm:$0xff]
    %v275 = vld [vmem:[#allocation2 + $0x448] sm:$0xff]
    %v276 = vld [vmem:[#allocation2 + $0x450] sm:$0xff]
    %v277 = vld [vmem:[#allocation2 + $0x458] sm:$0xff]
    %v278 = vld [vmem:[#allocation2 + $0x460] sm:$0xff]
    %v279 = vld [vmem:[#allocation2 + $0x468] sm:$0xff]
    %v280 = vld [vmem:[#allocation2 + $0x470] sm:$0xff]
    %v281 = vld [vmem:[#allocation2 + $0x478] sm:$0xff]
    %v282 = vld [vmem:[#allocation2 + $0x480] sm:$0xff]
    %v283 = vld [vmem:[#allocation2 + $0x488] sm:$0xff]
    %v284 = vld [vmem:[#allocation2 + $0x490] sm:$0xff]
    %v285 = vld [vmem:[#allocation2 + $0x498] sm:$0xff]
    %v286 = vld [vmem:[#allocation2 + $0x4a0] sm:$0xff]
    %v287 = vld [vmem:[#allocation2 + $0x4a8] sm:$0xff]
    %v288 = vld [vmem:[#allocation2 + $0x4b0] sm:$0xff]
    %v289 = vld [vmem:[#allocation2 + $0x4b8] sm:$0xff]
    %v290 = vld [vmem:[#allocation2 + $0x4c0] sm:$0xff]
    %v291 = vld [vmem:[#allocation2 + $0x4c8] sm:$0xff]
    %v292 = vld [vmem:[#allocation2 + $0x4d0] sm:$0xff]
    %v293 = vld [vmem:[#allocation2 + $0x4d8] sm:$0xff]
    %v294 = vld [vmem:[#allocation2 + $0x4e0] sm:$0xff]
    %v295 = vld [vmem:[#allocation2 + $0x4e8] sm:$0xff]
    %v296 = vld [vmem:[#allocation2 + $0x4f0] sm:$0xff]
    %v297 = vld [vmem:[#allocation2 + $0x4f8] sm:$0xff]
    %v298 = vld [vmem:[#allocation2 + $0x500] sm:$0xff]
    %v299 = vld [vmem:[#allocation2 + $0x508] sm:$0xff]
    %v300 = vld [vmem:[#allocation2 + $0x510] sm:$0xff]
    %v301 = vld [vmem:[#allocation2 + $0x518] sm:$0xff]
    %v302 = vld [vmem:[#allocation2 + $0x520] sm:$0xff]
    %v303 = vld [vmem:[#allocation2 + $0x528] sm:$0xff]
    %v304 = vld [vmem:[#allocation2 + $0x530] sm:$0xff]
    %v305 = vld [vmem:[#allocation2 + $0x538] sm:$0xff]
    %v306 = vld [vmem:[#allocation2 + $0x540] sm:$0xff]
    %v307 = vld [vmem:[#allocation2 + $0x548] sm:$0xff]
    %v308 = vld [vmem:[#allocation2 + $0x550] sm:$0xff]
    %v309 = vld [vmem:[#allocation2 + $0x558] sm:$0xff]
    %v310 = vld [vmem:[#allocation2 + $0x560] sm:$0xff]
    %v311 = vld [vmem:[#allocation2 + $0x568] sm:$0xff]
    %v312 = vld [vmem:[#allocation2 + $0x570] sm:$0xff]
    %v313 = vld [vmem:[#allocation2 + $0x578] sm:$0xff]
    %v314 = vld [vmem:[#allocation2 + $0x580] sm:$0xff]
    %v315 = vld [vmem:[#allocation2 + $0x588] sm:$0xff]
    %v316 = vld [vmem:[#allocation2 + $0x590] sm:$0xff]
    %v317 = vld [vmem:[#allocation2 + $0x598] sm:$0xff]
    %v318 = vld [vmem:[#allocation2 + $0x5a0] sm:$0xff]
    %v319 = vld [vmem:[#allocation2 + $0x5a8] sm:$0xff]
    %v320 = vld [vmem:[#allocation2 + $0x5b0] sm:$0xff]
    %v321 = vld [vmem:[#allocation2 + $0x5b8] sm:$0xff]
    %v322 = vld [vmem:[#allocation2 + $0x5c0] sm:$0xff]
    %v323 = vld [vmem:[#allocation2 + $0x5c8] sm:$0xff]
    %v324 = vld [vmem:[#allocation2 + $0x5d0] sm:$0xff]
    %v325 = vld [vmem:[#allocation2 + $0x5d8] sm:$0xff]
    %v326 = vld [vmem:[#allocation2 + $0x5e0] sm:$0xff]
    %v327 = vld [vmem:[#allocation2 + $0x5e8] sm:$0xff]
    %v328 = vld [vmem:[#allocation2 + $0x5f0] sm:$0xff]
    %v329 = vld [vmem:[#allocation2 + $0x5f8] sm:$0xff]
    %v330 = vld [vmem:[#allocation2 + $0x600] sm:$0xff]
    %v331 = vld [vmem:[#allocation2 + $0x608] sm:$0xff]
    %v332 = vld [vmem:[#allocation2 + $0x610] sm:$0xff]
    %v333 = vld [vmem:[#allocation2 + $0x618] sm:$0xff]
    %v334 = vld [vmem:[#allocation2 + $0x620] sm:$0xff]
    %v335 = vld [vmem:[#allocation2 + $0x628] sm:$0xff]
    %v336 = vld [vmem:[#allocation2 + $0x630] sm:$0xff]
    %v337 = vld [vmem:[#allocation2 + $0x638] sm:$0xff]
    %v338 = vld [vmem:[#allocation2 + $0x640] sm:$0xff]
    %v339 = vld [vmem:[#allocation2 + $0x648] sm:$0xff]
    %v340 = vld [vmem:[#allocation2 + $0x650] sm:$0xff]
    %v341 = vld [vmem:[#allocation2 + $0x658] sm:$0xff]
    %v342 = vld [vmem:[#allocation2 + $0x660] sm:$0xff]
    %v343 = vld [vmem:[#allocation2 + $0x668] sm:$0xff]
    %v344 = vld [vmem:[#allocation2 + $0x670] sm:$0xff]
    %v345 = vld [vmem:[#allocation2 + $0x678] sm:$0xff]
    %v346 = vld [vmem:[#allocation2 + $0x680] sm:$0xff]
    %v347 = vld [vmem:[#allocation2 + $0x688] sm:$0xff]
    %v348 = vld [vmem:[#allocation2 + $0x690] sm:$0xff]
    %v349 = vld [vmem:[#allocation2 + $0x698] sm:$0xff]
    %v350 = vld [vmem:[#allocation2 + $0x6a0] sm:$0xff]
    %v351 = vld [vmem:[#allocation2 + $0x6a8] sm:$0xff]
    %v352 = vld [vmem:[#allocation2 + $0x6b0] sm:$0xff]
    %v353 = vld [vmem:[#allocation2 + $0x6b8] sm:$0xff]
    %v354 = vld [vmem:[#allocation2 + $0x6c0] sm:$0xff]
    %v355 = vld [vmem:[#allocation2 + $0x6c8] sm:$0xff]
    %v356 = vld [vmem:[#allocation2 + $0x6d0] sm:$0xff]
    %v357 = vld [vmem:[#allocation2 + $0x6d8] sm:$0xff]
    %v358 = vld [vmem:[#allocation2 + $0x6e0] sm:$0xff]
    %v359 = vld [vmem:[#allocation2 + $0x6e8] sm:$0xff]
    %v360 = vld [vmem:[#allocation2 + $0x6f0] sm:$0xff]
    %v361 = vld [vmem:[#allocation2 + $0x6f8] sm:$0xff]
    %v362 = vld [vmem:[#allocation2 + $0x700] sm:$0xff]
    %v363 = vld [vmem:[#allocation2 + $0x708] sm:$0xff]
    %v364 = vld [vmem:[#allocation2 + $0x710] sm:$0xff]
    %v365 = vld [vmem:[#allocation2 + $0x718] sm:$0xff]
    %v366 = vld [vmem:[#allocation2 + $0x720] sm:$0xff]
    %v367 = vld [vmem:[#allocation2 + $0x728] sm:$0xff]
    %v368 = vld [vmem:[#allocation2 + $0x730] sm:$0xff]
    %v369 = vld [vmem:[#allocation2 + $0x738] sm:$0xff]
    %v370 = vld [vmem:[#allocation2 + $0x740] sm:$0xff]
    %v371 = vld [vmem:[#allocation2 + $0x748] sm:$0xff]
    %v372 = vld [vmem:[#allocation2 + $0x750] sm:$0xff]
    %v373 = vld [vmem:[#allocation2 + $0x758] sm:$0xff]
    %v374 = vld [vmem:[#allocation2 + $0x760] sm:$0xff]
    %v375 = vld [vmem:[#allocation2 + $0x768] sm:$0xff]
    %v376 = vld [vmem:[#allocation2 + $0x770] sm:$0xff]
    %v377 = vld [vmem:[#allocation2 + $0x778] sm:$0xff]
    %v378 = vld [vmem:[#allocation2 + $0x780] sm:$0xff]
    %v379 = vld [vmem:[#allocation2 + $0x788] sm:$0xff]
    %v380 = vld [vmem:[#allocation2 + $0x790] sm:$0xff]
    %v381 = vld [vmem:[#allocation2 + $0x798] sm:$0xff]
    %v382 = vld [vmem:[#allocation2 + $0x7a0] sm:$0xff]
    %v383 = vld [vmem:[#allocation2 + $0x7a8] sm:$0xff]
    %v384 = vld [vmem:[#allocation2 + $0x7b0] sm:$0xff]
    %v385 = vld [vmem:[#allocation2 + $0x7b8] sm:$0xff]
    %v386 = vld [vmem:[#allocation2 + $0x7c0] sm:$0xff]
    %v387 = vld [vmem:[#allocation2 + $0x7c8] sm:$0xff]
    %v388 = vld [vmem:[#allocation2 + $0x7d0] sm:$0xff]
    %v389 = vld [vmem:[#allocation2 + $0x7d8] sm:$0xff]
    %v390 = vld [vmem:[#allocation2 + $0x7e0] sm:$0xff]
    %v391 = vld [vmem:[#allocation2 + $0x7e8] sm:$0xff]
    %v392 = vld [vmem:[#allocation2 + $0x7f0] sm:$0xff]
    %v393 = vld [vmem:[#allocation2 + $0x7f8] sm:$0xff]
    %v394 = vld [vmem:[#allocation2 + $0x800] sm:$0xff]
    %v395 = vld [vmem:[#allocation2 + $0x808] sm:$0xff]
    %v396 = vld [vmem:[#allocation2 + $0x810] sm:$0xff]
    %v397 = vld [vmem:[#allocation2 + $0x818] sm:$0xff]
    %v398 = vld [vmem:[#allocation2 + $0x820] sm:$0xff]
    %v399 = vld [vmem:[#allocation2 + $0x828] sm:$0xff]
    %v400 = vld [vmem:[#allocation2 + $0x830] sm:$0xff]
    %v401 = vld [vmem:[#allocation2 + $0x838] sm:$0xff]
    %v402 = vld [vmem:[#allocation2 + $0x840] sm:$0xff]
    %v403 = vld [vmem:[#allocation2 + $0x848] sm:$0xff]
    %v404 = vld [vmem:[#allocation2 + $0x850] sm:$0xff]
    %v405 = vld [vmem:[#allocation2 + $0x858] sm:$0xff]
    %v406 = vld [vmem:[#allocation2 + $0x860] sm:$0xff]
    %v407 = vld [vmem:[#allocation2 + $0x868] sm:$0xff]
    %v408 = vld [vmem:[#allocation2 + $0x870] sm:$0xff]
    %v409 = vld [vmem:[#allocation2 + $0x878] sm:$0xff]
    %v410 = vld [vmem:[#allocation2 + $0x880] sm:$0xff]
    %v411 = vld [vmem:[#allocation2 + $0x888] sm:$0xff]
    %v412 = vld [vmem:[#allocation2 + $0x890] sm:$0xff]
    %v413 = vld [vmem:[#allocation2 + $0x898] sm:$0xff]
    %v414 = vld [vmem:[#allocation2 + $0x8a0] sm:$0xff]
    %v415 = vld [vmem:[#allocation2 + $0x8a8] sm:$0xff]
    %v416 = vld [vmem:[#allocation2 + $0x8b0] sm:$0xff]
    %v417 = vld [vmem:[#allocation2 + $0x8b8] sm:$0xff]
    %v418 = vld [vmem:[#allocation2 + $0x8c0] sm:$0xff]
    %v419 = vld [vmem:[#allocation2 + $0x8c8] sm:$0xff]
    %v420 = vld [vmem:[#allocation2 + $0x8d0] sm:$0xff]
    %v421 = vld [vmem:[#allocation2 + $0x8d8] sm:$0xff]
    %v422 = vld [vmem:[#allocation2 + $0x8e0] sm:$0xff]
    %v423 = vld [vmem:[#allocation2 + $0x8e8] sm:$0xff]
    %v424 = vld [vmem:[#allocation2 + $0x8f0] sm:$0xff]
    %v425 = vld [vmem:[#allocation2 + $0x8f8] sm:$0xff]
    %v426 = vld [vmem:[#allocation2 + $0x900] sm:$0xff]
    %v427 = vld [vmem:[#allocation2 + $0x908] sm:$0xff]
    %v428 = vld [vmem:[#allocation2 + $0x910] sm:$0xff]
    %v429 = vld [vmem:[#allocation2 + $0x918] sm:$0xff]
    %v430 = vld [vmem:[#allocation2 + $0x920] sm:$0xff]
    %v431 = vld [vmem:[#allocation2 + $0x928] sm:$0xff]
    %v432 = vld [vmem:[#allocation2 + $0x930] sm:$0xff]
    %v433 = vld [vmem:[#allocation2 + $0x938] sm:$0xff]
    %v434 = vld [vmem:[#allocation2 + $0x940] sm:$0xff]
    %v435 = vld [vmem:[#allocation2 + $0x948] sm:$0xff]
    %v436 = vld [vmem:[#allocation2 + $0x950] sm:$0xff]
    %v437 = vld [vmem:[#allocation2 + $0x958] sm:$0xff]
    %v438 = vld [vmem:[#allocation2 + $0x960] sm:$0xff]
    %v439 = vld [vmem:[#allocation2 + $0x968] sm:$0xff]
    %v440 = vld [vmem:[#allocation2 + $0x970] sm:$0xff]
    %v441 = vld [vmem:[#allocation2 + $0x978] sm:$0xff]
    %v442 = vld [vmem:[#allocation2 + $0x980] sm:$0xff]
    %v443 = vld [vmem:[#allocation2 + $0x988] sm:$0xff]
    %v444 = vld [vmem:[#allocation2 + $0x990] sm:$0xff]
    %v445 = vld [vmem:[#allocation2 + $0x998] sm:$0xff]
    %v446 = vld [vmem:[#allocation2 + $0x9a0] sm:$0xff]
    %v447 = vld [vmem:[#allocation2 + $0x9a8] sm:$0xff]
    %v448 = vld [vmem:[#allocation2 + $0x9b0] sm:$0xff]
    %v449 = vld [vmem:[#allocation2 + $0x9b8] sm:$0xff]
    %v450 = vld [vmem:[#allocation2 + $0x9c0] sm:$0xff]
    %v451 = vld [vmem:[#allocation2 + $0x9c8] sm:$0xff]
    %v452 = vld [vmem:[#allocation2 + $0x9d0] sm:$0xff]
    %v453 = vld [vmem:[#allocation2 + $0x9d8] sm:$0xff]
    %v454 = vld [vmem:[#allocation2 + $0x9e0] sm:$0xff]
    %v455 = vld [vmem:[#allocation2 + $0x9e8] sm:$0xff]
    %v456 = vld [vmem:[#allocation2 + $0x9f0] sm:$0xff]
    %v457 = vld [vmem:[#allocation2 + $0x9f8] sm:$0xff]
    %v458 = vld [vmem:[#allocation2 + $0xa00] sm:$0xff]
    %v459 = vld [vmem:[#allocation2 + $0xa08] sm:$0xff]
    %v460 = vld [vmem:[#allocation2 + $0xa10] sm:$0xff]
    %v461 = vld [vmem:[#allocation2 + $0xa18] sm:$0xff]
    %v462 = vld [vmem:[#allocation2 + $0xa20] sm:$0xff]
    %v463 = vld [vmem:[#allocation2 + $0xa28] sm:$0xff]
    %v464 = vld [vmem:[#allocation2 + $0xa30] sm:$0xff]
    %v465 = vld [vmem:[#allocation2 + $0xa38] sm:$0xff]
    %v466 = vld [vmem:[#allocation2 + $0xa40] sm:$0xff]
    %v467 = vld [vmem:[#allocation2 + $0xa48] sm:$0xff]
    %v468 = vld [vmem:[#allocation2 + $0xa50] sm:$0xff]
    %v469 = vld [vmem:[#allocation2 + $0xa58] sm:$0xff]
    %v470 = vld [vmem:[#allocation2 + $0xa60] sm:$0xff]
    %v471 = vld [vmem:[#allocation2 + $0xa68] sm:$0xff]
    %v472 = vld [vmem:[#allocation2 + $0xa70] sm:$0xff]
    %v473 = vld [vmem:[#allocation2 + $0xa78] sm:$0xff]
    %v474 = vld [vmem:[#allocation2 + $0xa80] sm:$0xff]
    %v475 = vld [vmem:[#allocation2 + $0xa88] sm:$0xff]
    %v476 = vld [vmem:[#allocation2 + $0xa90] sm:$0xff]
    %v477 = vld [vmem:[#allocation2 + $0xa98] sm:$0xff]
    %v478 = vld [vmem:[#allocation2 + $0xaa0] sm:$0xff]
    %v479 = vld [vmem:[#allocation2 + $0xaa8] sm:$0xff]
    %v480 = vld [vmem:[#allocation2 + $0xab0] sm:$0xff]
    %v481 = vld [vmem:[#allocation2 + $0xab8] sm:$0xff]
    %v482 = vld [vmem:[#allocation2 + $0xac0] sm:$0xff]
    %v483 = vld [vmem:[#allocation2 + $0xac8] sm:$0xff]
    %v484 = vld [vmem:[#allocation2 + $0xad0] sm:$0xff]
    %v485 = vld [vmem:[#allocation2 + $0xad8] sm:$0xff]
    %v486 = vld [vmem:[#allocation2 + $0xae0] sm:$0xff]
    %v487 = vld [vmem:[#allocation2 + $0xae8] sm:$0xff]
    %v488 = vld [vmem:[#allocation2 + $0xaf0] sm:$0xff]
    %v489 = vld [vmem:[#allocation2 + $0xaf8] sm:$0xff]
    %v490 = vld [vmem:[#allocation2 + $0xb00] sm:$0xff]
    %v491 = vld [vmem:[#allocation2 + $0xb08] sm:$0xff]
    %v492 = vld [vmem:[#allocation2 + $0xb10] sm:$0xff]
    %v493 = vld [vmem:[#allocation2 + $0xb18] sm:$0xff]
    %v494 = vld [vmem:[#allocation2 + $0xb20] sm:$0xff]
    %v495 = vld [vmem:[#allocation2 + $0xb28] sm:$0xff]
    %v496 = vld [vmem:[#allocation2 + $0xb30] sm:$0xff]
    %v497 = vld [vmem:[#allocation2 + $0xb38] sm:$0xff]
    %v498 = vld [vmem:[#allocation2 + $0xb40] sm:$0xff]
    %v499 = vld [vmem:[#allocation2 + $0xb48] sm:$0xff]
    %v500 = vld [vmem:[#allocation2 + $0xb50] sm:$0xff]
    %v501 = vld [vmem:[#allocation2 + $0xb58] sm:$0xff]
    %v502 = vld [vmem:[#allocation2 + $0xb60] sm:$0xff]
    %v503 = vld [vmem:[#allocation2 + $0xb68] sm:$0xff]
    %v504 = vld [vmem:[#allocation2 + $0xb70] sm:$0xff]
    %v505 = vld [vmem:[#allocation2 + $0xb78] sm:$0xff]
    %v506 = vld [vmem:[#allocation2 + $0xb80] sm:$0xff]
    %v507 = vld [vmem:[#allocation2 + $0xb88] sm:$0xff]
    %v508 = vld [vmem:[#allocation2 + $0xb90] sm:$0xff]
    %v509 = vld [vmem:[#allocation2 + $0xb98] sm:$0xff]
    %v510 = vld [vmem:[#allocation2 + $0xba0] sm:$0xff]
    %v511 = vld [vmem:[#allocation2 + $0xba8] sm:$0xff]
    %v512 = vld [vmem:[#allocation2 + $0xbb0] sm:$0xff]
    %v513 = vld [vmem:[#allocation2 + $0xbb8] sm:$0xff]
    %v514 = vld [vmem:[#allocation2 + $0xbc0] sm:$0xff]
    %v515 = vld [vmem:[#allocation2 + $0xbc8] sm:$0xff]
    %v516 = vld [vmem:[#allocation2 + $0xbd0] sm:$0xff]
    %v517 = vld [vmem:[#allocation2 + $0xbd8] sm:$0xff]
    %v518 = vld [vmem:[#allocation2 + $0xbe0] sm:$0xff]
    %v519 = vld [vmem:[#allocation2 + $0xbe8] sm:$0xff]
    %v520 = vld [vmem:[#allocation2 + $0xbf0] sm:$0xff]
    %v521 = vld [vmem:[#allocation2 + $0xbf8] sm:$0xff]
    %v522 = vld [vmem:[#allocation2 + $0xc00] sm:$0xff]
    %v523 = vld [vmem:[#allocation2 + $0xc08] sm:$0xff]
    %v524 = vld [vmem:[#allocation2 + $0xc10] sm:$0xff]
    %v525 = vld [vmem:[#allocation2 + $0xc18] sm:$0xff]
    %v526 = vld [vmem:[#allocation2 + $0xc20] sm:$0xff]
    %v527 = vld [vmem:[#allocation2 + $0xc28] sm:$0xff]
    %v528 = vld [vmem:[#allocation2 + $0xc30] sm:$0xff]
    %v529 = vld [vmem:[#allocation2 + $0xc38] sm:$0xff]
    %v530 = vld [vmem:[#allocation2 + $0xc40] sm:$0xff]
    %v531 = vld [vmem:[#allocation2 + $0xc48] sm:$0xff]
    %v532 = vld [vmem:[#allocation2 + $0xc50] sm:$0xff]
    %v533 = vld [vmem:[#allocation2 + $0xc58] sm:$0xff]
    %v534 = vld [vmem:[#allocation2 + $0xc60] sm:$0xff]
    %v535 = vld [vmem:[#allocation2 + $0xc68] sm:$0xff]
    %v536 = vld [vmem:[#allocation2 + $0xc70] sm:$0xff]
    %v537 = vld [vmem:[#allocation2 + $0xc78] sm:$0xff]
    %v538 = vld [vmem:[#allocation2 + $0xc80] sm:$0xff]
    %v539 = vld [vmem:[#allocation2 + $0xc88] sm:$0xff]
    %v540 = vld [vmem:[#allocation2 + $0xc90] sm:$0xff]
    %v541 = vld [vmem:[#allocation2 + $0xc98] sm:$0xff]
    %v542 = vld [vmem:[#allocation2 + $0xca0] sm:$0xff]
    %v543 = vld [vmem:[#allocation2 + $0xca8] sm:$0xff]
    %v544 = vld [vmem:[#allocation2 + $0xcb0] sm:$0xff]
    %v545 = vld [vmem:[#allocation2 + $0xcb8] sm:$0xff]
    %v546 = vld [vmem:[#allocation2 + $0xcc0] sm:$0xff]
    %v547 = vld [vmem:[#allocation2 + $0xcc8] sm:$0xff]
    %v548 = vld [vmem:[#allocation2 + $0xcd0] sm:$0xff]
    %v549 = vld [vmem:[#allocation2 + $0xcd8] sm:$0xff]
    %v550 = vld [vmem:[#allocation2 + $0xce0] sm:$0xff]
    %v551 = vld [vmem:[#allocation2 + $0xce8] sm:$0xff]
    %v552 = vld [vmem:[#allocation2 + $0xcf0] sm:$0xff]
    %v553 = vld [vmem:[#allocation2 + $0xcf8] sm:$0xff]
    %v554 = vld [vmem:[#allocation2 + $0xd00] sm:$0xff]
    %v555 = vld [vmem:[#allocation2 + $0xd08] sm:$0xff]
    %v556 = vld [vmem:[#allocation2 + $0xd10] sm:$0xff]
    %v557 = vld [vmem:[#allocation2 + $0xd18] sm:$0xff]
    %v558 = vld [vmem:[#allocation2 + $0xd20] sm:$0xff]
    %v559 = vld [vmem:[#allocation2 + $0xd28] sm:$0xff]
    %v560 = vld [vmem:[#allocation2 + $0xd30] sm:$0xff]
    %v561 = vld [vmem:[#allocation2 + $0xd38] sm:$0xff]
    %v562 = vld [vmem:[#allocation2 + $0xd40] sm:$0xff]
    %v563 = vld [vmem:[#allocation2 + $0xd48] sm:$0xff]
    %v564 = vld [vmem:[#allocation2 + $0xd50] sm:$0xff]
    %v565 = vld [vmem:[#allocation2 + $0xd58] sm:$0xff]
    %v566 = vld [vmem:[#allocation2 + $0xd60] sm:$0xff]
    %v567 = vld [vmem:[#allocation2 + $0xd68] sm:$0xff]
    %v568 = vld [vmem:[#allocation2 + $0xd70] sm:$0xff]
    %v569 = vld [vmem:[#allocation2 + $0xd78] sm:$0xff]
    %v570 = vld [vmem:[#allocation2 + $0xd80] sm:$0xff]
    %v571 = vld [vmem:[#allocation2 + $0xd88] sm:$0xff]
    %v572 = vld [vmem:[#allocation2 + $0xd90] sm:$0xff]
    %v573 = vld [vmem:[#allocation2 + $0xd98] sm:$0xff]
    %v574 = vld [vmem:[#allocation2 + $0xda0] sm:$0xff]
    %v575 = vld [vmem:[#allocation2 + $0xda8] sm:$0xff]
    %v576 = vld [vmem:[#allocation2 + $0xdb0] sm:$0xff]
    %v577 = vld [vmem:[#allocation2 + $0xdb8] sm:$0xff]
    %v578 = vld [vmem:[#allocation2 + $0xdc0] sm:$0xff]
    %v579 = vld [vmem:[#allocation2 + $0xdc8] sm:$0xff]
    %v580 = vld [vmem:[#allocation2 + $0xdd0] sm:$0xff]
    %v581 = vld [vmem:[#allocation2 + $0xdd8] sm:$0xff]
    %v582 = vld [vmem:[#allocation2 + $0xde0] sm:$0xff]
    %v583 = vld [vmem:[#allocation2 + $0xde8] sm:$0xff]
    %v584 = vld [vmem:[#allocation2 + $0xdf0] sm:$0xff]
    %v585 = vld [vmem:[#allocation2 + $0xdf8] sm:$0xff]
    %v586 = vld [vmem:[#allocation2 + $0xe00] sm:$0xff]
    %v587 = vld [vmem:[#allocation2 + $0xe08] sm:$0xff]
    %v588 = vld [vmem:[#allocation2 + $0xe10] sm:$0xff]
    %v589 = vld [vmem:[#allocation2 + $0xe18] sm:$0xff]
    %v590 = vld [vmem:[#allocation2 + $0xe20] sm:$0xff]
    %v591 = vld [vmem:[#allocation2 + $0xe28] sm:$0xff]
    %v592 = vld [vmem:[#allocation2 + $0xe30] sm:$0xff]
    %v593 = vld [vmem:[#allocation2 + $0xe38] sm:$0xff]
    %v594 = vld [vmem:[#allocation2 + $0xe40] sm:$0xff]
    %v595 = vld [vmem:[#allocation2 + $0xe48] sm:$0xff]
    %v596 = vld [vmem:[#allocation2 + $0xe50] sm:$0xff]
    %v597 = vld [vmem:[#allocation2 + $0xe58] sm:$0xff]
    %v598 = vld [vmem:[#allocation2 + $0xe60] sm:$0xff]
    %v599 = vld [vmem:[#allocation2 + $0xe68] sm:$0xff]
    %v600 = vld [vmem:[#allocation2 + $0xe70] sm:$0xff]
    %v601 = vld [vmem:[#allocation2 + $0xe78] sm:$0xff]
    %v602 = vld [vmem:[#allocation2 + $0xe80] sm:$0xff]
    %v603 = vld [vmem:[#allocation2 + $0xe88] sm:$0xff]
    %v604 = vld [vmem:[#allocation2 + $0xe90] sm:$0xff]
    %v605 = vld [vmem:[#allocation2 + $0xe98] sm:$0xff]
    %v606 = vld [vmem:[#allocation2 + $0xea0] sm:$0xff]
    %v607 = vld [vmem:[#allocation2 + $0xea8] sm:$0xff]
    %v608 = vld [vmem:[#allocation2 + $0xeb0] sm:$0xff]
    %v609 = vld [vmem:[#allocation2 + $0xeb8] sm:$0xff]
    %v610 = vld [vmem:[#allocation2 + $0xec0] sm:$0xff]
    %v611 = vld [vmem:[#allocation2 + $0xec8] sm:$0xff]
    %v612 = vld [vmem:[#allocation2 + $0xed0] sm:$0xff]
    %v613 = vld [vmem:[#allocation2 + $0xed8] sm:$0xff]
    %v614 = vld [vmem:[#allocation2 + $0xee0] sm:$0xff]
    %v615 = vld [vmem:[#allocation2 + $0xee8] sm:$0xff]
    %v616 = vld [vmem:[#allocation2 + $0xef0] sm:$0xff]
    %v617 = vld [vmem:[#allocation2 + $0xef8] sm:$0xff]
    %v618 = vld [vmem:[#allocation2 + $0xf00] sm:$0xff]
    %v619 = vld [vmem:[#allocation2 + $0xf08] sm:$0xff]
    %v620 = vld [vmem:[#allocation2 + $0xf10] sm:$0xff]
    %v621 = vld [vmem:[#allocation2 + $0xf18] sm:$0xff]
    %v622 = vld [vmem:[#allocation2 + $0xf20] sm:$0xff]
    %v623 = vld [vmem:[#allocation2 + $0xf28] sm:$0xff]
    %v624 = vld [vmem:[#allocation2 + $0xf30] sm:$0xff]
    %v625 = vld [vmem:[#allocation2 + $0xf38] sm:$0xff]
    %v626 = vld [vmem:[#allocation2 + $0xf40] sm:$0xff]
    %v627 = vld [vmem:[#allocation2 + $0xf48] sm:$0xff]
    %v628 = vld [vmem:[#allocation2 + $0xf50] sm:$0xff]
    %v629 = vld [vmem:[#allocation2 + $0xf58] sm:$0xff]
    %v630 = vld [vmem:[#allocation2 + $0xf60] sm:$0xff]
    %v631 = vld [vmem:[#allocation2 + $0xf68] sm:$0xff]
    %v632 = vld [vmem:[#allocation2 + $0xf70] sm:$0xff]
    %v633 = vld [vmem:[#allocation2 + $0xf78] sm:$0xff]
    %v634 = vld [vmem:[#allocation2 + $0xf80] sm:$0xff]
    %v635 = vld [vmem:[#allocation2 + $0xf88] sm:$0xff]
    %v636 = vld [vmem:[#allocation2 + $0xf90] sm:$0xff]
    %v637 = vld [vmem:[#allocation2 + $0xf98] sm:$0xff]
    %v638 = vld [vmem:[#allocation2 + $0xfa0] sm:$0xff]
    %v639 = vld [vmem:[#allocation2 + $0xfa8] sm:$0xff]
    %v640 = vld [vmem:[#allocation2 + $0xfb0] sm:$0xff]
    %v641 = vld [vmem:[#allocation2 + $0xfb8] sm:$0xff]
    %v642 = vld [vmem:[#allocation2 + $0xfc0] sm:$0xff]
    %v643 = vld [vmem:[#allocation2 + $0xfc8] sm:$0xff]
    %v644 = vld [vmem:[#allocation2 + $0xfd0] sm:$0xff]
    %v645 = vld [vmem:[#allocation2 + $0xfd8] sm:$0xff]
    %v646 = vld [vmem:[#allocation2 + $0xfe0] sm:$0xff]
    %v647 = vld [vmem:[#allocation2 + $0xfe8] sm:$0xff]
    %v648 = vld [vmem:[#allocation2 + $0xff0] sm:$0xff]
    %v649 = vld [vmem:[#allocation2 + $0xff8] sm:$0xff]
    %v650 = vld [vmem:[#allocation2 + $0x1000] sm:$0xff]
    %v651 = vld [vmem:[#allocation2 + $0x1008] sm:$0xff]
    %v652 = vld [vmem:[#allocation2 + $0x1010] sm:$0xff]
    %v653 = vld [vmem:[#allocation2 + $0x1018] sm:$0xff]
    %v654 = vld [vmem:[#allocation2 + $0x1020] sm:$0xff]
    %v655 = vld [vmem:[#allocation2 + $0x1028] sm:$0xff]
    %v656 = vld [vmem:[#allocation2 + $0x1030] sm:$0xff]
    %v657 = vld [vmem:[#allocation2 + $0x1038] sm:$0xff]
    %v658 = vld [vmem:[#allocation2 + $0x1040] sm:$0xff]
    %v659 = vld [vmem:[#allocation2 + $0x1048] sm:$0xff]
    %v660 = vld [vmem:[#allocation2 + $0x1050] sm:$0xff]
    %v661 = vld [vmem:[#allocation2 + $0x1058] sm:$0xff]
    %v662 = vld [vmem:[#allocation2 + $0x1060] sm:$0xff]
    %v663 = vld [vmem:[#allocation2 + $0x1068] sm:$0xff]
    %v664 = vld [vmem:[#allocation2 + $0x1070] sm:$0xff]
    %v665 = vld [vmem:[#allocation2 + $0x1078] sm:$0xff]
    %v666 = vld [vmem:[#allocation2 + $0x1080] sm:$0xff]
    %v667 = vld [vmem:[#allocation2 + $0x1088] sm:$0xff]
    %v668 = vld [vmem:[#allocation2 + $0x1090] sm:$0xff]
    %v669 = vld [vmem:[#allocation2 + $0x1098] sm:$0xff]
    %v670 = vld [vmem:[#allocation2 + $0x10a0] sm:$0xff]
    %v671 = vld [vmem:[#allocation2 + $0x10a8] sm:$0xff]
    %v672 = vld [vmem:[#allocation2 + $0x10b0] sm:$0xff]
    %v673 = vld [vmem:[#allocation2 + $0x10b8] sm:$0xff]
    %v674 = vld [vmem:[#allocation2 + $0x10c0] sm:$0xff]
    %v675 = vld [vmem:[#allocation2 + $0x10c8] sm:$0xff]
    %v676 = vld [vmem:[#allocation2 + $0x10d0] sm:$0xff]
    %v677 = vld [vmem:[#allocation2 + $0x10d8] sm:$0xff]
    %v678 = vld [vmem:[#allocation2 + $0x10e0] sm:$0xff]
    %v679 = vld [vmem:[#allocation2 + $0x10e8] sm:$0xff]
    %v680 = vld [vmem:[#allocation2 + $0x10f0] sm:$0xff]
    %v681 = vld [vmem:[#allocation2 + $0x10f8] sm:$0xff]
    %v682 = vld [vmem:[#allocation2 + $0x1100] sm:$0xff]
    %v683 = vld [vmem:[#allocation2 + $0x1108] sm:$0xff]
    %v684 = vld [vmem:[#allocation2 + $0x1110] sm:$0xff]
    %v685 = vld [vmem:[#allocation2 + $0x1118] sm:$0xff]
    %v686 = vld [vmem:[#allocation2 + $0x1120] sm:$0xff]
    %v687 = vld [vmem:[#allocation2 + $0x1128] sm:$0xff]
    %v688 = vld [vmem:[#allocation2 + $0x1130] sm:$0xff]
    %v689 = vld [vmem:[#allocation2 + $0x1138] sm:$0xff]
    %v690 = vld [vmem:[#allocation2 + $0x1140] sm:$0xff]
    %v691 = vld [vmem:[#allocation2 + $0x1148] sm:$0xff]
    %v692 = vld [vmem:[#allocation2 + $0x1150] sm:$0xff]
    %v693 = vld [vmem:[#allocation2 + $0x1158] sm:$0xff]
    %v694 = vld [vmem:[#allocation2 + $0x1160] sm:$0xff]
    %v695 = vld [vmem:[#allocation2 + $0x1168] sm:$0xff]
    %v696 = vld [vmem:[#allocation2 + $0x1170] sm:$0xff]
    %v697 = vld [vmem:[#allocation2 + $0x1178] sm:$0xff]
    %v698 = vld [vmem:[#allocation2 + $0x1180] sm:$0xff]
    %v699 = vld [vmem:[#allocation2 + $0x1188] sm:$0xff]
    %v700 = vld [vmem:[#allocation2 + $0x1190] sm:$0xff]
    %v701 = vld [vmem:[#allocation2 + $0x1198] sm:$0xff]
    %v702 = vld [vmem:[#allocation2 + $0x11a0] sm:$0xff]
    %v703 = vld [vmem:[#allocation2 + $0x11a8] sm:$0xff]
    %v704 = vld [vmem:[#allocation2 + $0x11b0] sm:$0xff]
    %v705 = vld [vmem:[#allocation2 + $0x11b8] sm:$0xff]
    %v706 = vld [vmem:[#allocation2 + $0x11c0] sm:$0xff]
    %v707 = vld [vmem:[#allocation2 + $0x11c8] sm:$0xff]
    %v708 = vld [vmem:[#allocation2 + $0x11d0] sm:$0xff]
    %v709 = vld [vmem:[#allocation2 + $0x11d8] sm:$0xff]
    %v710 = vld [vmem:[#allocation2 + $0x11e0] sm:$0xff]
    %v711 = vld [vmem:[#allocation2 + $0x11e8] sm:$0xff]
    %v712 = vld [vmem:[#allocation2 + $0x11f0] sm:$0xff]
    %v713 = vld [vmem:[#allocation2 + $0x11f8] sm:$0xff]
    %v714 = vld [vmem:[#allocation2 + $0x1200] sm:$0xff]
    %v715 = vld [vmem:[#allocation2 + $0x1208] sm:$0xff]
    %v716 = vld [vmem:[#allocation2 + $0x1210] sm:$0xff]
    %v717 = vld [vmem:[#allocation2 + $0x1218] sm:$0xff]
    %v718 = vld [vmem:[#allocation2 + $0x1220] sm:$0xff]
    %v719 = vld [vmem:[#allocation2 + $0x1228] sm:$0xff]
    %v720 = vld [vmem:[#allocation2 + $0x1230] sm:$0xff]
    %v721 = vld [vmem:[#allocation2 + $0x1238] sm:$0xff]
    %v722 = vld [vmem:[#allocation2 + $0x1240] sm:$0xff]
    %v723 = vld [vmem:[#allocation2 + $0x1248] sm:$0xff]
    %v724 = vld [vmem:[#allocation2 + $0x1250] sm:$0xff]
    %v725 = vld [vmem:[#allocation2 + $0x1258] sm:$0xff]
    %v726 = vld [vmem:[#allocation2 + $0x1260] sm:$0xff]
    %v727 = vld [vmem:[#allocation2 + $0x1268] sm:$0xff]
    %v728 = vld [vmem:[#allocation2 + $0x1270] sm:$0xff]
    %v729 = vld [vmem:[#allocation2 + $0x1278] sm:$0xff]
    %v730 = vld [vmem:[#allocation2 + $0x1280] sm:$0xff]
    %v731 = vld [vmem:[#allocation2 + $0x1288] sm:$0xff]
    %v732 = vld [vmem:[#allocation2 + $0x1290] sm:$0xff]
    %v733 = vld [vmem:[#allocation2 + $0x1298] sm:$0xff]
    %v734 = vld [vmem:[#allocation2 + $0x12a0] sm:$0xff]
    %v735 = vld [vmem:[#allocation2 + $0x12a8] sm:$0xff]
    %v736 = vld [vmem:[#allocation2 + $0x12b0] sm:$0xff]
    %v737 = vld [vmem:[#allocation2 + $0x12b8] sm:$0xff]
    %v738 = vld [vmem:[#allocation2 + $0x12c0] sm:$0xff]
    %v739 = vld [vmem:[#allocation2 + $0x12c8] sm:$0xff]
    %v740 = vld [vmem:[#allocation2 + $0x12d0] sm:$0xff]
    %v741 = vld [vmem:[#allocation2 + $0x12d8] sm:$0xff]
    %v742 = vld [vmem:[#allocation2 + $0x12e0] sm:$0xff]
    %v743 = vld [vmem:[#allocation2 + $0x12e8] sm:$0xff]
    %v744 = vld [vmem:[#allocation2 + $0x12f0] sm:$0xff]
    %v745 = vld [vmem:[#allocation2 + $0x12f8] sm:$0xff]
    %v746 = vld [vmem:[#allocation2 + $0x1300] sm:$0xff]
    %v747 = vld [vmem:[#allocation2 + $0x1308] sm:$0xff]
    %v748 = vld [vmem:[#allocation2 + $0x1310] sm:$0xff]
    %v749 = vld [vmem:[#allocation2 + $0x1318] sm:$0xff]
    %v750 = vld [vmem:[#allocation2 + $0x1320] sm:$0xff]
    %v751 = vld [vmem:[#allocation2 + $0x1328] sm:$0xff]
    %v752 = vld [vmem:[#allocation2 + $0x1330] sm:$0xff]
    %v753 = vld [vmem:[#allocation2 + $0x1338] sm:$0xff]
    %v754 = vld [vmem:[#allocation2 + $0x1340] sm:$0xff]
    %v755 = vld [vmem:[#allocation2 + $0x1348] sm:$0xff]
    %v756 = vld [vmem:[#allocation2 + $0x1350] sm:$0xff]
    %v757 = vld [vmem:[#allocation2 + $0x1358] sm:$0xff]
    %v758 = vld [vmem:[#allocation2 + $0x1360] sm:$0xff]
    %v759 = vld [vmem:[#allocation2 + $0x1368] sm:$0xff]
    %v760 = vld [vmem:[#allocation2 + $0x1370] sm:$0xff]
    %v761 = vld [vmem:[#allocation2 + $0x1378] sm:$0xff]
    %v762 = vld [vmem:[#allocation2 + $0x1380] sm:$0xff]
    %v763 = vld [vmem:[#allocation2 + $0x1388] sm:$0xff]
    %v764 = vld [vmem:[#allocation2 + $0x1390] sm:$0xff]
    %v765 = vld [vmem:[#allocation2 + $0x1398] sm:$0xff]
    %v766 = vld [vmem:[#allocation2 + $0x13a0] sm:$0xff]
    %v767 = vld [vmem:[#allocation2 + $0x13a8] sm:$0xff]
    %v768 = vld [vmem:[#allocation2 + $0x13b0] sm:$0xff]
    %v769 = vld [vmem:[#allocation2 + $0x13b8] sm:$0xff]
    %v770 = vld [vmem:[#allocation2 + $0x13c0] sm:$0xff]
    %v771 = vld [vmem:[#allocation2 + $0x13c8] sm:$0xff]
    %v772 = vld [vmem:[#allocation2 + $0x13d0] sm:$0xff]
    %v773 = vld [vmem:[#allocation2 + $0x13d8] sm:$0xff]
    %v774 = vld [vmem:[#allocation2 + $0x13e0] sm:$0xff]
    %v775 = vld [vmem:[#allocation2 + $0x13e8] sm:$0xff]
    %v776 = vld [vmem:[#allocation2 + $0x13f0] sm:$0xff]
    %v777 = vld [vmem:[#allocation2 + $0x13f8] sm:$0xff]
    %v778 = vld [vmem:[#allocation2 + $0x1400] sm:$0xff]
    %v779 = vld [vmem:[#allocation2 + $0x1408] sm:$0xff]
    %v780 = vld [vmem:[#allocation2 + $0x1410] sm:$0xff]
    %v781 = vld [vmem:[#allocation2 + $0x1418] sm:$0xff]
    %v782 = vld [vmem:[#allocation2 + $0x1420] sm:$0xff]
    %v783 = vld [vmem:[#allocation2 + $0x1428] sm:$0xff]
    %v784 = vld [vmem:[#allocation2 + $0x1430] sm:$0xff]
    %v785 = vld [vmem:[#allocation2 + $0x1438] sm:$0xff]
    %v786 = vld [vmem:[#allocation2 + $0x1440] sm:$0xff]
    %v787 = vld [vmem:[#allocation2 + $0x1448] sm:$0xff]
    %v788 = vld [vmem:[#allocation2 + $0x1450] sm:$0xff]
    %v789 = vld [vmem:[#allocation2 + $0x1458] sm:$0xff]
    %v790 = vld [vmem:[#allocation2 + $0x1460] sm:$0xff]
    %v791 = vld [vmem:[#allocation2 + $0x1468] sm:$0xff]
    %v792 = vld [vmem:[#allocation2 + $0x1470] sm:$0xff]
    %v793 = vld [vmem:[#allocation2 + $0x1478] sm:$0xff]
    %v794 = vld [vmem:[#allocation2 + $0x1480] sm:$0xff]
    %v795 = vld [vmem:[#allocation2 + $0x1488] sm:$0xff]
    %v796 = vld [vmem:[#allocation2 + $0x1490] sm:$0xff]
    %v797 = vld [vmem:[#allocation2 + $0x1498] sm:$0xff]
    %v798 = vld [vmem:[#allocation2 + $0x14a0] sm:$0xff]
    %v799 = vld [vmem:[#allocation2 + $0x14a8] sm:$0xff]
    %v800 = vld [vmem:[#allocation2 + $0x14b0] sm:$0xff]
    %v801 = vld [vmem:[#allocation2 + $0x14b8] sm:$0xff]
    %v802 = vld [vmem:[#allocation2 + $0x14c0] sm:$0xff]
    %v803 = vld [vmem:[#allocation2 + $0x14c8] sm:$0xff]
    %v804 = vld [vmem:[#allocation2 + $0x14d0] sm:$0xff]
    %v805 = vld [vmem:[#allocation2 + $0x14d8] sm:$0xff]
    %v806 = vld [vmem:[#allocation2 + $0x14e0] sm:$0xff]
    %v807 = vld [vmem:[#allocation2 + $0x14e8] sm:$0xff]
    %v808 = vld [vmem:[#allocation2 + $0x14f0] sm:$0xff]
    %v809 = vld [vmem:[#allocation2 + $0x14f8] sm:$0xff]
    %v810 = vld [vmem:[#allocation2 + $0x1500] sm:$0xff]
    %v811 = vld [vmem:[#allocation2 + $0x1508] sm:$0xff]
    %v812 = vld [vmem:[#allocation2 + $0x1510] sm:$0xff]
    %v813 = vld [vmem:[#allocation2 + $0x1518] sm:$0xff]
    %v814 = vld [vmem:[#allocation2 + $0x1520] sm:$0xff]
    %v815 = vld [vmem:[#allocation2 + $0x1528] sm:$0xff]
    %v816 = vld [vmem:[#allocation2 + $0x1530] sm:$0xff]
    %v817 = vld [vmem:[#allocation2 + $0x1538] sm:$0xff]
    %v818 = vld [vmem:[#allocation2 + $0x1540] sm:$0xff]
    %v819 = vld [vmem:[#allocation2 + $0x1548] sm:$0xff]
    %v820 = vld [vmem:[#allocation2 + $0x1550] sm:$0xff]
    %v821 = vld [vmem:[#allocation2 + $0x1558] sm:$0xff]
    %v822 = vld [vmem:[#allocation2 + $0x1560] sm:$0xff]
    %v823 = vld [vmem:[#allocation2 + $0x1568] sm:$0xff]
    %v824 = vld [vmem:[#allocation2 + $0x1570] sm:$0xff]
    %v825 = vld [vmem:[#allocation2 + $0x1578] sm:$0xff]
    %v826 = vld [vmem:[#allocation2 + $0x1580] sm:$0xff]
    %v827 = vld [vmem:[#allocation2 + $0x1588] sm:$0xff]
    %v828 = vld [vmem:[#allocation2 + $0x1590] sm:$0xff]
    %v829 = vld [vmem:[#allocation2 + $0x1598] sm:$0xff]
    %v830 = vld [vmem:[#allocation2 + $0x15a0] sm:$0xff]
    %v831 = vld [vmem:[#allocation2 + $0x15a8] sm:$0xff]
    %v832 = vld [vmem:[#allocation2 + $0x15b0] sm:$0xff]
    %v833 = vld [vmem:[#allocation2 + $0x15b8] sm:$0xff]
    %v834 = vld [vmem:[#allocation2 + $0x15c0] sm:$0xff]
    %v835 = vld [vmem:[#allocation2 + $0x15c8] sm:$0xff]
    %v836 = vld [vmem:[#allocation2 + $0x15d0] sm:$0xff]
    %v837 = vld [vmem:[#allocation2 + $0x15d8] sm:$0xff]
    %v838 = vld [vmem:[#allocation2 + $0x15e0] sm:$0xff]
    %v839 = vld [vmem:[#allocation2 + $0x15e8] sm:$0xff]
    %v840 = vld [vmem:[#allocation2 + $0x15f0] sm:$0xff]
    %v841 = vld [vmem:[#allocation2 + $0x15f8] sm:$0xff]
    %v842 = vld [vmem:[#allocation2 + $0x1600] sm:$0xff]
    %v843 = vld [vmem:[#allocation2 + $0x1608] sm:$0xff]
    %v844 = vld [vmem:[#allocation2 + $0x1610] sm:$0xff]
    %v845 = vld [vmem:[#allocation2 + $0x1618] sm:$0xff]
    %v846 = vld [vmem:[#allocation2 + $0x1620] sm:$0xff]
    %v847 = vld [vmem:[#allocation2 + $0x1628] sm:$0xff]
    %v848 = vld [vmem:[#allocation2 + $0x1630] sm:$0xff]
    %v849 = vld [vmem:[#allocation2 + $0x1638] sm:$0xff]
    %v850 = vld [vmem:[#allocation2 + $0x1640] sm:$0xff]
    %v851 = vld [vmem:[#allocation2 + $0x1648] sm:$0xff]
    %v852 = vld [vmem:[#allocation2 + $0x1650] sm:$0xff]
    %v853 = vld [vmem:[#allocation2 + $0x1658] sm:$0xff]
    %v854 = vld [vmem:[#allocation2 + $0x1660] sm:$0xff]
    %v855 = vld [vmem:[#allocation2 + $0x1668] sm:$0xff]
    %v856 = vld [vmem:[#allocation2 + $0x1670] sm:$0xff]
    %v857 = vld [vmem:[#allocation2 + $0x1678] sm:$0xff]
    %v858 = vld [vmem:[#allocation2 + $0x1680] sm:$0xff]
    %v859 = vld [vmem:[#allocation2 + $0x1688] sm:$0xff]
    %v860 = vld [vmem:[#allocation2 + $0x1690] sm:$0xff]
    %v861 = vld [vmem:[#allocation2 + $0x1698] sm:$0xff]
    %v862 = vld [vmem:[#allocation2 + $0x16a0] sm:$0xff]
    %v863 = vld [vmem:[#allocation2 + $0x16a8] sm:$0xff]
    %v864 = vld [vmem:[#allocation2 + $0x16b0] sm:$0xff]
    %v865 = vld [vmem:[#allocation2 + $0x16b8] sm:$0xff]
    %v866 = vld [vmem:[#allocation2 + $0x16c0] sm:$0xff]
    %v867 = vld [vmem:[#allocation2 + $0x16c8] sm:$0xff]
    %v868 = vld [vmem:[#allocation2 + $0x16d0] sm:$0xff]
    %v869 = vld [vmem:[#allocation2 + $0x16d8] sm:$0xff]
    %v870 = vld [vmem:[#allocation2 + $0x16e0] sm:$0xff]
    %v871 = vld [vmem:[#allocation2 + $0x16e8] sm:$0xff]
    %v872 = vld [vmem:[#allocation2 + $0x16f0] sm:$0xff]
    %v873 = vld [vmem:[#allocation2 + $0x16f8] sm:$0xff]
    %v874 = vld [vmem:[#allocation2 + $0x1700] sm:$0xff]
    %v875 = vld [vmem:[#allocation2 + $0x1708] sm:$0xff]
    %v876 = vld [vmem:[#allocation2 + $0x1710] sm:$0xff]
    %v877 = vld [vmem:[#allocation2 + $0x1718] sm:$0xff]
    %v878 = vld [vmem:[#allocation2 + $0x1720] sm:$0xff]
    %v879 = vld [vmem:[#allocation2 + $0x1728] sm:$0xff]
    %v880 = vld [vmem:[#allocation2 + $0x1730] sm:$0xff]
    %v881 = vld [vmem:[#allocation2 + $0x1738] sm:$0xff]
    %v882 = vld [vmem:[#allocation2 + $0x1740] sm:$0xff]
    %v883 = vld [vmem:[#allocation2 + $0x1748] sm:$0xff]
    %v884 = vld [vmem:[#allocation2 + $0x1750] sm:$0xff]
    %v885 = vld [vmem:[#allocation2 + $0x1758] sm:$0xff]
    %v886 = vld [vmem:[#allocation2 + $0x1760] sm:$0xff]
    %v887 = vld [vmem:[#allocation2 + $0x1768] sm:$0xff]
    %v888 = vld [vmem:[#allocation2 + $0x1770] sm:$0xff]
    %v889 = vld [vmem:[#allocation2 + $0x1778] sm:$0xff]
    %v890 = vld [vmem:[#allocation2 + $0x1780] sm:$0xff]
    %v891 = vld [vmem:[#allocation2 + $0x1788] sm:$0xff]
    %v892 = vld [vmem:[#allocation2 + $0x1790] sm:$0xff]
    %v893 = vld [vmem:[#allocation2 + $0x1798] sm:$0xff]
    %v894 = vld [vmem:[#allocation2 + $0x17a0] sm:$0xff]
    %v895 = vld [vmem:[#allocation2 + $0x17a8] sm:$0xff]
    %v896 = vld [vmem:[#allocation2 + $0x17b0] sm:$0xff]
    %v897 = vld [vmem:[#allocation2 + $0x17b8] sm:$0xff]
    %v898 = vld [vmem:[#allocation2 + $0x17c0] sm:$0xff]
    %v899 = vld [vmem:[#allocation2 + $0x17c8] sm:$0xff]
    %v900 = vld [vmem:[#allocation2 + $0x17d0] sm:$0xff]
    %v901 = vld [vmem:[#allocation2 + $0x17d8] sm:$0xff]
    %v902 = vld [vmem:[#allocation2 + $0x17e0] sm:$0xff]
    %v903 = vld [vmem:[#allocation2 + $0x17e8] sm:$0xff]
    %v904 = vld [vmem:[#allocation2 + $0x17f0] sm:$0xff]
    %v905 = vld [vmem:[#allocation2 + $0x17f8] sm:$0xff]
    %v906 = vld [vmem:[#allocation2 + $0x1800] sm:$0xff]
    %v907 = vld [vmem:[#allocation2 + $0x1808] sm:$0xff]
    %v908 = vld [vmem:[#allocation2 + $0x1810] sm:$0xff]
    %v909 = vld [vmem:[#allocation2 + $0x1818] sm:$0xff]
    %v910 = vld [vmem:[#allocation2 + $0x1820] sm:$0xff]
    %v911 = vld [vmem:[#allocation2 + $0x1828] sm:$0xff]
    %v912 = vld [vmem:[#allocation2 + $0x1830] sm:$0xff]
    %v913 = vld [vmem:[#allocation2 + $0x1838] sm:$0xff]
    %v914 = vld [vmem:[#allocation2 + $0x1840] sm:$0xff]
    %v915 = vld [vmem:[#allocation2 + $0x1848] sm:$0xff]
    %v916 = vld [vmem:[#allocation2 + $0x1850] sm:$0xff]
    %v917 = vld [vmem:[#allocation2 + $0x1858] sm:$0xff]
    %v918 = vld [vmem:[#allocation2 + $0x1860] sm:$0xff]
    %v919 = vld [vmem:[#allocation2 + $0x1868] sm:$0xff]
    %v920 = vld [vmem:[#allocation2 + $0x1870] sm:$0xff]
    %v921 = vld [vmem:[#allocation2 + $0x1878] sm:$0xff]
    %v922 = vld [vmem:[#allocation2 + $0x1880] sm:$0xff]
    %v923 = vld [vmem:[#allocation2 + $0x1888] sm:$0xff]
    %v924 = vld [vmem:[#allocation2 + $0x1890] sm:$0xff]
    %v925 = vld [vmem:[#allocation2 + $0x1898] sm:$0xff]
    %v926 = vld [vmem:[#allocation2 + $0x18a0] sm:$0xff]
    %v927 = vld [vmem:[#allocation2 + $0x18a8] sm:$0xff]
    %v928 = vld [vmem:[#allocation2 + $0x18b0] sm:$0xff]
    %v929 = vld [vmem:[#allocation2 + $0x18b8] sm:$0xff]
    %v930 = vld [vmem:[#allocation2 + $0x18c0] sm:$0xff]
    %v931 = vld [vmem:[#allocation2 + $0x18c8] sm:$0xff]
    %v932 = vld [vmem:[#allocation2 + $0x18d0] sm:$0xff]
    %v933 = vld [vmem:[#allocation2 + $0x18d8] sm:$0xff]
    %v934 = vld [vmem:[#allocation2 + $0x18e0] sm:$0xff]
    %v935 = vld [vmem:[#allocation2 + $0x18e8] sm:$0xff]
    %v936 = vld [vmem:[#allocation2 + $0x18f0] sm:$0xff]
    %v937 = vld [vmem:[#allocation2 + $0x18f8] sm:$0xff]
    %v938 = vld [vmem:[#allocation2 + $0x1900] sm:$0xff]
    %v939 = vld [vmem:[#allocation2 + $0x1908] sm:$0xff]
    %v940 = vld [vmem:[#allocation2 + $0x1910] sm:$0xff]
    %v941 = vld [vmem:[#allocation2 + $0x1918] sm:$0xff]
    %v942 = vld [vmem:[#allocation2 + $0x1920] sm:$0xff]
    %v943 = vld [vmem:[#allocation2 + $0x1928] sm:$0xff]
    %v944 = vld [vmem:[#allocation2 + $0x1930] sm:$0xff]
    %v945 = vld [vmem:[#allocation2 + $0x1938] sm:$0xff]
    %v946 = vld [vmem:[#allocation2 + $0x1940] sm:$0xff]
    %v947 = vld [vmem:[#allocation2 + $0x1948] sm:$0xff]
    %v948 = vld [vmem:[#allocation2 + $0x1950] sm:$0xff]
    %v949 = vld [vmem:[#allocation2 + $0x1958] sm:$0xff]
    %v950 = vld [vmem:[#allocation2 + $0x1960] sm:$0xff]
    %v951 = vld [vmem:[#allocation2 + $0x1968] sm:$0xff]
    %v952 = vld [vmem:[#allocation2 + $0x1970] sm:$0xff]
    %v953 = vld [vmem:[#allocation2 + $0x1978] sm:$0xff]
    %v954 = vld [vmem:[#allocation2 + $0x1980] sm:$0xff]
    %v955 = vld [vmem:[#allocation2 + $0x1988] sm:$0xff]
    %v956 = vld [vmem:[#allocation2 + $0x1990] sm:$0xff]
    %v957 = vld [vmem:[#allocation2 + $0x1998] sm:$0xff]
    %v958 = vld [vmem:[#allocation2 + $0x19a0] sm:$0xff]
    %v959 = vld [vmem:[#allocation2 + $0x19a8] sm:$0xff]
    %v960 = vld [vmem:[#allocation2 + $0x19b0] sm:$0xff]
    %v961 = vld [vmem:[#allocation2 + $0x19b8] sm:$0xff]
    %v962 = vld [vmem:[#allocation2 + $0x19c0] sm:$0xff]
    %v963 = vld [vmem:[#allocation2 + $0x19c8] sm:$0xff]
    %v964 = vld [vmem:[#allocation2 + $0x19d0] sm:$0xff]
    %v965 = vld [vmem:[#allocation2 + $0x19d8] sm:$0xff]
    %v966 = vld [vmem:[#allocation2 + $0x19e0] sm:$0xff]
    %v967 = vld [vmem:[#allocation2 + $0x19e8] sm:$0xff]
    %v968 = vld [vmem:[#allocation2 + $0x19f0] sm:$0xff]
    %v969 = vld [vmem:[#allocation2 + $0x19f8] sm:$0xff]
    %v970 = vld [vmem:[#allocation2 + $0x1a00] sm:$0xff]
    %v971 = vld [vmem:[#allocation2 + $0x1a08] sm:$0xff]
    %v972 = vld [vmem:[#allocation2 + $0x1a10] sm:$0xff]
    %v973 = vld [vmem:[#allocation2 + $0x1a18] sm:$0xff]
    %v974 = vld [vmem:[#allocation2 + $0x1a20] sm:$0xff]
    %v975 = vld [vmem:[#allocation2 + $0x1a28] sm:$0xff]
    %v976 = vld [vmem:[#allocation2 + $0x1a30] sm:$0xff]
    %v977 = vld [vmem:[#allocation2 + $0x1a38] sm:$0xff]
    %v978 = vld [vmem:[#allocation2 + $0x1a40] sm:$0xff]
    %v979 = vld [vmem:[#allocation2 + $0x1a48] sm:$0xff]
    %v980 = vld [vmem:[#allocation2 + $0x1a50] sm:$0xff]
    %v981 = vld [vmem:[#allocation2 + $0x1a58] sm:$0xff]
    %v982 = vld [vmem:[#allocation2 + $0x1a60] sm:$0xff]
    %v983 = vld [vmem:[#allocation2 + $0x1a68] sm:$0xff]
    %v984 = vld [vmem:[#allocation2 + $0x1a70] sm:$0xff]
    %v985 = vld [vmem:[#allocation2 + $0x1a78] sm:$0xff]
    %v986 = vld [vmem:[#allocation2 + $0x1a80] sm:$0xff]
    %v987 = vld [vmem:[#allocation2 + $0x1a88] sm:$0xff]
    %v988 = vld [vmem:[#allocation2 + $0x1a90] sm:$0xff]
    %v989 = vld [vmem:[#allocation2 + $0x1a98] sm:$0xff]
    %v990 = vld [vmem:[#allocation2 + $0x1aa0] sm:$0xff]
    %v991 = vld [vmem:[#allocation2 + $0x1aa8] sm:$0xff]
    %v992 = vld [vmem:[#allocation2 + $0x1ab0] sm:$0xff]
    %v993 = vld [vmem:[#allocation2 + $0x1ab8] sm:$0xff]
    %v994 = vld [vmem:[#allocation2 + $0x1ac0] sm:$0xff]
    %v995 = vld [vmem:[#allocation2 + $0x1ac8] sm:$0xff]
    %v996 = vld [vmem:[#allocation2 + $0x1ad0] sm:$0xff]
    %v997 = vld [vmem:[#allocation2 + $0x1ad8] sm:$0xff]
    %v998 = vld [vmem:[#allocation2 + $0x1ae0] sm:$0xff]
    %v999 = vld [vmem:[#allocation2 + $0x1ae8] sm:$0xff]
    %v1000 = vld [vmem:[#allocation2 + $0x1af0] sm:$0xff]
    %v1001 = vld [vmem:[#allocation2 + $0x1af8] sm:$0xff]
    %v1002 = vld [vmem:[#allocation2 + $0x1b00] sm:$0xff]
    %v1003 = vld [vmem:[#allocation2 + $0x1b08] sm:$0xff]
    %v1004 = vld [vmem:[#allocation2 + $0x1b10] sm:$0xff]
    %v1005 = vld [vmem:[#allocation2 + $0x1b18] sm:$0xff]
    %v1006 = vld [vmem:[#allocation2 + $0x1b20] sm:$0xff]
    %v1007 = vld [vmem:[#allocation2 + $0x1b28] sm:$0xff]
    %v1008 = vld [vmem:[#allocation2 + $0x1b30] sm:$0xff]
    %v1009 = vld [vmem:[#allocation2 + $0x1b38] sm:$0xff]
    %v1010 = vld [vmem:[#allocation2 + $0x1b40] sm:$0xff]
    %v1011 = vld [vmem:[#allocation2 + $0x1b48] sm:$0xff]
    %v1012 = vld [vmem:[#allocation2 + $0x1b50] sm:$0xff]
    %v1013 = vld [vmem:[#allocation2 + $0x1b58] sm:$0xff]
    %v1014 = vld [vmem:[#allocation2 + $0x1b60] sm:$0xff]
    %v1015 = vld [vmem:[#allocation2 + $0x1b68] sm:$0xff]
    %v1016 = vld [vmem:[#allocation2 + $0x1b70] sm:$0xff]
    %v1017 = vld [vmem:[#allocation2 + $0x1b78] sm:$0xff]
    %v1018 = vld [vmem:[#allocation2 + $0x1b80] sm:$0xff]
    %v1019 = vld [vmem:[#allocation2 + $0x1b88] sm:$0xff]
    %v1020 = vld [vmem:[#allocation2 + $0x1b90] sm:$0xff]
    %v1021 = vld [vmem:[#allocation2 + $0x1b98] sm:$0xff]
    %v1022 = vld [vmem:[#allocation2 + $0x1ba0] sm:$0xff]
    %v1023 = vld [vmem:[#allocation2 + $0x1ba8] sm:$0xff]
    %v1024 = vld [vmem:[#allocation2 + $0x1bb0] sm:$0xff]
    %v1025 = vld [vmem:[#allocation2 + $0x1bb8] sm:$0xff]
    %v1026 = vld [vmem:[#allocation2 + $0x1bc0] sm:$0xff]
    %v1027 = vld [vmem:[#allocation2 + $0x1bc8] sm:$0xff]
    %v1028 = vld [vmem:[#allocation2 + $0x1bd0] sm:$0xff]
    %v1029 = vld [vmem:[#allocation2 + $0x1bd8] sm:$0xff]
    %v1030 = vld [vmem:[#allocation2 + $0x1be0] sm:$0xff]
    %v1031 = vld [vmem:[#allocation2 + $0x1be8] sm:$0xff]
    %v1032 = vld [vmem:[#allocation2 + $0x1bf0] sm:$0xff]
    %v1033 = vld [vmem:[#allocation2 + $0x1bf8] sm:$0xff]
    %v1034 = vld [vmem:[#allocation2 + $0x1c00] sm:$0xff]
    %v1035 = vld [vmem:[#allocation2 + $0x1c08] sm:$0xff]
    %v1036 = vld [vmem:[#allocation2 + $0x1c10] sm:$0xff]
    %v1037 = vld [vmem:[#allocation2 + $0x1c18] sm:$0xff]
    %v1038 = vld [vmem:[#allocation2 + $0x1c20] sm:$0xff]
    %v1039 = vld [vmem:[#allocation2 + $0x1c28] sm:$0xff]
    %v1040 = vld [vmem:[#allocation2 + $0x1c30] sm:$0xff]
    %v1041 = vld [vmem:[#allocation2 + $0x1c38] sm:$0xff]
    %v1042 = vld [vmem:[#allocation2 + $0x1c40] sm:$0xff]
    %v1043 = vld [vmem:[#allocation2 + $0x1c48] sm:$0xff]
    %v1044 = vld [vmem:[#allocation2 + $0x1c50] sm:$0xff]
    %v1045 = vld [vmem:[#allocation2 + $0x1c58] sm:$0xff]
    %v1046 = vld [vmem:[#allocation2 + $0x1c60] sm:$0xff]
    %v1047 = vld [vmem:[#allocation2 + $0x1c68] sm:$0xff]
    %v1048 = vld [vmem:[#allocation2 + $0x1c70] sm:$0xff]
    %v1049 = vld [vmem:[#allocation2 + $0x1c78] sm:$0xff]
    %v1050 = vld [vmem:[#allocation2 + $0x1c80] sm:$0xff]
    %v1051 = vld [vmem:[#allocation2 + $0x1c88] sm:$0xff]
    %v1052 = vld [vmem:[#allocation2 + $0x1c90] sm:$0xff]
    %v1053 = vld [vmem:[#allocation2 + $0x1c98] sm:$0xff]
    %v1054 = vld [vmem:[#allocation2 + $0x1ca0] sm:$0xff]
    %v1055 = vld [vmem:[#allocation2 + $0x1ca8] sm:$0xff]
    %v1056 = vld [vmem:[#allocation2 + $0x1cb0] sm:$0xff]
    %v1057 = vld [vmem:[#allocation2 + $0x1cb8] sm:$0xff]
    %v1058 = vld [vmem:[#allocation2 + $0x1cc0] sm:$0xff]
    %v1059 = vld [vmem:[#allocation2 + $0x1cc8] sm:$0xff]
    %v1060 = vld [vmem:[#allocation2 + $0x1cd0] sm:$0xff]
    %v1061 = vld [vmem:[#allocation2 + $0x1cd8] sm:$0xff]
    %v1062 = vld [vmem:[#allocation2 + $0x1ce0] sm:$0xff]
    %v1063 = vld [vmem:[#allocation2 + $0x1ce8] sm:$0xff]
    %v1064 = vld [vmem:[#allocation2 + $0x1cf0] sm:$0xff]
    %v1065 = vld [vmem:[#allocation2 + $0x1cf8] sm:$0xff]
    %v1066 = vld [vmem:[#allocation2 + $0x1d00] sm:$0xff]
    %v1067 = vld [vmem:[#allocation2 + $0x1d08] sm:$0xff]
    %v1068 = vld [vmem:[#allocation2 + $0x1d10] sm:$0xff]
    %v1069 = vld [vmem:[#allocation2 + $0x1d18] sm:$0xff]
    %v1070 = vld [vmem:[#allocation2 + $0x1d20] sm:$0xff]
    %v1071 = vld [vmem:[#allocation2 + $0x1d28] sm:$0xff]
    %v1072 = vld [vmem:[#allocation2 + $0x1d30] sm:$0xff]
    %v1073 = vld [vmem:[#allocation2 + $0x1d38] sm:$0xff]
    %v1074 = vld [vmem:[#allocation2 + $0x1d40] sm:$0xff]
    %v1075 = vld [vmem:[#allocation2 + $0x1d48] sm:$0xff]
    %v1076 = vld [vmem:[#allocation2 + $0x1d50] sm:$0xff]
    %v1077 = vld [vmem:[#allocation2 + $0x1d58] sm:$0xff]
    %v1078 = vld [vmem:[#allocation2 + $0x1d60] sm:$0xff]
    %v1079 = vld [vmem:[#allocation2 + $0x1d68] sm:$0xff]
    %v1080 = vld [vmem:[#allocation2 + $0x1d70] sm:$0xff]
    %v1081 = vld [vmem:[#allocation2 + $0x1d78] sm:$0xff]
    %v1082 = vld [vmem:[#allocation2 + $0x1d80] sm:$0xff]
    %v1083 = vld [vmem:[#allocation2 + $0x1d88] sm:$0xff]
    %v1084 = vld [vmem:[#allocation2 + $0x1d90] sm:$0xff]
    %v1085 = vld [vmem:[#allocation2 + $0x1d98] sm:$0xff]
    %v1086 = vld [vmem:[#allocation2 + $0x1da0] sm:$0xff]
    %v1087 = vld [vmem:[#allocation2 + $0x1da8] sm:$0xff]
    %v1088 = vld [vmem:[#allocation2 + $0x1db0] sm:$0xff]
    %v1089 = vld [vmem:[#allocation2 + $0x1db8] sm:$0xff]
    %v1090 = vld [vmem:[#allocation2 + $0x1dc0] sm:$0xff]
    %v1091 = vld [vmem:[#allocation2 + $0x1dc8] sm:$0xff]
    %v1092 = vld [vmem:[#allocation2 + $0x1dd0] sm:$0xff]
    %v1093 = vld [vmem:[#allocation2 + $0x1dd8] sm:$0xff]
    %v1094 = vld [vmem:[#allocation2 + $0x1de0] sm:$0xff]
    %v1095 = vld [vmem:[#allocation2 + $0x1de8] sm:$0xff]
    %v1096 = vld [vmem:[#allocation2 + $0x1df0] sm:$0xff]
    %v1097 = vld [vmem:[#allocation2 + $0x1df8] sm:$0xff]
    %v1098 = vld [vmem:[#allocation2 + $0x1e00] sm:$0xff]
    %v1099 = vld [vmem:[#allocation2 + $0x1e08] sm:$0xff]
    %v1100 = vld [vmem:[#allocation2 + $0x1e10] sm:$0xff]
    %v1101 = vld [vmem:[#allocation2 + $0x1e18] sm:$0xff]
    %v1102 = vld [vmem:[#allocation2 + $0x1e20] sm:$0xff]
    %v1103 = vld [vmem:[#allocation2 + $0x1e28] sm:$0xff]
    %v1104 = vld [vmem:[#allocation2 + $0x1e30] sm:$0xff]
    %v1105 = vld [vmem:[#allocation2 + $0x1e38] sm:$0xff]
    %v1106 = vld [vmem:[#allocation2 + $0x1e40] sm:$0xff]
    %v1107 = vld [vmem:[#allocation2 + $0x1e48] sm:$0xff]
    %v1108 = vld [vmem:[#allocation2 + $0x1e50] sm:$0xff]
    %v1109 = vld [vmem:[#allocation2 + $0x1e58] sm:$0xff]
    %v1110 = vld [vmem:[#allocation2 + $0x1e60] sm:$0xff]
    %v1111 = vld [vmem:[#allocation2 + $0x1e68] sm:$0xff]
    %v1112 = vld [vmem:[#allocation2 + $0x1e70] sm:$0xff]
    %v1113 = vld [vmem:[#allocation2 + $0x1e78] sm:$0xff]
    %v1114 = vld [vmem:[#allocation2 + $0x1e80] sm:$0xff]
    %v1115 = vld [vmem:[#allocation2 + $0x1e88] sm:$0xff]
    %v1116 = vld [vmem:[#allocation2 + $0x1e90] sm:$0xff]
    %v1117 = vld [vmem:[#allocation2 + $0x1e98] sm:$0xff]
    %v1118 = vld [vmem:[#allocation2 + $0x1ea0] sm:$0xff]
    %v1119 = vld [vmem:[#allocation2 + $0x1ea8] sm:$0xff]
    %v1120 = vld [vmem:[#allocation2 + $0x1eb0] sm:$0xff]
    %v1121 = vld [vmem:[#allocation2 + $0x1eb8] sm:$0xff]
    %v1122 = vld [vmem:[#allocation2 + $0x1ec0] sm:$0xff]
    %v1123 = vld [vmem:[#allocation2 + $0x1ec8] sm:$0xff]
    %v1124 = vld [vmem:[#allocation2 + $0x1ed0] sm:$0xff]
    %v1125 = vld [vmem:[#allocation2 + $0x1ed8] sm:$0xff]
    %v1126 = vld [vmem:[#allocation2 + $0x1ee0] sm:$0xff]
    %v1127 = vld [vmem:[#allocation2 + $0x1ee8] sm:$0xff]
    %v1128 = vld [vmem:[#allocation2 + $0x1ef0] sm:$0xff]
    %v1129 = vld [vmem:[#allocation2 + $0x1ef8] sm:$0xff]
    %v1130 = vld [vmem:[#allocation2 + $0x1f00] sm:$0xff]
    %v1131 = vld [vmem:[#allocation2 + $0x1f08] sm:$0xff]
    %v1132 = vld [vmem:[#allocation2 + $0x1f10] sm:$0xff]
    %v1133 = vld [vmem:[#allocation2 + $0x1f18] sm:$0xff]
    %v1134 = vld [vmem:[#allocation2 + $0x1f20] sm:$0xff]
    %v1135 = vld [vmem:[#allocation2 + $0x1f28] sm:$0xff]
    %v1136 = vld [vmem:[#allocation2 + $0x1f30] sm:$0xff]
    %v1137 = vld [vmem:[#allocation2 + $0x1f38] sm:$0xff]
    %v1138 = vld [vmem:[#allocation2 + $0x1f40] sm:$0xff]
    %v1139 = vld [vmem:[#allocation2 + $0x1f48] sm:$0xff]
    %v1140 = vld [vmem:[#allocation2 + $0x1f50] sm:$0xff]
    %v1141 = vld [vmem:[#allocation2 + $0x1f58] sm:$0xff]
    %v1142 = vld [vmem:[#allocation2 + $0x1f60] sm:$0xff]
    %v1143 = vld [vmem:[#allocation2 + $0x1f68] sm:$0xff]
    %v1144 = vld [vmem:[#allocation2 + $0x1f70] sm:$0xff]
    %v1145 = vld [vmem:[#allocation2 + $0x1f78] sm:$0xff]
    %v1146 = vld [vmem:[#allocation2 + $0x1f80] sm:$0xff]
    %v1147 = vld [vmem:[#allocation2 + $0x1f88] sm:$0xff]
    %v1148 = vld [vmem:[#allocation2 + $0x1f90] sm:$0xff]
    %v1149 = vld [vmem:[#allocation2 + $0x1f98] sm:$0xff]
    %v1150 = vld [vmem:[#allocation2 + $0x1fa0] sm:$0xff]
    %v1151 = vld [vmem:[#allocation2 + $0x1fa8] sm:$0xff]
    %v1152 = vld [vmem:[#allocation2 + $0x1fb0] sm:$0xff]
    %v1153 = vld [vmem:[#allocation2 + $0x1fb8] sm:$0xff]
    %v1154 = vld [vmem:[#allocation2 + $0x1fc0] sm:$0xff]
    %v1155 = vld [vmem:[#allocation2 + $0x1fc8] sm:$0xff]
    %v1156 = vld [vmem:[#allocation2 + $0x1fd0] sm:$0xff]
    %v1157 = vld [vmem:[#allocation2 + $0x1fd8] sm:$0xff]
    %v1158 = vld [vmem:[#allocation2 + $0x1fe0] sm:$0xff]
    %v1159 = vld [vmem:[#allocation2 + $0x1fe8] sm:$0xff]
    %v1160 = vld [vmem:[#allocation2 + $0x1ff0] sm:$0xff]
    %v1161 = vld [vmem:[#allocation2 + $0x1ff8] sm:$0xff]
    %v1162 = vld [vmem:[#allocation2 + $0x2000] sm:$0xff]
    %v1163 = vld [vmem:[#allocation2 + $0x2008] sm:$0xff]
    %v1164 = vld [vmem:[#allocation2 + $0x2010] sm:$0xff]
    %v1165 = vld [vmem:[#allocation2 + $0x2018] sm:$0xff]
    %v1166 = vld [vmem:[#allocation2 + $0x2020] sm:$0xff]
    %v1167 = vld [vmem:[#allocation2 + $0x2028] sm:$0xff]
    %v1168 = vld [vmem:[#allocation2 + $0x2030] sm:$0xff]
    %v1169 = vld [vmem:[#allocation2 + $0x2038] sm:$0xff]
    %v1170 = vld [vmem:[#allocation2 + $0x2040] sm:$0xff]
    %v1171 = vld [vmem:[#allocation2 + $0x2048] sm:$0xff]
    %v1172 = vld [vmem:[#allocation2 + $0x2050] sm:$0xff]
    %v1173 = vld [vmem:[#allocation2 + $0x2058] sm:$0xff]
    %v1174 = vld [vmem:[#allocation2 + $0x2060] sm:$0xff]
    %v1175 = vld [vmem:[#allocation2 + $0x2068] sm:$0xff]
    %v1176 = vld [vmem:[#allocation2 + $0x2070] sm:$0xff]
    %v1177 = vld [vmem:[#allocation2 + $0x2078] sm:$0xff]
    %v1178 = vld [vmem:[#allocation2 + $0x2080] sm:$0xff]
    %v1179 = vld [vmem:[#allocation2 + $0x2088] sm:$0xff]
    %v1180 = vld [vmem:[#allocation2 + $0x2090] sm:$0xff]
    %v1181 = vld [vmem:[#allocation2 + $0x2098] sm:$0xff]
    %v1182 = vld [vmem:[#allocation2 + $0x20a0] sm:$0xff]
    %v1183 = vld [vmem:[#allocation2 + $0x20a8] sm:$0xff]
    %v1184 = vld [vmem:[#allocation2 + $0x20b0] sm:$0xff]
    %v1185 = vld [vmem:[#allocation2 + $0x20b8] sm:$0xff]
    %v1186 = vld [vmem:[#allocation2 + $0x20c0] sm:$0xff]
    %v1187 = vld [vmem:[#allocation2 + $0x20c8] sm:$0xff]
    %v1188 = vld [vmem:[#allocation2 + $0x20d0] sm:$0xff]
    %v1189 = vld [vmem:[#allocation2 + $0x20d8] sm:$0xff]
    %v1190 = vld [vmem:[#allocation2 + $0x20e0] sm:$0xff]
    %v1191 = vld [vmem:[#allocation2 + $0x20e8] sm:$0xff]
    %v1192 = vld [vmem:[#allocation2 + $0x20f0] sm:$0xff]
    %v1193 = vld [vmem:[#allocation2 + $0x20f8] sm:$0xff]
    %v1194 = vld [vmem:[#allocation2 + $0x2100] sm:$0xff]
    %v1195 = vld [vmem:[#allocation2 + $0x2108] sm:$0xff]
    %v1196 = vld [vmem:[#allocation2 + $0x2110] sm:$0xff]
    %v1197 = vld [vmem:[#allocation2 + $0x2118] sm:$0xff]
    %v1198 = vld [vmem:[#allocation2 + $0x2120] sm:$0xff]
    %v1199 = vld [vmem:[#allocation2 + $0x2128] sm:$0xff]
    %v1200 = vld [vmem:[#allocation2 + $0x2130] sm:$0xff]
    %v1201 = vld [vmem:[#allocation2 + $0x2138] sm:$0xff]
    %v1202 = vld [vmem:[#allocation2 + $0x2140] sm:$0xff]
    %v1203 = vld [vmem:[#allocation2 + $0x2148] sm:$0xff]
    %v1204 = vld [vmem:[#allocation2 + $0x2150] sm:$0xff]
    %v1205 = vld [vmem:[#allocation2 + $0x2158] sm:$0xff]
    %v1206 = vld [vmem:[#allocation2 + $0x2160] sm:$0xff]
    %v1207 = vld [vmem:[#allocation2 + $0x2168] sm:$0xff]
    %v1208 = vld [vmem:[#allocation2 + $0x2170] sm:$0xff]
    %v1209 = vld [vmem:[#allocation2 + $0x2178] sm:$0xff]
    %v1210 = vld [vmem:[#allocation2 + $0x2180] sm:$0xff]
    %v1211 = vld [vmem:[#allocation2 + $0x2188] sm:$0xff]
    %v1212 = vld [vmem:[#allocation2 + $0x2190] sm:$0xff]
    %v1213 = vld [vmem:[#allocation2 + $0x2198] sm:$0xff]
    %v1214 = vld [vmem:[#allocation2 + $0x21a0] sm:$0xff]
    %v1215 = vld [vmem:[#allocation2 + $0x21a8] sm:$0xff]
    %v1216 = vld [vmem:[#allocation2 + $0x21b0] sm:$0xff]
    %v1217 = vld [vmem:[#allocation2 + $0x21b8] sm:$0xff]
    %v1218 = vld [vmem:[#allocation2 + $0x21c0] sm:$0xff]
    %v1219 = vld [vmem:[#allocation2 + $0x21c8] sm:$0xff]
    %v1220 = vld [vmem:[#allocation2 + $0x21d0] sm:$0xff]
    %v1221 = vld [vmem:[#allocation2 + $0x21d8] sm:$0xff]
    %v1222 = vld [vmem:[#allocation2 + $0x21e0] sm:$0xff]
    %v1223 = vld [vmem:[#allocation2 + $0x21e8] sm:$0xff]
    %v1224 = vld [vmem:[#allocation2 + $0x21f0] sm:$0xff]
    %v1225 = vld [vmem:[#allocation2 + $0x21f8] sm:$0xff]
    %v1226 = vld [vmem:[#allocation2 + $0x2200] sm:$0xff]
    %v1227 = vld [vmem:[#allocation2 + $0x2208] sm:$0xff]
    %v1228 = vld [vmem:[#allocation2 + $0x2210] sm:$0xff]
    %v1229 = vld [vmem:[#allocation2 + $0x2218] sm:$0xff]
    %v1230 = vld [vmem:[#allocation2 + $0x2220] sm:$0xff]
    %v1231 = vld [vmem:[#allocation2 + $0x2228] sm:$0xff]
    %v1232 = vld [vmem:[#allocation2 + $0x2230] sm:$0xff]
    %v1233 = vld [vmem:[#allocation2 + $0x2238] sm:$0xff]
    %v1234 = vld [vmem:[#allocation2 + $0x2240] sm:$0xff]
    %v1235 = vld [vmem:[#allocation2 + $0x2248] sm:$0xff]
    %v1236 = vld [vmem:[#allocation2 + $0x2250] sm:$0xff]
    %v1237 = vld [vmem:[#allocation2 + $0x2258] sm:$0xff]
    %v1238 = vld [vmem:[#allocation2 + $0x2260] sm:$0xff]
    %v1239 = vld [vmem:[#allocation2 + $0x2268] sm:$0xff]
    %v1240 = vld [vmem:[#allocation2 + $0x2270] sm:$0xff]
    %v1241 = vld [vmem:[#allocation2 + $0x2278] sm:$0xff]
    %v1242 = vld [vmem:[#allocation2 + $0x2280] sm:$0xff]
    %v1243 = vld [vmem:[#allocation2 + $0x2288] sm:$0xff]
    %v1244 = vld [vmem:[#allocation2 + $0x2290] sm:$0xff]
    %v1245 = vld [vmem:[#allocation2 + $0x2298] sm:$0xff]
    %v1246 = vld [vmem:[#allocation2 + $0x22a0] sm:$0xff]
    %v1247 = vld [vmem:[#allocation2 + $0x22a8] sm:$0xff]
    %v1248 = vld [vmem:[#allocation2 + $0x22b0] sm:$0xff]
    %v1249 = vld [vmem:[#allocation2 + $0x22b8] sm:$0xff]
    %v1250 = vld [vmem:[#allocation2 + $0x22c0] sm:$0xff]
    %v1251 = vld [vmem:[#allocation2 + $0x22c8] sm:$0xff]
    %v1252 = vld [vmem:[#allocation2 + $0x22d0] sm:$0xff]
    %v1253 = vld [vmem:[#allocation2 + $0x22d8] sm:$0xff]
    %v1254 = vld [vmem:[#allocation2 + $0x22e0] sm:$0xff]
    %v1255 = vld [vmem:[#allocation2 + $0x22e8] sm:$0xff]
    %v1256 = vld [vmem:[#allocation2 + $0x22f0] sm:$0xff]
    %v1257 = vld [vmem:[#allocation2 + $0x22f8] sm:$0xff]
    %v1258 = vld [vmem:[#allocation2 + $0x2300] sm:$0xff]
    %v1259 = vld [vmem:[#allocation2 + $0x2308] sm:$0xff]
    %v1260 = vld [vmem:[#allocation2 + $0x2310] sm:$0xff]
    %v1261 = vld [vmem:[#allocation2 + $0x2318] sm:$0xff]
    %v1262 = vld [vmem:[#allocation2 + $0x2320] sm:$0xff]
    %v1263 = vld [vmem:[#allocation2 + $0x2328] sm:$0xff]
    %v1264 = vld [vmem:[#allocation2 + $0x2330] sm:$0xff]
    %v1265 = vld [vmem:[#allocation2 + $0x2338] sm:$0xff]
    %v1266 = vld [vmem:[#allocation2 + $0x2340] sm:$0xff]
    %v1267 = vld [vmem:[#allocation2 + $0x2348] sm:$0xff]
    %v1268 = vld [vmem:[#allocation2 + $0x2350] sm:$0xff]
    %v1269 = vld [vmem:[#allocation2 + $0x2358] sm:$0xff]
    %v1270 = vld [vmem:[#allocation2 + $0x2360] sm:$0xff]
    %v1271 = vld [vmem:[#allocation2 + $0x2368] sm:$0xff]
    %v1272 = vld [vmem:[#allocation2 + $0x2370] sm:$0xff]
    %v1273 = vld [vmem:[#allocation2 + $0x2378] sm:$0xff]
    %v1274 = vld [vmem:[#allocation2 + $0x2380] sm:$0xff]
    %v1275 = vld [vmem:[#allocation2 + $0x2388] sm:$0xff]
    %v1276 = vld [vmem:[#allocation2 + $0x2390] sm:$0xff]
    %v1277 = vld [vmem:[#allocation2 + $0x2398] sm:$0xff]
    %v1278 = vld [vmem:[#allocation2 + $0x23a0] sm:$0xff]
    %v1279 = vld [vmem:[#allocation2 + $0x23a8] sm:$0xff]
    %v1280 = vld [vmem:[#allocation2 + $0x23b0] sm:$0xff]
    %v1281 = vld [vmem:[#allocation2 + $0x23b8] sm:$0xff]
    %v1282 = vld [vmem:[#allocation2 + $0x23c0] sm:$0xff]
    %v1283 = vld [vmem:[#allocation2 + $0x23c8] sm:$0xff]
    %v1284 = vld [vmem:[#allocation2 + $0x23d0] sm:$0xff]
    %v1285 = vld [vmem:[#allocation2 + $0x23d8] sm:$0xff]
    %v1286 = vld [vmem:[#allocation2 + $0x23e0] sm:$0xff]
    %v1287 = vld [vmem:[#allocation2 + $0x23e8] sm:$0xff]
    %v1288 = vld [vmem:[#allocation2 + $0x23f0] sm:$0xff]
    %v1289 = vld [vmem:[#allocation2 + $0x23f8] sm:$0xff]
    %v1290 = vld [vmem:[#allocation2 + $0x2400] sm:$0xff]
    %v1291 = vld [vmem:[#allocation2 + $0x2408] sm:$0xff]
    %v1292 = vld [vmem:[#allocation2 + $0x2410] sm:$0xff]
    %v1293 = vld [vmem:[#allocation2 + $0x2418] sm:$0xff]
    %v1294 = vld [vmem:[#allocation2 + $0x2420] sm:$0xff]
    %v1295 = vld [vmem:[#allocation2 + $0x2428] sm:$0xff]
    %v1296 = vld [vmem:[#allocation2 + $0x2430] sm:$0xff]
    %v1297 = vld [vmem:[#allocation2 + $0x2438] sm:$0xff]
    %v1298 = vld [vmem:[#allocation2 + $0x2440] sm:$0xff]
    %v1299 = vld [vmem:[#allocation2 + $0x2448] sm:$0xff]
    %v1300 = vld [vmem:[#allocation2 + $0x2450] sm:$0xff]
    %v1301 = vld [vmem:[#allocation2 + $0x2458] sm:$0xff]
    %v1302 = vld [vmem:[#allocation2 + $0x2460] sm:$0xff]
    %v1303 = vld [vmem:[#allocation2 + $0x2468] sm:$0xff]
    %v1304 = vld [vmem:[#allocation2 + $0x2470] sm:$0xff]
    %v1305 = vld [vmem:[#allocation2 + $0x2478] sm:$0xff]
    %v1306 = vld [vmem:[#allocation2 + $0x2480] sm:$0xff]
    %v1307 = vld [vmem:[#allocation2 + $0x2488] sm:$0xff]
    %v1308 = vld [vmem:[#allocation2 + $0x2490] sm:$0xff]
    %v1309 = vld [vmem:[#allocation2 + $0x2498] sm:$0xff]
    %v1310 = vld [vmem:[#allocation2 + $0x24a0] sm:$0xff]
    %v1311 = vld [vmem:[#allocation2 + $0x24a8] sm:$0xff]
    %v1312 = vld [vmem:[#allocation2 + $0x24b0] sm:$0xff]
    %v1313 = vld [vmem:[#allocation2 + $0x24b8] sm:$0xff]
    %v1314 = vld [vmem:[#allocation2 + $0x24c0] sm:$0xff]
    %v1315 = vld [vmem:[#allocation2 + $0x24c8] sm:$0xff]
    %v1316 = vld [vmem:[#allocation2 + $0x24d0] sm:$0xff]
    %v1317 = vld [vmem:[#allocation2 + $0x24d8] sm:$0xff]
    %v1318 = vld [vmem:[#allocation2 + $0x24e0] sm:$0xff]
    %v1319 = vld [vmem:[#allocation2 + $0x24e8] sm:$0xff]
    %v1320 = vld [vmem:[#allocation2 + $0x24f0] sm:$0xff]
    %v1321 = vld [vmem:[#allocation2 + $0x24f8] sm:$0xff]
    %v1322 = vld [vmem:[#allocation2 + $0x2500] sm:$0xff]
    %v1323 = vld [vmem:[#allocation2 + $0x2508] sm:$0xff]
    %v1324 = vld [vmem:[#allocation2 + $0x2510] sm:$0xff]
    %v1325 = vld [vmem:[#allocation2 + $0x2518] sm:$0xff]
    %v1326 = vld [vmem:[#allocation2 + $0x2520] sm:$0xff]
    %v1327 = vld [vmem:[#allocation2 + $0x2528] sm:$0xff]
    %v1328 = vld [vmem:[#allocation2 + $0x2530] sm:$0xff]
    %v1329 = vld [vmem:[#allocation2 + $0x2538] sm:$0xff]
    %v1330 = vld [vmem:[#allocation2 + $0x2540] sm:$0xff]
    %v1331 = vld [vmem:[#allocation2 + $0x2548] sm:$0xff]
    %v1332 = vld [vmem:[#allocation2 + $0x2550] sm:$0xff]
    %v1333 = vld [vmem:[#allocation2 + $0x2558] sm:$0xff]
    %v1334 = vld [vmem:[#allocation2 + $0x2560] sm:$0xff]
    %v1335 = vld [vmem:[#allocation2 + $0x2568] sm:$0xff]
    %v1336 = vld [vmem:[#allocation2 + $0x2570] sm:$0xff]
    %v1337 = vld [vmem:[#allocation2 + $0x2578] sm:$0xff]
    %v1338 = vld [vmem:[#allocation2 + $0x2580] sm:$0xff]
    %v1339 = vld [vmem:[#allocation2 + $0x2588] sm:$0xff]
    %v1340 = vld [vmem:[#allocation2 + $0x2590] sm:$0xff]
    %v1341 = vld [vmem:[#allocation2 + $0x2598] sm:$0xff]
    %v1342 = vld [vmem:[#allocation2 + $0x25a0] sm:$0xff]
    %v1343 = vld [vmem:[#allocation2 + $0x25a8] sm:$0xff]
    %v1344 = vld [vmem:[#allocation2 + $0x25b0] sm:$0xff]
    %v1345 = vld [vmem:[#allocation2 + $0x25b8] sm:$0xff]
    %v1346 = vld [vmem:[#allocation2 + $0x25c0] sm:$0xff]
    %v1347 = vld [vmem:[#allocation2 + $0x25c8] sm:$0xff]
    %v1348 = vld [vmem:[#allocation2 + $0x25d0] sm:$0xff]
    %v1349 = vld [vmem:[#allocation2 + $0x25d8] sm:$0xff]
    %v1350 = vld [vmem:[#allocation2 + $0x25e0] sm:$0xff]
    %v1351 = vld [vmem:[#allocation2 + $0x25e8] sm:$0xff]
    %v1352 = vld [vmem:[#allocation2 + $0x25f0] sm:$0xff]
    %v1353 = vld [vmem:[#allocation2 + $0x25f8] sm:$0xff]
    %v1354 = vld [vmem:[#allocation2 + $0x2600] sm:$0xff]
    %v1355 = vld [vmem:[#allocation2 + $0x2608] sm:$0xff]
    %v1356 = vld [vmem:[#allocation2 + $0x2610] sm:$0xff]
    %v1357 = vld [vmem:[#allocation2 + $0x2618] sm:$0xff]
    %v1358 = vld [vmem:[#allocation2 + $0x2620] sm:$0xff]
    %v1359 = vld [vmem:[#allocation2 + $0x2628] sm:$0xff]
    %v1360 = vld [vmem:[#allocation2 + $0x2630] sm:$0xff]
    %v1361 = vld [vmem:[#allocation2 + $0x2638] sm:$0xff]
    %v1362 = vld [vmem:[#allocation2 + $0x2640] sm:$0xff]
    %v1363 = vld [vmem:[#allocation2 + $0x2648] sm:$0xff]
    %v1364 = vld [vmem:[#allocation2 + $0x2650] sm:$0xff]
    %v1365 = vld [vmem:[#allocation2 + $0x2658] sm:$0xff]
    %v1366 = vld [vmem:[#allocation2 + $0x2660] sm:$0xff]
    %v1367 = vld [vmem:[#allocation2 + $0x2668] sm:$0xff]
    %v1368 = vld [vmem:[#allocation2 + $0x2670] sm:$0xff]
    %v1369 = vld [vmem:[#allocation2 + $0x2678] sm:$0xff]
    %v1370 = vld [vmem:[#allocation2 + $0x2680] sm:$0xff]
    %v1371 = vld [vmem:[#allocation2 + $0x2688] sm:$0xff]
    %v1372 = vld [vmem:[#allocation2 + $0x2690] sm:$0xff]
    %v1373 = vld [vmem:[#allocation2 + $0x2698] sm:$0xff]
    %v1374 = vld [vmem:[#allocation2 + $0x26a0] sm:$0xff]
    %v1375 = vld [vmem:[#allocation2 + $0x26a8] sm:$0xff]
    %v1376 = vld [vmem:[#allocation2 + $0x26b0] sm:$0xff]
    %v1377 = vld [vmem:[#allocation2 + $0x26b8] sm:$0xff]
    %v1378 = vld [vmem:[#allocation2 + $0x26c0] sm:$0xff]
    %v1379 = vld [vmem:[#allocation2 + $0x26c8] sm:$0xff]
    %v1380 = vld [vmem:[#allocation2 + $0x26d0] sm:$0xff]
    %v1381 = vld [vmem:[#allocation2 + $0x26d8] sm:$0xff]
    %v1382 = vld [vmem:[#allocation2 + $0x26e0] sm:$0xff]
    %v1383 = vld [vmem:[#allocation2 + $0x26e8] sm:$0xff]
    %v1384 = vld [vmem:[#allocation2 + $0x26f0] sm:$0xff]
    %v1385 = vld [vmem:[#allocation2 + $0x26f8] sm:$0xff]
    %v1386 = vld [vmem:[#allocation2 + $0x2700] sm:$0xff]
    %v1387 = vld [vmem:[#allocation2 + $0x2708] sm:$0xff]
    %v1388 = vld [vmem:[#allocation2 + $0x2710] sm:$0xff]
    %v1389 = vld [vmem:[#allocation2 + $0x2718] sm:$0xff]
    %v1390 = vld [vmem:[#allocation2 + $0x2720] sm:$0xff]
    %v1391 = vld [vmem:[#allocation2 + $0x2728] sm:$0xff]
    %v1392 = vld [vmem:[#allocation2 + $0x2730] sm:$0xff]
    %v1393 = vld [vmem:[#allocation2 + $0x2738] sm:$0xff]
    %v1394 = vld [vmem:[#allocation2 + $0x2740] sm:$0xff]
    %v1395 = vld [vmem:[#allocation2 + $0x2748] sm:$0xff]
    %v1396 = vld [vmem:[#allocation2 + $0x2750] sm:$0xff]
    %v1397 = vld [vmem:[#allocation2 + $0x2758] sm:$0xff]
    %v1398 = vld [vmem:[#allocation2 + $0x2760] sm:$0xff]
    %v1399 = vld [vmem:[#allocation2 + $0x2768] sm:$0xff]
    %v1400 = vld [vmem:[#allocation2 + $0x2770] sm:$0xff]
    %v1401 = vld [vmem:[#allocation2 + $0x2778] sm:$0xff]
    %v1402 = vld [vmem:[#allocation2 + $0x2780] sm:$0xff]
    %v1403 = vld [vmem:[#allocation2 + $0x2788] sm:$0xff]
    %v1404 = vld [vmem:[#allocation2 + $0x2790] sm:$0xff]
    %v1405 = vld [vmem:[#allocation2 + $0x2798] sm:$0xff]
    %v1406 = vld [vmem:[#allocation2 + $0x27a0] sm:$0xff]
    %v1407 = vld [vmem:[#allocation2 + $0x27a8] sm:$0xff]
    %v1408 = vld [vmem:[#allocation2 + $0x27b0] sm:$0xff]
    %v1409 = vld [vmem:[#allocation2 + $0x27b8] sm:$0xff]
    %v1410 = vld [vmem:[#allocation2 + $0x27c0] sm:$0xff]
    %v1411 = vld [vmem:[#allocation2 + $0x27c8] sm:$0xff]
    %v1412 = vld [vmem:[#allocation2 + $0x27d0] sm:$0xff]
    %v1413 = vld [vmem:[#allocation2 + $0x27d8] sm:$0xff]
    %v1414 = vld [vmem:[#allocation2 + $0x27e0] sm:$0xff]
    %v1415 = vld [vmem:[#allocation2 + $0x27e8] sm:$0xff]
    %v1416 = vld [vmem:[#allocation2 + $0x27f0] sm:$0xff]
    %v1417 = vld [vmem:[#allocation2 + $0x27f8] sm:$0xff]
    %v1418 = vld [vmem:[#allocation2 + $0x2800] sm:$0xff]
    %v1419 = vld [vmem:[#allocation2 + $0x2808] sm:$0xff]
    %v1420 = vld [vmem:[#allocation2 + $0x2810] sm:$0xff]
    %v1421 = vld [vmem:[#allocation2 + $0x2818] sm:$0xff]
    %v1422 = vld [vmem:[#allocation2 + $0x2820] sm:$0xff]
    %v1423 = vld [vmem:[#allocation2 + $0x2828] sm:$0xff]
    %v1424 = vld [vmem:[#allocation2 + $0x2830] sm:$0xff]
    %v1425 = vld [vmem:[#allocation2 + $0x2838] sm:$0xff]
    %v1426 = vld [vmem:[#allocation2 + $0x2840] sm:$0xff]
    %v1427 = vld [vmem:[#allocation2 + $0x2848] sm:$0xff]
    %v1428 = vld [vmem:[#allocation2 + $0x2850] sm:$0xff]
    %v1429 = vld [vmem:[#allocation2 + $0x2858] sm:$0xff]
    %v1430 = vld [vmem:[#allocation2 + $0x2860] sm:$0xff]
    %v1431 = vld [vmem:[#allocation2 + $0x2868] sm:$0xff]
    %v1432 = vld [vmem:[#allocation2 + $0x2870] sm:$0xff]
    %v1433 = vld [vmem:[#allocation2 + $0x2878] sm:$0xff]
    %v1434 = vld [vmem:[#allocation2 + $0x2880] sm:$0xff]
    %v1435 = vld [vmem:[#allocation2 + $0x2888] sm:$0xff]
    %v1436 = vld [vmem:[#allocation2 + $0x2890] sm:$0xff]
    %v1437 = vld [vmem:[#allocation2 + $0x2898] sm:$0xff]
    %v1438 = vld [vmem:[#allocation2 + $0x28a0] sm:$0xff]
    %v1439 = vld [vmem:[#allocation2 + $0x28a8] sm:$0xff]
    %v1440 = vld [vmem:[#allocation2 + $0x28b0] sm:$0xff]
    %v1441 = vld [vmem:[#allocation2 + $0x28b8] sm:$0xff]
    %v1442 = vld [vmem:[#allocation2 + $0x28c0] sm:$0xff]
    %v1443 = vld [vmem:[#allocation2 + $0x28c8] sm:$0xff]
    %v1444 = vld [vmem:[#allocation2 + $0x28d0] sm:$0xff]
    %v1445 = vld [vmem:[#allocation2 + $0x28d8] sm:$0xff]
    %v1446 = vld [vmem:[#allocation2 + $0x28e0] sm:$0xff]
    %v1447 = vld [vmem:[#allocation2 + $0x28e8] sm:$0xff]
    %v1448 = vld [vmem:[#allocation2 + $0x28f0] sm:$0xff]
    %v1449 = vld [vmem:[#allocation2 + $0x28f8] sm:$0xff]
    %v1450 = vld [vmem:[#allocation2 + $0x2900] sm:$0xff]
    %v1451 = vld [vmem:[#allocation2 + $0x2908] sm:$0xff]
    %v1452 = vld [vmem:[#allocation2 + $0x2910] sm:$0xff]
    %v1453 = vld [vmem:[#allocation2 + $0x2918] sm:$0xff]
    %v1454 = vld [vmem:[#allocation2 + $0x2920] sm:$0xff]
    %v1455 = vld [vmem:[#allocation2 + $0x2928] sm:$0xff]
    %v1456 = vld [vmem:[#allocation2 + $0x2930] sm:$0xff]
    %v1457 = vld [vmem:[#allocation2 + $0x2938] sm:$0xff]
    %v1458 = vld [vmem:[#allocation2 + $0x2940] sm:$0xff]
    %v1459 = vld [vmem:[#allocation2 + $0x2948] sm:$0xff]
    %v1460 = vld [vmem:[#allocation2 + $0x2950] sm:$0xff]
    %v1461 = vld [vmem:[#allocation2 + $0x2958] sm:$0xff]
    %v1462 = vld [vmem:[#allocation2 + $0x2960] sm:$0xff]
    %v1463 = vld [vmem:[#allocation2 + $0x2968] sm:$0xff]
    %v1464 = vld [vmem:[#allocation2 + $0x2970] sm:$0xff]
    %v1465 = vld [vmem:[#allocation2 + $0x2978] sm:$0xff]
    %v1466 = vld [vmem:[#allocation2 + $0x2980] sm:$0xff]
    %v1467 = vld [vmem:[#allocation2 + $0x2988] sm:$0xff]
    %v1468 = vld [vmem:[#allocation2 + $0x2990] sm:$0xff]
    %v1469 = vld [vmem:[#allocation2 + $0x2998] sm:$0xff]
    %v1470 = vld [vmem:[#allocation2 + $0x29a0] sm:$0xff]
    %v1471 = vld [vmem:[#allocation2 + $0x29a8] sm:$0xff]
    %v1472 = vld [vmem:[#allocation2 + $0x29b0] sm:$0xff]
    %v1473 = vld [vmem:[#allocation2 + $0x29b8] sm:$0xff]
    %v1474 = vld [vmem:[#allocation2 + $0x29c0] sm:$0xff]
    %v1475 = vld [vmem:[#allocation2 + $0x29c8] sm:$0xff]
    %v1476 = vld [vmem:[#allocation2 + $0x29d0] sm:$0xff]
    %v1477 = vld [vmem:[#allocation2 + $0x29d8] sm:$0xff]
    %v1478 = vld [vmem:[#allocation2 + $0x29e0] sm:$0xff]
    %v1479 = vld [vmem:[#allocation2 + $0x29e8] sm:$0xff]
    %v1480 = vld [vmem:[#allocation2 + $0x29f0] sm:$0xff]
    %v1481 = vld [vmem:[#allocation2 + $0x29f8] sm:$0xff]
    %v1482 = vld [vmem:[#allocation2 + $0x2a00] sm:$0xff]
    %v1483 = vld [vmem:[#allocation2 + $0x2a08] sm:$0xff]
    %v1484 = vld [vmem:[#allocation2 + $0x2a10] sm:$0xff]
    %v1485 = vld [vmem:[#allocation2 + $0x2a18] sm:$0xff]
    %v1486 = vld [vmem:[#allocation2 + $0x2a20] sm:$0xff]
    %v1487 = vld [vmem:[#allocation2 + $0x2a28] sm:$0xff]
    %v1488 = vld [vmem:[#allocation2 + $0x2a30] sm:$0xff]
    %v1489 = vld [vmem:[#allocation2 + $0x2a38] sm:$0xff]
    %v1490 = vld [vmem:[#allocation2 + $0x2a40] sm:$0xff]
    %v1491 = vld [vmem:[#allocation2 + $0x2a48] sm:$0xff]
    %v1492 = vld [vmem:[#allocation2 + $0x2a50] sm:$0xff]
    %v1493 = vld [vmem:[#allocation2 + $0x2a58] sm:$0xff]
    %v1494 = vld [vmem:[#allocation2 + $0x2a60] sm:$0xff]
    %v1495 = vld [vmem:[#allocation2 + $0x2a68] sm:$0xff]
    %v1496 = vld [vmem:[#allocation2 + $0x2a70] sm:$0xff]
    %v1497 = vld [vmem:[#allocation2 + $0x2a78] sm:$0xff]
    %v1498 = vld [vmem:[#allocation2 + $0x2a80] sm:$0xff]
    %v1499 = vld [vmem:[#allocation2 + $0x2a88] sm:$0xff]
    %v1500 = vld [vmem:[#allocation2 + $0x2a90] sm:$0xff]
    %v1501 = vld [vmem:[#allocation2 + $0x2a98] sm:$0xff]
    %v1502 = vld [vmem:[#allocation2 + $0x2aa0] sm:$0xff]
    %v1503 = vld [vmem:[#allocation2 + $0x2aa8] sm:$0xff]
    %v1504 = vld [vmem:[#allocation2 + $0x2ab0] sm:$0xff]
    %v1505 = vld [vmem:[#allocation2 + $0x2ab8] sm:$0xff]
    %v1506 = vld [vmem:[#allocation2 + $0x2ac0] sm:$0xff]
    %v1507 = vld [vmem:[#allocation2 + $0x2ac8] sm:$0xff]
    %v1508 = vld [vmem:[#allocation2 + $0x2ad0] sm:$0xff]
    %v1509 = vld [vmem:[#allocation2 + $0x2ad8] sm:$0xff]
    %v1514 = vunpack.c.l.b16 %v134
    %v1515 = vunpack.c.h.b16 %v134
    %v1516 = vunpack.c.l.b16 %v135
    %v1517 = vunpack.c.h.b16 %v135
    %v1518 = vunpack.c.l.b16 %v136
    %v1519 = vunpack.c.h.b16 %v136
    %v1520 = vunpack.c.l.b16 %v137
    %v1521 = vpack.c.b16 %v1514, %v1514
    %v1522 = vpack.c.b16 %v1515, %v1515
    %v1523 = vpack.c.b16 %v1516, %v1516
    %v1524 = vpack.c.b16 %v1517, %v1517
    %v1525 = vpack.c.b16 %v1518, %v1518
    %v1526 = vpack.c.b16 %v1519, %v1519
    %v1527 = vpack.c.b16 %v1520, %v1520
    %v2906 = vunpack.c.l.b16 %v138
    %v2907 = vunpack.c.h.b16 %v138
    %v2908 = vunpack.c.l.b16 %v139
    %v2909 = vunpack.c.h.b16 %v139
    %v2910 = vunpack.c.l.b16 %v140
    %v2911 = vunpack.c.h.b16 %v140
    %v2912 = vunpack.c.l.b16 %v141
    %v2913 = vunpack.c.h.b16 %v141
    %v2914 = vunpack.c.l.b16 %v142
    %v2915 = vunpack.c.h.b16 %v142
    %v2916 = vunpack.c.l.b16 %v143
    %v2917 = vunpack.c.h.b16 %v143
    %v2918 = vunpack.c.l.b16 %v144
    %v2919 = vunpack.c.h.b16 %v144
    %v2920 = vunpack.c.l.b16 %v145
    %v2921 = vunpack.c.h.b16 %v145
    %v2922 = vunpack.c.l.b16 %v146
    %v2923 = vunpack.c.h.b16 %v146
    %v2924 = vunpack.c.l.b16 %v147
    %v2925 = vunpack.c.h.b16 %v147
    %v2926 = vunpack.c.l.b16 %v148
    %v2927 = vunpack.c.h.b16 %v148
    %v2928 = vunpack.c.l.b16 %v149
    %v2929 = vunpack.c.h.b16 %v149
    %v2930 = vunpack.c.l.b16 %v150
    %v2931 = vunpack.c.h.b16 %v150
    %v2932 = vunpack.c.l.b16 %v151
    %v2933 = vunpack.c.h.b16 %v151
    %v2934 = vunpack.c.l.b16 %v152
    %v2935 = vunpack.c.h.b16 %v152
    %v2936 = vunpack.c.l.b16 %v153
    %v2937 = vunpack.c.h.b16 %v153
    %v2938 = vunpack.c.l.b16 %v154
    %v2939 = vunpack.c.h.b16 %v154
    %v2940 = vunpack.c.l.b16 %v155
    %v2941 = vunpack.c.h.b16 %v155
    %v2942 = vunpack.c.l.b16 %v156
    %v2943 = vunpack.c.h.b16 %v156
    %v2944 = vunpack.c.l.b16 %v157
    %v2945 = vunpack.c.h.b16 %v157
    %v2946 = vunpack.c.l.b16 %v158
    %v2947 = vunpack.c.h.b16 %v158
    %v2948 = vunpack.c.l.b16 %v159
    %v2949 = vunpack.c.h.b16 %v159
    %v2950 = vunpack.c.l.b16 %v160
    %v2951 = vunpack.c.h.b16 %v160
    %v2952 = vunpack.c.l.b16 %v161
    %v2953 = vunpack.c.h.b16 %v161
    %v2954 = vunpack.c.l.b16 %v162
    %v2955 = vunpack.c.h.b16 %v162
    %v2956 = vunpack.c.l.b16 %v163
    %v2957 = vunpack.c.h.b16 %v163
    %v2958 = vunpack.c.l.b16 %v164
    %v2959 = vunpack.c.h.b16 %v164
    %v2960 = vunpack.c.l.b16 %v165
    %v2961 = vunpack.c.h.b16 %v165
    %v2962 = vunpack.c.l.b16 %v166
    %v2963 = vunpack.c.h.b16 %v166
    %v2964 = vunpack.c.l.b16 %v167
    %v2965 = vunpack.c.h.b16 %v167
    %v2966 = vunpack.c.l.b16 %v168
    %v2967 = vunpack.c.h.b16 %v168
    %v2968 = vunpack.c.l.b16 %v169
    %v2969 = vunpack.c.h.b16 %v169
    %v2970 = vunpack.c.l.b16 %v170
    %v2971 = vunpack.c.h.b16 %v170
    %v2972 = vunpack.c.l.b16 %v171
    %v2973 = vunpack.c.h.b16 %v171
    %v2974 = vunpack.c.l.b16 %v172
    %v2975 = vunpack.c.h.b16 %v172
    %v2976 = vunpack.c.l.b16 %v173
    %v2977 = vunpack.c.h.b16 %v173
    %v2978 = vunpack.c.l.b16 %v174
    %v2979 = vunpack.c.h.b16 %v174
    %v2980 = vunpack.c.l.b16 %v175
    %v2981 = vunpack.c.h.b16 %v175
    %v2982 = vunpack.c.l.b16 %v176
    %v2983 = vunpack.c.h.b16 %v176
    %v2984 = vunpack.c.l.b16 %v177
    %v2985 = vunpack.c.h.b16 %v177
    %v2986 = vunpack.c.l.b16 %v178
    %v2987 = vunpack.c.h.b16 %v178
    %v2988 = vunpack.c.l.b16 %v179
    %v2989 = vunpack.c.h.b16 %v179
    %v2990 = vunpack.c.l.b16 %v180
    %v2991 = vunpack.c.h.b16 %v180
    %v2992 = vunpack.c.l.b16 %v181
    %v2993 = vunpack.c.h.b16 %v181
    %v2994 = vunpack.c.l.b16 %v182
    %v2995 = vunpack.c.h.b16 %v182
    %v2996 = vunpack.c.l.b16 %v183
    %v2997 = vunpack.c.h.b16 %v183
    %v2998 = vunpack.c.l.b16 %v184
    %v2999 = vunpack.c.h.b16 %v184
    %v3000 = vunpack.c.l.b16 %v185
    %v3001 = vunpack.c.h.b16 %v185
    %v3002 = vunpack.c.l.b16 %v186
    %v3003 = vunpack.c.h.b16 %v186
    %v3004 = vunpack.c.l.b16 %v187
    %v3005 = vunpack.c.h.b16 %v187
    %v3006 = vunpack.c.l.b16 %v188
    %v3007 = vunpack.c.h.b16 %v188
    %v3008 = vunpack.c.l.b16 %v189
    %v3009 = vunpack.c.h.b16 %v189
    %v3010 = vunpack.c.l.b16 %v190
    %v3011 = vunpack.c.h.b16 %v190
    %v3012 = vunpack.c.l.b16 %v191
    %v3013 = vunpack.c.h.b16 %v191
    %v3014 = vunpack.c.l.b16 %v192
    %v3015 = vunpack.c.h.b16 %v192
    %v3016 = vunpack.c.l.b16 %v193
    %v3017 = vunpack.c.h.b16 %v193
    %v3018 = vunpack.c.l.b16 %v194
    %v3019 = vunpack.c.h.b16 %v194
    %v3020 = vunpack.c.l.b16 %v195
    %v3021 = vunpack.c.h.b16 %v195
    %v3022 = vunpack.c.l.b16 %v196
    %v3023 = vunpack.c.h.b16 %v196
    %v3024 = vunpack.c.l.b16 %v197
    %v3025 = vunpack.c.h.b16 %v197
    %v3026 = vunpack.c.l.b16 %v198
    %v3027 = vunpack.c.h.b16 %v198
    %v3028 = vunpack.c.l.b16 %v199
    %v3029 = vunpack.c.h.b16 %v199
    %v3030 = vunpack.c.l.b16 %v200
    %v3031 = vunpack.c.h.b16 %v200
    %v3032 = vunpack.c.l.b16 %v201
    %v3033 = vunpack.c.h.b16 %v201
    %v3034 = vunpack.c.l.b16 %v202
    %v3035 = vunpack.c.h.b16 %v202
    %v3036 = vunpack.c.l.b16 %v203
    %v3037 = vunpack.c.h.b16 %v203
    %v3038 = vunpack.c.l.b16 %v204
    %v3039 = vunpack.c.h.b16 %v204
    %v3040 = vunpack.c.l.b16 %v205
    %v3041 = vunpack.c.h.b16 %v205
    %v3042 = vunpack.c.l.b16 %v206
    %v3043 = vunpack.c.h.b16 %v206
    %v3044 = vunpack.c.l.b16 %v207
    %v3045 = vunpack.c.h.b16 %v207
    %v3046 = vunpack.c.l.b16 %v208
    %v3047 = vunpack.c.h.b16 %v208
    %v3048 = vunpack.c.l.b16 %v209
    %v3049 = vunpack.c.h.b16 %v209
    %v3050 = vunpack.c.l.b16 %v210
    %v3051 = vunpack.c.h.b16 %v210
    %v3052 = vunpack.c.l.b16 %v211
    %v3053 = vunpack.c.h.b16 %v211
    %v3054 = vunpack.c.l.b16 %v212
    %v3055 = vunpack.c.h.b16 %v212
    %v3056 = vunpack.c.l.b16 %v213
    %v3057 = vunpack.c.h.b16 %v213
    %v3058 = vunpack.c.l.b16 %v214
    %v3059 = vunpack.c.h.b16 %v214
    %v3060 = vunpack.c.l.b16 %v215
    %v3061 = vunpack.c.h.b16 %v215
    %v3062 = vunpack.c.l.b16 %v216
    %v3063 = vunpack.c.h.b16 %v216
    %v3064 = vunpack.c.l.b16 %v217
    %v3065 = vunpack.c.h.b16 %v217
    %v3066 = vunpack.c.l.b16 %v218
    %v3067 = vunpack.c.h.b16 %v218
    %v3068 = vunpack.c.l.b16 %v219
    %v3069 = vunpack.c.h.b16 %v219
    %v3070 = vunpack.c.l.b16 %v220
    %v3071 = vunpack.c.h.b16 %v220
    %v3072 = vunpack.c.l.b16 %v221
    %v3073 = vunpack.c.h.b16 %v221
    %v3074 = vunpack.c.l.b16 %v222
    %v3075 = vunpack.c.h.b16 %v222
    %v3076 = vunpack.c.l.b16 %v223
    %v3077 = vunpack.c.h.b16 %v223
    %v3078 = vunpack.c.l.b16 %v224
    %v3079 = vunpack.c.h.b16 %v224
    %v3080 = vunpack.c.l.b16 %v225
    %v3081 = vunpack.c.h.b16 %v225
    %v3082 = vunpack.c.l.b16 %v226
    %v3083 = vunpack.c.h.b16 %v226
    %v3084 = vunpack.c.l.b16 %v227
    %v3085 = vunpack.c.h.b16 %v227
    %v3086 = vunpack.c.l.b16 %v228
    %v3087 = vunpack.c.h.b16 %v228
    %v3088 = vunpack.c.l.b16 %v229
    %v3089 = vunpack.c.h.b16 %v229
    %v3090 = vunpack.c.l.b16 %v230
    %v3091 = vunpack.c.h.b16 %v230
    %v3092 = vunpack.c.l.b16 %v231
    %v3093 = vunpack.c.h.b16 %v231
    %v3094 = vunpack.c.l.b16 %v232
    %v3095 = vunpack.c.h.b16 %v232
    %v3096 = vunpack.c.l.b16 %v233
    %v3097 = vunpack.c.h.b16 %v233
    %v3098 = vunpack.c.l.b16 %v234
    %v3099 = vunpack.c.h.b16 %v234
    %v3100 = vunpack.c.l.b16 %v235
    %v3101 = vunpack.c.h.b16 %v235
    %v3102 = vunpack.c.l.b16 %v236
    %v3103 = vunpack.c.h.b16 %v236
    %v3104 = vunpack.c.l.b16 %v237
    %v3105 = vunpack.c.h.b16 %v237
    %v3106 = vunpack.c.l.b16 %v238
    %v3107 = vunpack.c.h.b16 %v238
    %v3108 = vunpack.c.l.b16 %v239
    %v3109 = vunpack.c.h.b16 %v239
    %v3110 = vunpack.c.l.b16 %v240
    %v3111 = vunpack.c.h.b16 %v240
    %v3112 = vunpack.c.l.b16 %v241
    %v3113 = vunpack.c.h.b16 %v241
    %v3114 = vunpack.c.l.b16 %v242
    %v3115 = vunpack.c.h.b16 %v242
    %v3116 = vunpack.c.l.b16 %v243
    %v3117 = vunpack.c.h.b16 %v243
    %v3118 = vunpack.c.l.b16 %v244
    %v3119 = vunpack.c.h.b16 %v244
    %v3120 = vunpack.c.l.b16 %v245
    %v3121 = vunpack.c.h.b16 %v245
    %v3122 = vunpack.c.l.b16 %v246
    %v3123 = vunpack.c.h.b16 %v246
    %v3124 = vunpack.c.l.b16 %v247
    %v3125 = vunpack.c.h.b16 %v247
    %v3126 = vunpack.c.l.b16 %v248
    %v3127 = vunpack.c.h.b16 %v248
    %v3128 = vunpack.c.l.b16 %v249
    %v3129 = vunpack.c.h.b16 %v249
    %v3130 = vunpack.c.l.b16 %v250
    %v3131 = vunpack.c.h.b16 %v250
    %v3132 = vunpack.c.l.b16 %v251
    %v3133 = vunpack.c.h.b16 %v251
    %v3134 = vunpack.c.l.b16 %v252
    %v3135 = vunpack.c.h.b16 %v252
    %v3136 = vunpack.c.l.b16 %v253
    %v3137 = vunpack.c.h.b16 %v253
    %v3138 = vunpack.c.l.b16 %v254
    %v3139 = vunpack.c.h.b16 %v254
    %v3140 = vunpack.c.l.b16 %v255
    %v3141 = vunpack.c.h.b16 %v255
    %v3142 = vunpack.c.l.b16 %v256
    %v3143 = vunpack.c.h.b16 %v256
    %v3144 = vunpack.c.l.b16 %v257
    %v3145 = vunpack.c.h.b16 %v257
    %v3146 = vunpack.c.l.b16 %v258
    %v3147 = vunpack.c.h.b16 %v258
    %v3148 = vunpack.c.l.b16 %v259
    %v3149 = vunpack.c.h.b16 %v259
    %v3150 = vunpack.c.l.b16 %v260
    %v3151 = vunpack.c.h.b16 %v260
    %v3152 = vunpack.c.l.b16 %v261
    %v3153 = vunpack.c.h.b16 %v261
    %v3154 = vunpack.c.l.b16 %v262
    %v3155 = vunpack.c.h.b16 %v262
    %v3156 = vunpack.c.l.b16 %v263
    %v3157 = vunpack.c.h.b16 %v263
    %v3158 = vunpack.c.l.b16 %v264
    %v3159 = vunpack.c.h.b16 %v264
    %v3160 = vunpack.c.l.b16 %v265
    %v3161 = vunpack.c.h.b16 %v265
    %v3162 = vunpack.c.l.b16 %v266
    %v3163 = vunpack.c.h.b16 %v266
    %v3164 = vunpack.c.l.b16 %v267
    %v3165 = vunpack.c.h.b16 %v267
    %v3166 = vunpack.c.l.b16 %v268
    %v3167 = vunpack.c.h.b16 %v268
    %v3168 = vunpack.c.l.b16 %v269
    %v3169 = vunpack.c.h.b16 %v269
    %v3170 = vunpack.c.l.b16 %v270
    %v3171 = vunpack.c.h.b16 %v270
    %v3172 = vunpack.c.l.b16 %v271
    %v3173 = vunpack.c.h.b16 %v271
    %v3174 = vunpack.c.l.b16 %v272
    %v3175 = vunpack.c.h.b16 %v272
    %v3176 = vunpack.c.l.b16 %v273
    %v3177 = vunpack.c.h.b16 %v273
    %v3178 = vunpack.c.l.b16 %v274
    %v3179 = vunpack.c.h.b16 %v274
    %v3180 = vunpack.c.l.b16 %v275
    %v3181 = vunpack.c.h.b16 %v275
    %v3182 = vunpack.c.l.b16 %v276
    %v3183 = vunpack.c.h.b16 %v276
    %v3184 = vunpack.c.l.b16 %v277
    %v3185 = vunpack.c.h.b16 %v277
    %v3186 = vunpack.c.l.b16 %v278
    %v3187 = vunpack.c.h.b16 %v278
    %v3188 = vunpack.c.l.b16 %v279
    %v3189 = vunpack.c.h.b16 %v279
    %v3190 = vunpack.c.l.b16 %v280
    %v3191 = vunpack.c.h.b16 %v280
    %v3192 = vunpack.c.l.b16 %v281
    %v3193 = vunpack.c.h.b16 %v281
    %v3194 = vunpack.c.l.b16 %v282
    %v3195 = vunpack.c.h.b16 %v282
    %v3196 = vunpack.c.l.b16 %v283
    %v3197 = vunpack.c.h.b16 %v283
    %v3198 = vunpack.c.l.b16 %v284
    %v3199 = vunpack.c.h.b16 %v284
    %v3200 = vunpack.c.l.b16 %v285
    %v3201 = vunpack.c.h.b16 %v285
    %v3202 = vunpack.c.l.b16 %v286
    %v3203 = vunpack.c.h.b16 %v286
    %v3204 = vunpack.c.l.b16 %v287
    %v3205 = vunpack.c.h.b16 %v287
    %v3206 = vunpack.c.l.b16 %v288
    %v3207 = vunpack.c.h.b16 %v288
    %v3208 = vunpack.c.l.b16 %v289
    %v3209 = vunpack.c.h.b16 %v289
    %v3210 = vunpack.c.l.b16 %v290
    %v3211 = vunpack.c.h.b16 %v290
    %v3212 = vunpack.c.l.b16 %v291
    %v3213 = vunpack.c.h.b16 %v291
    %v3214 = vunpack.c.l.b16 %v292
    %v3215 = vunpack.c.h.b16 %v292
    %v3216 = vunpack.c.l.b16 %v293
    %v3217 = vunpack.c.h.b16 %v293
    %v3218 = vunpack.c.l.b16 %v294
    %v3219 = vunpack.c.h.b16 %v294
    %v3220 = vunpack.c.l.b16 %v295
    %v3221 = vunpack.c.h.b16 %v295
    %v3222 = vunpack.c.l.b16 %v296
    %v3223 = vunpack.c.h.b16 %v296
    %v3224 = vunpack.c.l.b16 %v297
    %v3225 = vunpack.c.h.b16 %v297
    %v3226 = vunpack.c.l.b16 %v298
    %v3227 = vunpack.c.h.b16 %v298
    %v3228 = vunpack.c.l.b16 %v299
    %v3229 = vunpack.c.h.b16 %v299
    %v3230 = vunpack.c.l.b16 %v300
    %v3231 = vunpack.c.h.b16 %v300
    %v3232 = vunpack.c.l.b16 %v301
    %v3233 = vunpack.c.h.b16 %v301
    %v3234 = vunpack.c.l.b16 %v302
    %v3235 = vunpack.c.h.b16 %v302
    %v3236 = vunpack.c.l.b16 %v303
    %v3237 = vunpack.c.h.b16 %v303
    %v3238 = vunpack.c.l.b16 %v304
    %v3239 = vunpack.c.h.b16 %v304
    %v3240 = vunpack.c.l.b16 %v305
    %v3241 = vunpack.c.h.b16 %v305
    %v3242 = vunpack.c.l.b16 %v306
    %v3243 = vunpack.c.h.b16 %v306
    %v3244 = vunpack.c.l.b16 %v307
    %v3245 = vunpack.c.h.b16 %v307
    %v3246 = vunpack.c.l.b16 %v308
    %v3247 = vunpack.c.h.b16 %v308
    %v3248 = vunpack.c.l.b16 %v309
    %v3249 = vunpack.c.h.b16 %v309
    %v3250 = vunpack.c.l.b16 %v310
    %v3251 = vunpack.c.h.b16 %v310
    %v3252 = vunpack.c.l.b16 %v311
    %v3253 = vunpack.c.h.b16 %v311
    %v3254 = vunpack.c.l.b16 %v312
    %v3255 = vunpack.c.h.b16 %v312
    %v3256 = vunpack.c.l.b16 %v313
    %v3257 = vunpack.c.h.b16 %v313
    %v3258 = vunpack.c.l.b16 %v314
    %v3259 = vunpack.c.h.b16 %v314
    %v3260 = vunpack.c.l.b16 %v315
    %v3261 = vunpack.c.h.b16 %v315
    %v3262 = vunpack.c.l.b16 %v316
    %v3263 = vunpack.c.h.b16 %v316
    %v3264 = vunpack.c.l.b16 %v317
    %v3265 = vunpack.c.h.b16 %v317
    %v3266 = vunpack.c.l.b16 %v318
    %v3267 = vunpack.c.h.b16 %v318
    %v3268 = vunpack.c.l.b16 %v319
    %v3269 = vunpack.c.h.b16 %v319
    %v3270 = vunpack.c.l.b16 %v320
    %v3271 = vunpack.c.h.b16 %v320
    %v3272 = vunpack.c.l.b16 %v321
    %v3273 = vunpack.c.h.b16 %v321
    %v3274 = vunpack.c.l.b16 %v322
    %v3275 = vunpack.c.h.b16 %v322
    %v3276 = vunpack.c.l.b16 %v323
    %v3277 = vunpack.c.h.b16 %v323
    %v3278 = vunpack.c.l.b16 %v324
    %v3279 = vunpack.c.h.b16 %v324
    %v3280 = vunpack.c.l.b16 %v325
    %v3281 = vunpack.c.h.b16 %v325
    %v3282 = vunpack.c.l.b16 %v326
    %v3283 = vunpack.c.h.b16 %v326
    %v3284 = vunpack.c.l.b16 %v327
    %v3285 = vunpack.c.h.b16 %v327
    %v3286 = vunpack.c.l.b16 %v328
    %v3287 = vunpack.c.h.b16 %v328
    %v3288 = vunpack.c.l.b16 %v329
    %v3289 = vunpack.c.h.b16 %v329
    %v3290 = vunpack.c.l.b16 %v330
    %v3291 = vunpack.c.h.b16 %v330
    %v3292 = vunpack.c.l.b16 %v331
    %v3293 = vunpack.c.h.b16 %v331
    %v3294 = vunpack.c.l.b16 %v332
    %v3295 = vunpack.c.h.b16 %v332
    %v3296 = vunpack.c.l.b16 %v333
    %v3297 = vunpack.c.h.b16 %v333
    %v3298 = vunpack.c.l.b16 %v334
    %v3299 = vunpack.c.h.b16 %v334
    %v3300 = vunpack.c.l.b16 %v335
    %v3301 = vunpack.c.h.b16 %v335
    %v3302 = vunpack.c.l.b16 %v336
    %v3303 = vunpack.c.h.b16 %v336
    %v3304 = vunpack.c.l.b16 %v337
    %v3305 = vunpack.c.h.b16 %v337
    %v3306 = vunpack.c.l.b16 %v338
    %v3307 = vunpack.c.h.b16 %v338
    %v3308 = vunpack.c.l.b16 %v339
    %v3309 = vunpack.c.h.b16 %v339
    %v3310 = vunpack.c.l.b16 %v340
    %v3311 = vunpack.c.h.b16 %v340
    %v3312 = vunpack.c.l.b16 %v341
    %v3313 = vunpack.c.h.b16 %v341
    %v3314 = vunpack.c.l.b16 %v342
    %v3315 = vunpack.c.h.b16 %v342
    %v3316 = vunpack.c.l.b16 %v343
    %v3317 = vunpack.c.h.b16 %v343
    %v3318 = vunpack.c.l.b16 %v344
    %v3319 = vunpack.c.h.b16 %v344
    %v3320 = vunpack.c.l.b16 %v345
    %v3321 = vunpack.c.h.b16 %v345
    %v3322 = vunpack.c.l.b16 %v346
    %v3323 = vunpack.c.h.b16 %v346
    %v3324 = vunpack.c.l.b16 %v347
    %v3325 = vunpack.c.h.b16 %v347
    %v3326 = vunpack.c.l.b16 %v348
    %v3327 = vunpack.c.h.b16 %v348
    %v3328 = vunpack.c.l.b16 %v349
    %v3329 = vunpack.c.h.b16 %v349
    %v3330 = vunpack.c.l.b16 %v350
    %v3331 = vunpack.c.h.b16 %v350
    %v3332 = vunpack.c.l.b16 %v351
    %v3333 = vunpack.c.h.b16 %v351
    %v3334 = vunpack.c.l.b16 %v352
    %v3335 = vunpack.c.h.b16 %v352
    %v3336 = vunpack.c.l.b16 %v353
    %v3337 = vunpack.c.h.b16 %v353
    %v3338 = vunpack.c.l.b16 %v354
    %v3339 = vunpack.c.h.b16 %v354
    %v3340 = vunpack.c.l.b16 %v355
    %v3341 = vunpack.c.h.b16 %v355
    %v3342 = vunpack.c.l.b16 %v356
    %v3343 = vunpack.c.h.b16 %v356
    %v3344 = vunpack.c.l.b16 %v357
    %v3345 = vunpack.c.h.b16 %v357
    %v3346 = vunpack.c.l.b16 %v358
    %v3347 = vunpack.c.h.b16 %v358
    %v3348 = vunpack.c.l.b16 %v359
    %v3349 = vunpack.c.h.b16 %v359
    %v3350 = vunpack.c.l.b16 %v360
    %v3351 = vunpack.c.h.b16 %v360
    %v3352 = vunpack.c.l.b16 %v361
    %v3353 = vunpack.c.h.b16 %v361
    %v3354 = vunpack.c.l.b16 %v362
    %v3355 = vunpack.c.h.b16 %v362
    %v3356 = vunpack.c.l.b16 %v363
    %v3357 = vunpack.c.h.b16 %v363
    %v3358 = vunpack.c.l.b16 %v364
    %v3359 = vunpack.c.h.b16 %v364
    %v3360 = vunpack.c.l.b16 %v365
    %v3361 = vunpack.c.h.b16 %v365
    %v3362 = vunpack.c.l.b16 %v366
    %v3363 = vunpack.c.h.b16 %v366
    %v3364 = vunpack.c.l.b16 %v367
    %v3365 = vunpack.c.h.b16 %v367
    %v3366 = vunpack.c.l.b16 %v368
    %v3367 = vunpack.c.h.b16 %v368
    %v3368 = vunpack.c.l.b16 %v369
    %v3369 = vunpack.c.h.b16 %v369
    %v3370 = vunpack.c.l.b16 %v370
    %v3371 = vunpack.c.h.b16 %v370
    %v3372 = vunpack.c.l.b16 %v371
    %v3373 = vunpack.c.h.b16 %v371
    %v3374 = vunpack.c.l.b16 %v372
    %v3375 = vunpack.c.h.b16 %v372
    %v3376 = vunpack.c.l.b16 %v373
    %v3377 = vunpack.c.h.b16 %v373
    %v3378 = vunpack.c.l.b16 %v374
    %v3379 = vunpack.c.h.b16 %v374
    %v3380 = vunpack.c.l.b16 %v375
    %v3381 = vunpack.c.h.b16 %v375
    %v3382 = vunpack.c.l.b16 %v376
    %v3383 = vunpack.c.h.b16 %v376
    %v3384 = vunpack.c.l.b16 %v377
    %v3385 = vunpack.c.h.b16 %v377
    %v3386 = vunpack.c.l.b16 %v378
    %v3387 = vunpack.c.h.b16 %v378
    %v3388 = vunpack.c.l.b16 %v379
    %v3389 = vunpack.c.h.b16 %v379
    %v3390 = vunpack.c.l.b16 %v380
    %v3391 = vunpack.c.h.b16 %v380
    %v3392 = vunpack.c.l.b16 %v381
    %v3393 = vunpack.c.h.b16 %v381
    %v3394 = vunpack.c.l.b16 %v382
    %v3395 = vunpack.c.h.b16 %v382
    %v3396 = vunpack.c.l.b16 %v383
    %v3397 = vunpack.c.h.b16 %v383
    %v3398 = vunpack.c.l.b16 %v384
    %v3399 = vunpack.c.h.b16 %v384
    %v3400 = vunpack.c.l.b16 %v385
    %v3401 = vunpack.c.h.b16 %v385
    %v3402 = vunpack.c.l.b16 %v386
    %v3403 = vunpack.c.h.b16 %v386
    %v3404 = vunpack.c.l.b16 %v387
    %v3405 = vunpack.c.h.b16 %v387
    %v3406 = vunpack.c.l.b16 %v388
    %v3407 = vunpack.c.h.b16 %v388
    %v3408 = vunpack.c.l.b16 %v389
    %v3409 = vunpack.c.h.b16 %v389
    %v3410 = vunpack.c.l.b16 %v390
    %v3411 = vunpack.c.h.b16 %v390
    %v3412 = vunpack.c.l.b16 %v391
    %v3413 = vunpack.c.h.b16 %v391
    %v3414 = vunpack.c.l.b16 %v392
    %v3415 = vunpack.c.h.b16 %v392
    %v3416 = vunpack.c.l.b16 %v393
    %v3417 = vunpack.c.h.b16 %v393
    %v3418 = vunpack.c.l.b16 %v394
    %v3419 = vunpack.c.h.b16 %v394
    %v3420 = vunpack.c.l.b16 %v395
    %v3421 = vunpack.c.h.b16 %v395
    %v3422 = vunpack.c.l.b16 %v396
    %v3423 = vunpack.c.h.b16 %v396
    %v3424 = vunpack.c.l.b16 %v397
    %v3425 = vunpack.c.h.b16 %v397
    %v3426 = vunpack.c.l.b16 %v398
    %v3427 = vunpack.c.h.b16 %v398
    %v3428 = vunpack.c.l.b16 %v399
    %v3429 = vunpack.c.h.b16 %v399
    %v3430 = vunpack.c.l.b16 %v400
    %v3431 = vunpack.c.h.b16 %v400
    %v3432 = vunpack.c.l.b16 %v401
    %v3433 = vunpack.c.h.b16 %v401
    %v3434 = vunpack.c.l.b16 %v402
    %v3435 = vunpack.c.h.b16 %v402
    %v3436 = vunpack.c.l.b16 %v403
    %v3437 = vunpack.c.h.b16 %v403
    %v3438 = vunpack.c.l.b16 %v404
    %v3439 = vunpack.c.h.b16 %v404
    %v3440 = vunpack.c.l.b16 %v405
    %v3441 = vunpack.c.h.b16 %v405
    %v3442 = vunpack.c.l.b16 %v406
    %v3443 = vunpack.c.h.b16 %v406
    %v3444 = vunpack.c.l.b16 %v407
    %v3445 = vunpack.c.h.b16 %v407
    %v3446 = vunpack.c.l.b16 %v408
    %v3447 = vunpack.c.h.b16 %v408
    %v3448 = vunpack.c.l.b16 %v409
    %v3449 = vunpack.c.h.b16 %v409
    %v3450 = vunpack.c.l.b16 %v410
    %v3451 = vunpack.c.h.b16 %v410
    %v3452 = vunpack.c.l.b16 %v411
    %v3453 = vunpack.c.h.b16 %v411
    %v3454 = vunpack.c.l.b16 %v412
    %v3455 = vunpack.c.h.b16 %v412
    %v3456 = vunpack.c.l.b16 %v413
    %v3457 = vunpack.c.h.b16 %v413
    %v3458 = vunpack.c.l.b16 %v414
    %v3459 = vunpack.c.h.b16 %v414
    %v3460 = vunpack.c.l.b16 %v415
    %v3461 = vunpack.c.h.b16 %v415
    %v3462 = vunpack.c.l.b16 %v416
    %v3463 = vunpack.c.h.b16 %v416
    %v3464 = vunpack.c.l.b16 %v417
    %v3465 = vunpack.c.h.b16 %v417
    %v3466 = vunpack.c.l.b16 %v418
    %v3467 = vunpack.c.h.b16 %v418
    %v3468 = vunpack.c.l.b16 %v419
    %v3469 = vunpack.c.h.b16 %v419
    %v3470 = vunpack.c.l.b16 %v420
    %v3471 = vunpack.c.h.b16 %v420
    %v3472 = vunpack.c.l.b16 %v421
    %v3473 = vunpack.c.h.b16 %v421
    %v3474 = vunpack.c.l.b16 %v422
    %v3475 = vunpack.c.h.b16 %v422
    %v3476 = vunpack.c.l.b16 %v423
    %v3477 = vunpack.c.h.b16 %v423
    %v3478 = vunpack.c.l.b16 %v424
    %v3479 = vunpack.c.h.b16 %v424
    %v3480 = vunpack.c.l.b16 %v425
    %v3481 = vunpack.c.h.b16 %v425
    %v3482 = vunpack.c.l.b16 %v426
    %v3483 = vunpack.c.h.b16 %v426
    %v3484 = vunpack.c.l.b16 %v427
    %v3485 = vunpack.c.h.b16 %v427
    %v3486 = vunpack.c.l.b16 %v428
    %v3487 = vunpack.c.h.b16 %v428
    %v3488 = vunpack.c.l.b16 %v429
    %v3489 = vunpack.c.h.b16 %v429
    %v3490 = vunpack.c.l.b16 %v430
    %v3491 = vunpack.c.h.b16 %v430
    %v3492 = vunpack.c.l.b16 %v431
    %v3493 = vunpack.c.h.b16 %v431
    %v3494 = vunpack.c.l.b16 %v432
    %v3495 = vunpack.c.h.b16 %v432
    %v3496 = vunpack.c.l.b16 %v433
    %v3497 = vunpack.c.h.b16 %v433
    %v3498 = vunpack.c.l.b16 %v434
    %v3499 = vunpack.c.h.b16 %v434
    %v3500 = vunpack.c.l.b16 %v435
    %v3501 = vunpack.c.h.b16 %v435
    %v3502 = vunpack.c.l.b16 %v436
    %v3503 = vunpack.c.h.b16 %v436
    %v3504 = vunpack.c.l.b16 %v437
    %v3505 = vunpack.c.h.b16 %v437
    %v3506 = vunpack.c.l.b16 %v438
    %v3507 = vunpack.c.h.b16 %v438
    %v3508 = vunpack.c.l.b16 %v439
    %v3509 = vunpack.c.h.b16 %v439
    %v3510 = vunpack.c.l.b16 %v440
    %v3511 = vunpack.c.h.b16 %v440
    %v3512 = vunpack.c.l.b16 %v441
    %v3513 = vunpack.c.h.b16 %v441
    %v3514 = vunpack.c.l.b16 %v442
    %v3515 = vunpack.c.h.b16 %v442
    %v3516 = vunpack.c.l.b16 %v443
    %v3517 = vunpack.c.h.b16 %v443
    %v3518 = vunpack.c.l.b16 %v444
    %v3519 = vunpack.c.h.b16 %v444
    %v3520 = vunpack.c.l.b16 %v445
    %v3521 = vunpack.c.h.b16 %v445
    %v3522 = vunpack.c.l.b16 %v446
    %v3523 = vunpack.c.h.b16 %v446
    %v3524 = vunpack.c.l.b16 %v447
    %v3525 = vunpack.c.h.b16 %v447
    %v3526 = vunpack.c.l.b16 %v448
    %v3527 = vunpack.c.h.b16 %v448
    %v3528 = vunpack.c.l.b16 %v449
    %v3529 = vunpack.c.h.b16 %v449
    %v3530 = vunpack.c.l.b16 %v450
    %v3531 = vunpack.c.h.b16 %v450
    %v3532 = vunpack.c.l.b16 %v451
    %v3533 = vunpack.c.h.b16 %v451
    %v3534 = vunpack.c.l.b16 %v452
    %v3535 = vunpack.c.h.b16 %v452
    %v3536 = vunpack.c.l.b16 %v453
    %v3537 = vunpack.c.h.b16 %v453
    %v3538 = vunpack.c.l.b16 %v454
    %v3539 = vunpack.c.h.b16 %v454
    %v3540 = vunpack.c.l.b16 %v455
    %v3541 = vunpack.c.h.b16 %v455
    %v3542 = vunpack.c.l.b16 %v456
    %v3543 = vunpack.c.h.b16 %v456
    %v3544 = vunpack.c.l.b16 %v457
    %v3545 = vunpack.c.h.b16 %v457
    %v3546 = vunpack.c.l.b16 %v458
    %v3547 = vunpack.c.h.b16 %v458
    %v3548 = vunpack.c.l.b16 %v459
    %v3549 = vunpack.c.h.b16 %v459
    %v3550 = vunpack.c.l.b16 %v460
    %v3551 = vunpack.c.h.b16 %v460
    %v3552 = vunpack.c.l.b16 %v461
    %v3553 = vunpack.c.h.b16 %v461
    %v3554 = vunpack.c.l.b16 %v462
    %v3555 = vunpack.c.h.b16 %v462
    %v3556 = vunpack.c.l.b16 %v463
    %v3557 = vunpack.c.h.b16 %v463
    %v3558 = vunpack.c.l.b16 %v464
    %v3559 = vunpack.c.h.b16 %v464
    %v3560 = vunpack.c.l.b16 %v465
    %v3561 = vunpack.c.h.b16 %v465
    %v3562 = vunpack.c.l.b16 %v466
    %v3563 = vunpack.c.h.b16 %v466
    %v3564 = vunpack.c.l.b16 %v467
    %v3565 = vunpack.c.h.b16 %v467
    %v3566 = vunpack.c.l.b16 %v468
    %v3567 = vunpack.c.h.b16 %v468
    %v3568 = vunpack.c.l.b16 %v469
    %v3569 = vunpack.c.h.b16 %v469
    %v3570 = vunpack.c.l.b16 %v470
    %v3571 = vunpack.c.h.b16 %v470
    %v3572 = vunpack.c.l.b16 %v471
    %v3573 = vunpack.c.h.b16 %v471
    %v3574 = vunpack.c.l.b16 %v472
    %v3575 = vunpack.c.h.b16 %v472
    %v3576 = vunpack.c.l.b16 %v473
    %v3577 = vunpack.c.h.b16 %v473
    %v3578 = vunpack.c.l.b16 %v474
    %v3579 = vunpack.c.h.b16 %v474
    %v3580 = vunpack.c.l.b16 %v475
    %v3581 = vunpack.c.h.b16 %v475
    %v3582 = vunpack.c.l.b16 %v476
    %v3583 = vunpack.c.h.b16 %v476
    %v3584 = vunpack.c.l.b16 %v477
    %v3585 = vunpack.c.h.b16 %v477
    %v3586 = vunpack.c.l.b16 %v478
    %v3587 = vunpack.c.h.b16 %v478
    %v3588 = vunpack.c.l.b16 %v479
    %v3589 = vunpack.c.h.b16 %v479
    %v3590 = vunpack.c.l.b16 %v480
    %v3591 = vunpack.c.h.b16 %v480
    %v3592 = vunpack.c.l.b16 %v481
    %v3593 = vunpack.c.h.b16 %v481
    %v3594 = vunpack.c.l.b16 %v482
    %v3595 = vunpack.c.h.b16 %v482
    %v3596 = vunpack.c.l.b16 %v483
    %v3597 = vunpack.c.h.b16 %v483
    %v3598 = vunpack.c.l.b16 %v484
    %v3599 = vunpack.c.h.b16 %v484
    %v3600 = vunpack.c.l.b16 %v485
    %v3601 = vunpack.c.h.b16 %v485
    %v3602 = vunpack.c.l.b16 %v486
    %v3603 = vunpack.c.h.b16 %v486
    %v3604 = vunpack.c.l.b16 %v487
    %v3605 = vunpack.c.h.b16 %v487
    %v3606 = vunpack.c.l.b16 %v488
    %v3607 = vunpack.c.h.b16 %v488
    %v3608 = vunpack.c.l.b16 %v489
    %v3609 = vunpack.c.h.b16 %v489
    %v3610 = vunpack.c.l.b16 %v490
    %v3611 = vunpack.c.h.b16 %v490
    %v3612 = vunpack.c.l.b16 %v491
    %v3613 = vunpack.c.h.b16 %v491
    %v3614 = vunpack.c.l.b16 %v492
    %v3615 = vunpack.c.h.b16 %v492
    %v3616 = vunpack.c.l.b16 %v493
    %v3617 = vunpack.c.h.b16 %v493
    %v3618 = vunpack.c.l.b16 %v494
    %v3619 = vunpack.c.h.b16 %v494
    %v3620 = vunpack.c.l.b16 %v495
    %v3621 = vunpack.c.h.b16 %v495
    %v3622 = vunpack.c.l.b16 %v496
    %v3623 = vunpack.c.h.b16 %v496
    %v3624 = vunpack.c.l.b16 %v497
    %v3625 = vunpack.c.h.b16 %v497
    %v3626 = vunpack.c.l.b16 %v498
    %v3627 = vunpack.c.h.b16 %v498
    %v3628 = vunpack.c.l.b16 %v499
    %v3629 = vunpack.c.h.b16 %v499
    %v3630 = vunpack.c.l.b16 %v500
    %v3631 = vunpack.c.h.b16 %v500
    %v3632 = vunpack.c.l.b16 %v501
    %v3633 = vunpack.c.h.b16 %v501
    %v3634 = vunpack.c.l.b16 %v502
    %v3635 = vunpack.c.h.b16 %v502
    %v3636 = vunpack.c.l.b16 %v503
    %v3637 = vunpack.c.h.b16 %v503
    %v3638 = vunpack.c.l.b16 %v504
    %v3639 = vunpack.c.h.b16 %v504
    %v3640 = vunpack.c.l.b16 %v505
    %v3641 = vunpack.c.h.b16 %v505
    %v3642 = vunpack.c.l.b16 %v506
    %v3643 = vunpack.c.h.b16 %v506
    %v3644 = vunpack.c.l.b16 %v507
    %v3645 = vunpack.c.h.b16 %v507
    %v3646 = vunpack.c.l.b16 %v508
    %v3647 = vunpack.c.h.b16 %v508
    %v3648 = vunpack.c.l.b16 %v509
    %v3649 = vunpack.c.h.b16 %v509
    %v3650 = vunpack.c.l.b16 %v510
    %v3651 = vunpack.c.h.b16 %v510
    %v3652 = vunpack.c.l.b16 %v511
    %v3653 = vunpack.c.h.b16 %v511
    %v3654 = vunpack.c.l.b16 %v512
    %v3655 = vunpack.c.h.b16 %v512
    %v3656 = vunpack.c.l.b16 %v513
    %v3657 = vunpack.c.h.b16 %v513
    %v3658 = vunpack.c.l.b16 %v514
    %v3659 = vunpack.c.h.b16 %v514
    %v3660 = vunpack.c.l.b16 %v515
    %v3661 = vunpack.c.h.b16 %v515
    %v3662 = vunpack.c.l.b16 %v516
    %v3663 = vunpack.c.h.b16 %v516
    %v3664 = vunpack.c.l.b16 %v517
    %v3665 = vunpack.c.h.b16 %v517
    %v3666 = vunpack.c.l.b16 %v518
    %v3667 = vunpack.c.h.b16 %v518
    %v3668 = vunpack.c.l.b16 %v519
    %v3669 = vunpack.c.h.b16 %v519
    %v3670 = vunpack.c.l.b16 %v520
    %v3671 = vunpack.c.h.b16 %v520
    %v3672 = vunpack.c.l.b16 %v521
    %v3673 = vunpack.c.h.b16 %v521
    %v3674 = vunpack.c.l.b16 %v522
    %v3675 = vunpack.c.h.b16 %v522
    %v3676 = vunpack.c.l.b16 %v523
    %v3677 = vunpack.c.h.b16 %v523
    %v3678 = vunpack.c.l.b16 %v524
    %v3679 = vunpack.c.h.b16 %v524
    %v3680 = vunpack.c.l.b16 %v525
    %v3681 = vunpack.c.h.b16 %v525
    %v3682 = vunpack.c.l.b16 %v526
    %v3683 = vunpack.c.h.b16 %v526
    %v3684 = vunpack.c.l.b16 %v527
    %v3685 = vunpack.c.h.b16 %v527
    %v3686 = vunpack.c.l.b16 %v528
    %v3687 = vunpack.c.h.b16 %v528
    %v3688 = vunpack.c.l.b16 %v529
    %v3689 = vunpack.c.h.b16 %v529
    %v3690 = vunpack.c.l.b16 %v530
    %v3691 = vunpack.c.h.b16 %v530
    %v3692 = vunpack.c.l.b16 %v531
    %v3693 = vunpack.c.h.b16 %v531
    %v3694 = vunpack.c.l.b16 %v532
    %v3695 = vunpack.c.h.b16 %v532
    %v3696 = vunpack.c.l.b16 %v533
    %v3697 = vunpack.c.h.b16 %v533
    %v3698 = vunpack.c.l.b16 %v534
    %v3699 = vunpack.c.h.b16 %v534
    %v3700 = vunpack.c.l.b16 %v535
    %v3701 = vunpack.c.h.b16 %v535
    %v3702 = vunpack.c.l.b16 %v536
    %v3703 = vunpack.c.h.b16 %v536
    %v3704 = vunpack.c.l.b16 %v537
    %v3705 = vunpack.c.h.b16 %v537
    %v3706 = vunpack.c.l.b16 %v538
    %v3707 = vunpack.c.h.b16 %v538
    %v3708 = vunpack.c.l.b16 %v539
    %v3709 = vunpack.c.h.b16 %v539
    %v3710 = vunpack.c.l.b16 %v540
    %v3711 = vunpack.c.h.b16 %v540
    %v3712 = vunpack.c.l.b16 %v541
    %v3713 = vunpack.c.h.b16 %v541
    %v3714 = vunpack.c.l.b16 %v542
    %v3715 = vunpack.c.h.b16 %v542
    %v3716 = vunpack.c.l.b16 %v543
    %v3717 = vunpack.c.h.b16 %v543
    %v3718 = vunpack.c.l.b16 %v544
    %v3719 = vunpack.c.h.b16 %v544
    %v3720 = vunpack.c.l.b16 %v545
    %v3721 = vunpack.c.h.b16 %v545
    %v3722 = vunpack.c.l.b16 %v546
    %v3723 = vunpack.c.h.b16 %v546
    %v3724 = vunpack.c.l.b16 %v547
    %v3725 = vunpack.c.h.b16 %v547
    %v3726 = vunpack.c.l.b16 %v548
    %v3727 = vunpack.c.h.b16 %v548
    %v3728 = vunpack.c.l.b16 %v549
    %v3729 = vunpack.c.h.b16 %v549
    %v3730 = vunpack.c.l.b16 %v550
    %v3731 = vunpack.c.h.b16 %v550
    %v3732 = vunpack.c.l.b16 %v551
    %v3733 = vunpack.c.h.b16 %v551
    %v3734 = vunpack.c.l.b16 %v552
    %v3735 = vunpack.c.h.b16 %v552
    %v3736 = vunpack.c.l.b16 %v553
    %v3737 = vunpack.c.h.b16 %v553
    %v3738 = vunpack.c.l.b16 %v554
    %v3739 = vunpack.c.h.b16 %v554
    %v3740 = vunpack.c.l.b16 %v555
    %v3741 = vunpack.c.h.b16 %v555
    %v3742 = vunpack.c.l.b16 %v556
    %v3743 = vunpack.c.h.b16 %v556
    %v3744 = vunpack.c.l.b16 %v557
    %v3745 = vunpack.c.h.b16 %v557
    %v3746 = vunpack.c.l.b16 %v558
    %v3747 = vunpack.c.h.b16 %v558
    %v3748 = vunpack.c.l.b16 %v559
    %v3749 = vunpack.c.h.b16 %v559
    %v3750 = vunpack.c.l.b16 %v560
    %v3751 = vunpack.c.h.b16 %v560
    %v3752 = vunpack.c.l.b16 %v561
    %v3753 = vunpack.c.h.b16 %v561
    %v3754 = vunpack.c.l.b16 %v562
    %v3755 = vunpack.c.h.b16 %v562
    %v3756 = vunpack.c.l.b16 %v563
    %v3757 = vunpack.c.h.b16 %v563
    %v3758 = vunpack.c.l.b16 %v564
    %v3759 = vunpack.c.h.b16 %v564
    %v3760 = vunpack.c.l.b16 %v565
    %v3761 = vunpack.c.h.b16 %v565
    %v3762 = vunpack.c.l.b16 %v566
    %v3763 = vunpack.c.h.b16 %v566
    %v3764 = vunpack.c.l.b16 %v567
    %v3765 = vunpack.c.h.b16 %v567
    %v3766 = vunpack.c.l.b16 %v568
    %v3767 = vunpack.c.h.b16 %v568
    %v3768 = vunpack.c.l.b16 %v569
    %v3769 = vunpack.c.h.b16 %v569
    %v3770 = vunpack.c.l.b16 %v570
    %v3771 = vunpack.c.h.b16 %v570
    %v3772 = vunpack.c.l.b16 %v571
    %v3773 = vunpack.c.h.b16 %v571
    %v3774 = vunpack.c.l.b16 %v572
    %v3775 = vunpack.c.h.b16 %v572
    %v3776 = vunpack.c.l.b16 %v573
    %v3777 = vunpack.c.h.b16 %v573
    %v3778 = vunpack.c.l.b16 %v574
    %v3779 = vunpack.c.h.b16 %v574
    %v3780 = vunpack.c.l.b16 %v575
    %v3781 = vunpack.c.h.b16 %v575
    %v3782 = vunpack.c.l.b16 %v576
    %v3783 = vunpack.c.h.b16 %v576
    %v3784 = vunpack.c.l.b16 %v577
    %v3785 = vunpack.c.h.b16 %v577
    %v3786 = vunpack.c.l.b16 %v578
    %v3787 = vunpack.c.h.b16 %v578
    %v3788 = vunpack.c.l.b16 %v579
    %v3789 = vunpack.c.h.b16 %v579
    %v3790 = vunpack.c.l.b16 %v580
    %v3791 = vunpack.c.h.b16 %v580
    %v3792 = vunpack.c.l.b16 %v581
    %v3793 = vunpack.c.h.b16 %v581
    %v3794 = vunpack.c.l.b16 %v582
    %v3795 = vunpack.c.h.b16 %v582
    %v3796 = vunpack.c.l.b16 %v583
    %v3797 = vunpack.c.h.b16 %v583
    %v3798 = vunpack.c.l.b16 %v584
    %v3799 = vunpack.c.h.b16 %v584
    %v3800 = vunpack.c.l.b16 %v585
    %v3801 = vunpack.c.h.b16 %v585
    %v3802 = vunpack.c.l.b16 %v586
    %v3803 = vunpack.c.h.b16 %v586
    %v3804 = vunpack.c.l.b16 %v587
    %v3805 = vunpack.c.h.b16 %v587
    %v3806 = vunpack.c.l.b16 %v588
    %v3807 = vunpack.c.h.b16 %v588
    %v3808 = vunpack.c.l.b16 %v589
    %v3809 = vunpack.c.h.b16 %v589
    %v3810 = vunpack.c.l.b16 %v590
    %v3811 = vunpack.c.h.b16 %v590
    %v3812 = vunpack.c.l.b16 %v591
    %v3813 = vunpack.c.h.b16 %v591
    %v3814 = vunpack.c.l.b16 %v592
    %v3815 = vunpack.c.h.b16 %v592
    %v3816 = vunpack.c.l.b16 %v593
    %v3817 = vunpack.c.h.b16 %v593
    %v3818 = vunpack.c.l.b16 %v594
    %v3819 = vunpack.c.h.b16 %v594
    %v3820 = vunpack.c.l.b16 %v595
    %v3821 = vunpack.c.h.b16 %v595
    %v3822 = vunpack.c.l.b16 %v596
    %v3823 = vunpack.c.h.b16 %v596
    %v3824 = vunpack.c.l.b16 %v597
    %v3825 = vunpack.c.h.b16 %v597
    %v3826 = vunpack.c.l.b16 %v598
    %v3827 = vunpack.c.h.b16 %v598
    %v3828 = vunpack.c.l.b16 %v599
    %v3829 = vunpack.c.h.b16 %v599
    %v3830 = vunpack.c.l.b16 %v600
    %v3831 = vunpack.c.h.b16 %v600
    %v3832 = vunpack.c.l.b16 %v601
    %v3833 = vunpack.c.h.b16 %v601
    %v3834 = vunpack.c.l.b16 %v602
    %v3835 = vunpack.c.h.b16 %v602
    %v3836 = vunpack.c.l.b16 %v603
    %v3837 = vunpack.c.h.b16 %v603
    %v3838 = vunpack.c.l.b16 %v604
    %v3839 = vunpack.c.h.b16 %v604
    %v3840 = vunpack.c.l.b16 %v605
    %v3841 = vunpack.c.h.b16 %v605
    %v3842 = vunpack.c.l.b16 %v606
    %v3843 = vunpack.c.h.b16 %v606
    %v3844 = vunpack.c.l.b16 %v607
    %v3845 = vunpack.c.h.b16 %v607
    %v3846 = vunpack.c.l.b16 %v608
    %v3847 = vunpack.c.h.b16 %v608
    %v3848 = vunpack.c.l.b16 %v609
    %v3849 = vunpack.c.h.b16 %v609
    %v3850 = vunpack.c.l.b16 %v610
    %v3851 = vunpack.c.h.b16 %v610
    %v3852 = vunpack.c.l.b16 %v611
    %v3853 = vunpack.c.h.b16 %v611
    %v3854 = vunpack.c.l.b16 %v612
    %v3855 = vunpack.c.h.b16 %v612
    %v3856 = vunpack.c.l.b16 %v613
    %v3857 = vunpack.c.h.b16 %v613
    %v3858 = vunpack.c.l.b16 %v614
    %v3859 = vunpack.c.h.b16 %v614
    %v3860 = vunpack.c.l.b16 %v615
    %v3861 = vunpack.c.h.b16 %v615
    %v3862 = vunpack.c.l.b16 %v616
    %v3863 = vunpack.c.h.b16 %v616
    %v3864 = vunpack.c.l.b16 %v617
    %v3865 = vunpack.c.h.b16 %v617
    %v3866 = vunpack.c.l.b16 %v618
    %v3867 = vunpack.c.h.b16 %v618
    %v3868 = vunpack.c.l.b16 %v619
    %v3869 = vunpack.c.h.b16 %v619
    %v3870 = vunpack.c.l.b16 %v620
    %v3871 = vunpack.c.h.b16 %v620
    %v3872 = vunpack.c.l.b16 %v621
    %v3873 = vunpack.c.h.b16 %v621
    %v3874 = vunpack.c.l.b16 %v622
    %v3875 = vunpack.c.h.b16 %v622
    %v3876 = vunpack.c.l.b16 %v623
    %v3877 = vunpack.c.h.b16 %v623
    %v3878 = vunpack.c.l.b16 %v624
    %v3879 = vunpack.c.h.b16 %v624
    %v3880 = vunpack.c.l.b16 %v625
    %v3881 = vunpack.c.h.b16 %v625
    %v3882 = vunpack.c.l.b16 %v626
    %v3883 = vunpack.c.h.b16 %v626
    %v3884 = vunpack.c.l.b16 %v627
    %v3885 = vunpack.c.h.b16 %v627
    %v3886 = vunpack.c.l.b16 %v628
    %v3887 = vunpack.c.h.b16 %v628
    %v3888 = vunpack.c.l.b16 %v629
    %v3889 = vunpack.c.h.b16 %v629
    %v3890 = vunpack.c.l.b16 %v630
    %v3891 = vunpack.c.h.b16 %v630
    %v3892 = vunpack.c.l.b16 %v631
    %v3893 = vunpack.c.h.b16 %v631
    %v3894 = vunpack.c.l.b16 %v632
    %v3895 = vunpack.c.h.b16 %v632
    %v3896 = vunpack.c.l.b16 %v633
    %v3897 = vunpack.c.h.b16 %v633
    %v3898 = vunpack.c.l.b16 %v634
    %v3899 = vunpack.c.h.b16 %v634
    %v3900 = vunpack.c.l.b16 %v635
    %v3901 = vunpack.c.h.b16 %v635
    %v3902 = vunpack.c.l.b16 %v636
    %v3903 = vunpack.c.h.b16 %v636
    %v3904 = vunpack.c.l.b16 %v637
    %v3905 = vunpack.c.h.b16 %v637
    %v3906 = vunpack.c.l.b16 %v638
    %v3907 = vunpack.c.h.b16 %v638
    %v3908 = vunpack.c.l.b16 %v639
    %v3909 = vunpack.c.h.b16 %v639
    %v3910 = vunpack.c.l.b16 %v640
    %v3911 = vunpack.c.h.b16 %v640
    %v3912 = vunpack.c.l.b16 %v641
    %v3913 = vunpack.c.h.b16 %v641
    %v3914 = vunpack.c.l.b16 %v642
    %v3915 = vunpack.c.h.b16 %v642
    %v3916 = vunpack.c.l.b16 %v643
    %v3917 = vunpack.c.h.b16 %v643
    %v3918 = vunpack.c.l.b16 %v644
    %v3919 = vunpack.c.h.b16 %v644
    %v3920 = vunpack.c.l.b16 %v645
    %v3921 = vunpack.c.h.b16 %v645
    %v3922 = vunpack.c.l.b16 %v646
    %v3923 = vunpack.c.h.b16 %v646
    %v3924 = vunpack.c.l.b16 %v647
    %v3925 = vunpack.c.h.b16 %v647
    %v3926 = vunpack.c.l.b16 %v648
    %v3927 = vunpack.c.h.b16 %v648
    %v3928 = vunpack.c.l.b16 %v649
    %v3929 = vunpack.c.h.b16 %v649
    %v3930 = vunpack.c.l.b16 %v650
    %v3931 = vunpack.c.h.b16 %v650
    %v3932 = vunpack.c.l.b16 %v651
    %v3933 = vunpack.c.h.b16 %v651
    %v3934 = vunpack.c.l.b16 %v652
    %v3935 = vunpack.c.h.b16 %v652
    %v3936 = vunpack.c.l.b16 %v653
    %v3937 = vunpack.c.h.b16 %v653
    %v3938 = vunpack.c.l.b16 %v654
    %v3939 = vunpack.c.h.b16 %v654
    %v3940 = vunpack.c.l.b16 %v655
    %v3941 = vunpack.c.h.b16 %v655
    %v3942 = vunpack.c.l.b16 %v656
    %v3943 = vunpack.c.h.b16 %v656
    %v3944 = vunpack.c.l.b16 %v657
    %v3945 = vunpack.c.h.b16 %v657
    %v3946 = vunpack.c.l.b16 %v658
    %v3947 = vunpack.c.h.b16 %v658
    %v3948 = vunpack.c.l.b16 %v659
    %v3949 = vunpack.c.h.b16 %v659
    %v3950 = vunpack.c.l.b16 %v660
    %v3951 = vunpack.c.h.b16 %v660
    %v3952 = vunpack.c.l.b16 %v661
    %v3953 = vunpack.c.h.b16 %v661
    %v3954 = vunpack.c.l.b16 %v662
    %v3955 = vunpack.c.h.b16 %v662
    %v3956 = vunpack.c.l.b16 %v663
    %v3957 = vunpack.c.h.b16 %v663
    %v3958 = vunpack.c.l.b16 %v664
    %v3959 = vunpack.c.h.b16 %v664
    %v3960 = vunpack.c.l.b16 %v665
    %v3961 = vunpack.c.h.b16 %v665
    %v3962 = vunpack.c.l.b16 %v666
    %v3963 = vunpack.c.h.b16 %v666
    %v3964 = vunpack.c.l.b16 %v667
    %v3965 = vunpack.c.h.b16 %v667
    %v3966 = vunpack.c.l.b16 %v668
    %v3967 = vunpack.c.h.b16 %v668
    %v3968 = vunpack.c.l.b16 %v669
    %v3969 = vunpack.c.h.b16 %v669
    %v3970 = vunpack.c.l.b16 %v670
    %v3971 = vunpack.c.h.b16 %v670
    %v3972 = vunpack.c.l.b16 %v671
    %v3973 = vunpack.c.h.b16 %v671
    %v3974 = vunpack.c.l.b16 %v672
    %v3975 = vunpack.c.h.b16 %v672
    %v3976 = vunpack.c.l.b16 %v673
    %v3977 = vunpack.c.h.b16 %v673
    %v3978 = vunpack.c.l.b16 %v674
    %v3979 = vunpack.c.h.b16 %v674
    %v3980 = vunpack.c.l.b16 %v675
    %v3981 = vunpack.c.h.b16 %v675
    %v3982 = vunpack.c.l.b16 %v676
    %v3983 = vunpack.c.h.b16 %v676
    %v3984 = vunpack.c.l.b16 %v677
    %v3985 = vunpack.c.h.b16 %v677
    %v3986 = vunpack.c.l.b16 %v678
    %v3987 = vunpack.c.h.b16 %v678
    %v3988 = vunpack.c.l.b16 %v679
    %v3989 = vunpack.c.h.b16 %v679
    %v3990 = vunpack.c.l.b16 %v680
    %v3991 = vunpack.c.h.b16 %v680
    %v3992 = vunpack.c.l.b16 %v681
    %v3993 = vunpack.c.h.b16 %v681
    %v3994 = vunpack.c.l.b16 %v682
    %v3995 = vunpack.c.h.b16 %v682
    %v3996 = vunpack.c.l.b16 %v683
    %v3997 = vunpack.c.h.b16 %v683
    %v3998 = vunpack.c.l.b16 %v684
    %v3999 = vunpack.c.h.b16 %v684
    %v4000 = vunpack.c.l.b16 %v685
    %v4001 = vunpack.c.h.b16 %v685
    %v4002 = vunpack.c.l.b16 %v686
    %v4003 = vunpack.c.h.b16 %v686
    %v4004 = vunpack.c.l.b16 %v687
    %v4005 = vunpack.c.h.b16 %v687
    %v4006 = vunpack.c.l.b16 %v688
    %v4007 = vunpack.c.h.b16 %v688
    %v4008 = vunpack.c.l.b16 %v689
    %v4009 = vunpack.c.h.b16 %v689
    %v4010 = vunpack.c.l.b16 %v690
    %v4011 = vunpack.c.h.b16 %v690
    %v4012 = vunpack.c.l.b16 %v691
    %v4013 = vunpack.c.h.b16 %v691
    %v4014 = vunpack.c.l.b16 %v692
    %v4015 = vunpack.c.h.b16 %v692
    %v4016 = vunpack.c.l.b16 %v693
    %v4017 = vunpack.c.h.b16 %v693
    %v4018 = vunpack.c.l.b16 %v694
    %v4019 = vunpack.c.h.b16 %v694
    %v4020 = vunpack.c.l.b16 %v695
    %v4021 = vunpack.c.h.b16 %v695
    %v4022 = vunpack.c.l.b16 %v696
    %v4023 = vunpack.c.h.b16 %v696
    %v4024 = vunpack.c.l.b16 %v697
    %v4025 = vunpack.c.h.b16 %v697
    %v4026 = vunpack.c.l.b16 %v698
    %v4027 = vunpack.c.h.b16 %v698
    %v4028 = vunpack.c.l.b16 %v699
    %v4029 = vunpack.c.h.b16 %v699
    %v4030 = vunpack.c.l.b16 %v700
    %v4031 = vunpack.c.h.b16 %v700
    %v4032 = vunpack.c.l.b16 %v701
    %v4033 = vunpack.c.h.b16 %v701
    %v4034 = vunpack.c.l.b16 %v702
    %v4035 = vunpack.c.h.b16 %v702
    %v4036 = vunpack.c.l.b16 %v703
    %v4037 = vunpack.c.h.b16 %v703
    %v4038 = vunpack.c.l.b16 %v704
    %v4039 = vunpack.c.h.b16 %v704
    %v4040 = vunpack.c.l.b16 %v705
    %v4041 = vunpack.c.h.b16 %v705
    %v4042 = vunpack.c.l.b16 %v706
    %v4043 = vunpack.c.h.b16 %v706
    %v4044 = vunpack.c.l.b16 %v707
    %v4045 = vunpack.c.h.b16 %v707
    %v4046 = vunpack.c.l.b16 %v708
    %v4047 = vunpack.c.h.b16 %v708
    %v4048 = vunpack.c.l.b16 %v709
    %v4049 = vunpack.c.h.b16 %v709
    %v4050 = vunpack.c.l.b16 %v710
    %v4051 = vunpack.c.h.b16 %v710
    %v4052 = vunpack.c.l.b16 %v711
    %v4053 = vunpack.c.h.b16 %v711
    %v4054 = vunpack.c.l.b16 %v712
    %v4055 = vunpack.c.h.b16 %v712
    %v4056 = vunpack.c.l.b16 %v713
    %v4057 = vunpack.c.h.b16 %v713
    %v4058 = vunpack.c.l.b16 %v714
    %v4059 = vunpack.c.h.b16 %v714
    %v4060 = vunpack.c.l.b16 %v715
    %v4061 = vunpack.c.h.b16 %v715
    %v4062 = vunpack.c.l.b16 %v716
    %v4063 = vunpack.c.h.b16 %v716
    %v4064 = vunpack.c.l.b16 %v717
    %v4065 = vunpack.c.h.b16 %v717
    %v4066 = vunpack.c.l.b16 %v718
    %v4067 = vunpack.c.h.b16 %v718
    %v4068 = vunpack.c.l.b16 %v719
    %v4069 = vunpack.c.h.b16 %v719
    %v4070 = vunpack.c.l.b16 %v720
    %v4071 = vunpack.c.h.b16 %v720
    %v4072 = vunpack.c.l.b16 %v721
    %v4073 = vunpack.c.h.b16 %v721
    %v4074 = vunpack.c.l.b16 %v722
    %v4075 = vunpack.c.h.b16 %v722
    %v4076 = vunpack.c.l.b16 %v723
    %v4077 = vunpack.c.h.b16 %v723
    %v4078 = vunpack.c.l.b16 %v724
    %v4079 = vunpack.c.h.b16 %v724
    %v4080 = vunpack.c.l.b16 %v725
    %v4081 = vunpack.c.h.b16 %v725
    %v4082 = vunpack.c.l.b16 %v726
    %v4083 = vunpack.c.h.b16 %v726
    %v4084 = vunpack.c.l.b16 %v727
    %v4085 = vunpack.c.h.b16 %v727
    %v4086 = vunpack.c.l.b16 %v728
    %v4087 = vunpack.c.h.b16 %v728
    %v4088 = vunpack.c.l.b16 %v729
    %v4089 = vunpack.c.h.b16 %v729
    %v4090 = vunpack.c.l.b16 %v730
    %v4091 = vunpack.c.h.b16 %v730
    %v4092 = vunpack.c.l.b16 %v731
    %v4093 = vunpack.c.h.b16 %v731
    %v4094 = vunpack.c.l.b16 %v732
    %v4095 = vunpack.c.h.b16 %v732
    %v4096 = vunpack.c.l.b16 %v733
    %v4097 = vunpack.c.h.b16 %v733
    %v4098 = vunpack.c.l.b16 %v734
    %v4099 = vunpack.c.h.b16 %v734
    %v4100 = vunpack.c.l.b16 %v735
    %v4101 = vunpack.c.h.b16 %v735
    %v4102 = vunpack.c.l.b16 %v736
    %v4103 = vunpack.c.h.b16 %v736
    %v4104 = vunpack.c.l.b16 %v737
    %v4105 = vunpack.c.h.b16 %v737
    %v4106 = vunpack.c.l.b16 %v738
    %v4107 = vunpack.c.h.b16 %v738
    %v4108 = vunpack.c.l.b16 %v739
    %v4109 = vunpack.c.h.b16 %v739
    %v4110 = vunpack.c.l.b16 %v740
    %v4111 = vunpack.c.h.b16 %v740
    %v4112 = vunpack.c.l.b16 %v741
    %v4113 = vunpack.c.h.b16 %v741
    %v4114 = vunpack.c.l.b16 %v742
    %v4115 = vunpack.c.h.b16 %v742
    %v4116 = vunpack.c.l.b16 %v743
    %v4117 = vunpack.c.h.b16 %v743
    %v4118 = vunpack.c.l.b16 %v744
    %v4119 = vunpack.c.h.b16 %v744
    %v4120 = vunpack.c.l.b16 %v745
    %v4121 = vunpack.c.h.b16 %v745
    %v4122 = vunpack.c.l.b16 %v746
    %v4123 = vunpack.c.h.b16 %v746
    %v4124 = vunpack.c.l.b16 %v747
    %v4125 = vunpack.c.h.b16 %v747
    %v4126 = vunpack.c.l.b16 %v748
    %v4127 = vunpack.c.h.b16 %v748
    %v4128 = vunpack.c.l.b16 %v749
    %v4129 = vunpack.c.h.b16 %v749
    %v4130 = vunpack.c.l.b16 %v750
    %v4131 = vunpack.c.h.b16 %v750
    %v4132 = vunpack.c.l.b16 %v751
    %v4133 = vunpack.c.h.b16 %v751
    %v4134 = vunpack.c.l.b16 %v752
    %v4135 = vunpack.c.h.b16 %v752
    %v4136 = vunpack.c.l.b16 %v753
    %v4137 = vunpack.c.h.b16 %v753
    %v4138 = vunpack.c.l.b16 %v754
    %v4139 = vunpack.c.h.b16 %v754
    %v4140 = vunpack.c.l.b16 %v755
    %v4141 = vunpack.c.h.b16 %v755
    %v4142 = vunpack.c.l.b16 %v756
    %v4143 = vunpack.c.h.b16 %v756
    %v4144 = vunpack.c.l.b16 %v757
    %v4145 = vunpack.c.h.b16 %v757
    %v4146 = vunpack.c.l.b16 %v758
    %v4147 = vunpack.c.h.b16 %v758
    %v4148 = vunpack.c.l.b16 %v759
    %v4149 = vunpack.c.h.b16 %v759
    %v4150 = vunpack.c.l.b16 %v760
    %v4151 = vunpack.c.h.b16 %v760
    %v4152 = vunpack.c.l.b16 %v761
    %v4153 = vunpack.c.h.b16 %v761
    %v4154 = vunpack.c.l.b16 %v762
    %v4155 = vunpack.c.h.b16 %v762
    %v4156 = vunpack.c.l.b16 %v763
    %v4157 = vunpack.c.h.b16 %v763
    %v4158 = vunpack.c.l.b16 %v764
    %v4159 = vunpack.c.h.b16 %v764
    %v4160 = vunpack.c.l.b16 %v765
    %v4161 = vunpack.c.h.b16 %v765
    %v4162 = vunpack.c.l.b16 %v766
    %v4163 = vunpack.c.h.b16 %v766
    %v4164 = vunpack.c.l.b16 %v767
    %v4165 = vunpack.c.h.b16 %v767
    %v4166 = vunpack.c.l.b16 %v768
    %v4167 = vunpack.c.h.b16 %v768
    %v4168 = vunpack.c.l.b16 %v769
    %v4169 = vunpack.c.h.b16 %v769
    %v4170 = vunpack.c.l.b16 %v770
    %v4171 = vunpack.c.h.b16 %v770
    %v4172 = vunpack.c.l.b16 %v771
    %v4173 = vunpack.c.h.b16 %v771
    %v4174 = vunpack.c.l.b16 %v772
    %v4175 = vunpack.c.h.b16 %v772
    %v4176 = vunpack.c.l.b16 %v773
    %v4177 = vunpack.c.h.b16 %v773
    %v4178 = vunpack.c.l.b16 %v774
    %v4179 = vunpack.c.h.b16 %v774
    %v4180 = vunpack.c.l.b16 %v775
    %v4181 = vunpack.c.h.b16 %v775
    %v4182 = vunpack.c.l.b16 %v776
    %v4183 = vunpack.c.h.b16 %v776
    %v4184 = vunpack.c.l.b16 %v777
    %v4185 = vunpack.c.h.b16 %v777
    %v4186 = vunpack.c.l.b16 %v778
    %v4187 = vunpack.c.h.b16 %v778
    %v4188 = vunpack.c.l.b16 %v779
    %v4189 = vunpack.c.h.b16 %v779
    %v4190 = vunpack.c.l.b16 %v780
    %v4191 = vunpack.c.h.b16 %v780
    %v4192 = vunpack.c.l.b16 %v781
    %v4193 = vunpack.c.h.b16 %v781
    %v4194 = vunpack.c.l.b16 %v782
    %v4195 = vunpack.c.h.b16 %v782
    %v4196 = vunpack.c.l.b16 %v783
    %v4197 = vunpack.c.h.b16 %v783
    %v4198 = vunpack.c.l.b16 %v784
    %v4199 = vunpack.c.h.b16 %v784
    %v4200 = vunpack.c.l.b16 %v785
    %v4201 = vunpack.c.h.b16 %v785
    %v4202 = vunpack.c.l.b16 %v786
    %v4203 = vunpack.c.h.b16 %v786
    %v4204 = vunpack.c.l.b16 %v787
    %v4205 = vunpack.c.h.b16 %v787
    %v4206 = vunpack.c.l.b16 %v788
    %v4207 = vunpack.c.h.b16 %v788
    %v4208 = vunpack.c.l.b16 %v789
    %v4209 = vunpack.c.h.b16 %v789
    %v4210 = vunpack.c.l.b16 %v790
    %v4211 = vunpack.c.h.b16 %v790
    %v4212 = vunpack.c.l.b16 %v791
    %v4213 = vunpack.c.h.b16 %v791
    %v4214 = vunpack.c.l.b16 %v792
    %v4215 = vunpack.c.h.b16 %v792
    %v4216 = vunpack.c.l.b16 %v793
    %v4217 = vunpack.c.h.b16 %v793
    %v4218 = vunpack.c.l.b16 %v794
    %v4219 = vunpack.c.h.b16 %v794
    %v4220 = vunpack.c.l.b16 %v795
    %v4221 = vunpack.c.h.b16 %v795
    %v4222 = vunpack.c.l.b16 %v796
    %v4223 = vunpack.c.h.b16 %v796
    %v4224 = vunpack.c.l.b16 %v797
    %v4225 = vunpack.c.h.b16 %v797
    %v4226 = vunpack.c.l.b16 %v798
    %v4227 = vunpack.c.h.b16 %v798
    %v4228 = vunpack.c.l.b16 %v799
    %v4229 = vunpack.c.h.b16 %v799
    %v4230 = vunpack.c.l.b16 %v800
    %v4231 = vunpack.c.h.b16 %v800
    %v4232 = vunpack.c.l.b16 %v801
    %v4233 = vunpack.c.h.b16 %v801
    %v4234 = vunpack.c.l.b16 %v802
    %v4235 = vunpack.c.h.b16 %v802
    %v4236 = vunpack.c.l.b16 %v803
    %v4237 = vunpack.c.h.b16 %v803
    %v4238 = vunpack.c.l.b16 %v804
    %v4239 = vunpack.c.h.b16 %v804
    %v4240 = vunpack.c.l.b16 %v805
    %v4241 = vunpack.c.h.b16 %v805
    %v4242 = vunpack.c.l.b16 %v806
    %v4243 = vunpack.c.h.b16 %v806
    %v4244 = vunpack.c.l.b16 %v807
    %v4245 = vunpack.c.h.b16 %v807
    %v4246 = vunpack.c.l.b16 %v808
    %v4247 = vunpack.c.h.b16 %v808
    %v4248 = vunpack.c.l.b16 %v809
    %v4249 = vunpack.c.h.b16 %v809
    %v4250 = vunpack.c.l.b16 %v810
    %v4251 = vunpack.c.h.b16 %v810
    %v4252 = vunpack.c.l.b16 %v811
    %v4253 = vunpack.c.h.b16 %v811
    %v4254 = vunpack.c.l.b16 %v812
    %v4255 = vunpack.c.h.b16 %v812
    %v4256 = vunpack.c.l.b16 %v813
    %v4257 = vunpack.c.h.b16 %v813
    %v4258 = vunpack.c.l.b16 %v814
    %v4259 = vunpack.c.h.b16 %v814
    %v4260 = vunpack.c.l.b16 %v815
    %v4261 = vunpack.c.h.b16 %v815
    %v4262 = vunpack.c.l.b16 %v816
    %v4263 = vunpack.c.h.b16 %v816
    %v4264 = vunpack.c.l.b16 %v817
    %v4265 = vunpack.c.h.b16 %v817
    %v4266 = vunpack.c.l.b16 %v818
    %v4267 = vunpack.c.h.b16 %v818
    %v4268 = vunpack.c.l.b16 %v819
    %v4269 = vunpack.c.h.b16 %v819
    %v4270 = vunpack.c.l.b16 %v820
    %v4271 = vunpack.c.h.b16 %v820
    %v4272 = vunpack.c.l.b16 %v821
    %v4273 = vunpack.c.h.b16 %v821
    %v4274 = vunpack.c.l.b16 %v822
    %v4275 = vunpack.c.h.b16 %v822
    %v4276 = vunpack.c.l.b16 %v823
    %v4277 = vunpack.c.h.b16 %v823
    %v4278 = vunpack.c.l.b16 %v824
    %v4279 = vunpack.c.h.b16 %v824
    %v4280 = vunpack.c.l.b16 %v825
    %v4281 = vunpack.c.h.b16 %v825
    %v4282 = vunpack.c.l.b16 %v826
    %v4283 = vunpack.c.h.b16 %v826
    %v4284 = vunpack.c.l.b16 %v827
    %v4285 = vunpack.c.h.b16 %v827
    %v4286 = vunpack.c.l.b16 %v828
    %v4287 = vunpack.c.h.b16 %v828
    %v4288 = vunpack.c.l.b16 %v829
    %v4289 = vunpack.c.h.b16 %v829
    %v4290 = vunpack.c.l.b16 %v830
    %v4291 = vunpack.c.h.b16 %v830
    %v4292 = vunpack.c.l.b16 %v831
    %v4293 = vunpack.c.h.b16 %v831
    %v4294 = vunpack.c.l.b16 %v832
    %v4295 = vunpack.c.h.b16 %v832
    %v4296 = vunpack.c.l.b16 %v833
    %v4297 = vunpack.c.h.b16 %v833
    %v4298 = vunpack.c.l.b16 %v834
    %v4299 = vunpack.c.h.b16 %v834
    %v4300 = vunpack.c.l.b16 %v835
    %v4301 = vunpack.c.h.b16 %v835
    %v4302 = vunpack.c.l.b16 %v836
    %v4303 = vunpack.c.h.b16 %v836
    %v4304 = vunpack.c.l.b16 %v837
    %v4305 = vunpack.c.h.b16 %v837
    %v4306 = vunpack.c.l.b16 %v838
    %v4307 = vunpack.c.h.b16 %v838
    %v4308 = vunpack.c.l.b16 %v839
    %v4309 = vunpack.c.h.b16 %v839
    %v4310 = vunpack.c.l.b16 %v840
    %v4311 = vunpack.c.h.b16 %v840
    %v4312 = vunpack.c.l.b16 %v841
    %v4313 = vunpack.c.h.b16 %v841
    %v4314 = vunpack.c.l.b16 %v842
    %v4315 = vunpack.c.h.b16 %v842
    %v4316 = vunpack.c.l.b16 %v843
    %v4317 = vunpack.c.h.b16 %v843
    %v4318 = vunpack.c.l.b16 %v844
    %v4319 = vunpack.c.h.b16 %v844
    %v4320 = vunpack.c.l.b16 %v845
    %v4321 = vunpack.c.h.b16 %v845
    %v4322 = vunpack.c.l.b16 %v846
    %v4323 = vunpack.c.h.b16 %v846
    %v4324 = vunpack.c.l.b16 %v847
    %v4325 = vunpack.c.h.b16 %v847
    %v4326 = vunpack.c.l.b16 %v848
    %v4327 = vunpack.c.h.b16 %v848
    %v4328 = vunpack.c.l.b16 %v849
    %v4329 = vunpack.c.h.b16 %v849
    %v4330 = vunpack.c.l.b16 %v850
    %v4331 = vunpack.c.h.b16 %v850
    %v4332 = vunpack.c.l.b16 %v851
    %v4333 = vunpack.c.h.b16 %v851
    %v4334 = vunpack.c.l.b16 %v852
    %v4335 = vunpack.c.h.b16 %v852
    %v4336 = vunpack.c.l.b16 %v853
    %v4337 = vunpack.c.h.b16 %v853
    %v4338 = vunpack.c.l.b16 %v854
    %v4339 = vunpack.c.h.b16 %v854
    %v4340 = vunpack.c.l.b16 %v855
    %v4341 = vunpack.c.h.b16 %v855
    %v4342 = vunpack.c.l.b16 %v856
    %v4343 = vunpack.c.h.b16 %v856
    %v4344 = vunpack.c.l.b16 %v857
    %v4345 = vunpack.c.h.b16 %v857
    %v4346 = vunpack.c.l.b16 %v858
    %v4347 = vunpack.c.h.b16 %v858
    %v4348 = vunpack.c.l.b16 %v859
    %v4349 = vunpack.c.h.b16 %v859
    %v4350 = vunpack.c.l.b16 %v860
    %v4351 = vunpack.c.h.b16 %v860
    %v4352 = vunpack.c.l.b16 %v861
    %v4353 = vunpack.c.h.b16 %v861
    %v4354 = vunpack.c.l.b16 %v862
    %v4355 = vunpack.c.h.b16 %v862
    %v4356 = vunpack.c.l.b16 %v863
    %v4357 = vunpack.c.h.b16 %v863
    %v4358 = vunpack.c.l.b16 %v864
    %v4359 = vunpack.c.h.b16 %v864
    %v4360 = vunpack.c.l.b16 %v865
    %v4361 = vunpack.c.h.b16 %v865
    %v4362 = vunpack.c.l.b16 %v866
    %v4363 = vunpack.c.h.b16 %v866
    %v4364 = vunpack.c.l.b16 %v867
    %v4365 = vunpack.c.h.b16 %v867
    %v4366 = vunpack.c.l.b16 %v868
    %v4367 = vunpack.c.h.b16 %v868
    %v4368 = vunpack.c.l.b16 %v869
    %v4369 = vunpack.c.h.b16 %v869
    %v4370 = vunpack.c.l.b16 %v870
    %v4371 = vunpack.c.h.b16 %v870
    %v4372 = vunpack.c.l.b16 %v871
    %v4373 = vunpack.c.h.b16 %v871
    %v4374 = vunpack.c.l.b16 %v872
    %v4375 = vunpack.c.h.b16 %v872
    %v4376 = vunpack.c.l.b16 %v873
    %v4377 = vunpack.c.h.b16 %v873
    %v4378 = vunpack.c.l.b16 %v874
    %v4379 = vunpack.c.h.b16 %v874
    %v4380 = vunpack.c.l.b16 %v875
    %v4381 = vunpack.c.h.b16 %v875
    %v4382 = vunpack.c.l.b16 %v876
    %v4383 = vunpack.c.h.b16 %v876
    %v4384 = vunpack.c.l.b16 %v877
    %v4385 = vunpack.c.h.b16 %v877
    %v4386 = vunpack.c.l.b16 %v878
    %v4387 = vunpack.c.h.b16 %v878
    %v4388 = vunpack.c.l.b16 %v879
    %v4389 = vunpack.c.h.b16 %v879
    %v4390 = vunpack.c.l.b16 %v880
    %v4391 = vunpack.c.h.b16 %v880
    %v4392 = vunpack.c.l.b16 %v881
    %v4393 = vunpack.c.h.b16 %v881
    %v4394 = vunpack.c.l.b16 %v882
    %v4395 = vunpack.c.h.b16 %v882
    %v4396 = vunpack.c.l.b16 %v883
    %v4397 = vunpack.c.h.b16 %v883
    %v4398 = vunpack.c.l.b16 %v884
    %v4399 = vunpack.c.h.b16 %v884
    %v4400 = vunpack.c.l.b16 %v885
    %v4401 = vunpack.c.h.b16 %v885
    %v4402 = vunpack.c.l.b16 %v886
    %v4403 = vunpack.c.h.b16 %v886
    %v4404 = vunpack.c.l.b16 %v887
    %v4405 = vunpack.c.h.b16 %v887
    %v4406 = vunpack.c.l.b16 %v888
    %v4407 = vunpack.c.h.b16 %v888
    %v4408 = vunpack.c.l.b16 %v889
    %v4409 = vunpack.c.h.b16 %v889
    %v4410 = vunpack.c.l.b16 %v890
    %v4411 = vunpack.c.h.b16 %v890
    %v4412 = vunpack.c.l.b16 %v891
    %v4413 = vunpack.c.h.b16 %v891
    %v4414 = vunpack.c.l.b16 %v892
    %v4415 = vunpack.c.h.b16 %v892
    %v4416 = vunpack.c.l.b16 %v893
    %v4417 = vunpack.c.h.b16 %v893
    %v4418 = vunpack.c.l.b16 %v894
    %v4419 = vunpack.c.h.b16 %v894
    %v4420 = vunpack.c.l.b16 %v895
    %v4421 = vunpack.c.h.b16 %v895
    %v4422 = vunpack.c.l.b16 %v896
    %v4423 = vunpack.c.h.b16 %v896
    %v4424 = vunpack.c.l.b16 %v897
    %v4425 = vunpack.c.h.b16 %v897
    %v4426 = vunpack.c.l.b16 %v898
    %v4427 = vunpack.c.h.b16 %v898
    %v4428 = vunpack.c.l.b16 %v899
    %v4429 = vunpack.c.h.b16 %v899
    %v4430 = vunpack.c.l.b16 %v900
    %v4431 = vunpack.c.h.b16 %v900
    %v4432 = vunpack.c.l.b16 %v901
    %v4433 = vunpack.c.h.b16 %v901
    %v4434 = vunpack.c.l.b16 %v902
    %v4435 = vunpack.c.h.b16 %v902
    %v4436 = vunpack.c.l.b16 %v903
    %v4437 = vunpack.c.h.b16 %v903
    %v4438 = vunpack.c.l.b16 %v904
    %v4439 = vunpack.c.h.b16 %v904
    %v4440 = vunpack.c.l.b16 %v905
    %v4441 = vunpack.c.h.b16 %v905
    %v4442 = vunpack.c.l.b16 %v906
    %v4443 = vunpack.c.h.b16 %v906
    %v4444 = vunpack.c.l.b16 %v907
    %v4445 = vunpack.c.h.b16 %v907
    %v4446 = vunpack.c.l.b16 %v908
    %v4447 = vunpack.c.h.b16 %v908
    %v4448 = vunpack.c.l.b16 %v909
    %v4449 = vunpack.c.h.b16 %v909
    %v4450 = vunpack.c.l.b16 %v910
    %v4451 = vunpack.c.h.b16 %v910
    %v4452 = vunpack.c.l.b16 %v911
    %v4453 = vunpack.c.h.b16 %v911
    %v4454 = vunpack.c.l.b16 %v912
    %v4455 = vunpack.c.h.b16 %v912
    %v4456 = vunpack.c.l.b16 %v913
    %v4457 = vunpack.c.h.b16 %v913
    %v4458 = vunpack.c.l.b16 %v914
    %v4459 = vunpack.c.h.b16 %v914
    %v4460 = vunpack.c.l.b16 %v915
    %v4461 = vunpack.c.h.b16 %v915
    %v4462 = vunpack.c.l.b16 %v916
    %v4463 = vunpack.c.h.b16 %v916
    %v4464 = vunpack.c.l.b16 %v917
    %v4465 = vunpack.c.h.b16 %v917
    %v4466 = vunpack.c.l.b16 %v918
    %v4467 = vunpack.c.h.b16 %v918
    %v4468 = vunpack.c.l.b16 %v919
    %v4469 = vunpack.c.h.b16 %v919
    %v4470 = vunpack.c.l.b16 %v920
    %v4471 = vunpack.c.h.b16 %v920
    %v4472 = vunpack.c.l.b16 %v921
    %v4473 = vunpack.c.h.b16 %v921
    %v4474 = vunpack.c.l.b16 %v922
    %v4475 = vunpack.c.h.b16 %v922
    %v4476 = vunpack.c.l.b16 %v923
    %v4477 = vunpack.c.h.b16 %v923
    %v4478 = vunpack.c.l.b16 %v924
    %v4479 = vunpack.c.h.b16 %v924
    %v4480 = vunpack.c.l.b16 %v925
    %v4481 = vunpack.c.h.b16 %v925
    %v4482 = vunpack.c.l.b16 %v926
    %v4483 = vunpack.c.h.b16 %v926
    %v4484 = vunpack.c.l.b16 %v927
    %v4485 = vunpack.c.h.b16 %v927
    %v4486 = vunpack.c.l.b16 %v928
    %v4487 = vunpack.c.h.b16 %v928
    %v4488 = vunpack.c.l.b16 %v929
    %v4489 = vunpack.c.h.b16 %v929
    %v4490 = vunpack.c.l.b16 %v930
    %v4491 = vunpack.c.h.b16 %v930
    %v4492 = vunpack.c.l.b16 %v931
    %v4493 = vunpack.c.h.b16 %v931
    %v4494 = vunpack.c.l.b16 %v932
    %v4495 = vunpack.c.h.b16 %v932
    %v4496 = vunpack.c.l.b16 %v933
    %v4497 = vunpack.c.h.b16 %v933
    %v4498 = vunpack.c.l.b16 %v934
    %v4499 = vunpack.c.h.b16 %v934
    %v4500 = vunpack.c.l.b16 %v935
    %v4501 = vunpack.c.h.b16 %v935
    %v4502 = vunpack.c.l.b16 %v936
    %v4503 = vunpack.c.h.b16 %v936
    %v4504 = vunpack.c.l.b16 %v937
    %v4505 = vunpack.c.h.b16 %v937
    %v4506 = vunpack.c.l.b16 %v938
    %v4507 = vunpack.c.h.b16 %v938
    %v4508 = vunpack.c.l.b16 %v939
    %v4509 = vunpack.c.h.b16 %v939
    %v4510 = vunpack.c.l.b16 %v940
    %v4511 = vunpack.c.h.b16 %v940
    %v4512 = vunpack.c.l.b16 %v941
    %v4513 = vunpack.c.h.b16 %v941
    %v4514 = vunpack.c.l.b16 %v942
    %v4515 = vunpack.c.h.b16 %v942
    %v4516 = vunpack.c.l.b16 %v943
    %v4517 = vunpack.c.h.b16 %v943
    %v4518 = vunpack.c.l.b16 %v944
    %v4519 = vunpack.c.h.b16 %v944
    %v4520 = vunpack.c.l.b16 %v945
    %v4521 = vunpack.c.h.b16 %v945
    %v4522 = vunpack.c.l.b16 %v946
    %v4523 = vunpack.c.h.b16 %v946
    %v4524 = vunpack.c.l.b16 %v947
    %v4525 = vunpack.c.h.b16 %v947
    %v4526 = vunpack.c.l.b16 %v948
    %v4527 = vunpack.c.h.b16 %v948
    %v4528 = vunpack.c.l.b16 %v949
    %v4529 = vunpack.c.h.b16 %v949
    %v4530 = vunpack.c.l.b16 %v950
    %v4531 = vunpack.c.h.b16 %v950
    %v4532 = vunpack.c.l.b16 %v951
    %v4533 = vunpack.c.h.b16 %v951
    %v4534 = vunpack.c.l.b16 %v952
    %v4535 = vunpack.c.h.b16 %v952
    %v4536 = vunpack.c.l.b16 %v953
    %v4537 = vunpack.c.h.b16 %v953
    %v4538 = vunpack.c.l.b16 %v954
    %v4539 = vunpack.c.h.b16 %v954
    %v4540 = vunpack.c.l.b16 %v955
    %v4541 = vunpack.c.h.b16 %v955
    %v4542 = vunpack.c.l.b16 %v956
    %v4543 = vunpack.c.h.b16 %v956
    %v4544 = vunpack.c.l.b16 %v957
    %v4545 = vunpack.c.h.b16 %v957
    %v4546 = vunpack.c.l.b16 %v958
    %v4547 = vunpack.c.h.b16 %v958
    %v4548 = vunpack.c.l.b16 %v959
    %v4549 = vunpack.c.h.b16 %v959
    %v4550 = vunpack.c.l.b16 %v960
    %v4551 = vunpack.c.h.b16 %v960
    %v4552 = vunpack.c.l.b16 %v961
    %v4553 = vunpack.c.h.b16 %v961
    %v4554 = vunpack.c.l.b16 %v962
    %v4555 = vunpack.c.h.b16 %v962
    %v4556 = vunpack.c.l.b16 %v963
    %v4557 = vunpack.c.h.b16 %v963
    %v4558 = vunpack.c.l.b16 %v964
    %v4559 = vunpack.c.h.b16 %v964
    %v4560 = vunpack.c.l.b16 %v965
    %v4561 = vunpack.c.h.b16 %v965
    %v4562 = vunpack.c.l.b16 %v966
    %v4563 = vunpack.c.h.b16 %v966
    %v4564 = vunpack.c.l.b16 %v967
    %v4565 = vunpack.c.h.b16 %v967
    %v4566 = vunpack.c.l.b16 %v968
    %v4567 = vunpack.c.h.b16 %v968
    %v4568 = vunpack.c.l.b16 %v969
    %v4569 = vunpack.c.h.b16 %v969
    %v4570 = vunpack.c.l.b16 %v970
    %v4571 = vunpack.c.h.b16 %v970
    %v4572 = vunpack.c.l.b16 %v971
    %v4573 = vunpack.c.h.b16 %v971
    %v4574 = vunpack.c.l.b16 %v972
    %v4575 = vunpack.c.h.b16 %v972
    %v4576 = vunpack.c.l.b16 %v973
    %v4577 = vunpack.c.h.b16 %v973
    %v4578 = vunpack.c.l.b16 %v974
    %v4579 = vunpack.c.h.b16 %v974
    %v4580 = vunpack.c.l.b16 %v975
    %v4581 = vunpack.c.h.b16 %v975
    %v4582 = vunpack.c.l.b16 %v976
    %v4583 = vunpack.c.h.b16 %v976
    %v4584 = vunpack.c.l.b16 %v977
    %v4585 = vunpack.c.h.b16 %v977
    %v4586 = vunpack.c.l.b16 %v978
    %v4587 = vunpack.c.h.b16 %v978
    %v4588 = vunpack.c.l.b16 %v979
    %v4589 = vunpack.c.h.b16 %v979
    %v4590 = vunpack.c.l.b16 %v980
    %v4591 = vunpack.c.h.b16 %v980
    %v4592 = vunpack.c.l.b16 %v981
    %v4593 = vunpack.c.h.b16 %v981
    %v4594 = vunpack.c.l.b16 %v982
    %v4595 = vunpack.c.h.b16 %v982
    %v4596 = vunpack.c.l.b16 %v983
    %v4597 = vunpack.c.h.b16 %v983
    %v4598 = vunpack.c.l.b16 %v984
    %v4599 = vunpack.c.h.b16 %v984
    %v4600 = vunpack.c.l.b16 %v985
    %v4601 = vunpack.c.h.b16 %v985
    %v4602 = vunpack.c.l.b16 %v986
    %v4603 = vunpack.c.h.b16 %v986
    %v4604 = vunpack.c.l.b16 %v987
    %v4605 = vunpack.c.h.b16 %v987
    %v4606 = vunpack.c.l.b16 %v988
    %v4607 = vunpack.c.h.b16 %v988
    %v4608 = vunpack.c.l.b16 %v989
    %v4609 = vunpack.c.h.b16 %v989
    %v4610 = vunpack.c.l.b16 %v990
    %v4611 = vunpack.c.h.b16 %v990
    %v4612 = vunpack.c.l.b16 %v991
    %v4613 = vunpack.c.h.b16 %v991
    %v4614 = vunpack.c.l.b16 %v992
    %v4615 = vunpack.c.h.b16 %v992
    %v4616 = vunpack.c.l.b16 %v993
    %v4617 = vunpack.c.h.b16 %v993
    %v4618 = vunpack.c.l.b16 %v994
    %v4619 = vunpack.c.h.b16 %v994
    %v4620 = vunpack.c.l.b16 %v995
    %v4621 = vunpack.c.h.b16 %v995
    %v4622 = vunpack.c.l.b16 %v996
    %v4623 = vunpack.c.h.b16 %v996
    %v4624 = vunpack.c.l.b16 %v997
    %v4625 = vunpack.c.h.b16 %v997
    %v4626 = vunpack.c.l.b16 %v998
    %v4627 = vunpack.c.h.b16 %v998
    %v4628 = vunpack.c.l.b16 %v999
    %v4629 = vunpack.c.h.b16 %v999
    %v4630 = vunpack.c.l.b16 %v1000
    %v4631 = vunpack.c.h.b16 %v1000
    %v4632 = vunpack.c.l.b16 %v1001
    %v4633 = vunpack.c.h.b16 %v1001
    %v4634 = vunpack.c.l.b16 %v1002
    %v4635 = vunpack.c.h.b16 %v1002
    %v4636 = vunpack.c.l.b16 %v1003
    %v4637 = vunpack.c.h.b16 %v1003
    %v4638 = vunpack.c.l.b16 %v1004
    %v4639 = vunpack.c.h.b16 %v1004
    %v4640 = vunpack.c.l.b16 %v1005
    %v4641 = vunpack.c.h.b16 %v1005
    %v4642 = vunpack.c.l.b16 %v1006
    %v4643 = vunpack.c.h.b16 %v1006
    %v4644 = vunpack.c.l.b16 %v1007
    %v4645 = vunpack.c.h.b16 %v1007
    %v4646 = vunpack.c.l.b16 %v1008
    %v4647 = vunpack.c.h.b16 %v1008
    %v4648 = vunpack.c.l.b16 %v1009
    %v4649 = vunpack.c.h.b16 %v1009
    %v4650 = vunpack.c.l.b16 %v1010
    %v4651 = vunpack.c.h.b16 %v1010
    %v4652 = vunpack.c.l.b16 %v1011
    %v4653 = vunpack.c.h.b16 %v1011
    %v4654 = vunpack.c.l.b16 %v1012
    %v4655 = vunpack.c.h.b16 %v1012
    %v4656 = vunpack.c.l.b16 %v1013
    %v4657 = vunpack.c.h.b16 %v1013
    %v4658 = vunpack.c.l.b16 %v1014
    %v4659 = vunpack.c.h.b16 %v1014
    %v4660 = vunpack.c.l.b16 %v1015
    %v4661 = vunpack.c.h.b16 %v1015
    %v4662 = vunpack.c.l.b16 %v1016
    %v4663 = vunpack.c.h.b16 %v1016
    %v4664 = vunpack.c.l.b16 %v1017
    %v4665 = vunpack.c.h.b16 %v1017
    %v4666 = vunpack.c.l.b16 %v1018
    %v4667 = vunpack.c.h.b16 %v1018
    %v4668 = vunpack.c.l.b16 %v1019
    %v4669 = vunpack.c.h.b16 %v1019
    %v4670 = vunpack.c.l.b16 %v1020
    %v4671 = vunpack.c.h.b16 %v1020
    %v4672 = vunpack.c.l.b16 %v1021
    %v4673 = vunpack.c.h.b16 %v1021
    %v4674 = vunpack.c.l.b16 %v1022
    %v4675 = vunpack.c.h.b16 %v1022
    %v4676 = vunpack.c.l.b16 %v1023
    %v4677 = vunpack.c.h.b16 %v1023
    %v4678 = vunpack.c.l.b16 %v1024
    %v4679 = vunpack.c.h.b16 %v1024
    %v4680 = vunpack.c.l.b16 %v1025
    %v4681 = vunpack.c.h.b16 %v1025
    %v4682 = vunpack.c.l.b16 %v1026
    %v4683 = vunpack.c.h.b16 %v1026
    %v4684 = vunpack.c.l.b16 %v1027
    %v4685 = vunpack.c.h.b16 %v1027
    %v4686 = vunpack.c.l.b16 %v1028
    %v4687 = vunpack.c.h.b16 %v1028
    %v4688 = vunpack.c.l.b16 %v1029
    %v4689 = vunpack.c.h.b16 %v1029
    %v4690 = vunpack.c.l.b16 %v1030
    %v4691 = vunpack.c.h.b16 %v1030
    %v4692 = vunpack.c.l.b16 %v1031
    %v4693 = vunpack.c.h.b16 %v1031
    %v4694 = vunpack.c.l.b16 %v1032
    %v4695 = vunpack.c.h.b16 %v1032
    %v4696 = vunpack.c.l.b16 %v1033
    %v4697 = vunpack.c.h.b16 %v1033
    %v4698 = vunpack.c.l.b16 %v1034
    %v4699 = vunpack.c.h.b16 %v1034
    %v4700 = vunpack.c.l.b16 %v1035
    %v4701 = vunpack.c.h.b16 %v1035
    %v4702 = vunpack.c.l.b16 %v1036
    %v4703 = vunpack.c.h.b16 %v1036
    %v4704 = vunpack.c.l.b16 %v1037
    %v4705 = vunpack.c.h.b16 %v1037
    %v4706 = vunpack.c.l.b16 %v1038
    %v4707 = vunpack.c.h.b16 %v1038
    %v4708 = vunpack.c.l.b16 %v1039
    %v4709 = vunpack.c.h.b16 %v1039
    %v4710 = vunpack.c.l.b16 %v1040
    %v4711 = vunpack.c.h.b16 %v1040
    %v4712 = vunpack.c.l.b16 %v1041
    %v4713 = vunpack.c.h.b16 %v1041
    %v4714 = vunpack.c.l.b16 %v1042
    %v4715 = vunpack.c.h.b16 %v1042
    %v4716 = vunpack.c.l.b16 %v1043
    %v4717 = vunpack.c.h.b16 %v1043
    %v4718 = vunpack.c.l.b16 %v1044
    %v4719 = vunpack.c.h.b16 %v1044
    %v4720 = vunpack.c.l.b16 %v1045
    %v4721 = vunpack.c.h.b16 %v1045
    %v4722 = vunpack.c.l.b16 %v1046
    %v4723 = vunpack.c.h.b16 %v1046
    %v4724 = vunpack.c.l.b16 %v1047
    %v4725 = vunpack.c.h.b16 %v1047
    %v4726 = vunpack.c.l.b16 %v1048
    %v4727 = vunpack.c.h.b16 %v1048
    %v4728 = vunpack.c.l.b16 %v1049
    %v4729 = vunpack.c.h.b16 %v1049
    %v4730 = vunpack.c.l.b16 %v1050
    %v4731 = vunpack.c.h.b16 %v1050
    %v4732 = vunpack.c.l.b16 %v1051
    %v4733 = vunpack.c.h.b16 %v1051
    %v4734 = vunpack.c.l.b16 %v1052
    %v4735 = vunpack.c.h.b16 %v1052
    %v4736 = vunpack.c.l.b16 %v1053
    %v4737 = vunpack.c.h.b16 %v1053
    %v4738 = vunpack.c.l.b16 %v1054
    %v4739 = vunpack.c.h.b16 %v1054
    %v4740 = vunpack.c.l.b16 %v1055
    %v4741 = vunpack.c.h.b16 %v1055
    %v4742 = vunpack.c.l.b16 %v1056
    %v4743 = vunpack.c.h.b16 %v1056
    %v4744 = vunpack.c.l.b16 %v1057
    %v4745 = vunpack.c.h.b16 %v1057
    %v4746 = vunpack.c.l.b16 %v1058
    %v4747 = vunpack.c.h.b16 %v1058
    %v4748 = vunpack.c.l.b16 %v1059
    %v4749 = vunpack.c.h.b16 %v1059
    %v4750 = vunpack.c.l.b16 %v1060
    %v4751 = vunpack.c.h.b16 %v1060
    %v4752 = vunpack.c.l.b16 %v1061
    %v4753 = vunpack.c.h.b16 %v1061
    %v4754 = vunpack.c.l.b16 %v1062
    %v4755 = vunpack.c.h.b16 %v1062
    %v4756 = vunpack.c.l.b16 %v1063
    %v4757 = vunpack.c.h.b16 %v1063
    %v4758 = vunpack.c.l.b16 %v1064
    %v4759 = vunpack.c.h.b16 %v1064
    %v4760 = vunpack.c.l.b16 %v1065
    %v4761 = vunpack.c.h.b16 %v1065
    %v4762 = vunpack.c.l.b16 %v1066
    %v4763 = vunpack.c.h.b16 %v1066
    %v4764 = vunpack.c.l.b16 %v1067
    %v4765 = vunpack.c.h.b16 %v1067
    %v4766 = vunpack.c.l.b16 %v1068
    %v4767 = vunpack.c.h.b16 %v1068
    %v4768 = vunpack.c.l.b16 %v1069
    %v4769 = vunpack.c.h.b16 %v1069
    %v4770 = vunpack.c.l.b16 %v1070
    %v4771 = vunpack.c.h.b16 %v1070
    %v4772 = vunpack.c.l.b16 %v1071
    %v4773 = vunpack.c.h.b16 %v1071
    %v4774 = vunpack.c.l.b16 %v1072
    %v4775 = vunpack.c.h.b16 %v1072
    %v4776 = vunpack.c.l.b16 %v1073
    %v4777 = vunpack.c.h.b16 %v1073
    %v4778 = vunpack.c.l.b16 %v1074
    %v4779 = vunpack.c.h.b16 %v1074
    %v4780 = vunpack.c.l.b16 %v1075
    %v4781 = vunpack.c.h.b16 %v1075
    %v4782 = vunpack.c.l.b16 %v1076
    %v4783 = vunpack.c.h.b16 %v1076
    %v4784 = vunpack.c.l.b16 %v1077
    %v4785 = vunpack.c.h.b16 %v1077
    %v4786 = vunpack.c.l.b16 %v1078
    %v4787 = vunpack.c.h.b16 %v1078
    %v4788 = vunpack.c.l.b16 %v1079
    %v4789 = vunpack.c.h.b16 %v1079
    %v4790 = vunpack.c.l.b16 %v1080
    %v4791 = vunpack.c.h.b16 %v1080
    %v4792 = vunpack.c.l.b16 %v1081
    %v4793 = vunpack.c.h.b16 %v1081
    %v4794 = vunpack.c.l.b16 %v1082
    %v4795 = vunpack.c.h.b16 %v1082
    %v4796 = vunpack.c.l.b16 %v1083
    %v4797 = vunpack.c.h.b16 %v1083
    %v4798 = vunpack.c.l.b16 %v1084
    %v4799 = vunpack.c.h.b16 %v1084
    %v4800 = vunpack.c.l.b16 %v1085
    %v4801 = vunpack.c.h.b16 %v1085
    %v4802 = vunpack.c.l.b16 %v1086
    %v4803 = vunpack.c.h.b16 %v1086
    %v4804 = vunpack.c.l.b16 %v1087
    %v4805 = vunpack.c.h.b16 %v1087
    %v4806 = vunpack.c.l.b16 %v1088
    %v4807 = vunpack.c.h.b16 %v1088
    %v4808 = vunpack.c.l.b16 %v1089
    %v4809 = vunpack.c.h.b16 %v1089
    %v4810 = vunpack.c.l.b16 %v1090
    %v4811 = vunpack.c.h.b16 %v1090
    %v4812 = vunpack.c.l.b16 %v1091
    %v4813 = vunpack.c.h.b16 %v1091
    %v4814 = vunpack.c.l.b16 %v1092
    %v4815 = vunpack.c.h.b16 %v1092
    %v4816 = vunpack.c.l.b16 %v1093
    %v4817 = vunpack.c.h.b16 %v1093
    %v4818 = vunpack.c.l.b16 %v1094
    %v4819 = vunpack.c.h.b16 %v1094
    %v4820 = vunpack.c.l.b16 %v1095
    %v4821 = vunpack.c.h.b16 %v1095
    %v4822 = vunpack.c.l.b16 %v1096
    %v4823 = vunpack.c.h.b16 %v1096
    %v4824 = vunpack.c.l.b16 %v1097
    %v4825 = vunpack.c.h.b16 %v1097
    %v4826 = vunpack.c.l.b16 %v1098
    %v4827 = vunpack.c.h.b16 %v1098
    %v4828 = vunpack.c.l.b16 %v1099
    %v4829 = vunpack.c.h.b16 %v1099
    %v4830 = vunpack.c.l.b16 %v1100
    %v4831 = vunpack.c.h.b16 %v1100
    %v4832 = vunpack.c.l.b16 %v1101
    %v4833 = vunpack.c.h.b16 %v1101
    %v4834 = vunpack.c.l.b16 %v1102
    %v4835 = vunpack.c.h.b16 %v1102
    %v4836 = vunpack.c.l.b16 %v1103
    %v4837 = vunpack.c.h.b16 %v1103
    %v4838 = vunpack.c.l.b16 %v1104
    %v4839 = vunpack.c.h.b16 %v1104
    %v4840 = vunpack.c.l.b16 %v1105
    %v4841 = vunpack.c.h.b16 %v1105
    %v4842 = vunpack.c.l.b16 %v1106
    %v4843 = vunpack.c.h.b16 %v1106
    %v4844 = vunpack.c.l.b16 %v1107
    %v4845 = vunpack.c.h.b16 %v1107
    %v4846 = vunpack.c.l.b16 %v1108
    %v4847 = vunpack.c.h.b16 %v1108
    %v4848 = vunpack.c.l.b16 %v1109
    %v4849 = vunpack.c.h.b16 %v1109
    %v4850 = vunpack.c.l.b16 %v1110
    %v4851 = vunpack.c.h.b16 %v1110
    %v4852 = vunpack.c.l.b16 %v1111
    %v4853 = vunpack.c.h.b16 %v1111
    %v4854 = vunpack.c.l.b16 %v1112
    %v4855 = vunpack.c.h.b16 %v1112
    %v4856 = vunpack.c.l.b16 %v1113
    %v4857 = vunpack.c.h.b16 %v1113
    %v4858 = vunpack.c.l.b16 %v1114
    %v4859 = vunpack.c.h.b16 %v1114
    %v4860 = vunpack.c.l.b16 %v1115
    %v4861 = vunpack.c.h.b16 %v1115
    %v4862 = vunpack.c.l.b16 %v1116
    %v4863 = vunpack.c.h.b16 %v1116
    %v4864 = vunpack.c.l.b16 %v1117
    %v4865 = vunpack.c.h.b16 %v1117
    %v4866 = vunpack.c.l.b16 %v1118
    %v4867 = vunpack.c.h.b16 %v1118
    %v4868 = vunpack.c.l.b16 %v1119
    %v4869 = vunpack.c.h.b16 %v1119
    %v4870 = vunpack.c.l.b16 %v1120
    %v4871 = vunpack.c.h.b16 %v1120
    %v4872 = vunpack.c.l.b16 %v1121
    %v4873 = vunpack.c.h.b16 %v1121
    %v4874 = vunpack.c.l.b16 %v1122
    %v4875 = vunpack.c.h.b16 %v1122
    %v4876 = vunpack.c.l.b16 %v1123
    %v4877 = vunpack.c.h.b16 %v1123
    %v4878 = vunpack.c.l.b16 %v1124
    %v4879 = vunpack.c.h.b16 %v1124
    %v4880 = vunpack.c.l.b16 %v1125
    %v4881 = vunpack.c.h.b16 %v1125
    %v4882 = vunpack.c.l.b16 %v1126
    %v4883 = vunpack.c.h.b16 %v1126
    %v4884 = vunpack.c.l.b16 %v1127
    %v4885 = vunpack.c.h.b16 %v1127
    %v4886 = vunpack.c.l.b16 %v1128
    %v4887 = vunpack.c.h.b16 %v1128
    %v4888 = vunpack.c.l.b16 %v1129
    %v4889 = vunpack.c.h.b16 %v1129
    %v4890 = vunpack.c.l.b16 %v1130
    %v4891 = vunpack.c.h.b16 %v1130
    %v4892 = vunpack.c.l.b16 %v1131
    %v4893 = vunpack.c.h.b16 %v1131
    %v4894 = vunpack.c.l.b16 %v1132
    %v4895 = vunpack.c.h.b16 %v1132
    %v4896 = vunpack.c.l.b16 %v1133
    %v4897 = vunpack.c.h.b16 %v1133
    %v4898 = vunpack.c.l.b16 %v1134
    %v4899 = vunpack.c.h.b16 %v1134
    %v4900 = vunpack.c.l.b16 %v1135
    %v4901 = vunpack.c.h.b16 %v1135
    %v4902 = vunpack.c.l.b16 %v1136
    %v4903 = vunpack.c.h.b16 %v1136
    %v4904 = vunpack.c.l.b16 %v1137
    %v4905 = vunpack.c.h.b16 %v1137
    %v4906 = vunpack.c.l.b16 %v1138
    %v4907 = vunpack.c.h.b16 %v1138
    %v4908 = vunpack.c.l.b16 %v1139
    %v4909 = vunpack.c.h.b16 %v1139
    %v4910 = vunpack.c.l.b16 %v1140
    %v4911 = vunpack.c.h.b16 %v1140
    %v4912 = vunpack.c.l.b16 %v1141
    %v4913 = vunpack.c.h.b16 %v1141
    %v4914 = vunpack.c.l.b16 %v1142
    %v4915 = vunpack.c.h.b16 %v1142
    %v4916 = vunpack.c.l.b16 %v1143
    %v4917 = vunpack.c.h.b16 %v1143
    %v4918 = vunpack.c.l.b16 %v1144
    %v4919 = vunpack.c.h.b16 %v1144
    %v4920 = vunpack.c.l.b16 %v1145
    %v4921 = vunpack.c.h.b16 %v1145
    %v4922 = vunpack.c.l.b16 %v1146
    %v4923 = vunpack.c.h.b16 %v1146
    %v4924 = vunpack.c.l.b16 %v1147
    %v4925 = vunpack.c.h.b16 %v1147
    %v4926 = vunpack.c.l.b16 %v1148
    %v4927 = vunpack.c.h.b16 %v1148
    %v4928 = vunpack.c.l.b16 %v1149
    %v4929 = vunpack.c.h.b16 %v1149
    %v4930 = vunpack.c.l.b16 %v1150
    %v4931 = vunpack.c.h.b16 %v1150
    %v4932 = vunpack.c.l.b16 %v1151
    %v4933 = vunpack.c.h.b16 %v1151
    %v4934 = vunpack.c.l.b16 %v1152
    %v4935 = vunpack.c.h.b16 %v1152
    %v4936 = vunpack.c.l.b16 %v1153
    %v4937 = vunpack.c.h.b16 %v1153
    %v4938 = vunpack.c.l.b16 %v1154
    %v4939 = vunpack.c.h.b16 %v1154
    %v4940 = vunpack.c.l.b16 %v1155
    %v4941 = vunpack.c.h.b16 %v1155
    %v4942 = vunpack.c.l.b16 %v1156
    %v4943 = vunpack.c.h.b16 %v1156
    %v4944 = vunpack.c.l.b16 %v1157
    %v4945 = vunpack.c.h.b16 %v1157
    %v4946 = vunpack.c.l.b16 %v1158
    %v4947 = vunpack.c.h.b16 %v1158
    %v4948 = vunpack.c.l.b16 %v1159
    %v4949 = vunpack.c.h.b16 %v1159
    %v4950 = vunpack.c.l.b16 %v1160
    %v4951 = vunpack.c.h.b16 %v1160
    %v4952 = vunpack.c.l.b16 %v1161
    %v4953 = vunpack.c.h.b16 %v1161
    %v4954 = vunpack.c.l.b16 %v1162
    %v4955 = vunpack.c.h.b16 %v1162
    %v4956 = vunpack.c.l.b16 %v1163
    %v4957 = vunpack.c.h.b16 %v1163
    %v4958 = vunpack.c.l.b16 %v1164
    %v4959 = vunpack.c.h.b16 %v1164
    %v4960 = vunpack.c.l.b16 %v1165
    %v4961 = vunpack.c.h.b16 %v1165
    %v4962 = vunpack.c.l.b16 %v1166
    %v4963 = vunpack.c.h.b16 %v1166
    %v4964 = vunpack.c.l.b16 %v1167
    %v4965 = vunpack.c.h.b16 %v1167
    %v4966 = vunpack.c.l.b16 %v1168
    %v4967 = vunpack.c.h.b16 %v1168
    %v4968 = vunpack.c.l.b16 %v1169
    %v4969 = vunpack.c.h.b16 %v1169
    %v4970 = vunpack.c.l.b16 %v1170
    %v4971 = vunpack.c.h.b16 %v1170
    %v4972 = vunpack.c.l.b16 %v1171
    %v4973 = vunpack.c.h.b16 %v1171
    %v4974 = vunpack.c.l.b16 %v1172
    %v4975 = vunpack.c.h.b16 %v1172
    %v4976 = vunpack.c.l.b16 %v1173
    %v4977 = vunpack.c.h.b16 %v1173
    %v4978 = vunpack.c.l.b16 %v1174
    %v4979 = vunpack.c.h.b16 %v1174
    %v4980 = vunpack.c.l.b16 %v1175
    %v4981 = vunpack.c.h.b16 %v1175
    %v4982 = vunpack.c.l.b16 %v1176
    %v4983 = vunpack.c.h.b16 %v1176
    %v4984 = vunpack.c.l.b16 %v1177
    %v4985 = vunpack.c.h.b16 %v1177
    %v4986 = vunpack.c.l.b16 %v1178
    %v4987 = vunpack.c.h.b16 %v1178
    %v4988 = vunpack.c.l.b16 %v1179
    %v4989 = vunpack.c.h.b16 %v1179
    %v4990 = vunpack.c.l.b16 %v1180
    %v4991 = vunpack.c.h.b16 %v1180
    %v4992 = vunpack.c.l.b16 %v1181
    %v4993 = vunpack.c.h.b16 %v1181
    %v4994 = vunpack.c.l.b16 %v1182
    %v4995 = vunpack.c.h.b16 %v1182
    %v4996 = vunpack.c.l.b16 %v1183
    %v4997 = vunpack.c.h.b16 %v1183
    %v4998 = vunpack.c.l.b16 %v1184
    %v4999 = vunpack.c.h.b16 %v1184
    %v5000 = vunpack.c.l.b16 %v1185
    %v5001 = vunpack.c.h.b16 %v1185
    %v5002 = vunpack.c.l.b16 %v1186
    %v5003 = vunpack.c.h.b16 %v1186
    %v5004 = vunpack.c.l.b16 %v1187
    %v5005 = vunpack.c.h.b16 %v1187
    %v5006 = vunpack.c.l.b16 %v1188
    %v5007 = vunpack.c.h.b16 %v1188
    %v5008 = vunpack.c.l.b16 %v1189
    %v5009 = vunpack.c.h.b16 %v1189
    %v5010 = vunpack.c.l.b16 %v1190
    %v5011 = vunpack.c.h.b16 %v1190
    %v5012 = vunpack.c.l.b16 %v1191
    %v5013 = vunpack.c.h.b16 %v1191
    %v5014 = vunpack.c.l.b16 %v1192
    %v5015 = vunpack.c.h.b16 %v1192
    %v5016 = vunpack.c.l.b16 %v1193
    %v5017 = vunpack.c.h.b16 %v1193
    %v5018 = vunpack.c.l.b16 %v1194
    %v5019 = vunpack.c.h.b16 %v1194
    %v5020 = vunpack.c.l.b16 %v1195
    %v5021 = vunpack.c.h.b16 %v1195
    %v5022 = vunpack.c.l.b16 %v1196
    %v5023 = vunpack.c.h.b16 %v1196
    %v5024 = vunpack.c.l.b16 %v1197
    %v5025 = vunpack.c.h.b16 %v1197
    %v5026 = vunpack.c.l.b16 %v1198
    %v5027 = vunpack.c.h.b16 %v1198
    %v5028 = vunpack.c.l.b16 %v1199
    %v5029 = vunpack.c.h.b16 %v1199
    %v5030 = vunpack.c.l.b16 %v1200
    %v5031 = vunpack.c.h.b16 %v1200
    %v5032 = vunpack.c.l.b16 %v1201
    %v5033 = vunpack.c.h.b16 %v1201
    %v5034 = vunpack.c.l.b16 %v1202
    %v5035 = vunpack.c.h.b16 %v1202
    %v5036 = vunpack.c.l.b16 %v1203
    %v5037 = vunpack.c.h.b16 %v1203
    %v5038 = vunpack.c.l.b16 %v1204
    %v5039 = vunpack.c.h.b16 %v1204
    %v5040 = vunpack.c.l.b16 %v1205
    %v5041 = vunpack.c.h.b16 %v1205
    %v5042 = vunpack.c.l.b16 %v1206
    %v5043 = vunpack.c.h.b16 %v1206
    %v5044 = vunpack.c.l.b16 %v1207
    %v5045 = vunpack.c.h.b16 %v1207
    %v5046 = vunpack.c.l.b16 %v1208
    %v5047 = vunpack.c.h.b16 %v1208
    %v5048 = vunpack.c.l.b16 %v1209
    %v5049 = vunpack.c.h.b16 %v1209
    %v5050 = vunpack.c.l.b16 %v1210
    %v5051 = vunpack.c.h.b16 %v1210
    %v5052 = vunpack.c.l.b16 %v1211
    %v5053 = vunpack.c.h.b16 %v1211
    %v5054 = vunpack.c.l.b16 %v1212
    %v5055 = vunpack.c.h.b16 %v1212
    %v5056 = vunpack.c.l.b16 %v1213
    %v5057 = vunpack.c.h.b16 %v1213
    %v5058 = vunpack.c.l.b16 %v1214
    %v5059 = vunpack.c.h.b16 %v1214
    %v5060 = vunpack.c.l.b16 %v1215
    %v5061 = vunpack.c.h.b16 %v1215
    %v5062 = vunpack.c.l.b16 %v1216
    %v5063 = vunpack.c.h.b16 %v1216
    %v5064 = vunpack.c.l.b16 %v1217
    %v5065 = vunpack.c.h.b16 %v1217
    %v5066 = vunpack.c.l.b16 %v1218
    %v5067 = vunpack.c.h.b16 %v1218
    %v5068 = vunpack.c.l.b16 %v1219
    %v5069 = vunpack.c.h.b16 %v1219
    %v5070 = vunpack.c.l.b16 %v1220
    %v5071 = vunpack.c.h.b16 %v1220
    %v5072 = vunpack.c.l.b16 %v1221
    %v5073 = vunpack.c.h.b16 %v1221
    %v5074 = vunpack.c.l.b16 %v1222
    %v5075 = vunpack.c.h.b16 %v1222
    %v5076 = vunpack.c.l.b16 %v1223
    %v5077 = vunpack.c.h.b16 %v1223
    %v5078 = vunpack.c.l.b16 %v1224
    %v5079 = vunpack.c.h.b16 %v1224
    %v5080 = vunpack.c.l.b16 %v1225
    %v5081 = vunpack.c.h.b16 %v1225
    %v5082 = vunpack.c.l.b16 %v1226
    %v5083 = vunpack.c.h.b16 %v1226
    %v5084 = vunpack.c.l.b16 %v1227
    %v5085 = vunpack.c.h.b16 %v1227
    %v5086 = vunpack.c.l.b16 %v1228
    %v5087 = vunpack.c.h.b16 %v1228
    %v5088 = vunpack.c.l.b16 %v1229
    %v5089 = vunpack.c.h.b16 %v1229
    %v5090 = vunpack.c.l.b16 %v1230
    %v5091 = vunpack.c.h.b16 %v1230
    %v5092 = vunpack.c.l.b16 %v1231
    %v5093 = vunpack.c.h.b16 %v1231
    %v5094 = vunpack.c.l.b16 %v1232
    %v5095 = vunpack.c.h.b16 %v1232
    %v5096 = vunpack.c.l.b16 %v1233
    %v5097 = vunpack.c.h.b16 %v1233
    %v5098 = vunpack.c.l.b16 %v1234
    %v5099 = vunpack.c.h.b16 %v1234
    %v5100 = vunpack.c.l.b16 %v1235
    %v5101 = vunpack.c.h.b16 %v1235
    %v5102 = vunpack.c.l.b16 %v1236
    %v5103 = vunpack.c.h.b16 %v1236
    %v5104 = vunpack.c.l.b16 %v1237
    %v5105 = vunpack.c.h.b16 %v1237
    %v5106 = vunpack.c.l.b16 %v1238
    %v5107 = vunpack.c.h.b16 %v1238
    %v5108 = vunpack.c.l.b16 %v1239
    %v5109 = vunpack.c.h.b16 %v1239
    %v5110 = vunpack.c.l.b16 %v1240
    %v5111 = vunpack.c.h.b16 %v1240
    %v5112 = vunpack.c.l.b16 %v1241
    %v5113 = vunpack.c.h.b16 %v1241
    %v5114 = vunpack.c.l.b16 %v1242
    %v5115 = vunpack.c.h.b16 %v1242
    %v5116 = vunpack.c.l.b16 %v1243
    %v5117 = vunpack.c.h.b16 %v1243
    %v5118 = vunpack.c.l.b16 %v1244
    %v5119 = vunpack.c.h.b16 %v1244
    %v5120 = vunpack.c.l.b16 %v1245
    %v5121 = vunpack.c.h.b16 %v1245
    %v5122 = vunpack.c.l.b16 %v1246
    %v5123 = vunpack.c.h.b16 %v1246
    %v5124 = vunpack.c.l.b16 %v1247
    %v5125 = vunpack.c.h.b16 %v1247
    %v5126 = vunpack.c.l.b16 %v1248
    %v5127 = vunpack.c.h.b16 %v1248
    %v5128 = vunpack.c.l.b16 %v1249
    %v5129 = vunpack.c.h.b16 %v1249
    %v5130 = vunpack.c.l.b16 %v1250
    %v5131 = vunpack.c.h.b16 %v1250
    %v5132 = vunpack.c.l.b16 %v1251
    %v5133 = vunpack.c.h.b16 %v1251
    %v5134 = vunpack.c.l.b16 %v1252
    %v5135 = vunpack.c.h.b16 %v1252
    %v5136 = vunpack.c.l.b16 %v1253
    %v5137 = vunpack.c.h.b16 %v1253
    %v5138 = vunpack.c.l.b16 %v1254
    %v5139 = vunpack.c.h.b16 %v1254
    %v5140 = vunpack.c.l.b16 %v1255
    %v5141 = vunpack.c.h.b16 %v1255
    %v5142 = vunpack.c.l.b16 %v1256
    %v5143 = vunpack.c.h.b16 %v1256
    %v5144 = vunpack.c.l.b16 %v1257
    %v5145 = vunpack.c.h.b16 %v1257
    %v5146 = vunpack.c.l.b16 %v1258
    %v5147 = vunpack.c.h.b16 %v1258
    %v5148 = vunpack.c.l.b16 %v1259
    %v5149 = vunpack.c.h.b16 %v1259
    %v5150 = vunpack.c.l.b16 %v1260
    %v5151 = vunpack.c.h.b16 %v1260
    %v5152 = vunpack.c.l.b16 %v1261
    %v5153 = vunpack.c.h.b16 %v1261
    %v5154 = vunpack.c.l.b16 %v1262
    %v5155 = vunpack.c.h.b16 %v1262
    %v5156 = vunpack.c.l.b16 %v1263
    %v5157 = vunpack.c.h.b16 %v1263
    %v5158 = vunpack.c.l.b16 %v1264
    %v5159 = vunpack.c.h.b16 %v1264
    %v5160 = vunpack.c.l.b16 %v1265
    %v5161 = vunpack.c.h.b16 %v1265
    %v5162 = vunpack.c.l.b16 %v1266
    %v5163 = vunpack.c.h.b16 %v1266
    %v5164 = vunpack.c.l.b16 %v1267
    %v5165 = vunpack.c.h.b16 %v1267
    %v5166 = vunpack.c.l.b16 %v1268
    %v5167 = vunpack.c.h.b16 %v1268
    %v5168 = vunpack.c.l.b16 %v1269
    %v5169 = vunpack.c.h.b16 %v1269
    %v5170 = vunpack.c.l.b16 %v1270
    %v5171 = vunpack.c.h.b16 %v1270
    %v5172 = vunpack.c.l.b16 %v1271
    %v5173 = vunpack.c.h.b16 %v1271
    %v5174 = vunpack.c.l.b16 %v1272
    %v5175 = vunpack.c.h.b16 %v1272
    %v5176 = vunpack.c.l.b16 %v1273
    %v5177 = vunpack.c.h.b16 %v1273
    %v5178 = vunpack.c.l.b16 %v1274
    %v5179 = vunpack.c.h.b16 %v1274
    %v5180 = vunpack.c.l.b16 %v1275
    %v5181 = vunpack.c.h.b16 %v1275
    %v5182 = vunpack.c.l.b16 %v1276
    %v5183 = vunpack.c.h.b16 %v1276
    %v5184 = vunpack.c.l.b16 %v1277
    %v5185 = vunpack.c.h.b16 %v1277
    %v5186 = vunpack.c.l.b16 %v1278
    %v5187 = vunpack.c.h.b16 %v1278
    %v5188 = vunpack.c.l.b16 %v1279
    %v5189 = vunpack.c.h.b16 %v1279
    %v5190 = vunpack.c.l.b16 %v1280
    %v5191 = vunpack.c.h.b16 %v1280
    %v5192 = vunpack.c.l.b16 %v1281
    %v5193 = vunpack.c.h.b16 %v1281
    %v5194 = vunpack.c.l.b16 %v1282
    %v5195 = vunpack.c.h.b16 %v1282
    %v5196 = vunpack.c.l.b16 %v1283
    %v5197 = vunpack.c.h.b16 %v1283
    %v5198 = vunpack.c.l.b16 %v1284
    %v5199 = vunpack.c.h.b16 %v1284
    %v5200 = vunpack.c.l.b16 %v1285
    %v5201 = vunpack.c.h.b16 %v1285
    %v5202 = vunpack.c.l.b16 %v1286
    %v5203 = vunpack.c.h.b16 %v1286
    %v5204 = vunpack.c.l.b16 %v1287
    %v5205 = vunpack.c.h.b16 %v1287
    %v5206 = vunpack.c.l.b16 %v1288
    %v5207 = vunpack.c.h.b16 %v1288
    %v5208 = vunpack.c.l.b16 %v1289
    %v5209 = vunpack.c.h.b16 %v1289
    %v5210 = vunpack.c.l.b16 %v1290
    %v5211 = vunpack.c.h.b16 %v1290
    %v5212 = vunpack.c.l.b16 %v1291
    %v5213 = vunpack.c.h.b16 %v1291
    %v5214 = vunpack.c.l.b16 %v1292
    %v5215 = vunpack.c.h.b16 %v1292
    %v5216 = vunpack.c.l.b16 %v1293
    %v5217 = vunpack.c.h.b16 %v1293
    %v5218 = vunpack.c.l.b16 %v1294
    %v5219 = vunpack.c.h.b16 %v1294
    %v5220 = vunpack.c.l.b16 %v1295
    %v5221 = vunpack.c.h.b16 %v1295
    %v5222 = vunpack.c.l.b16 %v1296
    %v5223 = vunpack.c.h.b16 %v1296
    %v5224 = vunpack.c.l.b16 %v1297
    %v5225 = vunpack.c.h.b16 %v1297
    %v5226 = vunpack.c.l.b16 %v1298
    %v5227 = vunpack.c.h.b16 %v1298
    %v5228 = vunpack.c.l.b16 %v1299
    %v5229 = vunpack.c.h.b16 %v1299
    %v5230 = vunpack.c.l.b16 %v1300
    %v5231 = vunpack.c.h.b16 %v1300
    %v5232 = vunpack.c.l.b16 %v1301
    %v5233 = vunpack.c.h.b16 %v1301
    %v5234 = vunpack.c.l.b16 %v1302
    %v5235 = vunpack.c.h.b16 %v1302
    %v5236 = vunpack.c.l.b16 %v1303
    %v5237 = vunpack.c.h.b16 %v1303
    %v5238 = vunpack.c.l.b16 %v1304
    %v5239 = vunpack.c.h.b16 %v1304
    %v5240 = vunpack.c.l.b16 %v1305
    %v5241 = vunpack.c.h.b16 %v1305
    %v5242 = vunpack.c.l.b16 %v1306
    %v5243 = vunpack.c.h.b16 %v1306
    %v5244 = vunpack.c.l.b16 %v1307
    %v5245 = vunpack.c.h.b16 %v1307
    %v5246 = vunpack.c.l.b16 %v1308
    %v5247 = vunpack.c.h.b16 %v1308
    %v5248 = vunpack.c.l.b16 %v1309
    %v5249 = vunpack.c.h.b16 %v1309
    %v5250 = vunpack.c.l.b16 %v1310
    %v5251 = vunpack.c.h.b16 %v1310
    %v5252 = vunpack.c.l.b16 %v1311
    %v5253 = vunpack.c.h.b16 %v1311
    %v5254 = vunpack.c.l.b16 %v1312
    %v5255 = vunpack.c.h.b16 %v1312
    %v5256 = vunpack.c.l.b16 %v1313
    %v5257 = vunpack.c.h.b16 %v1313
    %v5258 = vunpack.c.l.b16 %v1314
    %v5259 = vunpack.c.h.b16 %v1314
    %v5260 = vunpack.c.l.b16 %v1315
    %v5261 = vunpack.c.h.b16 %v1315
    %v5262 = vunpack.c.l.b16 %v1316
    %v5263 = vunpack.c.h.b16 %v1316
    %v5264 = vunpack.c.l.b16 %v1317
    %v5265 = vunpack.c.h.b16 %v1317
    %v5266 = vunpack.c.l.b16 %v1318
    %v5267 = vunpack.c.h.b16 %v1318
    %v5268 = vunpack.c.l.b16 %v1319
    %v5269 = vunpack.c.h.b16 %v1319
    %v5270 = vunpack.c.l.b16 %v1320
    %v5271 = vunpack.c.h.b16 %v1320
    %v5272 = vunpack.c.l.b16 %v1321
    %v5273 = vunpack.c.h.b16 %v1321
    %v5274 = vunpack.c.l.b16 %v1322
    %v5275 = vunpack.c.h.b16 %v1322
    %v5276 = vunpack.c.l.b16 %v1323
    %v5277 = vunpack.c.h.b16 %v1323
    %v5278 = vunpack.c.l.b16 %v1324
    %v5279 = vunpack.c.h.b16 %v1324
    %v5280 = vunpack.c.l.b16 %v1325
    %v5281 = vunpack.c.h.b16 %v1325
    %v5282 = vunpack.c.l.b16 %v1326
    %v5283 = vunpack.c.h.b16 %v1326
    %v5284 = vunpack.c.l.b16 %v1327
    %v5285 = vunpack.c.h.b16 %v1327
    %v5286 = vunpack.c.l.b16 %v1328
    %v5287 = vunpack.c.h.b16 %v1328
    %v5288 = vunpack.c.l.b16 %v1329
    %v5289 = vunpack.c.h.b16 %v1329
    %v5290 = vunpack.c.l.b16 %v1330
    %v5291 = vunpack.c.h.b16 %v1330
    %v5292 = vunpack.c.l.b16 %v1331
    %v5293 = vunpack.c.h.b16 %v1331
    %v5294 = vunpack.c.l.b16 %v1332
    %v5295 = vunpack.c.h.b16 %v1332
    %v5296 = vunpack.c.l.b16 %v1333
    %v5297 = vunpack.c.h.b16 %v1333
    %v5298 = vunpack.c.l.b16 %v1334
    %v5299 = vunpack.c.h.b16 %v1334
    %v5300 = vunpack.c.l.b16 %v1335
    %v5301 = vunpack.c.h.b16 %v1335
    %v5302 = vunpack.c.l.b16 %v1336
    %v5303 = vunpack.c.h.b16 %v1336
    %v5304 = vunpack.c.l.b16 %v1337
    %v5305 = vunpack.c.h.b16 %v1337
    %v5306 = vunpack.c.l.b16 %v1338
    %v5307 = vunpack.c.h.b16 %v1338
    %v5308 = vunpack.c.l.b16 %v1339
    %v5309 = vunpack.c.h.b16 %v1339
    %v5310 = vunpack.c.l.b16 %v1340
    %v5311 = vunpack.c.h.b16 %v1340
    %v5312 = vunpack.c.l.b16 %v1341
    %v5313 = vunpack.c.h.b16 %v1341
    %v5314 = vunpack.c.l.b16 %v1342
    %v5315 = vunpack.c.h.b16 %v1342
    %v5316 = vunpack.c.l.b16 %v1343
    %v5317 = vunpack.c.h.b16 %v1343
    %v5318 = vunpack.c.l.b16 %v1344
    %v5319 = vunpack.c.h.b16 %v1344
    %v5320 = vunpack.c.l.b16 %v1345
    %v5321 = vunpack.c.h.b16 %v1345
    %v5322 = vunpack.c.l.b16 %v1346
    %v5323 = vunpack.c.h.b16 %v1346
    %v5324 = vunpack.c.l.b16 %v1347
    %v5325 = vunpack.c.h.b16 %v1347
    %v5326 = vunpack.c.l.b16 %v1348
    %v5327 = vunpack.c.h.b16 %v1348
    %v5328 = vunpack.c.l.b16 %v1349
    %v5329 = vunpack.c.h.b16 %v1349
    %v5330 = vunpack.c.l.b16 %v1350
    %v5331 = vunpack.c.h.b16 %v1350
    %v5332 = vunpack.c.l.b16 %v1351
    %v5333 = vunpack.c.h.b16 %v1351
    %v5334 = vunpack.c.l.b16 %v1352
    %v5335 = vunpack.c.h.b16 %v1352
    %v5336 = vunpack.c.l.b16 %v1353
    %v5337 = vunpack.c.h.b16 %v1353
    %v5338 = vunpack.c.l.b16 %v1354
    %v5339 = vunpack.c.h.b16 %v1354
    %v5340 = vunpack.c.l.b16 %v1355
    %v5341 = vunpack.c.h.b16 %v1355
    %v5342 = vunpack.c.l.b16 %v1356
    %v5343 = vunpack.c.h.b16 %v1356
    %v5344 = vunpack.c.l.b16 %v1357
    %v5345 = vunpack.c.h.b16 %v1357
    %v5346 = vunpack.c.l.b16 %v1358
    %v5347 = vunpack.c.h.b16 %v1358
    %v5348 = vunpack.c.l.b16 %v1359
    %v5349 = vunpack.c.h.b16 %v1359
    %v5350 = vunpack.c.l.b16 %v1360
    %v5351 = vunpack.c.h.b16 %v1360
    %v5352 = vunpack.c.l.b16 %v1361
    %v5353 = vunpack.c.h.b16 %v1361
    %v5354 = vunpack.c.l.b16 %v1362
    %v5355 = vunpack.c.h.b16 %v1362
    %v5356 = vunpack.c.l.b16 %v1363
    %v5357 = vunpack.c.h.b16 %v1363
    %v5358 = vunpack.c.l.b16 %v1364
    %v5359 = vunpack.c.h.b16 %v1364
    %v5360 = vunpack.c.l.b16 %v1365
    %v5361 = vunpack.c.h.b16 %v1365
    %v5362 = vunpack.c.l.b16 %v1366
    %v5363 = vunpack.c.h.b16 %v1366
    %v5364 = vunpack.c.l.b16 %v1367
    %v5365 = vunpack.c.h.b16 %v1367
    %v5366 = vunpack.c.l.b16 %v1368
    %v5367 = vunpack.c.h.b16 %v1368
    %v5368 = vunpack.c.l.b16 %v1369
    %v5369 = vunpack.c.h.b16 %v1369
    %v5370 = vunpack.c.l.b16 %v1370
    %v5371 = vunpack.c.h.b16 %v1370
    %v5372 = vunpack.c.l.b16 %v1371
    %v5373 = vunpack.c.h.b16 %v1371
    %v5374 = vunpack.c.l.b16 %v1372
    %v5375 = vunpack.c.h.b16 %v1372
    %v5376 = vunpack.c.l.b16 %v1373
    %v5377 = vunpack.c.h.b16 %v1373
    %v5378 = vunpack.c.l.b16 %v1374
    %v5379 = vunpack.c.h.b16 %v1374
    %v5380 = vunpack.c.l.b16 %v1375
    %v5381 = vunpack.c.h.b16 %v1375
    %v5382 = vunpack.c.l.b16 %v1376
    %v5383 = vunpack.c.h.b16 %v1376
    %v5384 = vunpack.c.l.b16 %v1377
    %v5385 = vunpack.c.h.b16 %v1377
    %v5386 = vunpack.c.l.b16 %v1378
    %v5387 = vunpack.c.h.b16 %v1378
    %v5388 = vunpack.c.l.b16 %v1379
    %v5389 = vunpack.c.h.b16 %v1379
    %v5390 = vunpack.c.l.b16 %v1380
    %v5391 = vunpack.c.h.b16 %v1380
    %v5392 = vunpack.c.l.b16 %v1381
    %v5393 = vunpack.c.h.b16 %v1381
    %v5394 = vunpack.c.l.b16 %v1382
    %v5395 = vunpack.c.h.b16 %v1382
    %v5396 = vunpack.c.l.b16 %v1383
    %v5397 = vunpack.c.h.b16 %v1383
    %v5398 = vunpack.c.l.b16 %v1384
    %v5399 = vunpack.c.h.b16 %v1384
    %v5400 = vunpack.c.l.b16 %v1385
    %v5401 = vunpack.c.h.b16 %v1385
    %v5402 = vunpack.c.l.b16 %v1386
    %v5403 = vunpack.c.h.b16 %v1386
    %v5404 = vunpack.c.l.b16 %v1387
    %v5405 = vunpack.c.h.b16 %v1387
    %v5406 = vunpack.c.l.b16 %v1388
    %v5407 = vunpack.c.h.b16 %v1388
    %v5408 = vunpack.c.l.b16 %v1389
    %v5409 = vunpack.c.h.b16 %v1389
    %v5410 = vunpack.c.l.b16 %v1390
    %v5411 = vunpack.c.h.b16 %v1390
    %v5412 = vunpack.c.l.b16 %v1391
    %v5413 = vunpack.c.h.b16 %v1391
    %v5414 = vunpack.c.l.b16 %v1392
    %v5415 = vunpack.c.h.b16 %v1392
    %v5416 = vunpack.c.l.b16 %v1393
    %v5417 = vunpack.c.h.b16 %v1393
    %v5418 = vunpack.c.l.b16 %v1394
    %v5419 = vunpack.c.h.b16 %v1394
    %v5420 = vunpack.c.l.b16 %v1395
    %v5421 = vunpack.c.h.b16 %v1395
    %v5422 = vunpack.c.l.b16 %v1396
    %v5423 = vunpack.c.h.b16 %v1396
    %v5424 = vunpack.c.l.b16 %v1397
    %v5425 = vunpack.c.h.b16 %v1397
    %v5426 = vunpack.c.l.b16 %v1398
    %v5427 = vunpack.c.h.b16 %v1398
    %v5428 = vunpack.c.l.b16 %v1399
    %v5429 = vunpack.c.h.b16 %v1399
    %v5430 = vunpack.c.l.b16 %v1400
    %v5431 = vunpack.c.h.b16 %v1400
    %v5432 = vunpack.c.l.b16 %v1401
    %v5433 = vunpack.c.h.b16 %v1401
    %v5434 = vunpack.c.l.b16 %v1402
    %v5435 = vunpack.c.h.b16 %v1402
    %v5436 = vunpack.c.l.b16 %v1403
    %v5437 = vunpack.c.h.b16 %v1403
    %v5438 = vunpack.c.l.b16 %v1404
    %v5439 = vunpack.c.h.b16 %v1404
    %v5440 = vunpack.c.l.b16 %v1405
    %v5441 = vunpack.c.h.b16 %v1405
    %v5442 = vunpack.c.l.b16 %v1406
    %v5443 = vunpack.c.h.b16 %v1406
    %v5444 = vunpack.c.l.b16 %v1407
    %v5445 = vunpack.c.h.b16 %v1407
    %v5446 = vunpack.c.l.b16 %v1408
    %v5447 = vunpack.c.h.b16 %v1408
    %v5448 = vunpack.c.l.b16 %v1409
    %v5449 = vunpack.c.h.b16 %v1409
    %v5450 = vunpack.c.l.b16 %v1410
    %v5451 = vunpack.c.h.b16 %v1410
    %v5452 = vunpack.c.l.b16 %v1411
    %v5453 = vunpack.c.h.b16 %v1411
    %v5454 = vunpack.c.l.b16 %v1412
    %v5455 = vunpack.c.h.b16 %v1412
    %v5456 = vunpack.c.l.b16 %v1413
    %v5457 = vunpack.c.h.b16 %v1413
    %v5458 = vunpack.c.l.b16 %v1414
    %v5459 = vunpack.c.h.b16 %v1414
    %v5460 = vunpack.c.l.b16 %v1415
    %v5461 = vunpack.c.h.b16 %v1415
    %v5462 = vunpack.c.l.b16 %v1416
    %v5463 = vunpack.c.h.b16 %v1416
    %v5464 = vunpack.c.l.b16 %v1417
    %v5465 = vunpack.c.h.b16 %v1417
    %v5466 = vunpack.c.l.b16 %v1418
    %v5467 = vunpack.c.h.b16 %v1418
    %v5468 = vunpack.c.l.b16 %v1419
    %v5469 = vunpack.c.h.b16 %v1419
    %v5470 = vunpack.c.l.b16 %v1420
    %v5471 = vunpack.c.h.b16 %v1420
    %v5472 = vunpack.c.l.b16 %v1421
    %v5473 = vunpack.c.h.b16 %v1421
    %v5474 = vunpack.c.l.b16 %v1422
    %v5475 = vunpack.c.h.b16 %v1422
    %v5476 = vunpack.c.l.b16 %v1423
    %v5477 = vunpack.c.h.b16 %v1423
    %v5478 = vunpack.c.l.b16 %v1424
    %v5479 = vunpack.c.h.b16 %v1424
    %v5480 = vunpack.c.l.b16 %v1425
    %v5481 = vunpack.c.h.b16 %v1425
    %v5482 = vunpack.c.l.b16 %v1426
    %v5483 = vunpack.c.h.b16 %v1426
    %v5484 = vunpack.c.l.b16 %v1427
    %v5485 = vunpack.c.h.b16 %v1427
    %v5486 = vunpack.c.l.b16 %v1428
    %v5487 = vunpack.c.h.b16 %v1428
    %v5488 = vunpack.c.l.b16 %v1429
    %v5489 = vunpack.c.h.b16 %v1429
    %v5490 = vunpack.c.l.b16 %v1430
    %v5491 = vunpack.c.h.b16 %v1430
    %v5492 = vunpack.c.l.b16 %v1431
    %v5493 = vunpack.c.h.b16 %v1431
    %v5494 = vunpack.c.l.b16 %v1432
    %v5495 = vunpack.c.h.b16 %v1432
    %v5496 = vunpack.c.l.b16 %v1433
    %v5497 = vunpack.c.h.b16 %v1433
    %v5498 = vunpack.c.l.b16 %v1434
    %v5499 = vunpack.c.h.b16 %v1434
    %v5500 = vunpack.c.l.b16 %v1435
    %v5501 = vunpack.c.h.b16 %v1435
    %v5502 = vunpack.c.l.b16 %v1436
    %v5503 = vunpack.c.h.b16 %v1436
    %v5504 = vunpack.c.l.b16 %v1437
    %v5505 = vunpack.c.h.b16 %v1437
    %v5506 = vunpack.c.l.b16 %v1438
    %v5507 = vunpack.c.h.b16 %v1438
    %v5508 = vunpack.c.l.b16 %v1439
    %v5509 = vunpack.c.h.b16 %v1439
    %v5510 = vunpack.c.l.b16 %v1440
    %v5511 = vunpack.c.h.b16 %v1440
    %v5512 = vunpack.c.l.b16 %v1441
    %v5513 = vunpack.c.h.b16 %v1441
    %v5514 = vunpack.c.l.b16 %v1442
    %v5515 = vunpack.c.h.b16 %v1442
    %v5516 = vunpack.c.l.b16 %v1443
    %v5517 = vunpack.c.h.b16 %v1443
    %v5518 = vunpack.c.l.b16 %v1444
    %v5519 = vunpack.c.h.b16 %v1444
    %v5520 = vunpack.c.l.b16 %v1445
    %v5521 = vunpack.c.h.b16 %v1445
    %v5522 = vunpack.c.l.b16 %v1446
    %v5523 = vunpack.c.h.b16 %v1446
    %v5524 = vunpack.c.l.b16 %v1447
    %v5525 = vunpack.c.h.b16 %v1447
    %v5526 = vunpack.c.l.b16 %v1448
    %v5527 = vunpack.c.h.b16 %v1448
    %v5528 = vunpack.c.l.b16 %v1449
    %v5529 = vunpack.c.h.b16 %v1449
    %v5530 = vunpack.c.l.b16 %v1450
    %v5531 = vunpack.c.h.b16 %v1450
    %v5532 = vunpack.c.l.b16 %v1451
    %v5533 = vunpack.c.h.b16 %v1451
    %v5534 = vunpack.c.l.b16 %v1452
    %v5535 = vunpack.c.h.b16 %v1452
    %v5536 = vunpack.c.l.b16 %v1453
    %v5537 = vunpack.c.h.b16 %v1453
    %v5538 = vunpack.c.l.b16 %v1454
    %v5539 = vunpack.c.h.b16 %v1454
    %v5540 = vunpack.c.l.b16 %v1455
    %v5541 = vunpack.c.h.b16 %v1455
    %v5542 = vunpack.c.l.b16 %v1456
    %v5543 = vunpack.c.h.b16 %v1456
    %v5544 = vunpack.c.l.b16 %v1457
    %v5545 = vunpack.c.h.b16 %v1457
    %v5546 = vunpack.c.l.b16 %v1458
    %v5547 = vunpack.c.h.b16 %v1458
    %v5548 = vunpack.c.l.b16 %v1459
    %v5549 = vunpack.c.h.b16 %v1459
    %v5550 = vunpack.c.l.b16 %v1460
    %v5551 = vunpack.c.h.b16 %v1460
    %v5552 = vunpack.c.l.b16 %v1461
    %v5553 = vunpack.c.h.b16 %v1461
    %v5554 = vunpack.c.l.b16 %v1462
    %v5555 = vunpack.c.h.b16 %v1462
    %v5556 = vunpack.c.l.b16 %v1463
    %v5557 = vunpack.c.h.b16 %v1463
    %v5558 = vunpack.c.l.b16 %v1464
    %v5559 = vunpack.c.h.b16 %v1464
    %v5560 = vunpack.c.l.b16 %v1465
    %v5561 = vunpack.c.h.b16 %v1465
    %v5562 = vunpack.c.l.b16 %v1466
    %v5563 = vunpack.c.h.b16 %v1466
    %v5564 = vunpack.c.l.b16 %v1467
    %v5565 = vunpack.c.h.b16 %v1467
    %v5566 = vunpack.c.l.b16 %v1468
    %v5567 = vunpack.c.h.b16 %v1468
    %v5568 = vunpack.c.l.b16 %v1469
    %v5569 = vunpack.c.h.b16 %v1469
    %v5570 = vunpack.c.l.b16 %v1470
    %v5571 = vunpack.c.h.b16 %v1470
    %v5572 = vunpack.c.l.b16 %v1471
    %v5573 = vunpack.c.h.b16 %v1471
    %v5574 = vunpack.c.l.b16 %v1472
    %v5575 = vunpack.c.h.b16 %v1472
    %v5576 = vunpack.c.l.b16 %v1473
    %v5577 = vunpack.c.h.b16 %v1473
    %v5578 = vunpack.c.l.b16 %v1474
    %v5579 = vunpack.c.h.b16 %v1474
    %v5580 = vunpack.c.l.b16 %v1475
    %v5581 = vunpack.c.h.b16 %v1475
    %v5582 = vunpack.c.l.b16 %v1476
    %v5583 = vunpack.c.h.b16 %v1476
    %v5584 = vunpack.c.l.b16 %v1477
    %v5585 = vunpack.c.h.b16 %v1477
    %v5586 = vunpack.c.l.b16 %v1478
    %v5587 = vunpack.c.h.b16 %v1478
    %v5588 = vunpack.c.l.b16 %v1479
    %v5589 = vunpack.c.h.b16 %v1479
    %v5590 = vunpack.c.l.b16 %v1480
    %v5591 = vunpack.c.h.b16 %v1480
    %v5592 = vunpack.c.l.b16 %v1481
    %v5593 = vunpack.c.h.b16 %v1481
    %v5594 = vunpack.c.l.b16 %v1482
    %v5595 = vunpack.c.h.b16 %v1482
    %v5596 = vunpack.c.l.b16 %v1483
    %v5597 = vunpack.c.h.b16 %v1483
    %v5598 = vunpack.c.l.b16 %v1484
    %v5599 = vunpack.c.h.b16 %v1484
    %v5600 = vunpack.c.l.b16 %v1485
    %v5601 = vunpack.c.h.b16 %v1485
    %v5602 = vunpack.c.l.b16 %v1486
    %v5603 = vunpack.c.h.b16 %v1486
    %v5604 = vunpack.c.l.b16 %v1487
    %v5605 = vunpack.c.h.b16 %v1487
    %v5606 = vunpack.c.l.b16 %v1488
    %v5607 = vunpack.c.h.b16 %v1488
    %v5608 = vunpack.c.l.b16 %v1489
    %v5609 = vunpack.c.h.b16 %v1489
    %v5610 = vunpack.c.l.b16 %v1490
    %v5611 = vunpack.c.h.b16 %v1490
    %v5612 = vunpack.c.l.b16 %v1491
    %v5613 = vunpack.c.h.b16 %v1491
    %v5614 = vunpack.c.l.b16 %v1492
    %v5615 = vunpack.c.h.b16 %v1492
    %v5616 = vunpack.c.l.b16 %v1493
    %v5617 = vunpack.c.h.b16 %v1493
    %v5618 = vunpack.c.l.b16 %v1494
    %v5619 = vunpack.c.h.b16 %v1494
    %v5620 = vunpack.c.l.b16 %v1495
    %v5621 = vunpack.c.h.b16 %v1495
    %v5622 = vunpack.c.l.b16 %v1496
    %v5623 = vunpack.c.h.b16 %v1496
    %v5624 = vunpack.c.l.b16 %v1497
    %v5625 = vunpack.c.h.b16 %v1497
    %v5626 = vunpack.c.l.b16 %v1498
    %v5627 = vunpack.c.h.b16 %v1498
    %v5628 = vunpack.c.l.b16 %v1499
    %v5629 = vunpack.c.h.b16 %v1499
    %v5630 = vunpack.c.l.b16 %v1500
    %v5631 = vunpack.c.h.b16 %v1500
    %v5632 = vunpack.c.l.b16 %v1501
    %v5633 = vunpack.c.h.b16 %v1501
    %v5634 = vunpack.c.l.b16 %v1502
    %v5635 = vunpack.c.h.b16 %v1502
    %v5636 = vunpack.c.l.b16 %v1503
    %v5637 = vunpack.c.h.b16 %v1503
    %v5638 = vunpack.c.l.b16 %v1504
    %v5639 = vunpack.c.h.b16 %v1504
    %v5640 = vunpack.c.l.b16 %v1505
    %v5641 = vunpack.c.h.b16 %v1505
    %v5642 = vunpack.c.l.b16 %v1506
    %v5643 = vunpack.c.h.b16 %v1506
    %v5644 = vunpack.c.l.b16 %v1507
    %v5645 = vunpack.c.h.b16 %v1507
    %v5646 = vunpack.c.l.b16 %v1508
    %v5647 = vunpack.c.h.b16 %v1508
    %v5648 = vunpack.c.l.b16 %v1509
    %v5649 = vunpack.c.h.b16 %v1509
    %v5650 = vpack.c.b16 %v2934, %v2906
    %v5651 = vpack.c.b16 %v2935, %v2907
    %v5652 = vpack.c.b16 %v2936, %v2908
    %v5653 = vpack.c.b16 %v2937, %v2909
    %v5654 = vpack.c.b16 %v2938, %v2910
    %v5655 = vpack.c.b16 %v2939, %v2911
    %v5656 = vpack.c.b16 %v2940, %v2912
    %v5657 = vpack.c.b16 %v2941, %v2913
    %v5658 = vpack.c.b16 %v2942, %v2914
    %v5659 = vpack.c.b16 %v2943, %v2915
    %v5660 = vpack.c.b16 %v2944, %v2916
    %v5661 = vpack.c.b16 %v2945, %v2917
    %v5662 = vpack.c.b16 %v2946, %v2918
    %v5663 = vpack.c.b16 %v2947, %v2919
    %v5664 = vpack.c.b16 %v2948, %v2920
    %v5665 = vpack.c.b16 %v2949, %v2921
    %v5666 = vpack.c.b16 %v2950, %v2922
    %v5667 = vpack.c.b16 %v2951, %v2923
    %v5668 = vpack.c.b16 %v2952, %v2924
    %v5669 = vpack.c.b16 %v2953, %v2925
    %v5670 = vpack.c.b16 %v2954, %v2926
    %v5671 = vpack.c.b16 %v2955, %v2927
    %v5672 = vpack.c.b16 %v2956, %v2928
    %v5673 = vpack.c.b16 %v2957, %v2929
    %v5674 = vpack.c.b16 %v2958, %v2930
    %v5675 = vpack.c.b16 %v2959, %v2931
    %v5676 = vpack.c.b16 %v2960, %v2932
    %v5677 = vpack.c.b16 %v2961, %v2933
    %v5678 = vpack.c.b16 %v2990, %v2962
    %v5679 = vpack.c.b16 %v2991, %v2963
    %v5680 = vpack.c.b16 %v2992, %v2964
    %v5681 = vpack.c.b16 %v2993, %v2965
    %v5682 = vpack.c.b16 %v2994, %v2966
    %v5683 = vpack.c.b16 %v2995, %v2967
    %v5684 = vpack.c.b16 %v2996, %v2968
    %v5685 = vpack.c.b16 %v2997, %v2969
    %v5686 = vpack.c.b16 %v2998, %v2970
    %v5687 = vpack.c.b16 %v2999, %v2971
    %v5688 = vpack.c.b16 %v3000, %v2972
    %v5689 = vpack.c.b16 %v3001, %v2973
    %v5690 = vpack.c.b16 %v3002, %v2974
    %v5691 = vpack.c.b16 %v3003, %v2975
    %v5692 = vpack.c.b16 %v3004, %v2976
    %v5693 = vpack.c.b16 %v3005, %v2977
    %v5694 = vpack.c.b16 %v3006, %v2978
    %v5695 = vpack.c.b16 %v3007, %v2979
    %v5696 = vpack.c.b16 %v3008, %v2980
    %v5697 = vpack.c.b16 %v3009, %v2981
    %v5698 = vpack.c.b16 %v3010, %v2982
    %v5699 = vpack.c.b16 %v3011, %v2983
    %v5700 = vpack.c.b16 %v3012, %v2984
    %v5701 = vpack.c.b16 %v3013, %v2985
    %v5702 = vpack.c.b16 %v3014, %v2986
    %v5703 = vpack.c.b16 %v3015, %v2987
    %v5704 = vpack.c.b16 %v3016, %v2988
    %v5705 = vpack.c.b16 %v3017, %v2989
    %v5706 = vpack.c.b16 %v3046, %v3018
    %v5707 = vpack.c.b16 %v3047, %v3019
    %v5708 = vpack.c.b16 %v3048, %v3020
    %v5709 = vpack.c.b16 %v3049, %v3021
    %v5710 = vpack.c.b16 %v3050, %v3022
    %v5711 = vpack.c.b16 %v3051, %v3023
    %v5712 = vpack.c.b16 %v3052, %v3024
    %v5713 = vpack.c.b16 %v3053, %v3025
    %v5714 = vpack.c.b16 %v3054, %v3026
    %v5715 = vpack.c.b16 %v3055, %v3027
    %v5716 = vpack.c.b16 %v3056, %v3028
    %v5717 = vpack.c.b16 %v3057, %v3029
    %v5718 = vpack.c.b16 %v3058, %v3030
    %v5719 = vpack.c.b16 %v3059, %v3031
    %v5720 = vpack.c.b16 %v3060, %v3032
    %v5721 = vpack.c.b16 %v3061, %v3033
    %v5722 = vpack.c.b16 %v3062, %v3034
    %v5723 = vpack.c.b16 %v3063, %v3035
    %v5724 = vpack.c.b16 %v3064, %v3036
    %v5725 = vpack.c.b16 %v3065, %v3037
    %v5726 = vpack.c.b16 %v3066, %v3038
    %v5727 = vpack.c.b16 %v3067, %v3039
    %v5728 = vpack.c.b16 %v3068, %v3040
    %v5729 = vpack.c.b16 %v3069, %v3041
    %v5730 = vpack.c.b16 %v3070, %v3042
    %v5731 = vpack.c.b16 %v3071, %v3043
    %v5732 = vpack.c.b16 %v3072, %v3044
    %v5733 = vpack.c.b16 %v3073, %v3045
    %v5734 = vpack.c.b16 %v3102, %v3074
    %v5735 = vpack.c.b16 %v3103, %v3075
    %v5736 = vpack.c.b16 %v3104, %v3076
    %v5737 = vpack.c.b16 %v3105, %v3077
    %v5738 = vpack.c.b16 %v3106, %v3078
    %v5739 = vpack.c.b16 %v3107, %v3079
    %v5740 = vpack.c.b16 %v3108, %v3080
    %v5741 = vpack.c.b16 %v3109, %v3081
    %v5742 = vpack.c.b16 %v3110, %v3082
    %v5743 = vpack.c.b16 %v3111, %v3083
    %v5744 = vpack.c.b16 %v3112, %v3084
    %v5745 = vpack.c.b16 %v3113, %v3085
    %v5746 = vpack.c.b16 %v3114, %v3086
    %v5747 = vpack.c.b16 %v3115, %v3087
    %v5748 = vpack.c.b16 %v3116, %v3088
    %v5749 = vpack.c.b16 %v3117, %v3089
    %v5750 = vpack.c.b16 %v3118, %v3090
    %v5751 = vpack.c.b16 %v3119, %v3091
    %v5752 = vpack.c.b16 %v3120, %v3092
    %v5753 = vpack.c.b16 %v3121, %v3093
    %v5754 = vpack.c.b16 %v3122, %v3094
    %v5755 = vpack.c.b16 %v3123, %v3095
    %v5756 = vpack.c.b16 %v3124, %v3096
    %v5757 = vpack.c.b16 %v3125, %v3097
    %v5758 = vpack.c.b16 %v3126, %v3098
    %v5759 = vpack.c.b16 %v3127, %v3099
    %v5760 = vpack.c.b16 %v3128, %v3100
    %v5761 = vpack.c.b16 %v3129, %v3101
    %v5762 = vpack.c.b16 %v3158, %v3130
    %v5763 = vpack.c.b16 %v3159, %v3131
    %v5764 = vpack.c.b16 %v3160, %v3132
    %v5765 = vpack.c.b16 %v3161, %v3133
    %v5766 = vpack.c.b16 %v3162, %v3134
    %v5767 = vpack.c.b16 %v3163, %v3135
    %v5768 = vpack.c.b16 %v3164, %v3136
    %v5769 = vpack.c.b16 %v3165, %v3137
    %v5770 = vpack.c.b16 %v3166, %v3138
    %v5771 = vpack.c.b16 %v3167, %v3139
    %v5772 = vpack.c.b16 %v3168, %v3140
    %v5773 = vpack.c.b16 %v3169, %v3141
    %v5774 = vpack.c.b16 %v3170, %v3142
    %v5775 = vpack.c.b16 %v3171, %v3143
    %v5776 = vpack.c.b16 %v3172, %v3144
    %v5777 = vpack.c.b16 %v3173, %v3145
    %v5778 = vpack.c.b16 %v3174, %v3146
    %v5779 = vpack.c.b16 %v3175, %v3147
    %v5780 = vpack.c.b16 %v3176, %v3148
    %v5781 = vpack.c.b16 %v3177, %v3149
    %v5782 = vpack.c.b16 %v3178, %v3150
    %v5783 = vpack.c.b16 %v3179, %v3151
    %v5784 = vpack.c.b16 %v3180, %v3152
    %v5785 = vpack.c.b16 %v3181, %v3153
    %v5786 = vpack.c.b16 %v3182, %v3154
    %v5787 = vpack.c.b16 %v3183, %v3155
    %v5788 = vpack.c.b16 %v3184, %v3156
    %v5789 = vpack.c.b16 %v3185, %v3157
    %v5790 = vpack.c.b16 %v3214, %v3186
    %v5791 = vpack.c.b16 %v3215, %v3187
    %v5792 = vpack.c.b16 %v3216, %v3188
    %v5793 = vpack.c.b16 %v3217, %v3189
    %v5794 = vpack.c.b16 %v3218, %v3190
    %v5795 = vpack.c.b16 %v3219, %v3191
    %v5796 = vpack.c.b16 %v3220, %v3192
    %v5797 = vpack.c.b16 %v3221, %v3193
    %v5798 = vpack.c.b16 %v3222, %v3194
    %v5799 = vpack.c.b16 %v3223, %v3195
    %v5800 = vpack.c.b16 %v3224, %v3196
    %v5801 = vpack.c.b16 %v3225, %v3197
    %v5802 = vpack.c.b16 %v3226, %v3198
    %v5803 = vpack.c.b16 %v3227, %v3199
    %v5804 = vpack.c.b16 %v3228, %v3200
    %v5805 = vpack.c.b16 %v3229, %v3201
    %v5806 = vpack.c.b16 %v3230, %v3202
    %v5807 = vpack.c.b16 %v3231, %v3203
    %v5808 = vpack.c.b16 %v3232, %v3204
    %v5809 = vpack.c.b16 %v3233, %v3205
    %v5810 = vpack.c.b16 %v3234, %v3206
    %v5811 = vpack.c.b16 %v3235, %v3207
    %v5812 = vpack.c.b16 %v3236, %v3208
    %v5813 = vpack.c.b16 %v3237, %v3209
    %v5814 = vpack.c.b16 %v3238, %v3210
    %v5815 = vpack.c.b16 %v3239, %v3211
    %v5816 = vpack.c.b16 %v3240, %v3212
    %v5817 = vpack.c.b16 %v3241, %v3213
    %v5818 = vpack.c.b16 %v3270, %v3242
    %v5819 = vpack.c.b16 %v3271, %v3243
    %v5820 = vpack.c.b16 %v3272, %v3244
    %v5821 = vpack.c.b16 %v3273, %v3245
    %v5822 = vpack.c.b16 %v3274, %v3246
    %v5823 = vpack.c.b16 %v3275, %v3247
    %v5824 = vpack.c.b16 %v3276, %v3248
    %v5825 = vpack.c.b16 %v3277, %v3249
    %v5826 = vpack.c.b16 %v3278, %v3250
    %v5827 = vpack.c.b16 %v3279, %v3251
    %v5828 = vpack.c.b16 %v3280, %v3252
    %v5829 = vpack.c.b16 %v3281, %v3253
    %v5830 = vpack.c.b16 %v3282, %v3254
    %v5831 = vpack.c.b16 %v3283, %v3255
    %v5832 = vpack.c.b16 %v3284, %v3256
    %v5833 = vpack.c.b16 %v3285, %v3257
    %v5834 = vpack.c.b16 %v3286, %v3258
    %v5835 = vpack.c.b16 %v3287, %v3259
    %v5836 = vpack.c.b16 %v3288, %v3260
    %v5837 = vpack.c.b16 %v3289, %v3261
    %v5838 = vpack.c.b16 %v3290, %v3262
    %v5839 = vpack.c.b16 %v3291, %v3263
    %v5840 = vpack.c.b16 %v3292, %v3264
    %v5841 = vpack.c.b16 %v3293, %v3265
    %v5842 = vpack.c.b16 %v3294, %v3266
    %v5843 = vpack.c.b16 %v3295, %v3267
    %v5844 = vpack.c.b16 %v3296, %v3268
    %v5845 = vpack.c.b16 %v3297, %v3269
    %v5846 = vpack.c.b16 %v3326, %v3298
    %v5847 = vpack.c.b16 %v3327, %v3299
    %v5848 = vpack.c.b16 %v3328, %v3300
    %v5849 = vpack.c.b16 %v3329, %v3301
    %v5850 = vpack.c.b16 %v3330, %v3302
    %v5851 = vpack.c.b16 %v3331, %v3303
    %v5852 = vpack.c.b16 %v3332, %v3304
    %v5853 = vpack.c.b16 %v3333, %v3305
    %v5854 = vpack.c.b16 %v3334, %v3306
    %v5855 = vpack.c.b16 %v3335, %v3307
    %v5856 = vpack.c.b16 %v3336, %v3308
    %v5857 = vpack.c.b16 %v3337, %v3309
    %v5858 = vpack.c.b16 %v3338, %v3310
    %v5859 = vpack.c.b16 %v3339, %v3311
    %v5860 = vpack.c.b16 %v3340, %v3312
    %v5861 = vpack.c.b16 %v3341, %v3313
    %v5862 = vpack.c.b16 %v3342, %v3314
    %v5863 = vpack.c.b16 %v3343, %v3315
    %v5864 = vpack.c.b16 %v3344, %v3316
    %v5865 = vpack.c.b16 %v3345, %v3317
    %v5866 = vpack.c.b16 %v3346, %v3318
    %v5867 = vpack.c.b16 %v3347, %v3319
    %v5868 = vpack.c.b16 %v3348, %v3320
    %v5869 = vpack.c.b16 %v3349, %v3321
    %v5870 = vpack.c.b16 %v3350, %v3322
    %v5871 = vpack.c.b16 %v3351, %v3323
    %v5872 = vpack.c.b16 %v3352, %v3324
    %v5873 = vpack.c.b16 %v3353, %v3325
    %v5874 = vpack.c.b16 %v3382, %v3354
    %v5875 = vpack.c.b16 %v3383, %v3355
    %v5876 = vpack.c.b16 %v3384, %v3356
    %v5877 = vpack.c.b16 %v3385, %v3357
    %v5878 = vpack.c.b16 %v3386, %v3358
    %v5879 = vpack.c.b16 %v3387, %v3359
    %v5880 = vpack.c.b16 %v3388, %v3360
    %v5881 = vpack.c.b16 %v3389, %v3361
    %v5882 = vpack.c.b16 %v3390, %v3362
    %v5883 = vpack.c.b16 %v3391, %v3363
    %v5884 = vpack.c.b16 %v3392, %v3364
    %v5885 = vpack.c.b16 %v3393, %v3365
    %v5886 = vpack.c.b16 %v3394, %v3366
    %v5887 = vpack.c.b16 %v3395, %v3367
    %v5888 = vpack.c.b16 %v3396, %v3368
    %v5889 = vpack.c.b16 %v3397, %v3369
    %v5890 = vpack.c.b16 %v3398, %v3370
    %v5891 = vpack.c.b16 %v3399, %v3371
    %v5892 = vpack.c.b16 %v3400, %v3372
    %v5893 = vpack.c.b16 %v3401, %v3373
    %v5894 = vpack.c.b16 %v3402, %v3374
    %v5895 = vpack.c.b16 %v3403, %v3375
    %v5896 = vpack.c.b16 %v3404, %v3376
    %v5897 = vpack.c.b16 %v3405, %v3377
    %v5898 = vpack.c.b16 %v3406, %v3378
    %v5899 = vpack.c.b16 %v3407, %v3379
    %v5900 = vpack.c.b16 %v3408, %v3380
    %v5901 = vpack.c.b16 %v3409, %v3381
    %v5902 = vpack.c.b16 %v3438, %v3410
    %v5903 = vpack.c.b16 %v3439, %v3411
    %v5904 = vpack.c.b16 %v3440, %v3412
    %v5905 = vpack.c.b16 %v3441, %v3413
    %v5906 = vpack.c.b16 %v3442, %v3414
    %v5907 = vpack.c.b16 %v3443, %v3415
    %v5908 = vpack.c.b16 %v3444, %v3416
    %v5909 = vpack.c.b16 %v3445, %v3417
    %v5910 = vpack.c.b16 %v3446, %v3418
    %v5911 = vpack.c.b16 %v3447, %v3419
    %v5912 = vpack.c.b16 %v3448, %v3420
    %v5913 = vpack.c.b16 %v3449, %v3421
    %v5914 = vpack.c.b16 %v3450, %v3422
    %v5915 = vpack.c.b16 %v3451, %v3423
    %v5916 = vpack.c.b16 %v3452, %v3424
    %v5917 = vpack.c.b16 %v3453, %v3425
    %v5918 = vpack.c.b16 %v3454, %v3426
    %v5919 = vpack.c.b16 %v3455, %v3427
    %v5920 = vpack.c.b16 %v3456, %v3428
    %v5921 = vpack.c.b16 %v3457, %v3429
    %v5922 = vpack.c.b16 %v3458, %v3430
    %v5923 = vpack.c.b16 %v3459, %v3431
    %v5924 = vpack.c.b16 %v3460, %v3432
    %v5925 = vpack.c.b16 %v3461, %v3433
    %v5926 = vpack.c.b16 %v3462, %v3434
    %v5927 = vpack.c.b16 %v3463, %v3435
    %v5928 = vpack.c.b16 %v3464, %v3436
    %v5929 = vpack.c.b16 %v3465, %v3437
    %v5930 = vpack.c.b16 %v3494, %v3466
    %v5931 = vpack.c.b16 %v3495, %v3467
    %v5932 = vpack.c.b16 %v3496, %v3468
    %v5933 = vpack.c.b16 %v3497, %v3469
    %v5934 = vpack.c.b16 %v3498, %v3470
    %v5935 = vpack.c.b16 %v3499, %v3471
    %v5936 = vpack.c.b16 %v3500, %v3472
    %v5937 = vpack.c.b16 %v3501, %v3473
    %v5938 = vpack.c.b16 %v3502, %v3474
    %v5939 = vpack.c.b16 %v3503, %v3475
    %v5940 = vpack.c.b16 %v3504, %v3476
    %v5941 = vpack.c.b16 %v3505, %v3477
    %v5942 = vpack.c.b16 %v3506, %v3478
    %v5943 = vpack.c.b16 %v3507, %v3479
    %v5944 = vpack.c.b16 %v3508, %v3480
    %v5945 = vpack.c.b16 %v3509, %v3481
    %v5946 = vpack.c.b16 %v3510, %v3482
    %v5947 = vpack.c.b16 %v3511, %v3483
    %v5948 = vpack.c.b16 %v3512, %v3484
    %v5949 = vpack.c.b16 %v3513, %v3485
    %v5950 = vpack.c.b16 %v3514, %v3486
    %v5951 = vpack.c.b16 %v3515, %v3487
    %v5952 = vpack.c.b16 %v3516, %v3488
    %v5953 = vpack.c.b16 %v3517, %v3489
    %v5954 = vpack.c.b16 %v3518, %v3490
    %v5955 = vpack.c.b16 %v3519, %v3491
    %v5956 = vpack.c.b16 %v3520, %v3492
    %v5957 = vpack.c.b16 %v3521, %v3493
    %v5958 = vpack.c.b16 %v3550, %v3522
    %v5959 = vpack.c.b16 %v3551, %v3523
    %v5960 = vpack.c.b16 %v3552, %v3524
    %v5961 = vpack.c.b16 %v3553, %v3525
    %v5962 = vpack.c.b16 %v3554, %v3526
    %v5963 = vpack.c.b16 %v3555, %v3527
    %v5964 = vpack.c.b16 %v3556, %v3528
    %v5965 = vpack.c.b16 %v3557, %v3529
    %v5966 = vpack.c.b16 %v3558, %v3530
    %v5967 = vpack.c.b16 %v3559, %v3531
    %v5968 = vpack.c.b16 %v3560, %v3532
    %v5969 = vpack.c.b16 %v3561, %v3533
    %v5970 = vpack.c.b16 %v3562, %v3534
    %v5971 = vpack.c.b16 %v3563, %v3535
    %v5972 = vpack.c.b16 %v3564, %v3536
    %v5973 = vpack.c.b16 %v3565, %v3537
    %v5974 = vpack.c.b16 %v3566, %v3538
    %v5975 = vpack.c.b16 %v3567, %v3539
    %v5976 = vpack.c.b16 %v3568, %v3540
    %v5977 = vpack.c.b16 %v3569, %v3541
    %v5978 = vpack.c.b16 %v3570, %v3542
    %v5979 = vpack.c.b16 %v3571, %v3543
    %v5980 = vpack.c.b16 %v3572, %v3544
    %v5981 = vpack.c.b16 %v3573, %v3545
    %v5982 = vpack.c.b16 %v3574, %v3546
    %v5983 = vpack.c.b16 %v3575, %v3547
    %v5984 = vpack.c.b16 %v3576, %v3548
    %v5985 = vpack.c.b16 %v3577, %v3549
    %v5986 = vpack.c.b16 %v3606, %v3578
    %v5987 = vpack.c.b16 %v3607, %v3579
    %v5988 = vpack.c.b16 %v3608, %v3580
    %v5989 = vpack.c.b16 %v3609, %v3581
    %v5990 = vpack.c.b16 %v3610, %v3582
    %v5991 = vpack.c.b16 %v3611, %v3583
    %v5992 = vpack.c.b16 %v3612, %v3584
    %v5993 = vpack.c.b16 %v3613, %v3585
    %v5994 = vpack.c.b16 %v3614, %v3586
    %v5995 = vpack.c.b16 %v3615, %v3587
    %v5996 = vpack.c.b16 %v3616, %v3588
    %v5997 = vpack.c.b16 %v3617, %v3589
    %v5998 = vpack.c.b16 %v3618, %v3590
    %v5999 = vpack.c.b16 %v3619, %v3591
    %v6000 = vpack.c.b16 %v3620, %v3592
    %v6001 = vpack.c.b16 %v3621, %v3593
    %v6002 = vpack.c.b16 %v3622, %v3594
    %v6003 = vpack.c.b16 %v3623, %v3595
    %v6004 = vpack.c.b16 %v3624, %v3596
    %v6005 = vpack.c.b16 %v3625, %v3597
    %v6006 = vpack.c.b16 %v3626, %v3598
    %v6007 = vpack.c.b16 %v3627, %v3599
    %v6008 = vpack.c.b16 %v3628, %v3600
    %v6009 = vpack.c.b16 %v3629, %v3601
    %v6010 = vpack.c.b16 %v3630, %v3602
    %v6011 = vpack.c.b16 %v3631, %v3603
    %v6012 = vpack.c.b16 %v3632, %v3604
    %v6013 = vpack.c.b16 %v3633, %v3605
    %v6014 = vpack.c.b16 %v3662, %v3634
    %v6015 = vpack.c.b16 %v3663, %v3635
    %v6016 = vpack.c.b16 %v3664, %v3636
    %v6017 = vpack.c.b16 %v3665, %v3637
    %v6018 = vpack.c.b16 %v3666, %v3638
    %v6019 = vpack.c.b16 %v3667, %v3639
    %v6020 = vpack.c.b16 %v3668, %v3640
    %v6021 = vpack.c.b16 %v3669, %v3641
    %v6022 = vpack.c.b16 %v3670, %v3642
    %v6023 = vpack.c.b16 %v3671, %v3643
    %v6024 = vpack.c.b16 %v3672, %v3644
    %v6025 = vpack.c.b16 %v3673, %v3645
    %v6026 = vpack.c.b16 %v3674, %v3646
    %v6027 = vpack.c.b16 %v3675, %v3647
    %v6028 = vpack.c.b16 %v3676, %v3648
    %v6029 = vpack.c.b16 %v3677, %v3649
    %v6030 = vpack.c.b16 %v3678, %v3650
    %v6031 = vpack.c.b16 %v3679, %v3651
    %v6032 = vpack.c.b16 %v3680, %v3652
    %v6033 = vpack.c.b16 %v3681, %v3653
    %v6034 = vpack.c.b16 %v3682, %v3654
    %v6035 = vpack.c.b16 %v3683, %v3655
    %v6036 = vpack.c.b16 %v3684, %v3656
    %v6037 = vpack.c.b16 %v3685, %v3657
    %v6038 = vpack.c.b16 %v3686, %v3658
    %v6039 = vpack.c.b16 %v3687, %v3659
    %v6040 = vpack.c.b16 %v3688, %v3660
    %v6041 = vpack.c.b16 %v3689, %v3661
    %v6042 = vpack.c.b16 %v3718, %v3690
    %v6043 = vpack.c.b16 %v3719, %v3691
    %v6044 = vpack.c.b16 %v3720, %v3692
    %v6045 = vpack.c.b16 %v3721, %v3693
    %v6046 = vpack.c.b16 %v3722, %v3694
    %v6047 = vpack.c.b16 %v3723, %v3695
    %v6048 = vpack.c.b16 %v3724, %v3696
    %v6049 = vpack.c.b16 %v3725, %v3697
    %v6050 = vpack.c.b16 %v3726, %v3698
    %v6051 = vpack.c.b16 %v3727, %v3699
    %v6052 = vpack.c.b16 %v3728, %v3700
    %v6053 = vpack.c.b16 %v3729, %v3701
    %v6054 = vpack.c.b16 %v3730, %v3702
    %v6055 = vpack.c.b16 %v3731, %v3703
    %v6056 = vpack.c.b16 %v3732, %v3704
    %v6057 = vpack.c.b16 %v3733, %v3705
    %v6058 = vpack.c.b16 %v3734, %v3706
    %v6059 = vpack.c.b16 %v3735, %v3707
    %v6060 = vpack.c.b16 %v3736, %v3708
    %v6061 = vpack.c.b16 %v3737, %v3709
    %v6062 = vpack.c.b16 %v3738, %v3710
    %v6063 = vpack.c.b16 %v3739, %v3711
    %v6064 = vpack.c.b16 %v3740, %v3712
    %v6065 = vpack.c.b16 %v3741, %v3713
    %v6066 = vpack.c.b16 %v3742, %v3714
    %v6067 = vpack.c.b16 %v3743, %v3715
    %v6068 = vpack.c.b16 %v3744, %v3716
    %v6069 = vpack.c.b16 %v3745, %v3717
    %v6070 = vpack.c.b16 %v3774, %v3746
    %v6071 = vpack.c.b16 %v3775, %v3747
    %v6072 = vpack.c.b16 %v3776, %v3748
    %v6073 = vpack.c.b16 %v3777, %v3749
    %v6074 = vpack.c.b16 %v3778, %v3750
    %v6075 = vpack.c.b16 %v3779, %v3751
    %v6076 = vpack.c.b16 %v3780, %v3752
    %v6077 = vpack.c.b16 %v3781, %v3753
    %v6078 = vpack.c.b16 %v3782, %v3754
    %v6079 = vpack.c.b16 %v3783, %v3755
    %v6080 = vpack.c.b16 %v3784, %v3756
    %v6081 = vpack.c.b16 %v3785, %v3757
    %v6082 = vpack.c.b16 %v3786, %v3758
    %v6083 = vpack.c.b16 %v3787, %v3759
    %v6084 = vpack.c.b16 %v3788, %v3760
    %v6085 = vpack.c.b16 %v3789, %v3761
    %v6086 = vpack.c.b16 %v3790, %v3762
    %v6087 = vpack.c.b16 %v3791, %v3763
    %v6088 = vpack.c.b16 %v3792, %v3764
    %v6089 = vpack.c.b16 %v3793, %v3765
    %v6090 = vpack.c.b16 %v3794, %v3766
    %v6091 = vpack.c.b16 %v3795, %v3767
    %v6092 = vpack.c.b16 %v3796, %v3768
    %v6093 = vpack.c.b16 %v3797, %v3769
    %v6094 = vpack.c.b16 %v3798, %v3770
    %v6095 = vpack.c.b16 %v3799, %v3771
    %v6096 = vpack.c.b16 %v3800, %v3772
    %v6097 = vpack.c.b16 %v3801, %v3773
    %v6098 = vpack.c.b16 %v3830, %v3802
    %v6099 = vpack.c.b16 %v3831, %v3803
    %v6100 = vpack.c.b16 %v3832, %v3804
    %v6101 = vpack.c.b16 %v3833, %v3805
    %v6102 = vpack.c.b16 %v3834, %v3806
    %v6103 = vpack.c.b16 %v3835, %v3807
    %v6104 = vpack.c.b16 %v3836, %v3808
    %v6105 = vpack.c.b16 %v3837, %v3809
    %v6106 = vpack.c.b16 %v3838, %v3810
    %v6107 = vpack.c.b16 %v3839, %v3811
    %v6108 = vpack.c.b16 %v3840, %v3812
    %v6109 = vpack.c.b16 %v3841, %v3813
    %v6110 = vpack.c.b16 %v3842, %v3814
    %v6111 = vpack.c.b16 %v3843, %v3815
    %v6112 = vpack.c.b16 %v3844, %v3816
    %v6113 = vpack.c.b16 %v3845, %v3817
    %v6114 = vpack.c.b16 %v3846, %v3818
    %v6115 = vpack.c.b16 %v3847, %v3819
    %v6116 = vpack.c.b16 %v3848, %v3820
    %v6117 = vpack.c.b16 %v3849, %v3821
    %v6118 = vpack.c.b16 %v3850, %v3822
    %v6119 = vpack.c.b16 %v3851, %v3823
    %v6120 = vpack.c.b16 %v3852, %v3824
    %v6121 = vpack.c.b16 %v3853, %v3825
    %v6122 = vpack.c.b16 %v3854, %v3826
    %v6123 = vpack.c.b16 %v3855, %v3827
    %v6124 = vpack.c.b16 %v3856, %v3828
    %v6125 = vpack.c.b16 %v3857, %v3829
    %v6126 = vpack.c.b16 %v3886, %v3858
    %v6127 = vpack.c.b16 %v3887, %v3859
    %v6128 = vpack.c.b16 %v3888, %v3860
    %v6129 = vpack.c.b16 %v3889, %v3861
    %v6130 = vpack.c.b16 %v3890, %v3862
    %v6131 = vpack.c.b16 %v3891, %v3863
    %v6132 = vpack.c.b16 %v3892, %v3864
    %v6133 = vpack.c.b16 %v3893, %v3865
    %v6134 = vpack.c.b16 %v3894, %v3866
    %v6135 = vpack.c.b16 %v3895, %v3867
    %v6136 = vpack.c.b16 %v3896, %v3868
    %v6137 = vpack.c.b16 %v3897, %v3869
    %v6138 = vpack.c.b16 %v3898, %v3870
    %v6139 = vpack.c.b16 %v3899, %v3871
    %v6140 = vpack.c.b16 %v3900, %v3872
    %v6141 = vpack.c.b16 %v3901, %v3873
    %v6142 = vpack.c.b16 %v3902, %v3874
    %v6143 = vpack.c.b16 %v3903, %v3875
    %v6144 = vpack.c.b16 %v3904, %v3876
    %v6145 = vpack.c.b16 %v3905, %v3877
    %v6146 = vpack.c.b16 %v3906, %v3878
    %v6147 = vpack.c.b16 %v3907, %v3879
    %v6148 = vpack.c.b16 %v3908, %v3880
    %v6149 = vpack.c.b16 %v3909, %v3881
    %v6150 = vpack.c.b16 %v3910, %v3882
    %v6151 = vpack.c.b16 %v3911, %v3883
    %v6152 = vpack.c.b16 %v3912, %v3884
    %v6153 = vpack.c.b16 %v3913, %v3885
    %v6154 = vpack.c.b16 %v3942, %v3914
    %v6155 = vpack.c.b16 %v3943, %v3915
    %v6156 = vpack.c.b16 %v3944, %v3916
    %v6157 = vpack.c.b16 %v3945, %v3917
    %v6158 = vpack.c.b16 %v3946, %v3918
    %v6159 = vpack.c.b16 %v3947, %v3919
    %v6160 = vpack.c.b16 %v3948, %v3920
    %v6161 = vpack.c.b16 %v3949, %v3921
    %v6162 = vpack.c.b16 %v3950, %v3922
    %v6163 = vpack.c.b16 %v3951, %v3923
    %v6164 = vpack.c.b16 %v3952, %v3924
    %v6165 = vpack.c.b16 %v3953, %v3925
    %v6166 = vpack.c.b16 %v3954, %v3926
    %v6167 = vpack.c.b16 %v3955, %v3927
    %v6168 = vpack.c.b16 %v3956, %v3928
    %v6169 = vpack.c.b16 %v3957, %v3929
    %v6170 = vpack.c.b16 %v3958, %v3930
    %v6171 = vpack.c.b16 %v3959, %v3931
    %v6172 = vpack.c.b16 %v3960, %v3932
    %v6173 = vpack.c.b16 %v3961, %v3933
    %v6174 = vpack.c.b16 %v3962, %v3934
    %v6175 = vpack.c.b16 %v3963, %v3935
    %v6176 = vpack.c.b16 %v3964, %v3936
    %v6177 = vpack.c.b16 %v3965, %v3937
    %v6178 = vpack.c.b16 %v3966, %v3938
    %v6179 = vpack.c.b16 %v3967, %v3939
    %v6180 = vpack.c.b16 %v3968, %v3940
    %v6181 = vpack.c.b16 %v3969, %v3941
    %v6182 = vpack.c.b16 %v3998, %v3970
    %v6183 = vpack.c.b16 %v3999, %v3971
    %v6184 = vpack.c.b16 %v4000, %v3972
    %v6185 = vpack.c.b16 %v4001, %v3973
    %v6186 = vpack.c.b16 %v4002, %v3974
    %v6187 = vpack.c.b16 %v4003, %v3975
    %v6188 = vpack.c.b16 %v4004, %v3976
    %v6189 = vpack.c.b16 %v4005, %v3977
    %v6190 = vpack.c.b16 %v4006, %v3978
    %v6191 = vpack.c.b16 %v4007, %v3979
    %v6192 = vpack.c.b16 %v4008, %v3980
    %v6193 = vpack.c.b16 %v4009, %v3981
    %v6194 = vpack.c.b16 %v4010, %v3982
    %v6195 = vpack.c.b16 %v4011, %v3983
    %v6196 = vpack.c.b16 %v4012, %v3984
    %v6197 = vpack.c.b16 %v4013, %v3985
    %v6198 = vpack.c.b16 %v4014, %v3986
    %v6199 = vpack.c.b16 %v4015, %v3987
    %v6200 = vpack.c.b16 %v4016, %v3988
    %v6201 = vpack.c.b16 %v4017, %v3989
    %v6202 = vpack.c.b16 %v4018, %v3990
    %v6203 = vpack.c.b16 %v4019, %v3991
    %v6204 = vpack.c.b16 %v4020, %v3992
    %v6205 = vpack.c.b16 %v4021, %v3993
    %v6206 = vpack.c.b16 %v4022, %v3994
    %v6207 = vpack.c.b16 %v4023, %v3995
    %v6208 = vpack.c.b16 %v4024, %v3996
    %v6209 = vpack.c.b16 %v4025, %v3997
    %v6210 = vpack.c.b16 %v4054, %v4026
    %v6211 = vpack.c.b16 %v4055, %v4027
    %v6212 = vpack.c.b16 %v4056, %v4028
    %v6213 = vpack.c.b16 %v4057, %v4029
    %v6214 = vpack.c.b16 %v4058, %v4030
    %v6215 = vpack.c.b16 %v4059, %v4031
    %v6216 = vpack.c.b16 %v4060, %v4032
    %v6217 = vpack.c.b16 %v4061, %v4033
    %v6218 = vpack.c.b16 %v4062, %v4034
    %v6219 = vpack.c.b16 %v4063, %v4035
    %v6220 = vpack.c.b16 %v4064, %v4036
    %v6221 = vpack.c.b16 %v4065, %v4037
    %v6222 = vpack.c.b16 %v4066, %v4038
    %v6223 = vpack.c.b16 %v4067, %v4039
    %v6224 = vpack.c.b16 %v4068, %v4040
    %v6225 = vpack.c.b16 %v4069, %v4041
    %v6226 = vpack.c.b16 %v4070, %v4042
    %v6227 = vpack.c.b16 %v4071, %v4043
    %v6228 = vpack.c.b16 %v4072, %v4044
    %v6229 = vpack.c.b16 %v4073, %v4045
    %v6230 = vpack.c.b16 %v4074, %v4046
    %v6231 = vpack.c.b16 %v4075, %v4047
    %v6232 = vpack.c.b16 %v4076, %v4048
    %v6233 = vpack.c.b16 %v4077, %v4049
    %v6234 = vpack.c.b16 %v4078, %v4050
    %v6235 = vpack.c.b16 %v4079, %v4051
    %v6236 = vpack.c.b16 %v4080, %v4052
    %v6237 = vpack.c.b16 %v4081, %v4053
    %v6238 = vpack.c.b16 %v4110, %v4082
    %v6239 = vpack.c.b16 %v4111, %v4083
    %v6240 = vpack.c.b16 %v4112, %v4084
    %v6241 = vpack.c.b16 %v4113, %v4085
    %v6242 = vpack.c.b16 %v4114, %v4086
    %v6243 = vpack.c.b16 %v4115, %v4087
    %v6244 = vpack.c.b16 %v4116, %v4088
    %v6245 = vpack.c.b16 %v4117, %v4089
    %v6246 = vpack.c.b16 %v4118, %v4090
    %v6247 = vpack.c.b16 %v4119, %v4091
    %v6248 = vpack.c.b16 %v4120, %v4092
    %v6249 = vpack.c.b16 %v4121, %v4093
    %v6250 = vpack.c.b16 %v4122, %v4094
    %v6251 = vpack.c.b16 %v4123, %v4095
    %v6252 = vpack.c.b16 %v4124, %v4096
    %v6253 = vpack.c.b16 %v4125, %v4097
    %v6254 = vpack.c.b16 %v4126, %v4098
    %v6255 = vpack.c.b16 %v4127, %v4099
    %v6256 = vpack.c.b16 %v4128, %v4100
    %v6257 = vpack.c.b16 %v4129, %v4101
    %v6258 = vpack.c.b16 %v4130, %v4102
    %v6259 = vpack.c.b16 %v4131, %v4103
    %v6260 = vpack.c.b16 %v4132, %v4104
    %v6261 = vpack.c.b16 %v4133, %v4105
    %v6262 = vpack.c.b16 %v4134, %v4106
    %v6263 = vpack.c.b16 %v4135, %v4107
    %v6264 = vpack.c.b16 %v4136, %v4108
    %v6265 = vpack.c.b16 %v4137, %v4109
    %v6266 = vpack.c.b16 %v4166, %v4138
    %v6267 = vpack.c.b16 %v4167, %v4139
    %v6268 = vpack.c.b16 %v4168, %v4140
    %v6269 = vpack.c.b16 %v4169, %v4141
    %v6270 = vpack.c.b16 %v4170, %v4142
    %v6271 = vpack.c.b16 %v4171, %v4143
    %v6272 = vpack.c.b16 %v4172, %v4144
    %v6273 = vpack.c.b16 %v4173, %v4145
    %v6274 = vpack.c.b16 %v4174, %v4146
    %v6275 = vpack.c.b16 %v4175, %v4147
    %v6276 = vpack.c.b16 %v4176, %v4148
    %v6277 = vpack.c.b16 %v4177, %v4149
    %v6278 = vpack.c.b16 %v4178, %v4150
    %v6279 = vpack.c.b16 %v4179, %v4151
    %v6280 = vpack.c.b16 %v4180, %v4152
    %v6281 = vpack.c.b16 %v4181, %v4153
    %v6282 = vpack.c.b16 %v4182, %v4154
    %v6283 = vpack.c.b16 %v4183, %v4155
    %v6284 = vpack.c.b16 %v4184, %v4156
    %v6285 = vpack.c.b16 %v4185, %v4157
    %v6286 = vpack.c.b16 %v4186, %v4158
    %v6287 = vpack.c.b16 %v4187, %v4159
    %v6288 = vpack.c.b16 %v4188, %v4160
    %v6289 = vpack.c.b16 %v4189, %v4161
    %v6290 = vpack.c.b16 %v4190, %v4162
    %v6291 = vpack.c.b16 %v4191, %v4163
    %v6292 = vpack.c.b16 %v4192, %v4164
    %v6293 = vpack.c.b16 %v4193, %v4165
    %v6294 = vpack.c.b16 %v4222, %v4194
    %v6295 = vpack.c.b16 %v4223, %v4195
    %v6296 = vpack.c.b16 %v4224, %v4196
    %v6297 = vpack.c.b16 %v4225, %v4197
    %v6298 = vpack.c.b16 %v4226, %v4198
    %v6299 = vpack.c.b16 %v4227, %v4199
    %v6300 = vpack.c.b16 %v4228, %v4200
    %v6301 = vpack.c.b16 %v4229, %v4201
    %v6302 = vpack.c.b16 %v4230, %v4202
    %v6303 = vpack.c.b16 %v4231, %v4203
    %v6304 = vpack.c.b16 %v4232, %v4204
    %v6305 = vpack.c.b16 %v4233, %v4205
    %v6306 = vpack.c.b16 %v4234, %v4206
    %v6307 = vpack.c.b16 %v4235, %v4207
    %v6308 = vpack.c.b16 %v4236, %v4208
    %v6309 = vpack.c.b16 %v4237, %v4209
    %v6310 = vpack.c.b16 %v4238, %v4210
    %v6311 = vpack.c.b16 %v4239, %v4211
    %v6312 = vpack.c.b16 %v4240, %v4212
    %v6313 = vpack.c.b16 %v4241, %v4213
    %v6314 = vpack.c.b16 %v4242, %v4214
    %v6315 = vpack.c.b16 %v4243, %v4215
    %v6316 = vpack.c.b16 %v4244, %v4216
    %v6317 = vpack.c.b16 %v4245, %v4217
    %v6318 = vpack.c.b16 %v4246, %v4218
    %v6319 = vpack.c.b16 %v4247, %v4219
    %v6320 = vpack.c.b16 %v4248, %v4220
    %v6321 = vpack.c.b16 %v4249, %v4221
    %v6322 = vpack.c.b16 %v4278, %v4250
    %v6323 = vpack.c.b16 %v4279, %v4251
    %v6324 = vpack.c.b16 %v4280, %v4252
    %v6325 = vpack.c.b16 %v4281, %v4253
    %v6326 = vpack.c.b16 %v4282, %v4254
    %v6327 = vpack.c.b16 %v4283, %v4255
    %v6328 = vpack.c.b16 %v4284, %v4256
    %v6329 = vpack.c.b16 %v4285, %v4257
    %v6330 = vpack.c.b16 %v4286, %v4258
    %v6331 = vpack.c.b16 %v4287, %v4259
    %v6332 = vpack.c.b16 %v4288, %v4260
    %v6333 = vpack.c.b16 %v4289, %v4261
    %v6334 = vpack.c.b16 %v4290, %v4262
    %v6335 = vpack.c.b16 %v4291, %v4263
    %v6336 = vpack.c.b16 %v4292, %v4264
    %v6337 = vpack.c.b16 %v4293, %v4265
    %v6338 = vpack.c.b16 %v4294, %v4266
    %v6339 = vpack.c.b16 %v4295, %v4267
    %v6340 = vpack.c.b16 %v4296, %v4268
    %v6341 = vpack.c.b16 %v4297, %v4269
    %v6342 = vpack.c.b16 %v4298, %v4270
    %v6343 = vpack.c.b16 %v4299, %v4271
    %v6344 = vpack.c.b16 %v4300, %v4272
    %v6345 = vpack.c.b16 %v4301, %v4273
    %v6346 = vpack.c.b16 %v4302, %v4274
    %v6347 = vpack.c.b16 %v4303, %v4275
    %v6348 = vpack.c.b16 %v4304, %v4276
    %v6349 = vpack.c.b16 %v4305, %v4277
    %v6350 = vpack.c.b16 %v4334, %v4306
    %v6351 = vpack.c.b16 %v4335, %v4307
    %v6352 = vpack.c.b16 %v4336, %v4308
    %v6353 = vpack.c.b16 %v4337, %v4309
    %v6354 = vpack.c.b16 %v4338, %v4310
    %v6355 = vpack.c.b16 %v4339, %v4311
    %v6356 = vpack.c.b16 %v4340, %v4312
    %v6357 = vpack.c.b16 %v4341, %v4313
    %v6358 = vpack.c.b16 %v4342, %v4314
    %v6359 = vpack.c.b16 %v4343, %v4315
    %v6360 = vpack.c.b16 %v4344, %v4316
    %v6361 = vpack.c.b16 %v4345, %v4317
    %v6362 = vpack.c.b16 %v4346, %v4318
    %v6363 = vpack.c.b16 %v4347, %v4319
    %v6364 = vpack.c.b16 %v4348, %v4320
    %v6365 = vpack.c.b16 %v4349, %v4321
    %v6366 = vpack.c.b16 %v4350, %v4322
    %v6367 = vpack.c.b16 %v4351, %v4323
    %v6368 = vpack.c.b16 %v4352, %v4324
    %v6369 = vpack.c.b16 %v4353, %v4325
    %v6370 = vpack.c.b16 %v4354, %v4326
    %v6371 = vpack.c.b16 %v4355, %v4327
    %v6372 = vpack.c.b16 %v4356, %v4328
    %v6373 = vpack.c.b16 %v4357, %v4329
    %v6374 = vpack.c.b16 %v4358, %v4330
    %v6375 = vpack.c.b16 %v4359, %v4331
    %v6376 = vpack.c.b16 %v4360, %v4332
    %v6377 = vpack.c.b16 %v4361, %v4333
    %v6378 = vpack.c.b16 %v4390, %v4362
    %v6379 = vpack.c.b16 %v4391, %v4363
    %v6380 = vpack.c.b16 %v4392, %v4364
    %v6381 = vpack.c.b16 %v4393, %v4365
    %v6382 = vpack.c.b16 %v4394, %v4366
    %v6383 = vpack.c.b16 %v4395, %v4367
    %v6384 = vpack.c.b16 %v4396, %v4368
    %v6385 = vpack.c.b16 %v4397, %v4369
    %v6386 = vpack.c.b16 %v4398, %v4370
    %v6387 = vpack.c.b16 %v4399, %v4371
    %v6388 = vpack.c.b16 %v4400, %v4372
    %v6389 = vpack.c.b16 %v4401, %v4373
    %v6390 = vpack.c.b16 %v4402, %v4374
    %v6391 = vpack.c.b16 %v4403, %v4375
    %v6392 = vpack.c.b16 %v4404, %v4376
    %v6393 = vpack.c.b16 %v4405, %v4377
    %v6394 = vpack.c.b16 %v4406, %v4378
    %v6395 = vpack.c.b16 %v4407, %v4379
    %v6396 = vpack.c.b16 %v4408, %v4380
    %v6397 = vpack.c.b16 %v4409, %v4381
    %v6398 = vpack.c.b16 %v4410, %v4382
    %v6399 = vpack.c.b16 %v4411, %v4383
    %v6400 = vpack.c.b16 %v4412, %v4384
    %v6401 = vpack.c.b16 %v4413, %v4385
    %v6402 = vpack.c.b16 %v4414, %v4386
    %v6403 = vpack.c.b16 %v4415, %v4387
    %v6404 = vpack.c.b16 %v4416, %v4388
    %v6405 = vpack.c.b16 %v4417, %v4389
    %v6406 = vpack.c.b16 %v4446, %v4418
    %v6407 = vpack.c.b16 %v4447, %v4419
    %v6408 = vpack.c.b16 %v4448, %v4420
    %v6409 = vpack.c.b16 %v4449, %v4421
    %v6410 = vpack.c.b16 %v4450, %v4422
    %v6411 = vpack.c.b16 %v4451, %v4423
    %v6412 = vpack.c.b16 %v4452, %v4424
    %v6413 = vpack.c.b16 %v4453, %v4425
    %v6414 = vpack.c.b16 %v4454, %v4426
    %v6415 = vpack.c.b16 %v4455, %v4427
    %v6416 = vpack.c.b16 %v4456, %v4428
    %v6417 = vpack.c.b16 %v4457, %v4429
    %v6418 = vpack.c.b16 %v4458, %v4430
    %v6419 = vpack.c.b16 %v4459, %v4431
    %v6420 = vpack.c.b16 %v4460, %v4432
    %v6421 = vpack.c.b16 %v4461, %v4433
    %v6422 = vpack.c.b16 %v4462, %v4434
    %v6423 = vpack.c.b16 %v4463, %v4435
    %v6424 = vpack.c.b16 %v4464, %v4436
    %v6425 = vpack.c.b16 %v4465, %v4437
    %v6426 = vpack.c.b16 %v4466, %v4438
    %v6427 = vpack.c.b16 %v4467, %v4439
    %v6428 = vpack.c.b16 %v4468, %v4440
    %v6429 = vpack.c.b16 %v4469, %v4441
    %v6430 = vpack.c.b16 %v4470, %v4442
    %v6431 = vpack.c.b16 %v4471, %v4443
    %v6432 = vpack.c.b16 %v4472, %v4444
    %v6433 = vpack.c.b16 %v4473, %v4445
    %v6434 = vpack.c.b16 %v4502, %v4474
    %v6435 = vpack.c.b16 %v4503, %v4475
    %v6436 = vpack.c.b16 %v4504, %v4476
    %v6437 = vpack.c.b16 %v4505, %v4477
    %v6438 = vpack.c.b16 %v4506, %v4478
    %v6439 = vpack.c.b16 %v4507, %v4479
    %v6440 = vpack.c.b16 %v4508, %v4480
    %v6441 = vpack.c.b16 %v4509, %v4481
    %v6442 = vpack.c.b16 %v4510, %v4482
    %v6443 = vpack.c.b16 %v4511, %v4483
    %v6444 = vpack.c.b16 %v4512, %v4484
    %v6445 = vpack.c.b16 %v4513, %v4485
    %v6446 = vpack.c.b16 %v4514, %v4486
    %v6447 = vpack.c.b16 %v4515, %v4487
    %v6448 = vpack.c.b16 %v4516, %v4488
    %v6449 = vpack.c.b16 %v4517, %v4489
    %v6450 = vpack.c.b16 %v4518, %v4490
    %v6451 = vpack.c.b16 %v4519, %v4491
    %v6452 = vpack.c.b16 %v4520, %v4492
    %v6453 = vpack.c.b16 %v4521, %v4493
    %v6454 = vpack.c.b16 %v4522, %v4494
    %v6455 = vpack.c.b16 %v4523, %v4495
    %v6456 = vpack.c.b16 %v4524, %v4496
    %v6457 = vpack.c.b16 %v4525, %v4497
    %v6458 = vpack.c.b16 %v4526, %v4498
    %v6459 = vpack.c.b16 %v4527, %v4499
    %v6460 = vpack.c.b16 %v4528, %v4500
    %v6461 = vpack.c.b16 %v4529, %v4501
    %v6462 = vpack.c.b16 %v4558, %v4530
    %v6463 = vpack.c.b16 %v4559, %v4531
    %v6464 = vpack.c.b16 %v4560, %v4532
    %v6465 = vpack.c.b16 %v4561, %v4533
    %v6466 = vpack.c.b16 %v4562, %v4534
    %v6467 = vpack.c.b16 %v4563, %v4535
    %v6468 = vpack.c.b16 %v4564, %v4536
    %v6469 = vpack.c.b16 %v4565, %v4537
    %v6470 = vpack.c.b16 %v4566, %v4538
    %v6471 = vpack.c.b16 %v4567, %v4539
    %v6472 = vpack.c.b16 %v4568, %v4540
    %v6473 = vpack.c.b16 %v4569, %v4541
    %v6474 = vpack.c.b16 %v4570, %v4542
    %v6475 = vpack.c.b16 %v4571, %v4543
    %v6476 = vpack.c.b16 %v4572, %v4544
    %v6477 = vpack.c.b16 %v4573, %v4545
    %v6478 = vpack.c.b16 %v4574, %v4546
    %v6479 = vpack.c.b16 %v4575, %v4547
    %v6480 = vpack.c.b16 %v4576, %v4548
    %v6481 = vpack.c.b16 %v4577, %v4549
    %v6482 = vpack.c.b16 %v4578, %v4550
    %v6483 = vpack.c.b16 %v4579, %v4551
    %v6484 = vpack.c.b16 %v4580, %v4552
    %v6485 = vpack.c.b16 %v4581, %v4553
    %v6486 = vpack.c.b16 %v4582, %v4554
    %v6487 = vpack.c.b16 %v4583, %v4555
    %v6488 = vpack.c.b16 %v4584, %v4556
    %v6489 = vpack.c.b16 %v4585, %v4557
    %v6490 = vpack.c.b16 %v4614, %v4586
    %v6491 = vpack.c.b16 %v4615, %v4587
    %v6492 = vpack.c.b16 %v4616, %v4588
    %v6493 = vpack.c.b16 %v4617, %v4589
    %v6494 = vpack.c.b16 %v4618, %v4590
    %v6495 = vpack.c.b16 %v4619, %v4591
    %v6496 = vpack.c.b16 %v4620, %v4592
    %v6497 = vpack.c.b16 %v4621, %v4593
    %v6498 = vpack.c.b16 %v4622, %v4594
    %v6499 = vpack.c.b16 %v4623, %v4595
    %v6500 = vpack.c.b16 %v4624, %v4596
    %v6501 = vpack.c.b16 %v4625, %v4597
    %v6502 = vpack.c.b16 %v4626, %v4598
    %v6503 = vpack.c.b16 %v4627, %v4599
    %v6504 = vpack.c.b16 %v4628, %v4600
    %v6505 = vpack.c.b16 %v4629, %v4601
    %v6506 = vpack.c.b16 %v4630, %v4602
    %v6507 = vpack.c.b16 %v4631, %v4603
    %v6508 = vpack.c.b16 %v4632, %v4604
    %v6509 = vpack.c.b16 %v4633, %v4605
    %v6510 = vpack.c.b16 %v4634, %v4606
    %v6511 = vpack.c.b16 %v4635, %v4607
    %v6512 = vpack.c.b16 %v4636, %v4608
    %v6513 = vpack.c.b16 %v4637, %v4609
    %v6514 = vpack.c.b16 %v4638, %v4610
    %v6515 = vpack.c.b16 %v4639, %v4611
    %v6516 = vpack.c.b16 %v4640, %v4612
    %v6517 = vpack.c.b16 %v4641, %v4613
    %v6518 = vpack.c.b16 %v4670, %v4642
    %v6519 = vpack.c.b16 %v4671, %v4643
    %v6520 = vpack.c.b16 %v4672, %v4644
    %v6521 = vpack.c.b16 %v4673, %v4645
    %v6522 = vpack.c.b16 %v4674, %v4646
    %v6523 = vpack.c.b16 %v4675, %v4647
    %v6524 = vpack.c.b16 %v4676, %v4648
    %v6525 = vpack.c.b16 %v4677, %v4649
    %v6526 = vpack.c.b16 %v4678, %v4650
    %v6527 = vpack.c.b16 %v4679, %v4651
    %v6528 = vpack.c.b16 %v4680, %v4652
    %v6529 = vpack.c.b16 %v4681, %v4653
    %v6530 = vpack.c.b16 %v4682, %v4654
    %v6531 = vpack.c.b16 %v4683, %v4655
    %v6532 = vpack.c.b16 %v4684, %v4656
    %v6533 = vpack.c.b16 %v4685, %v4657
    %v6534 = vpack.c.b16 %v4686, %v4658
    %v6535 = vpack.c.b16 %v4687, %v4659
    %v6536 = vpack.c.b16 %v4688, %v4660
    %v6537 = vpack.c.b16 %v4689, %v4661
    %v6538 = vpack.c.b16 %v4690, %v4662
    %v6539 = vpack.c.b16 %v4691, %v4663
    %v6540 = vpack.c.b16 %v4692, %v4664
    %v6541 = vpack.c.b16 %v4693, %v4665
    %v6542 = vpack.c.b16 %v4694, %v4666
    %v6543 = vpack.c.b16 %v4695, %v4667
    %v6544 = vpack.c.b16 %v4696, %v4668
    %v6545 = vpack.c.b16 %v4697, %v4669
    %v6546 = vpack.c.b16 %v4726, %v4698
    %v6547 = vpack.c.b16 %v4727, %v4699
    %v6548 = vpack.c.b16 %v4728, %v4700
    %v6549 = vpack.c.b16 %v4729, %v4701
    %v6550 = vpack.c.b16 %v4730, %v4702
    %v6551 = vpack.c.b16 %v4731, %v4703
    %v6552 = vpack.c.b16 %v4732, %v4704
    %v6553 = vpack.c.b16 %v4733, %v4705
    %v6554 = vpack.c.b16 %v4734, %v4706
    %v6555 = vpack.c.b16 %v4735, %v4707
    %v6556 = vpack.c.b16 %v4736, %v4708
    %v6557 = vpack.c.b16 %v4737, %v4709
    %v6558 = vpack.c.b16 %v4738, %v4710
    %v6559 = vpack.c.b16 %v4739, %v4711
    %v6560 = vpack.c.b16 %v4740, %v4712
    %v6561 = vpack.c.b16 %v4741, %v4713
    %v6562 = vpack.c.b16 %v4742, %v4714
    %v6563 = vpack.c.b16 %v4743, %v4715
    %v6564 = vpack.c.b16 %v4744, %v4716
    %v6565 = vpack.c.b16 %v4745, %v4717
    %v6566 = vpack.c.b16 %v4746, %v4718
    %v6567 = vpack.c.b16 %v4747, %v4719
    %v6568 = vpack.c.b16 %v4748, %v4720
    %v6569 = vpack.c.b16 %v4749, %v4721
    %v6570 = vpack.c.b16 %v4750, %v4722
    %v6571 = vpack.c.b16 %v4751, %v4723
    %v6572 = vpack.c.b16 %v4752, %v4724
    %v6573 = vpack.c.b16 %v4753, %v4725
    %v6574 = vpack.c.b16 %v4782, %v4754
    %v6575 = vpack.c.b16 %v4783, %v4755
    %v6576 = vpack.c.b16 %v4784, %v4756
    %v6577 = vpack.c.b16 %v4785, %v4757
    %v6578 = vpack.c.b16 %v4786, %v4758
    %v6579 = vpack.c.b16 %v4787, %v4759
    %v6580 = vpack.c.b16 %v4788, %v4760
    %v6581 = vpack.c.b16 %v4789, %v4761
    %v6582 = vpack.c.b16 %v4790, %v4762
    %v6583 = vpack.c.b16 %v4791, %v4763
    %v6584 = vpack.c.b16 %v4792, %v4764
    %v6585 = vpack.c.b16 %v4793, %v4765
    %v6586 = vpack.c.b16 %v4794, %v4766
    %v6587 = vpack.c.b16 %v4795, %v4767
    %v6588 = vpack.c.b16 %v4796, %v4768
    %v6589 = vpack.c.b16 %v4797, %v4769
    %v6590 = vpack.c.b16 %v4798, %v4770
    %v6591 = vpack.c.b16 %v4799, %v4771
    %v6592 = vpack.c.b16 %v4800, %v4772
    %v6593 = vpack.c.b16 %v4801, %v4773
    %v6594 = vpack.c.b16 %v4802, %v4774
    %v6595 = vpack.c.b16 %v4803, %v4775
    %v6596 = vpack.c.b16 %v4804, %v4776
    %v6597 = vpack.c.b16 %v4805, %v4777
    %v6598 = vpack.c.b16 %v4806, %v4778
    %v6599 = vpack.c.b16 %v4807, %v4779
    %v6600 = vpack.c.b16 %v4808, %v4780
    %v6601 = vpack.c.b16 %v4809, %v4781
    %v6602 = vpack.c.b16 %v4838, %v4810
    %v6603 = vpack.c.b16 %v4839, %v4811
    %v6604 = vpack.c.b16 %v4840, %v4812
    %v6605 = vpack.c.b16 %v4841, %v4813
    %v6606 = vpack.c.b16 %v4842, %v4814
    %v6607 = vpack.c.b16 %v4843, %v4815
    %v6608 = vpack.c.b16 %v4844, %v4816
    %v6609 = vpack.c.b16 %v4845, %v4817
    %v6610 = vpack.c.b16 %v4846, %v4818
    %v6611 = vpack.c.b16 %v4847, %v4819
    %v6612 = vpack.c.b16 %v4848, %v4820
    %v6613 = vpack.c.b16 %v4849, %v4821
    %v6614 = vpack.c.b16 %v4850, %v4822
    %v6615 = vpack.c.b16 %v4851, %v4823
    %v6616 = vpack.c.b16 %v4852, %v4824
    %v6617 = vpack.c.b16 %v4853, %v4825
    %v6618 = vpack.c.b16 %v4854, %v4826
    %v6619 = vpack.c.b16 %v4855, %v4827
    %v6620 = vpack.c.b16 %v4856, %v4828
    %v6621 = vpack.c.b16 %v4857, %v4829
    %v6622 = vpack.c.b16 %v4858, %v4830
    %v6623 = vpack.c.b16 %v4859, %v4831
    %v6624 = vpack.c.b16 %v4860, %v4832
    %v6625 = vpack.c.b16 %v4861, %v4833
    %v6626 = vpack.c.b16 %v4862, %v4834
    %v6627 = vpack.c.b16 %v4863, %v4835
    %v6628 = vpack.c.b16 %v4864, %v4836
    %v6629 = vpack.c.b16 %v4865, %v4837
    %v6630 = vpack.c.b16 %v4894, %v4866
    %v6631 = vpack.c.b16 %v4895, %v4867
    %v6632 = vpack.c.b16 %v4896, %v4868
    %v6633 = vpack.c.b16 %v4897, %v4869
    %v6634 = vpack.c.b16 %v4898, %v4870
    %v6635 = vpack.c.b16 %v4899, %v4871
    %v6636 = vpack.c.b16 %v4900, %v4872
    %v6637 = vpack.c.b16 %v4901, %v4873
    %v6638 = vpack.c.b16 %v4902, %v4874
    %v6639 = vpack.c.b16 %v4903, %v4875
    %v6640 = vpack.c.b16 %v4904, %v4876
    %v6641 = vpack.c.b16 %v4905, %v4877
    %v6642 = vpack.c.b16 %v4906, %v4878
    %v6643 = vpack.c.b16 %v4907, %v4879
    %v6644 = vpack.c.b16 %v4908, %v4880
    %v6645 = vpack.c.b16 %v4909, %v4881
    %v6646 = vpack.c.b16 %v4910, %v4882
    %v6647 = vpack.c.b16 %v4911, %v4883
    %v6648 = vpack.c.b16 %v4912, %v4884
    %v6649 = vpack.c.b16 %v4913, %v4885
    %v6650 = vpack.c.b16 %v4914, %v4886
    %v6651 = vpack.c.b16 %v4915, %v4887
    %v6652 = vpack.c.b16 %v4916, %v4888
    %v6653 = vpack.c.b16 %v4917, %v4889
    %v6654 = vpack.c.b16 %v4918, %v4890
    %v6655 = vpack.c.b16 %v4919, %v4891
    %v6656 = vpack.c.b16 %v4920, %v4892
    %v6657 = vpack.c.b16 %v4921, %v4893
    %v6658 = vpack.c.b16 %v4950, %v4922
    %v6659 = vpack.c.b16 %v4951, %v4923
    %v6660 = vpack.c.b16 %v4952, %v4924
    %v6661 = vpack.c.b16 %v4953, %v4925
    %v6662 = vpack.c.b16 %v4954, %v4926
    %v6663 = vpack.c.b16 %v4955, %v4927
    %v6664 = vpack.c.b16 %v4956, %v4928
    %v6665 = vpack.c.b16 %v4957, %v4929
    %v6666 = vpack.c.b16 %v4958, %v4930
    %v6667 = vpack.c.b16 %v4959, %v4931
    %v6668 = vpack.c.b16 %v4960, %v4932
    %v6669 = vpack.c.b16 %v4961, %v4933
    %v6670 = vpack.c.b16 %v4962, %v4934
    %v6671 = vpack.c.b16 %v4963, %v4935
    %v6672 = vpack.c.b16 %v4964, %v4936
    %v6673 = vpack.c.b16 %v4965, %v4937
    %v6674 = vpack.c.b16 %v4966, %v4938
    %v6675 = vpack.c.b16 %v4967, %v4939
    %v6676 = vpack.c.b16 %v4968, %v4940
    %v6677 = vpack.c.b16 %v4969, %v4941
    %v6678 = vpack.c.b16 %v4970, %v4942
    %v6679 = vpack.c.b16 %v4971, %v4943
    %v6680 = vpack.c.b16 %v4972, %v4944
    %v6681 = vpack.c.b16 %v4973, %v4945
    %v6682 = vpack.c.b16 %v4974, %v4946
    %v6683 = vpack.c.b16 %v4975, %v4947
    %v6684 = vpack.c.b16 %v4976, %v4948
    %v6685 = vpack.c.b16 %v4977, %v4949
    %v6686 = vpack.c.b16 %v5006, %v4978
    %v6687 = vpack.c.b16 %v5007, %v4979
    %v6688 = vpack.c.b16 %v5008, %v4980
    %v6689 = vpack.c.b16 %v5009, %v4981
    %v6690 = vpack.c.b16 %v5010, %v4982
    %v6691 = vpack.c.b16 %v5011, %v4983
    %v6692 = vpack.c.b16 %v5012, %v4984
    %v6693 = vpack.c.b16 %v5013, %v4985
    %v6694 = vpack.c.b16 %v5014, %v4986
    %v6695 = vpack.c.b16 %v5015, %v4987
    %v6696 = vpack.c.b16 %v5016, %v4988
    %v6697 = vpack.c.b16 %v5017, %v4989
    %v6698 = vpack.c.b16 %v5018, %v4990
    %v6699 = vpack.c.b16 %v5019, %v4991
    %v6700 = vpack.c.b16 %v5020, %v4992
    %v6701 = vpack.c.b16 %v5021, %v4993
    %v6702 = vpack.c.b16 %v5022, %v4994
    %v6703 = vpack.c.b16 %v5023, %v4995
    %v6704 = vpack.c.b16 %v5024, %v4996
    %v6705 = vpack.c.b16 %v5025, %v4997
    %v6706 = vpack.c.b16 %v5026, %v4998
    %v6707 = vpack.c.b16 %v5027, %v4999
    %v6708 = vpack.c.b16 %v5028, %v5000
    %v6709 = vpack.c.b16 %v5029, %v5001
    %v6710 = vpack.c.b16 %v5030, %v5002
    %v6711 = vpack.c.b16 %v5031, %v5003
    %v6712 = vpack.c.b16 %v5032, %v5004
    %v6713 = vpack.c.b16 %v5033, %v5005
    %v6714 = vpack.c.b16 %v5062, %v5034
    %v6715 = vpack.c.b16 %v5063, %v5035
    %v6716 = vpack.c.b16 %v5064, %v5036
    %v6717 = vpack.c.b16 %v5065, %v5037
    %v6718 = vpack.c.b16 %v5066, %v5038
    %v6719 = vpack.c.b16 %v5067, %v5039
    %v6720 = vpack.c.b16 %v5068, %v5040
    %v6721 = vpack.c.b16 %v5069, %v5041
    %v6722 = vpack.c.b16 %v5070, %v5042
    %v6723 = vpack.c.b16 %v5071, %v5043
    %v6724 = vpack.c.b16 %v5072, %v5044
    %v6725 = vpack.c.b16 %v5073, %v5045
    %v6726 = vpack.c.b16 %v5074, %v5046
    %v6727 = vpack.c.b16 %v5075, %v5047
    %v6728 = vpack.c.b16 %v5076, %v5048
    %v6729 = vpack.c.b16 %v5077, %v5049
    %v6730 = vpack.c.b16 %v5078, %v5050
    %v6731 = vpack.c.b16 %v5079, %v5051
    %v6732 = vpack.c.b16 %v5080, %v5052
    %v6733 = vpack.c.b16 %v5081, %v5053
    %v6734 = vpack.c.b16 %v5082, %v5054
    %v6735 = vpack.c.b16 %v5083, %v5055
    %v6736 = vpack.c.b16 %v5084, %v5056
    %v6737 = vpack.c.b16 %v5085, %v5057
    %v6738 = vpack.c.b16 %v5086, %v5058
    %v6739 = vpack.c.b16 %v5087, %v5059
    %v6740 = vpack.c.b16 %v5088, %v5060
    %v6741 = vpack.c.b16 %v5089, %v5061
    %v6742 = vpack.c.b16 %v5118, %v5090
    %v6743 = vpack.c.b16 %v5119, %v5091
    %v6744 = vpack.c.b16 %v5120, %v5092
    %v6745 = vpack.c.b16 %v5121, %v5093
    %v6746 = vpack.c.b16 %v5122, %v5094
    %v6747 = vpack.c.b16 %v5123, %v5095
    %v6748 = vpack.c.b16 %v5124, %v5096
    %v6749 = vpack.c.b16 %v5125, %v5097
    %v6750 = vpack.c.b16 %v5126, %v5098
    %v6751 = vpack.c.b16 %v5127, %v5099
    %v6752 = vpack.c.b16 %v5128, %v5100
    %v6753 = vpack.c.b16 %v5129, %v5101
    %v6754 = vpack.c.b16 %v5130, %v5102
    %v6755 = vpack.c.b16 %v5131, %v5103
    %v6756 = vpack.c.b16 %v5132, %v5104
    %v6757 = vpack.c.b16 %v5133, %v5105
    %v6758 = vpack.c.b16 %v5134, %v5106
    %v6759 = vpack.c.b16 %v5135, %v5107
    %v6760 = vpack.c.b16 %v5136, %v5108
    %v6761 = vpack.c.b16 %v5137, %v5109
    %v6762 = vpack.c.b16 %v5138, %v5110
    %v6763 = vpack.c.b16 %v5139, %v5111
    %v6764 = vpack.c.b16 %v5140, %v5112
    %v6765 = vpack.c.b16 %v5141, %v5113
    %v6766 = vpack.c.b16 %v5142, %v5114
    %v6767 = vpack.c.b16 %v5143, %v5115
    %v6768 = vpack.c.b16 %v5144, %v5116
    %v6769 = vpack.c.b16 %v5145, %v5117
    %v6770 = vpack.c.b16 %v5174, %v5146
    %v6771 = vpack.c.b16 %v5175, %v5147
    %v6772 = vpack.c.b16 %v5176, %v5148
    %v6773 = vpack.c.b16 %v5177, %v5149
    %v6774 = vpack.c.b16 %v5178, %v5150
    %v6775 = vpack.c.b16 %v5179, %v5151
    %v6776 = vpack.c.b16 %v5180, %v5152
    %v6777 = vpack.c.b16 %v5181, %v5153
    %v6778 = vpack.c.b16 %v5182, %v5154
    %v6779 = vpack.c.b16 %v5183, %v5155
    %v6780 = vpack.c.b16 %v5184, %v5156
    %v6781 = vpack.c.b16 %v5185, %v5157
    %v6782 = vpack.c.b16 %v5186, %v5158
    %v6783 = vpack.c.b16 %v5187, %v5159
    %v6784 = vpack.c.b16 %v5188, %v5160
    %v6785 = vpack.c.b16 %v5189, %v5161
    %v6786 = vpack.c.b16 %v5190, %v5162
    %v6787 = vpack.c.b16 %v5191, %v5163
    %v6788 = vpack.c.b16 %v5192, %v5164
    %v6789 = vpack.c.b16 %v5193, %v5165
    %v6790 = vpack.c.b16 %v5194, %v5166
    %v6791 = vpack.c.b16 %v5195, %v5167
    %v6792 = vpack.c.b16 %v5196, %v5168
    %v6793 = vpack.c.b16 %v5197, %v5169
    %v6794 = vpack.c.b16 %v5198, %v5170
    %v6795 = vpack.c.b16 %v5199, %v5171
    %v6796 = vpack.c.b16 %v5200, %v5172
    %v6797 = vpack.c.b16 %v5201, %v5173
    %v6798 = vpack.c.b16 %v5230, %v5202
    %v6799 = vpack.c.b16 %v5231, %v5203
    %v6800 = vpack.c.b16 %v5232, %v5204
    %v6801 = vpack.c.b16 %v5233, %v5205
    %v6802 = vpack.c.b16 %v5234, %v5206
    %v6803 = vpack.c.b16 %v5235, %v5207
    %v6804 = vpack.c.b16 %v5236, %v5208
    %v6805 = vpack.c.b16 %v5237, %v5209
    %v6806 = vpack.c.b16 %v5238, %v5210
    %v6807 = vpack.c.b16 %v5239, %v5211
    %v6808 = vpack.c.b16 %v5240, %v5212
    %v6809 = vpack.c.b16 %v5241, %v5213
    %v6810 = vpack.c.b16 %v5242, %v5214
    %v6811 = vpack.c.b16 %v5243, %v5215
    %v6812 = vpack.c.b16 %v5244, %v5216
    %v6813 = vpack.c.b16 %v5245, %v5217
    %v6814 = vpack.c.b16 %v5246, %v5218
    %v6815 = vpack.c.b16 %v5247, %v5219
    %v6816 = vpack.c.b16 %v5248, %v5220
    %v6817 = vpack.c.b16 %v5249, %v5221
    %v6818 = vpack.c.b16 %v5250, %v5222
    %v6819 = vpack.c.b16 %v5251, %v5223
    %v6820 = vpack.c.b16 %v5252, %v5224
    %v6821 = vpack.c.b16 %v5253, %v5225
    %v6822 = vpack.c.b16 %v5254, %v5226
    %v6823 = vpack.c.b16 %v5255, %v5227
    %v6824 = vpack.c.b16 %v5256, %v5228
    %v6825 = vpack.c.b16 %v5257, %v5229
    %v6826 = vpack.c.b16 %v5286, %v5258
    %v6827 = vpack.c.b16 %v5287, %v5259
    %v6828 = vpack.c.b16 %v5288, %v5260
    %v6829 = vpack.c.b16 %v5289, %v5261
    %v6830 = vpack.c.b16 %v5290, %v5262
    %v6831 = vpack.c.b16 %v5291, %v5263
    %v6832 = vpack.c.b16 %v5292, %v5264
    %v6833 = vpack.c.b16 %v5293, %v5265
    %v6834 = vpack.c.b16 %v5294, %v5266
    %v6835 = vpack.c.b16 %v5295, %v5267
    %v6836 = vpack.c.b16 %v5296, %v5268
    %v6837 = vpack.c.b16 %v5297, %v5269
    %v6838 = vpack.c.b16 %v5298, %v5270
    %v6839 = vpack.c.b16 %v5299, %v5271
    %v6840 = vpack.c.b16 %v5300, %v5272
    %v6841 = vpack.c.b16 %v5301, %v5273
    %v6842 = vpack.c.b16 %v5302, %v5274
    %v6843 = vpack.c.b16 %v5303, %v5275
    %v6844 = vpack.c.b16 %v5304, %v5276
    %v6845 = vpack.c.b16 %v5305, %v5277
    %v6846 = vpack.c.b16 %v5306, %v5278
    %v6847 = vpack.c.b16 %v5307, %v5279
    %v6848 = vpack.c.b16 %v5308, %v5280
    %v6849 = vpack.c.b16 %v5309, %v5281
    %v6850 = vpack.c.b16 %v5310, %v5282
    %v6851 = vpack.c.b16 %v5311, %v5283
    %v6852 = vpack.c.b16 %v5312, %v5284
    %v6853 = vpack.c.b16 %v5313, %v5285
    %v6854 = vpack.c.b16 %v5342, %v5314
    %v6855 = vpack.c.b16 %v5343, %v5315
    %v6856 = vpack.c.b16 %v5344, %v5316
    %v6857 = vpack.c.b16 %v5345, %v5317
    %v6858 = vpack.c.b16 %v5346, %v5318
    %v6859 = vpack.c.b16 %v5347, %v5319
    %v6860 = vpack.c.b16 %v5348, %v5320
    %v6861 = vpack.c.b16 %v5349, %v5321
    %v6862 = vpack.c.b16 %v5350, %v5322
    %v6863 = vpack.c.b16 %v5351, %v5323
    %v6864 = vpack.c.b16 %v5352, %v5324
    %v6865 = vpack.c.b16 %v5353, %v5325
    %v6866 = vpack.c.b16 %v5354, %v5326
    %v6867 = vpack.c.b16 %v5355, %v5327
    %v6868 = vpack.c.b16 %v5356, %v5328
    %v6869 = vpack.c.b16 %v5357, %v5329
    %v6870 = vpack.c.b16 %v5358, %v5330
    %v6871 = vpack.c.b16 %v5359, %v5331
    %v6872 = vpack.c.b16 %v5360, %v5332
    %v6873 = vpack.c.b16 %v5361, %v5333
    %v6874 = vpack.c.b16 %v5362, %v5334
    %v6875 = vpack.c.b16 %v5363, %v5335
    %v6876 = vpack.c.b16 %v5364, %v5336
    %v6877 = vpack.c.b16 %v5365, %v5337
    %v6878 = vpack.c.b16 %v5366, %v5338
    %v6879 = vpack.c.b16 %v5367, %v5339
    %v6880 = vpack.c.b16 %v5368, %v5340
    %v6881 = vpack.c.b16 %v5369, %v5341
    %v6882 = vpack.c.b16 %v5398, %v5370
    %v6883 = vpack.c.b16 %v5399, %v5371
    %v6884 = vpack.c.b16 %v5400, %v5372
    %v6885 = vpack.c.b16 %v5401, %v5373
    %v6886 = vpack.c.b16 %v5402, %v5374
    %v6887 = vpack.c.b16 %v5403, %v5375
    %v6888 = vpack.c.b16 %v5404, %v5376
    %v6889 = vpack.c.b16 %v5405, %v5377
    %v6890 = vpack.c.b16 %v5406, %v5378
    %v6891 = vpack.c.b16 %v5407, %v5379
    %v6892 = vpack.c.b16 %v5408, %v5380
    %v6893 = vpack.c.b16 %v5409, %v5381
    %v6894 = vpack.c.b16 %v5410, %v5382
    %v6895 = vpack.c.b16 %v5411, %v5383
    %v6896 = vpack.c.b16 %v5412, %v5384
    %v6897 = vpack.c.b16 %v5413, %v5385
    %v6898 = vpack.c.b16 %v5414, %v5386
    %v6899 = vpack.c.b16 %v5415, %v5387
    %v6900 = vpack.c.b16 %v5416, %v5388
    %v6901 = vpack.c.b16 %v5417, %v5389
    %v6902 = vpack.c.b16 %v5418, %v5390
    %v6903 = vpack.c.b16 %v5419, %v5391
    %v6904 = vpack.c.b16 %v5420, %v5392
    %v6905 = vpack.c.b16 %v5421, %v5393
    %v6906 = vpack.c.b16 %v5422, %v5394
    %v6907 = vpack.c.b16 %v5423, %v5395
    %v6908 = vpack.c.b16 %v5424, %v5396
    %v6909 = vpack.c.b16 %v5425, %v5397
    %v6910 = vpack.c.b16 %v5454, %v5426
    %v6911 = vpack.c.b16 %v5455, %v5427
    %v6912 = vpack.c.b16 %v5456, %v5428
    %v6913 = vpack.c.b16 %v5457, %v5429
    %v6914 = vpack.c.b16 %v5458, %v5430
    %v6915 = vpack.c.b16 %v5459, %v5431
    %v6916 = vpack.c.b16 %v5460, %v5432
    %v6917 = vpack.c.b16 %v5461, %v5433
    %v6918 = vpack.c.b16 %v5462, %v5434
    %v6919 = vpack.c.b16 %v5463, %v5435
    %v6920 = vpack.c.b16 %v5464, %v5436
    %v6921 = vpack.c.b16 %v5465, %v5437
    %v6922 = vpack.c.b16 %v5466, %v5438
    %v6923 = vpack.c.b16 %v5467, %v5439
    %v6924 = vpack.c.b16 %v5468, %v5440
    %v6925 = vpack.c.b16 %v5469, %v5441
    %v6926 = vpack.c.b16 %v5470, %v5442
    %v6927 = vpack.c.b16 %v5471, %v5443
    %v6928 = vpack.c.b16 %v5472, %v5444
    %v6929 = vpack.c.b16 %v5473, %v5445
    %v6930 = vpack.c.b16 %v5474, %v5446
    %v6931 = vpack.c.b16 %v5475, %v5447
    %v6932 = vpack.c.b16 %v5476, %v5448
    %v6933 = vpack.c.b16 %v5477, %v5449
    %v6934 = vpack.c.b16 %v5478, %v5450
    %v6935 = vpack.c.b16 %v5479, %v5451
    %v6936 = vpack.c.b16 %v5480, %v5452
    %v6937 = vpack.c.b16 %v5481, %v5453
    %v6938 = vpack.c.b16 %v5510, %v5482
    %v6939 = vpack.c.b16 %v5511, %v5483
    %v6940 = vpack.c.b16 %v5512, %v5484
    %v6941 = vpack.c.b16 %v5513, %v5485
    %v6942 = vpack.c.b16 %v5514, %v5486
    %v6943 = vpack.c.b16 %v5515, %v5487
    %v6944 = vpack.c.b16 %v5516, %v5488
    %v6945 = vpack.c.b16 %v5517, %v5489
    %v6946 = vpack.c.b16 %v5518, %v5490
    %v6947 = vpack.c.b16 %v5519, %v5491
    %v6948 = vpack.c.b16 %v5520, %v5492
    %v6949 = vpack.c.b16 %v5521, %v5493
    %v6950 = vpack.c.b16 %v5522, %v5494
    %v6951 = vpack.c.b16 %v5523, %v5495
    %v6952 = vpack.c.b16 %v5524, %v5496
    %v6953 = vpack.c.b16 %v5525, %v5497
    %v6954 = vpack.c.b16 %v5526, %v5498
    %v6955 = vpack.c.b16 %v5527, %v5499
    %v6956 = vpack.c.b16 %v5528, %v5500
    %v6957 = vpack.c.b16 %v5529, %v5501
    %v6958 = vpack.c.b16 %v5530, %v5502
    %v6959 = vpack.c.b16 %v5531, %v5503
    %v6960 = vpack.c.b16 %v5532, %v5504
    %v6961 = vpack.c.b16 %v5533, %v5505
    %v6962 = vpack.c.b16 %v5534, %v5506
    %v6963 = vpack.c.b16 %v5535, %v5507
    %v6964 = vpack.c.b16 %v5536, %v5508
    %v6965 = vpack.c.b16 %v5537, %v5509
    %v6966 = vpack.c.b16 %v5566, %v5538
    %v6967 = vpack.c.b16 %v5567, %v5539
    %v6968 = vpack.c.b16 %v5568, %v5540
    %v6969 = vpack.c.b16 %v5569, %v5541
    %v6970 = vpack.c.b16 %v5570, %v5542
    %v6971 = vpack.c.b16 %v5571, %v5543
    %v6972 = vpack.c.b16 %v5572, %v5544
    %v6973 = vpack.c.b16 %v5573, %v5545
    %v6974 = vpack.c.b16 %v5574, %v5546
    %v6975 = vpack.c.b16 %v5575, %v5547
    %v6976 = vpack.c.b16 %v5576, %v5548
    %v6977 = vpack.c.b16 %v5577, %v5549
    %v6978 = vpack.c.b16 %v5578, %v5550
    %v6979 = vpack.c.b16 %v5579, %v5551
    %v6980 = vpack.c.b16 %v5580, %v5552
    %v6981 = vpack.c.b16 %v5581, %v5553
    %v6982 = vpack.c.b16 %v5582, %v5554
    %v6983 = vpack.c.b16 %v5583, %v5555
    %v6984 = vpack.c.b16 %v5584, %v5556
    %v6985 = vpack.c.b16 %v5585, %v5557
    %v6986 = vpack.c.b16 %v5586, %v5558
    %v6987 = vpack.c.b16 %v5587, %v5559
    %v6988 = vpack.c.b16 %v5588, %v5560
    %v6989 = vpack.c.b16 %v5589, %v5561
    %v6990 = vpack.c.b16 %v5590, %v5562
    %v6991 = vpack.c.b16 %v5591, %v5563
    %v6992 = vpack.c.b16 %v5592, %v5564
    %v6993 = vpack.c.b16 %v5593, %v5565
    %v6994 = vpack.c.b16 %v5622, %v5594
    %v6995 = vpack.c.b16 %v5623, %v5595
    %v6996 = vpack.c.b16 %v5624, %v5596
    %v6997 = vpack.c.b16 %v5625, %v5597
    %v6998 = vpack.c.b16 %v5626, %v5598
    %v6999 = vpack.c.b16 %v5627, %v5599
    %v7000 = vpack.c.b16 %v5628, %v5600
    %v7001 = vpack.c.b16 %v5629, %v5601
    %v7002 = vpack.c.b16 %v5630, %v5602
    %v7003 = vpack.c.b16 %v5631, %v5603
    %v7004 = vpack.c.b16 %v5632, %v5604
    %v7005 = vpack.c.b16 %v5633, %v5605
    %v7006 = vpack.c.b16 %v5634, %v5606
    %v7007 = vpack.c.b16 %v5635, %v5607
    %v7008 = vpack.c.b16 %v5636, %v5608
    %v7009 = vpack.c.b16 %v5637, %v5609
    %v7010 = vpack.c.b16 %v5638, %v5610
    %v7011 = vpack.c.b16 %v5639, %v5611
    %v7012 = vpack.c.b16 %v5640, %v5612
    %v7013 = vpack.c.b16 %v5641, %v5613
    %v7014 = vpack.c.b16 %v5642, %v5614
    %v7015 = vpack.c.b16 %v5643, %v5615
    %v7016 = vpack.c.b16 %v5644, %v5616
    %v7017 = vpack.c.b16 %v5645, %v5617
    %v7018 = vpack.c.b16 %v5646, %v5618
    %v7019 = vpack.c.b16 %v5647, %v5619
    %v7020 = vpack.c.b16 %v5648, %v5620
    %v7021 = vpack.c.b16 %v5649, %v5621
    %vm8394 = vcmask 130048
    %v8396 = vsel %vm8394, %v1527, 0
    %8398 = vmatprep.subr.bf16.mxu0 %v5847
    %8399 = vmatpush1.bf16.msra.mxu0 %v5846
    %8400 = vmatprep.subr.bf16.mxu0 %v5819
    %8401 = vmatpush1.bf16.msra.mxu0 %v5818
    %8402 = vmatprep.subr.bf16.mxu0 %v5791
    %8403 = vmatpush1.bf16.msra.mxu0 %v5790
    %8404 = vmatprep.subr.bf16.mxu0 %v5763
    %8405 = vmatpush1.bf16.msra.mxu0 %v5762
    %8406 = vmatprep.subr.bf16.mxu0 %v5735
    %8407 = vmatpush1.bf16.msra.mxu0 %v5734
    %8408 = vmatprep.subr.bf16.mxu0 %v5707
    %8409 = vmatpush1.bf16.msra.mxu0 %v5706
    %8410 = vmatprep.subr.bf16.mxu0 %v5679
    %8411 = vmatpush1.bf16.msra.mxu0 %v5678
    %8412 = vmatprep.subr.bf16.mxu0 %v5651
    %8413 = vmatpush1.bf16.msra.mxu0 %v5650
    %8414 = vmatprep.subr.bf16.mxu0 %v6071
    %8415 = vmatpush2.bf16.msra.mxu0 %v6070
    %8416 = vmatprep.subr.bf16.mxu0 %v6043
    %8417 = vmatpush2.bf16.msra.mxu0 %v6042
    %8418 = vmatprep.subr.bf16.mxu0 %v6015
    %8419 = vmatpush2.bf16.msra.mxu0 %v6014
    %8420 = vmatprep.subr.bf16.mxu0 %v5987
    %8421 = vmatpush2.bf16.msra.mxu0 %v5986
    %8422 = vmatprep.subr.bf16.mxu0 %v5959
    %8423 = vmatpush2.bf16.msra.mxu0 %v5958
    %8424 = vmatprep.subr.bf16.mxu0 %v5931
    %8425 = vmatpush2.bf16.msra.mxu0 %v5930
    %8426 = vmatprep.subr.bf16.mxu0 %v5903
    %8427 = vmatpush2.bf16.msra.mxu0 %v5902
    %8428 = vmatprep.subr.bf16.mxu0 %v5875
    %8429 = vmatpush2.bf16.msra.mxu0 %v5874
    %8430 = vmatprep.mubr.bf16.mxu0 %v1522
    %8431 = vmatmul.mubr.bf16.gmra.mxu0 %v1521
    %v8432 = vpop.f32.mrf.mxu0
    %v8433 = vadd.f32 0.0, %v8432
    %v8434 = vpop.f32.mrf.mxu0
    %v8435 = vadd.f32 0.0, %v8434
    %v8436 = vpop.f32.mrf.mxu0
    %v8437 = vpop.f32.mrf.mxu0
    %8438 = vdwg.mxu0
    %8439 = vmatprep.subr.bf16.mxu0 %v6295
    %8440 = vmatpush1.bf16.msra.mxu0 %v6294
    %8441 = vmatprep.subr.bf16.mxu0 %v6267
    %8442 = vmatpush1.bf16.msra.mxu0 %v6266
    %8443 = vmatprep.subr.bf16.mxu0 %v6239
    %8444 = vmatpush1.bf16.msra.mxu0 %v6238
    %8445 = vmatprep.subr.bf16.mxu0 %v6211
    %8446 = vmatpush1.bf16.msra.mxu0 %v6210
    %8447 = vmatprep.subr.bf16.mxu0 %v6183
    %8448 = vmatpush1.bf16.msra.mxu0 %v6182
    %8449 = vmatprep.subr.bf16.mxu0 %v6155
    %8450 = vmatpush1.bf16.msra.mxu0 %v6154
    %8451 = vmatprep.subr.bf16.mxu0 %v6127
    %8452 = vmatpush1.bf16.msra.mxu0 %v6126
    %8453 = vmatprep.subr.bf16.mxu0 %v6099
    %8454 = vmatpush1.bf16.msra.mxu0 %v6098
    %8455 = vmatprep.subr.bf16.mxu0 %v6519
    %8456 = vmatpush2.bf16.msra.mxu0 %v6518
    %8457 = vmatprep.subr.bf16.mxu0 %v6491
    %8458 = vmatpush2.bf16.msra.mxu0 %v6490
    %8459 = vmatprep.subr.bf16.mxu0 %v6463
    %8460 = vmatpush2.bf16.msra.mxu0 %v6462
    %8461 = vmatprep.subr.bf16.mxu0 %v6435
    %8462 = vmatpush2.bf16.msra.mxu0 %v6434
    %8463 = vmatprep.subr.bf16.mxu0 %v6407
    %8464 = vmatpush2.bf16.msra.mxu0 %v6406
    %8465 = vmatprep.subr.bf16.mxu0 %v6379
    %8466 = vmatpush2.bf16.msra.mxu0 %v6378
    %8467 = vmatprep.subr.bf16.mxu0 %v6351
    %8468 = vmatpush2.bf16.msra.mxu0 %v6350
    %8469 = vmatprep.subr.bf16.mxu0 %v6323
    %8470 = vmatpush2.bf16.msra.mxu0 %v6322
    %8471 = vmatprep.mubr.bf16.mxu0 %v1524
    %8472 = vmatmul.mubr.bf16.gmra.mxu0 %v1523
    %v8473 = vpop.f32.mrf.mxu0
    %v8474 = vadd.f32 %v8433, %v8473
    %v8475 = vpop.f32.mrf.mxu0
    %v8476 = vadd.f32 %v8435, %v8475
    %v8477 = vpop.f32.mrf.mxu0
    %v8478 = vpop.f32.mrf.mxu0
    %8479 = vdwg.mxu0
    %8480 = vmatprep.subr.bf16.mxu0 %v6743
    %8481 = vmatpush1.bf16.msra.mxu0 %v6742
    %8482 = vmatprep.subr.bf16.mxu0 %v6715
    %8483 = vmatpush1.bf16.msra.mxu0 %v6714
    %8484 = vmatprep.subr.bf16.mxu0 %v6687
    %8485 = vmatpush1.bf16.msra.mxu0 %v6686
    %8486 = vmatprep.subr.bf16.mxu0 %v6659
    %8487 = vmatpush1.bf16.msra.mxu0 %v6658
    %8488 = vmatprep.subr.bf16.mxu0 %v6631
    %8489 = vmatpush1.bf16.msra.mxu0 %v6630
    %8490 = vmatprep.subr.bf16.mxu0 %v6603
    %8491 = vmatpush1.bf16.msra.mxu0 %v6602
    %8492 = vmatprep.subr.bf16.mxu0 %v6575
    %8493 = vmatpush1.bf16.msra.mxu0 %v6574
    %8494 = vmatprep.subr.bf16.mxu0 %v6547
    %8495 = vmatpush1.bf16.msra.mxu0 %v6546
    %8496 = vmatprep.subr.bf16.mxu0 %v6967
    %8497 = vmatpush2.bf16.msra.mxu0 %v6966
    %8498 = vmatprep.subr.bf16.mxu0 %v6939
    %8499 = vmatpush2.bf16.msra.mxu0 %v6938
    %8500 = vmatprep.subr.bf16.mxu0 %v6911
    %8501 = vmatpush2.bf16.msra.mxu0 %v6910
    %8502 = vmatprep.subr.bf16.mxu0 %v6883
    %8503 = vmatpush2.bf16.msra.mxu0 %v6882
    %8504 = vmatprep.subr.bf16.mxu0 %v6855
    %8505 = vmatpush2.bf16.msra.mxu0 %v6854
    %8506 = vmatprep.subr.bf16.mxu0 %v6827
    %8507 = vmatpush2.bf16.msra.mxu0 %v6826
    %8508 = vmatprep.subr.bf16.mxu0 %v6799
    %8509 = vmatpush2.bf16.msra.mxu0 %v6798
    %8510 = vmatprep.subr.bf16.mxu0 %v6771
    %8511 = vmatpush2.bf16.msra.mxu0 %v6770
    %8512 = vmatprep.mubr.bf16.mxu0 %v1526
    %8513 = vmatmul.mubr.bf16.gmra.mxu0 %v1525
    %v8514 = vpop.f32.mrf.mxu0
    %v8515 = vadd.f32 %v8474, %v8514
    %v8516 = vpop.f32.mrf.mxu0
    %v8517 = vadd.f32 %v8476, %v8516
    %v8518 = vpop.f32.mrf.mxu0
    %v8519 = vpop.f32.mrf.mxu0
    %8520 = vdwg.mxu0
    %8521 = vmatprep.subr.bf16.mxu0 0
    %8522 = vmatpush1.bf16.msra.mxu0 0
    %8523 = vmatprep.subr.bf16.mxu0 0
    %8524 = vmatpush1.bf16.msra.mxu0 0
    %8525 = vmatprep.subr.bf16.mxu0 0
    %8526 = vmatpush1.bf16.msra.mxu0 0
    %8527 = vmatprep.subr.bf16.mxu0 0
    %8528 = vmatpush1.bf16.msra.mxu0 0
    %8529 = vmatprep.subr.bf16.mxu0 0
    %8530 = vmatpush1.bf16.msra.mxu0 0
    %8531 = vmatprep.subr.bf16.mxu0 0
    %8532 = vmatpush1.bf16.msra.mxu0 0
    %8533 = vmatprep.subr.bf16.mxu0 0
    %8534 = vmatpush1.bf16.msra.mxu0 0
    %8535 = vmatprep.subr.bf16.mxu0 %v6995
    %8536 = vmatpush1.bf16.msra.mxu0 %v6994
    %8537 = vmatprep.subr.bf16.mxu0 0
    %8538 = vmatpush2.bf16.msra.mxu0 0
    %8539 = vmatprep.subr.bf16.mxu0 0
    %8540 = vmatpush2.bf16.msra.mxu0 0
    %8541 = vmatprep.subr.bf16.mxu0 0
    %8542 = vmatpush2.bf16.msra.mxu0 0
    %8543 = vmatprep.subr.bf16.mxu0 0
    %8544 = vmatpush2.bf16.msra.mxu0 0
    %8545 = vmatprep.subr.bf16.mxu0 0
    %8546 = vmatpush2.bf16.msra.mxu0 0
    %8547 = vmatprep.subr.bf16.mxu0 0
    %8548 = vmatpush2.bf16.msra.mxu0 0
    %8549 = vmatprep.subr.bf16.mxu0 0
    %8550 = vmatpush2.bf16.msra.mxu0 0
    %8551 = vmatprep.subr.bf16.mxu0 0
    %8552 = vmatpush2.bf16.msra.mxu0 0
    %8553 = vmatprep.mubr.bf16.mxu0 0
    %8554 = vmatmul.mubr.bf16.gmra.mxu0 %v8396
    %v8555 = vpop.f32.mrf.mxu0
    %v8556 = vadd.f32 %v8515, %v8555
    %v8557 = vpop.f32.mrf.mxu0
    %v8558 = vadd.f32 %v8517, %v8557
    %v8559 = vpop.f32.mrf.mxu0
    %v8560 = vpop.f32.mrf.mxu0
    %8561 = vdwg.mxu0
    %8562 = vmatprep.subr.bf16.mxu0 %v5849
    %8563 = vmatpush1.bf16.msra.mxu0 %v5848
    %8564 = vmatprep.subr.bf16.mxu0 %v5821
    %8565 = vmatpush1.bf16.msra.mxu0 %v5820
    %8566 = vmatprep.subr.bf16.mxu0 %v5793
    %8567 = vmatpush1.bf16.msra.mxu0 %v5792
    %8568 = vmatprep.subr.bf16.mxu0 %v5765
    %8569 = vmatpush1.bf16.msra.mxu0 %v5764
    %8570 = vmatprep.subr.bf16.mxu0 %v5737
    %8571 = vmatpush1.bf16.msra.mxu0 %v5736
    %8572 = vmatprep.subr.bf16.mxu0 %v5709
    %8573 = vmatpush1.bf16.msra.mxu0 %v5708
    %8574 = vmatprep.subr.bf16.mxu0 %v5681
    %8575 = vmatpush1.bf16.msra.mxu0 %v5680
    %8576 = vmatprep.subr.bf16.mxu0 %v5653
    %8577 = vmatpush1.bf16.msra.mxu0 %v5652
    %8578 = vmatprep.subr.bf16.mxu0 %v6073
    %8579 = vmatpush2.bf16.msra.mxu0 %v6072
    %8580 = vmatprep.subr.bf16.mxu0 %v6045
    %8581 = vmatpush2.bf16.msra.mxu0 %v6044
    %8582 = vmatprep.subr.bf16.mxu0 %v6017
    %8583 = vmatpush2.bf16.msra.mxu0 %v6016
    %8584 = vmatprep.subr.bf16.mxu0 %v5989
    %8585 = vmatpush2.bf16.msra.mxu0 %v5988
    %8586 = vmatprep.subr.bf16.mxu0 %v5961
    %8587 = vmatpush2.bf16.msra.mxu0 %v5960
    %8588 = vmatprep.subr.bf16.mxu0 %v5933
    %8589 = vmatpush2.bf16.msra.mxu0 %v5932
    %8590 = vmatprep.subr.bf16.mxu0 %v5905
    %8591 = vmatpush2.bf16.msra.mxu0 %v5904
    %8592 = vmatprep.subr.bf16.mxu0 %v5877
    %8593 = vmatpush2.bf16.msra.mxu0 %v5876
    %8594 = vmatprep.mubr.bf16.mxu0 %v1522
    %8595 = vmatmul.mubr.bf16.gmra.mxu0 %v1521
    %v8596 = vpop.f32.mrf.mxu0
    %v8597 = vadd.f32 0.0, %v8596
    %v8598 = vpop.f32.mrf.mxu0
    %v8599 = vadd.f32 0.0, %v8598
    %v8600 = vpop.f32.mrf.mxu0
    %v8601 = vpop.f32.mrf.mxu0
    %8602 = vdwg.mxu0
    %8603 = vmatprep.subr.bf16.mxu0 %v6297
    %8604 = vmatpush1.bf16.msra.mxu0 %v6296
    %8605 = vmatprep.subr.bf16.mxu0 %v6269
    %8606 = vmatpush1.bf16.msra.mxu0 %v6268
    %8607 = vmatprep.subr.bf16.mxu0 %v6241
    %8608 = vmatpush1.bf16.msra.mxu0 %v6240
    %8609 = vmatprep.subr.bf16.mxu0 %v6213
    %8610 = vmatpush1.bf16.msra.mxu0 %v6212
    %8611 = vmatprep.subr.bf16.mxu0 %v6185
    %8612 = vmatpush1.bf16.msra.mxu0 %v6184
    %8613 = vmatprep.subr.bf16.mxu0 %v6157
    %8614 = vmatpush1.bf16.msra.mxu0 %v6156
    %8615 = vmatprep.subr.bf16.mxu0 %v6129
    %8616 = vmatpush1.bf16.msra.mxu0 %v6128
    %8617 = vmatprep.subr.bf16.mxu0 %v6101
    %8618 = vmatpush1.bf16.msra.mxu0 %v6100
    %8619 = vmatprep.subr.bf16.mxu0 %v6521
    %8620 = vmatpush2.bf16.msra.mxu0 %v6520
    %8621 = vmatprep.subr.bf16.mxu0 %v6493
    %8622 = vmatpush2.bf16.msra.mxu0 %v6492
    %8623 = vmatprep.subr.bf16.mxu0 %v6465
    %8624 = vmatpush2.bf16.msra.mxu0 %v6464
    %8625 = vmatprep.subr.bf16.mxu0 %v6437
    %8626 = vmatpush2.bf16.msra.mxu0 %v6436
    %8627 = vmatprep.subr.bf16.mxu0 %v6409
    %8628 = vmatpush2.bf16.msra.mxu0 %v6408
    %8629 = vmatprep.subr.bf16.mxu0 %v6381
    %8630 = vmatpush2.bf16.msra.mxu0 %v6380
    %8631 = vmatprep.subr.bf16.mxu0 %v6353
    %8632 = vmatpush2.bf16.msra.mxu0 %v6352
    %8633 = vmatprep.subr.bf16.mxu0 %v6325
    %8634 = vmatpush2.bf16.msra.mxu0 %v6324
    %8635 = vmatprep.mubr.bf16.mxu0 %v1524
    %8636 = vmatmul.mubr.bf16.gmra.mxu0 %v1523
    %v8637 = vpop.f32.mrf.mxu0
    %v8638 = vadd.f32 %v8597, %v8637
    %v8639 = vpop.f32.mrf.mxu0
    %v8640 = vadd.f32 %v8599, %v8639
    %v8641 = vpop.f32.mrf.mxu0
    %v8642 = vpop.f32.mrf.mxu0
    %8643 = vdwg.mxu0
    %8644 = vmatprep.subr.bf16.mxu0 %v6745
    %8645 = vmatpush1.bf16.msra.mxu0 %v6744
    %8646 = vmatprep.subr.bf16.mxu0 %v6717
    %8647 = vmatpush1.bf16.msra.mxu0 %v6716
    %8648 = vmatprep.subr.bf16.mxu0 %v6689
    %8649 = vmatpush1.bf16.msra.mxu0 %v6688
    %8650 = vmatprep.subr.bf16.mxu0 %v6661
    %8651 = vmatpush1.bf16.msra.mxu0 %v6660
    %8652 = vmatprep.subr.bf16.mxu0 %v6633
    %8653 = vmatpush1.bf16.msra.mxu0 %v6632
    %8654 = vmatprep.subr.bf16.mxu0 %v6605
    %8655 = vmatpush1.bf16.msra.mxu0 %v6604
    %8656 = vmatprep.subr.bf16.mxu0 %v6577
    %8657 = vmatpush1.bf16.msra.mxu0 %v6576
    %8658 = vmatprep.subr.bf16.mxu0 %v6549
    %8659 = vmatpush1.bf16.msra.mxu0 %v6548
    %8660 = vmatprep.subr.bf16.mxu0 %v6969
    %8661 = vmatpush2.bf16.msra.mxu0 %v6968
    %8662 = vmatprep.subr.bf16.mxu0 %v6941
    %8663 = vmatpush2.bf16.msra.mxu0 %v6940
    %8664 = vmatprep.subr.bf16.mxu0 %v6913
    %8665 = vmatpush2.bf16.msra.mxu0 %v6912
    %8666 = vmatprep.subr.bf16.mxu0 %v6885
    %8667 = vmatpush2.bf16.msra.mxu0 %v6884
    %8668 = vmatprep.subr.bf16.mxu0 %v6857
    %8669 = vmatpush2.bf16.msra.mxu0 %v6856
    %8670 = vmatprep.subr.bf16.mxu0 %v6829
    %8671 = vmatpush2.bf16.msra.mxu0 %v6828
    %8672 = vmatprep.subr.bf16.mxu0 %v6801
    %8673 = vmatpush2.bf16.msra.mxu0 %v6800
    %8674 = vmatprep.subr.bf16.mxu0 %v6773
    %8675 = vmatpush2.bf16.msra.mxu0 %v6772
    %8676 = vmatprep.mubr.bf16.mxu0 %v1526
    %8677 = vmatmul.mubr.bf16.gmra.mxu0 %v1525
    %v8678 = vpop.f32.mrf.mxu0
    %v8679 = vadd.f32 %v8638, %v8678
    %v8680 = vpop.f32.mrf.mxu0
    %v8681 = vadd.f32 %v8640, %v8680
    %v8682 = vpop.f32.mrf.mxu0
    %v8683 = vpop.f32.mrf.mxu0
    %8684 = vdwg.mxu0
    %8685 = vmatprep.subr.bf16.mxu0 0
    %8686 = vmatpush1.bf16.msra.mxu0 0
    %8687 = vmatprep.subr.bf16.mxu0 0
    %8688 = vmatpush1.bf16.msra.mxu0 0
    %8689 = vmatprep.subr.bf16.mxu0 0
    %8690 = vmatpush1.bf16.msra.mxu0 0
    %8691 = vmatprep.subr.bf16.mxu0 0
    %8692 = vmatpush1.bf16.msra.mxu0 0
    %8693 = vmatprep.subr.bf16.mxu0 0
    %8694 = vmatpush1.bf16.msra.mxu0 0
    %8695 = vmatprep.subr.bf16.mxu0 0
    %8696 = vmatpush1.bf16.msra.mxu0 0
    %8697 = vmatprep.subr.bf16.mxu0 0
    %8698 = vmatpush1.bf16.msra.mxu0 0
    %8699 = vmatprep.subr.bf16.mxu0 %v6997
    %8700 = vmatpush1.bf16.msra.mxu0 %v6996
    %8701 = vmatprep.subr.bf16.mxu0 0
    %8702 = vmatpush2.bf16.msra.mxu0 0
    %8703 = vmatprep.subr.bf16.mxu0 0
    %8704 = vmatpush2.bf16.msra.mxu0 0
    %8705 = vmatprep.subr.bf16.mxu0 0
    %8706 = vmatpush2.bf16.msra.mxu0 0
    %8707 = vmatprep.subr.bf16.mxu0 0
    %8708 = vmatpush2.bf16.msra.mxu0 0
    %8709 = vmatprep.subr.bf16.mxu0 0
    %8710 = vmatpush2.bf16.msra.mxu0 0
    %8711 = vmatprep.subr.bf16.mxu0 0
    %8712 = vmatpush2.bf16.msra.mxu0 0
    %8713 = vmatprep.subr.bf16.mxu0 0
    %8714 = vmatpush2.bf16.msra.mxu0 0
    %8715 = vmatprep.subr.bf16.mxu0 0
    %8716 = vmatpush2.bf16.msra.mxu0 0
    %8717 = vmatprep.mubr.bf16.mxu0 0
    %8718 = vmatmul.mubr.bf16.gmra.mxu0 %v8396
    %v8719 = vpop.f32.mrf.mxu0
    %v8720 = vadd.f32 %v8679, %v8719
    %v8721 = vpop.f32.mrf.mxu0
    %v8722 = vadd.f32 %v8681, %v8721
    %v8723 = vpop.f32.mrf.mxu0
    %v8724 = vpop.f32.mrf.mxu0
    %8725 = vdwg.mxu0
    %8726 = vmatprep.subr.bf16.mxu0 %v5851
    %8727 = vmatpush1.bf16.msra.mxu0 %v5850
    %8728 = vmatprep.subr.bf16.mxu0 %v5823
    %8729 = vmatpush1.bf16.msra.mxu0 %v5822
    %8730 = vmatprep.subr.bf16.mxu0 %v5795
    %8731 = vmatpush1.bf16.msra.mxu0 %v5794
    %8732 = vmatprep.subr.bf16.mxu0 %v5767
    %8733 = vmatpush1.bf16.msra.mxu0 %v5766
    %8734 = vmatprep.subr.bf16.mxu0 %v5739
    %8735 = vmatpush1.bf16.msra.mxu0 %v5738
    %8736 = vmatprep.subr.bf16.mxu0 %v5711
    %8737 = vmatpush1.bf16.msra.mxu0 %v5710
    %8738 = vmatprep.subr.bf16.mxu0 %v5683
    %8739 = vmatpush1.bf16.msra.mxu0 %v5682
    %8740 = vmatprep.subr.bf16.mxu0 %v5655
    %8741 = vmatpush1.bf16.msra.mxu0 %v5654
    %8742 = vmatprep.subr.bf16.mxu0 %v6075
    %8743 = vmatpush2.bf16.msra.mxu0 %v6074
    %8744 = vmatprep.subr.bf16.mxu0 %v6047
    %8745 = vmatpush2.bf16.msra.mxu0 %v6046
    %8746 = vmatprep.subr.bf16.mxu0 %v6019
    %8747 = vmatpush2.bf16.msra.mxu0 %v6018
    %8748 = vmatprep.subr.bf16.mxu0 %v5991
    %8749 = vmatpush2.bf16.msra.mxu0 %v5990
    %8750 = vmatprep.subr.bf16.mxu0 %v5963
    %8751 = vmatpush2.bf16.msra.mxu0 %v5962
    %8752 = vmatprep.subr.bf16.mxu0 %v5935
    %8753 = vmatpush2.bf16.msra.mxu0 %v5934
    %8754 = vmatprep.subr.bf16.mxu0 %v5907
    %8755 = vmatpush2.bf16.msra.mxu0 %v5906
    %8756 = vmatprep.subr.bf16.mxu0 %v5879
    %8757 = vmatpush2.bf16.msra.mxu0 %v5878
    %8758 = vmatprep.mubr.bf16.mxu0 %v1522
    %8759 = vmatmul.mubr.bf16.gmra.mxu0 %v1521
    %v8760 = vpop.f32.mrf.mxu0
    %v8761 = vadd.f32 0.0, %v8760
    %v8762 = vpop.f32.mrf.mxu0
    %v8763 = vadd.f32 0.0, %v8762
    %v8764 = vpop.f32.mrf.mxu0
    %v8765 = vpop.f32.mrf.mxu0
    %8766 = vdwg.mxu0
    %8767 = vmatprep.subr.bf16.mxu0 %v6299
    %8768 = vmatpush1.bf16.msra.mxu0 %v6298
    %8769 = vmatprep.subr.bf16.mxu0 %v6271
    %8770 = vmatpush1.bf16.msra.mxu0 %v6270
    %8771 = vmatprep.subr.bf16.mxu0 %v6243
    %8772 = vmatpush1.bf16.msra.mxu0 %v6242
    %8773 = vmatprep.subr.bf16.mxu0 %v6215
    %8774 = vmatpush1.bf16.msra.mxu0 %v6214
    %8775 = vmatprep.subr.bf16.mxu0 %v6187
    %8776 = vmatpush1.bf16.msra.mxu0 %v6186
    %8777 = vmatprep.subr.bf16.mxu0 %v6159
    %8778 = vmatpush1.bf16.msra.mxu0 %v6158
    %8779 = vmatprep.subr.bf16.mxu0 %v6131
    %8780 = vmatpush1.bf16.msra.mxu0 %v6130
    %8781 = vmatprep.subr.bf16.mxu0 %v6103
    %8782 = vmatpush1.bf16.msra.mxu0 %v6102
    %8783 = vmatprep.subr.bf16.mxu0 %v6523
    %8784 = vmatpush2.bf16.msra.mxu0 %v6522
    %8785 = vmatprep.subr.bf16.mxu0 %v6495
    %8786 = vmatpush2.bf16.msra.mxu0 %v6494
    %8787 = vmatprep.subr.bf16.mxu0 %v6467
    %8788 = vmatpush2.bf16.msra.mxu0 %v6466
    %8789 = vmatprep.subr.bf16.mxu0 %v6439
    %8790 = vmatpush2.bf16.msra.mxu0 %v6438
    %8791 = vmatprep.subr.bf16.mxu0 %v6411
    %8792 = vmatpush2.bf16.msra.mxu0 %v6410
    %8793 = vmatprep.subr.bf16.mxu0 %v6383
    %8794 = vmatpush2.bf16.msra.mxu0 %v6382
    %8795 = vmatprep.subr.bf16.mxu0 %v6355
    %8796 = vmatpush2.bf16.msra.mxu0 %v6354
    %8797 = vmatprep.subr.bf16.mxu0 %v6327
    %8798 = vmatpush2.bf16.msra.mxu0 %v6326
    %8799 = vmatprep.mubr.bf16.mxu0 %v1524
    %8800 = vmatmul.mubr.bf16.gmra.mxu0 %v1523
    %v8801 = vpop.f32.mrf.mxu0
    %v8802 = vadd.f32 %v8761, %v8801
    %v8803 = vpop.f32.mrf.mxu0
    %v8804 = vadd.f32 %v8763, %v8803
    %v8805 = vpop.f32.mrf.mxu0
    %v8806 = vpop.f32.mrf.mxu0
    %8807 = vdwg.mxu0
    %8808 = vmatprep.subr.bf16.mxu0 %v6747
    %8809 = vmatpush1.bf16.msra.mxu0 %v6746
    %8810 = vmatprep.subr.bf16.mxu0 %v6719
    %8811 = vmatpush1.bf16.msra.mxu0 %v6718
    %8812 = vmatprep.subr.bf16.mxu0 %v6691
    %8813 = vmatpush1.bf16.msra.mxu0 %v6690
    %8814 = vmatprep.subr.bf16.mxu0 %v6663
    %8815 = vmatpush1.bf16.msra.mxu0 %v6662
    %8816 = vmatprep.subr.bf16.mxu0 %v6635
    %8817 = vmatpush1.bf16.msra.mxu0 %v6634
    %8818 = vmatprep.subr.bf16.mxu0 %v6607
    %8819 = vmatpush1.bf16.msra.mxu0 %v6606
    %8820 = vmatprep.subr.bf16.mxu0 %v6579
    %8821 = vmatpush1.bf16.msra.mxu0 %v6578
    %8822 = vmatprep.subr.bf16.mxu0 %v6551
    %8823 = vmatpush1.bf16.msra.mxu0 %v6550
    %8824 = vmatprep.subr.bf16.mxu0 %v6971
    %8825 = vmatpush2.bf16.msra.mxu0 %v6970
    %8826 = vmatprep.subr.bf16.mxu0 %v6943
    %8827 = vmatpush2.bf16.msra.mxu0 %v6942
    %8828 = vmatprep.subr.bf16.mxu0 %v6915
    %8829 = vmatpush2.bf16.msra.mxu0 %v6914
    %8830 = vmatprep.subr.bf16.mxu0 %v6887
    %8831 = vmatpush2.bf16.msra.mxu0 %v6886
    %8832 = vmatprep.subr.bf16.mxu0 %v6859
    %8833 = vmatpush2.bf16.msra.mxu0 %v6858
    %8834 = vmatprep.subr.bf16.mxu0 %v6831
    %8835 = vmatpush2.bf16.msra.mxu0 %v6830
    %8836 = vmatprep.subr.bf16.mxu0 %v6803
    %8837 = vmatpush2.bf16.msra.mxu0 %v6802
    %8838 = vmatprep.subr.bf16.mxu0 %v6775
    %8839 = vmatpush2.bf16.msra.mxu0 %v6774
    %8840 = vmatprep.mubr.bf16.mxu0 %v1526
    %8841 = vmatmul.mubr.bf16.gmra.mxu0 %v1525
    %v8842 = vpop.f32.mrf.mxu0
    %v8843 = vadd.f32 %v8802, %v8842
    %v8844 = vpop.f32.mrf.mxu0
    %v8845 = vadd.f32 %v8804, %v8844
    %v8846 = vpop.f32.mrf.mxu0
    %v8847 = vpop.f32.mrf.mxu0
    %8848 = vdwg.mxu0
    %8849 = vmatprep.subr.bf16.mxu0 0
    %8850 = vmatpush1.bf16.msra.mxu0 0
    %8851 = vmatprep.subr.bf16.mxu0 0
    %8852 = vmatpush1.bf16.msra.mxu0 0
    %8853 = vmatprep.subr.bf16.mxu0 0
    %8854 = vmatpush1.bf16.msra.mxu0 0
    %8855 = vmatprep.subr.bf16.mxu0 0
    %8856 = vmatpush1.bf16.msra.mxu0 0
    %8857 = vmatprep.subr.bf16.mxu0 0
    %8858 = vmatpush1.bf16.msra.mxu0 0
    %8859 = vmatprep.subr.bf16.mxu0 0
    %8860 = vmatpush1.bf16.msra.mxu0 0
    %8861 = vmatprep.subr.bf16.mxu0 0
    %8862 = vmatpush1.bf16.msra.mxu0 0
    %8863 = vmatprep.subr.bf16.mxu0 %v6999
    %8864 = vmatpush1.bf16.msra.mxu0 %v6998
    %8865 = vmatprep.subr.bf16.mxu0 0
    %8866 = vmatpush2.bf16.msra.mxu0 0
    %8867 = vmatprep.subr.bf16.mxu0 0
    %8868 = vmatpush2.bf16.msra.mxu0 0
    %8869 = vmatprep.subr.bf16.mxu0 0
    %8870 = vmatpush2.bf16.msra.mxu0 0
    %8871 = vmatprep.subr.bf16.mxu0 0
    %8872 = vmatpush2.bf16.msra.mxu0 0
    %8873 = vmatprep.subr.bf16.mxu0 0
    %8874 = vmatpush2.bf16.msra.mxu0 0
    %8875 = vmatprep.subr.bf16.mxu0 0
    %8876 = vmatpush2.bf16.msra.mxu0 0
    %8877 = vmatprep.subr.bf16.mxu0 0
    %8878 = vmatpush2.bf16.msra.mxu0 0
    %8879 = vmatprep.subr.bf16.mxu0 0
    %8880 = vmatpush2.bf16.msra.mxu0 0
    %8881 = vmatprep.mubr.bf16.mxu0 0
    %8882 = vmatmul.mubr.bf16.gmra.mxu0 %v8396
    %v8883 = vpop.f32.mrf.mxu0
    %v8884 = vadd.f32 %v8843, %v8883
    %v8885 = vpop.f32.mrf.mxu0
    %v8886 = vadd.f32 %v8845, %v8885
    %v8887 = vpop.f32.mrf.mxu0
    %v8888 = vpop.f32.mrf.mxu0
    %8889 = vdwg.mxu0
    %8890 = vmatprep.subr.bf16.mxu0 %v5853
    %8891 = vmatpush1.bf16.msra.mxu0 %v5852
    %8892 = vmatprep.subr.bf16.mxu0 %v5825
    %8893 = vmatpush1.bf16.msra.mxu0 %v5824
    %8894 = vmatprep.subr.bf16.mxu0 %v5797
    %8895 = vmatpush1.bf16.msra.mxu0 %v5796
    %8896 = vmatprep.subr.bf16.mxu0 %v5769
    %8897 = vmatpush1.bf16.msra.mxu0 %v5768
    %8898 = vmatprep.subr.bf16.mxu0 %v5741
    %8899 = vmatpush1.bf16.msra.mxu0 %v5740
    %8900 = vmatprep.subr.bf16.mxu0 %v5713
    %8901 = vmatpush1.bf16.msra.mxu0 %v5712
    %8902 = vmatprep.subr.bf16.mxu0 %v5685
    %8903 = vmatpush1.bf16.msra.mxu0 %v5684
    %8904 = vmatprep.subr.bf16.mxu0 %v5657
    %8905 = vmatpush1.bf16.msra.mxu0 %v5656
    %8906 = vmatprep.subr.bf16.mxu0 %v6077
    %8907 = vmatpush2.bf16.msra.mxu0 %v6076
    %8908 = vmatprep.subr.bf16.mxu0 %v6049
    %8909 = vmatpush2.bf16.msra.mxu0 %v6048
    %8910 = vmatprep.subr.bf16.mxu0 %v6021
    %8911 = vmatpush2.bf16.msra.mxu0 %v6020
    %8912 = vmatprep.subr.bf16.mxu0 %v5993
    %8913 = vmatpush2.bf16.msra.mxu0 %v5992
    %8914 = vmatprep.subr.bf16.mxu0 %v5965
    %8915 = vmatpush2.bf16.msra.mxu0 %v5964
    %8916 = vmatprep.subr.bf16.mxu0 %v5937
    %8917 = vmatpush2.bf16.msra.mxu0 %v5936
    %8918 = vmatprep.subr.bf16.mxu0 %v5909
    %8919 = vmatpush2.bf16.msra.mxu0 %v5908
    %8920 = vmatprep.subr.bf16.mxu0 %v5881
    %8921 = vmatpush2.bf16.msra.mxu0 %v5880
    %8922 = vmatprep.mubr.bf16.mxu0 %v1522
    %8923 = vmatmul.mubr.bf16.gmra.mxu0 %v1521
    %v8924 = vpop.f32.mrf.mxu0
    %v8925 = vadd.f32 0.0, %v8924
    %v8926 = vpop.f32.mrf.mxu0
    %v8927 = vadd.f32 0.0, %v8926
    %v8928 = vpop.f32.mrf.mxu0
    %v8929 = vpop.f32.mrf.mxu0
    %8930 = vdwg.mxu0
    %8931 = vmatprep.subr.bf16.mxu0 %v6301
    %8932 = vmatpush1.bf16.msra.mxu0 %v6300
    %8933 = vmatprep.subr.bf16.mxu0 %v6273
    %8934 = vmatpush1.bf16.msra.mxu0 %v6272
    %8935 = vmatprep.subr.bf16.mxu0 %v6245
    %8936 = vmatpush1.bf16.msra.mxu0 %v6244
    %8937 = vmatprep.subr.bf16.mxu0 %v6217
    %8938 = vmatpush1.bf16.msra.mxu0 %v6216
    %8939 = vmatprep.subr.bf16.mxu0 %v6189
    %8940 = vmatpush1.bf16.msra.mxu0 %v6188
    %8941 = vmatprep.subr.bf16.mxu0 %v6161
    %8942 = vmatpush1.bf16.msra.mxu0 %v6160
    %8943 = vmatprep.subr.bf16.mxu0 %v6133
    %8944 = vmatpush1.bf16.msra.mxu0 %v6132
    %8945 = vmatprep.subr.bf16.mxu0 %v6105
    %8946 = vmatpush1.bf16.msra.mxu0 %v6104
    %8947 = vmatprep.subr.bf16.mxu0 %v6525
    %8948 = vmatpush2.bf16.msra.mxu0 %v6524
    %8949 = vmatprep.subr.bf16.mxu0 %v6497
    %8950 = vmatpush2.bf16.msra.mxu0 %v6496
    %8951 = vmatprep.subr.bf16.mxu0 %v6469
    %8952 = vmatpush2.bf16.msra.mxu0 %v6468
    %8953 = vmatprep.subr.bf16.mxu0 %v6441
    %8954 = vmatpush2.bf16.msra.mxu0 %v6440
    %8955 = vmatprep.subr.bf16.mxu0 %v6413
    %8956 = vmatpush2.bf16.msra.mxu0 %v6412
    %8957 = vmatprep.subr.bf16.mxu0 %v6385
    %8958 = vmatpush2.bf16.msra.mxu0 %v6384
    %8959 = vmatprep.subr.bf16.mxu0 %v6357
    %8960 = vmatpush2.bf16.msra.mxu0 %v6356
    %8961 = vmatprep.subr.bf16.mxu0 %v6329
    %8962 = vmatpush2.bf16.msra.mxu0 %v6328
    %8963 = vmatprep.mubr.bf16.mxu0 %v1524
    %8964 = vmatmul.mubr.bf16.gmra.mxu0 %v1523
    %v8965 = vpop.f32.mrf.mxu0
    %v8966 = vadd.f32 %v8925, %v8965
    %v8967 = vpop.f32.mrf.mxu0
    %v8968 = vadd.f32 %v8927, %v8967
    %v8969 = vpop.f32.mrf.mxu0
    %v8970 = vpop.f32.mrf.mxu0
    %8971 = vdwg.mxu0
    %8972 = vmatprep.subr.bf16.mxu0 %v6749
    %8973 = vmatpush1.bf16.msra.mxu0 %v6748
    %8974 = vmatprep.subr.bf16.mxu0 %v6721
    %8975 = vmatpush1.bf16.msra.mxu0 %v6720
    %8976 = vmatprep.subr.bf16.mxu0 %v6693
    %8977 = vmatpush1.bf16.msra.mxu0 %v6692
    %8978 = vmatprep.subr.bf16.mxu0 %v6665
    %8979 = vmatpush1.bf16.msra.mxu0 %v6664
    %8980 = vmatprep.subr.bf16.mxu0 %v6637
    %8981 = vmatpush1.bf16.msra.mxu0 %v6636
    %8982 = vmatprep.subr.bf16.mxu0 %v6609
    %8983 = vmatpush1.bf16.msra.mxu0 %v6608
    %8984 = vmatprep.subr.bf16.mxu0 %v6581
    %8985 = vmatpush1.bf16.msra.mxu0 %v6580
    %8986 = vmatprep.subr.bf16.mxu0 %v6553
    %8987 = vmatpush1.bf16.msra.mxu0 %v6552
    %8988 = vmatprep.subr.bf16.mxu0 %v6973
    %8989 = vmatpush2.bf16.msra.mxu0 %v6972
    %8990 = vmatprep.subr.bf16.mxu0 %v6945
    %8991 = vmatpush2.bf16.msra.mxu0 %v6944
    %8992 = vmatprep.subr.bf16.mxu0 %v6917
    %8993 = vmatpush2.bf16.msra.mxu0 %v6916
    %8994 = vmatprep.subr.bf16.mxu0 %v6889
    %8995 = vmatpush2.bf16.msra.mxu0 %v6888
    %8996 = vmatprep.subr.bf16.mxu0 %v6861
    %8997 = vmatpush2.bf16.msra.mxu0 %v6860
    %8998 = vmatprep.subr.bf16.mxu0 %v6833
    %8999 = vmatpush2.bf16.msra.mxu0 %v6832
    %9000 = vmatprep.subr.bf16.mxu0 %v6805
    %9001 = vmatpush2.bf16.msra.mxu0 %v6804
    %9002 = vmatprep.subr.bf16.mxu0 %v6777
    %9003 = vmatpush2.bf16.msra.mxu0 %v6776
    %9004 = vmatprep.mubr.bf16.mxu0 %v1526
    %9005 = vmatmul.mubr.bf16.gmra.mxu0 %v1525
    %v9006 = vpop.f32.mrf.mxu0
    %v9007 = vadd.f32 %v8966, %v9006
    %v9008 = vpop.f32.mrf.mxu0
    %v9009 = vadd.f32 %v8968, %v9008
    %v9010 = vpop.f32.mrf.mxu0
    %v9011 = vpop.f32.mrf.mxu0
    %9012 = vdwg.mxu0
    %9013 = vmatprep.subr.bf16.mxu0 0
    %9014 = vmatpush1.bf16.msra.mxu0 0
    %9015 = vmatprep.subr.bf16.mxu0 0
    %9016 = vmatpush1.bf16.msra.mxu0 0
    %9017 = vmatprep.subr.bf16.mxu0 0
    %9018 = vmatpush1.bf16.msra.mxu0 0
    %9019 = vmatprep.subr.bf16.mxu0 0
    %9020 = vmatpush1.bf16.msra.mxu0 0
    %9021 = vmatprep.subr.bf16.mxu0 0
    %9022 = vmatpush1.bf16.msra.mxu0 0
    %9023 = vmatprep.subr.bf16.mxu0 0
    %9024 = vmatpush1.bf16.msra.mxu0 0
    %9025 = vmatprep.subr.bf16.mxu0 0
    %9026 = vmatpush1.bf16.msra.mxu0 0
    %9027 = vmatprep.subr.bf16.mxu0 %v7001
    %9028 = vmatpush1.bf16.msra.mxu0 %v7000
    %9029 = vmatprep.subr.bf16.mxu0 0
    %9030 = vmatpush2.bf16.msra.mxu0 0
    %9031 = vmatprep.subr.bf16.mxu0 0
    %9032 = vmatpush2.bf16.msra.mxu0 0
    %9033 = vmatprep.subr.bf16.mxu0 0
    %9034 = vmatpush2.bf16.msra.mxu0 0
    %9035 = vmatprep.subr.bf16.mxu0 0
    %9036 = vmatpush2.bf16.msra.mxu0 0
    %9037 = vmatprep.subr.bf16.mxu0 0
    %9038 = vmatpush2.bf16.msra.mxu0 0
    %9039 = vmatprep.subr.bf16.mxu0 0
    %9040 = vmatpush2.bf16.msra.mxu0 0
    %9041 = vmatprep.subr.bf16.mxu0 0
    %9042 = vmatpush2.bf16.msra.mxu0 0
    %9043 = vmatprep.subr.bf16.mxu0 0
    %9044 = vmatpush2.bf16.msra.mxu0 0
    %9045 = vmatprep.mubr.bf16.mxu0 0
    %9046 = vmatmul.mubr.bf16.gmra.mxu0 %v8396
    %v9047 = vpop.f32.mrf.mxu0
    %v9048 = vadd.f32 %v9007, %v9047
    %v9049 = vpop.f32.mrf.mxu0
    %v9050 = vadd.f32 %v9009, %v9049
    %v9051 = vpop.f32.mrf.mxu0
    %v9052 = vpop.f32.mrf.mxu0
    %9053 = vdwg.mxu0
    %9054 = vmatprep.subr.bf16.mxu0 %v5855
    %9055 = vmatpush1.bf16.msra.mxu0 %v5854
    %9056 = vmatprep.subr.bf16.mxu0 %v5827
    %9057 = vmatpush1.bf16.msra.mxu0 %v5826
    %9058 = vmatprep.subr.bf16.mxu0 %v5799
    %9059 = vmatpush1.bf16.msra.mxu0 %v5798
    %9060 = vmatprep.subr.bf16.mxu0 %v5771
    %9061 = vmatpush1.bf16.msra.mxu0 %v5770
    %9062 = vmatprep.subr.bf16.mxu0 %v5743
    %9063 = vmatpush1.bf16.msra.mxu0 %v5742
    %9064 = vmatprep.subr.bf16.mxu0 %v5715
    %9065 = vmatpush1.bf16.msra.mxu0 %v5714
    %9066 = vmatprep.subr.bf16.mxu0 %v5687
    %9067 = vmatpush1.bf16.msra.mxu0 %v5686
    %9068 = vmatprep.subr.bf16.mxu0 %v5659
    %9069 = vmatpush1.bf16.msra.mxu0 %v5658
    %9070 = vmatprep.subr.bf16.mxu0 %v6079
    %9071 = vmatpush2.bf16.msra.mxu0 %v6078
    %9072 = vmatprep.subr.bf16.mxu0 %v6051
    %9073 = vmatpush2.bf16.msra.mxu0 %v6050
    %9074 = vmatprep.subr.bf16.mxu0 %v6023
    %9075 = vmatpush2.bf16.msra.mxu0 %v6022
    %9076 = vmatprep.subr.bf16.mxu0 %v5995
    %9077 = vmatpush2.bf16.msra.mxu0 %v5994
    %9078 = vmatprep.subr.bf16.mxu0 %v5967
    %9079 = vmatpush2.bf16.msra.mxu0 %v5966
    %9080 = vmatprep.subr.bf16.mxu0 %v5939
    %9081 = vmatpush2.bf16.msra.mxu0 %v5938
    %9082 = vmatprep.subr.bf16.mxu0 %v5911
    %9083 = vmatpush2.bf16.msra.mxu0 %v5910
    %9084 = vmatprep.subr.bf16.mxu0 %v5883
    %9085 = vmatpush2.bf16.msra.mxu0 %v5882
    %9086 = vmatprep.mubr.bf16.mxu0 %v1522
    %9087 = vmatmul.mubr.bf16.gmra.mxu0 %v1521
    %v9088 = vpop.f32.mrf.mxu0
    %v9089 = vadd.f32 0.0, %v9088
    %v9090 = vpop.f32.mrf.mxu0
    %v9091 = vadd.f32 0.0, %v9090
    %v9092 = vpop.f32.mrf.mxu0
    %v9093 = vpop.f32.mrf.mxu0
    %9094 = vdwg.mxu0
    %9095 = vmatprep.subr.bf16.mxu0 %v6303
    %9096 = vmatpush1.bf16.msra.mxu0 %v6302
    %9097 = vmatprep.subr.bf16.mxu0 %v6275
    %9098 = vmatpush1.bf16.msra.mxu0 %v6274
    %9099 = vmatprep.subr.bf16.mxu0 %v6247
    %9100 = vmatpush1.bf16.msra.mxu0 %v6246
    %9101 = vmatprep.subr.bf16.mxu0 %v6219
    %9102 = vmatpush1.bf16.msra.mxu0 %v6218
    %9103 = vmatprep.subr.bf16.mxu0 %v6191
    %9104 = vmatpush1.bf16.msra.mxu0 %v6190
    %9105 = vmatprep.subr.bf16.mxu0 %v6163
    %9106 = vmatpush1.bf16.msra.mxu0 %v6162
    %9107 = vmatprep.subr.bf16.mxu0 %v6135
    %9108 = vmatpush1.bf16.msra.mxu0 %v6134
    %9109 = vmatprep.subr.bf16.mxu0 %v6107
    %9110 = vmatpush1.bf16.msra.mxu0 %v6106
    %9111 = vmatprep.subr.bf16.mxu0 %v6527
    %9112 = vmatpush2.bf16.msra.mxu0 %v6526
    %9113 = vmatprep.subr.bf16.mxu0 %v6499
    %9114 = vmatpush2.bf16.msra.mxu0 %v6498
    %9115 = vmatprep.subr.bf16.mxu0 %v6471
    %9116 = vmatpush2.bf16.msra.mxu0 %v6470
    %9117 = vmatprep.subr.bf16.mxu0 %v6443
    %9118 = vmatpush2.bf16.msra.mxu0 %v6442
    %9119 = vmatprep.subr.bf16.mxu0 %v6415
    %9120 = vmatpush2.bf16.msra.mxu0 %v6414
    %9121 = vmatprep.subr.bf16.mxu0 %v6387
    %9122 = vmatpush2.bf16.msra.mxu0 %v6386
    %9123 = vmatprep.subr.bf16.mxu0 %v6359
    %9124 = vmatpush2.bf16.msra.mxu0 %v6358
    %9125 = vmatprep.subr.bf16.mxu0 %v6331
    %9126 = vmatpush2.bf16.msra.mxu0 %v6330
    %9127 = vmatprep.mubr.bf16.mxu0 %v1524
    %9128 = vmatmul.mubr.bf16.gmra.mxu0 %v1523
    %v9129 = vpop.f32.mrf.mxu0
    %v9130 = vadd.f32 %v9089, %v9129
    %v9131 = vpop.f32.mrf.mxu0
    %v9132 = vadd.f32 %v9091, %v9131
    %v9133 = vpop.f32.mrf.mxu0
    %v9134 = vpop.f32.mrf.mxu0
    %9135 = vdwg.mxu0
    %9136 = vmatprep.subr.bf16.mxu0 %v6751
    %9137 = vmatpush1.bf16.msra.mxu0 %v6750
    %9138 = vmatprep.subr.bf16.mxu0 %v6723
    %9139 = vmatpush1.bf16.msra.mxu0 %v6722
    %9140 = vmatprep.subr.bf16.mxu0 %v6695
    %9141 = vmatpush1.bf16.msra.mxu0 %v6694
    %9142 = vmatprep.subr.bf16.mxu0 %v6667
    %9143 = vmatpush1.bf16.msra.mxu0 %v6666
    %9144 = vmatprep.subr.bf16.mxu0 %v6639
    %9145 = vmatpush1.bf16.msra.mxu0 %v6638
    %9146 = vmatprep.subr.bf16.mxu0 %v6611
    %9147 = vmatpush1.bf16.msra.mxu0 %v6610
    %9148 = vmatprep.subr.bf16.mxu0 %v6583
    %9149 = vmatpush1.bf16.msra.mxu0 %v6582
    %9150 = vmatprep.subr.bf16.mxu0 %v6555
    %9151 = vmatpush1.bf16.msra.mxu0 %v6554
    %9152 = vmatprep.subr.bf16.mxu0 %v6975
    %9153 = vmatpush2.bf16.msra.mxu0 %v6974
    %9154 = vmatprep.subr.bf16.mxu0 %v6947
    %9155 = vmatpush2.bf16.msra.mxu0 %v6946
    %9156 = vmatprep.subr.bf16.mxu0 %v6919
    %9157 = vmatpush2.bf16.msra.mxu0 %v6918
    %9158 = vmatprep.subr.bf16.mxu0 %v6891
    %9159 = vmatpush2.bf16.msra.mxu0 %v6890
    %9160 = vmatprep.subr.bf16.mxu0 %v6863
    %9161 = vmatpush2.bf16.msra.mxu0 %v6862
    %9162 = vmatprep.subr.bf16.mxu0 %v6835
    %9163 = vmatpush2.bf16.msra.mxu0 %v6834
    %9164 = vmatprep.subr.bf16.mxu0 %v6807
    %9165 = vmatpush2.bf16.msra.mxu0 %v6806
    %9166 = vmatprep.subr.bf16.mxu0 %v6779
    %9167 = vmatpush2.bf16.msra.mxu0 %v6778
    %9168 = vmatprep.mubr.bf16.mxu0 %v1526
    %9169 = vmatmul.mubr.bf16.gmra.mxu0 %v1525
    %v9170 = vpop.f32.mrf.mxu0
    %v9171 = vadd.f32 %v9130, %v9170
    %v9172 = vpop.f32.mrf.mxu0
    %v9173 = vadd.f32 %v9132, %v9172
    %v9174 = vpop.f32.mrf.mxu0
    %v9175 = vpop.f32.mrf.mxu0
    %9176 = vdwg.mxu0
    %9177 = vmatprep.subr.bf16.mxu0 0
    %9178 = vmatpush1.bf16.msra.mxu0 0
    %9179 = vmatprep.subr.bf16.mxu0 0
    %9180 = vmatpush1.bf16.msra.mxu0 0
    %9181 = vmatprep.subr.bf16.mxu0 0
    %9182 = vmatpush1.bf16.msra.mxu0 0
    %9183 = vmatprep.subr.bf16.mxu0 0
    %9184 = vmatpush1.bf16.msra.mxu0 0
    %9185 = vmatprep.subr.bf16.mxu0 0
    %9186 = vmatpush1.bf16.msra.mxu0 0
    %9187 = vmatprep.subr.bf16.mxu0 0
    %9188 = vmatpush1.bf16.msra.mxu0 0
    %9189 = vmatprep.subr.bf16.mxu0 0
    %9190 = vmatpush1.bf16.msra.mxu0 0
    %9191 = vmatprep.subr.bf16.mxu0 %v7003
    %9192 = vmatpush1.bf16.msra.mxu0 %v7002
    %9193 = vmatprep.subr.bf16.mxu0 0
    %9194 = vmatpush2.bf16.msra.mxu0 0
    %9195 = vmatprep.subr.bf16.mxu0 0
    %9196 = vmatpush2.bf16.msra.mxu0 0
    %9197 = vmatprep.subr.bf16.mxu0 0
    %9198 = vmatpush2.bf16.msra.mxu0 0
    %9199 = vmatprep.subr.bf16.mxu0 0
    %9200 = vmatpush2.bf16.msra.mxu0 0
    %9201 = vmatprep.subr.bf16.mxu0 0
    %9202 = vmatpush2.bf16.msra.mxu0 0
    %9203 = vmatprep.subr.bf16.mxu0 0
    %9204 = vmatpush2.bf16.msra.mxu0 0
    %9205 = vmatprep.subr.bf16.mxu0 0
    %9206 = vmatpush2.bf16.msra.mxu0 0
    %9207 = vmatprep.subr.bf16.mxu0 0
    %9208 = vmatpush2.bf16.msra.mxu0 0
    %9209 = vmatprep.mubr.bf16.mxu0 0
    %9210 = vmatmul.mubr.bf16.gmra.mxu0 %v8396
    %v9211 = vpop.f32.mrf.mxu0
    %v9212 = vadd.f32 %v9171, %v9211
    %v9213 = vpop.f32.mrf.mxu0
    %v9214 = vadd.f32 %v9173, %v9213
    %v9215 = vpop.f32.mrf.mxu0
    %v9216 = vpop.f32.mrf.mxu0
    %9217 = vdwg.mxu0
    %9218 = vmatprep.subr.bf16.mxu0 %v5857
    %9219 = vmatpush1.bf16.msra.mxu0 %v5856
    %9220 = vmatprep.subr.bf16.mxu0 %v5829
    %9221 = vmatpush1.bf16.msra.mxu0 %v5828
    %9222 = vmatprep.subr.bf16.mxu0 %v5801
    %9223 = vmatpush1.bf16.msra.mxu0 %v5800
    %9224 = vmatprep.subr.bf16.mxu0 %v5773
    %9225 = vmatpush1.bf16.msra.mxu0 %v5772
    %9226 = vmatprep.subr.bf16.mxu0 %v5745
    %9227 = vmatpush1.bf16.msra.mxu0 %v5744
    %9228 = vmatprep.subr.bf16.mxu0 %v5717
    %9229 = vmatpush1.bf16.msra.mxu0 %v5716
    %9230 = vmatprep.subr.bf16.mxu0 %v5689
    %9231 = vmatpush1.bf16.msra.mxu0 %v5688
    %9232 = vmatprep.subr.bf16.mxu0 %v5661
    %9233 = vmatpush1.bf16.msra.mxu0 %v5660
    %9234 = vmatprep.subr.bf16.mxu0 %v6081
    %9235 = vmatpush2.bf16.msra.mxu0 %v6080
    %9236 = vmatprep.subr.bf16.mxu0 %v6053
    %9237 = vmatpush2.bf16.msra.mxu0 %v6052
    %9238 = vmatprep.subr.bf16.mxu0 %v6025
    %9239 = vmatpush2.bf16.msra.mxu0 %v6024
    %9240 = vmatprep.subr.bf16.mxu0 %v5997
    %9241 = vmatpush2.bf16.msra.mxu0 %v5996
    %9242 = vmatprep.subr.bf16.mxu0 %v5969
    %9243 = vmatpush2.bf16.msra.mxu0 %v5968
    %9244 = vmatprep.subr.bf16.mxu0 %v5941
    %9245 = vmatpush2.bf16.msra.mxu0 %v5940
    %9246 = vmatprep.subr.bf16.mxu0 %v5913
    %9247 = vmatpush2.bf16.msra.mxu0 %v5912
    %9248 = vmatprep.subr.bf16.mxu0 %v5885
    %9249 = vmatpush2.bf16.msra.mxu0 %v5884
    %9250 = vmatprep.mubr.bf16.mxu0 %v1522
    %9251 = vmatmul.mubr.bf16.gmra.mxu0 %v1521
    %v9252 = vpop.f32.mrf.mxu0
    %v9253 = vadd.f32 0.0, %v9252
    %v9254 = vpop.f32.mrf.mxu0
    %v9255 = vadd.f32 0.0, %v9254
    %v9256 = vpop.f32.mrf.mxu0
    %v9257 = vpop.f32.mrf.mxu0
    %9258 = vdwg.mxu0
    %9259 = vmatprep.subr.bf16.mxu0 %v6305
    %9260 = vmatpush1.bf16.msra.mxu0 %v6304
    %9261 = vmatprep.subr.bf16.mxu0 %v6277
    %9262 = vmatpush1.bf16.msra.mxu0 %v6276
    %9263 = vmatprep.subr.bf16.mxu0 %v6249
    %9264 = vmatpush1.bf16.msra.mxu0 %v6248
    %9265 = vmatprep.subr.bf16.mxu0 %v6221
    %9266 = vmatpush1.bf16.msra.mxu0 %v6220
    %9267 = vmatprep.subr.bf16.mxu0 %v6193
    %9268 = vmatpush1.bf16.msra.mxu0 %v6192
    %9269 = vmatprep.subr.bf16.mxu0 %v6165
    %9270 = vmatpush1.bf16.msra.mxu0 %v6164
    %9271 = vmatprep.subr.bf16.mxu0 %v6137
    %9272 = vmatpush1.bf16.msra.mxu0 %v6136
    %9273 = vmatprep.subr.bf16.mxu0 %v6109
    %9274 = vmatpush1.bf16.msra.mxu0 %v6108
    %9275 = vmatprep.subr.bf16.mxu0 %v6529
    %9276 = vmatpush2.bf16.msra.mxu0 %v6528
    %9277 = vmatprep.subr.bf16.mxu0 %v6501
    %9278 = vmatpush2.bf16.msra.mxu0 %v6500
    %9279 = vmatprep.subr.bf16.mxu0 %v6473
    %9280 = vmatpush2.bf16.msra.mxu0 %v6472
    %9281 = vmatprep.subr.bf16.mxu0 %v6445
    %9282 = vmatpush2.bf16.msra.mxu0 %v6444
    %9283 = vmatprep.subr.bf16.mxu0 %v6417
    %9284 = vmatpush2.bf16.msra.mxu0 %v6416
    %9285 = vmatprep.subr.bf16.mxu0 %v6389
    %9286 = vmatpush2.bf16.msra.mxu0 %v6388
    %9287 = vmatprep.subr.bf16.mxu0 %v6361
    %9288 = vmatpush2.bf16.msra.mxu0 %v6360
    %9289 = vmatprep.subr.bf16.mxu0 %v6333
    %9290 = vmatpush2.bf16.msra.mxu0 %v6332
    %9291 = vmatprep.mubr.bf16.mxu0 %v1524
    %9292 = vmatmul.mubr.bf16.gmra.mxu0 %v1523
    %v9293 = vpop.f32.mrf.mxu0
    %v9294 = vadd.f32 %v9253, %v9293
    %v9295 = vpop.f32.mrf.mxu0
    %v9296 = vadd.f32 %v9255, %v9295
    %v9297 = vpop.f32.mrf.mxu0
    %v9298 = vpop.f32.mrf.mxu0
    %9299 = vdwg.mxu0
    %9300 = vmatprep.subr.bf16.mxu0 %v6753
    %9301 = vmatpush1.bf16.msra.mxu0 %v6752
    %9302 = vmatprep.subr.bf16.mxu0 %v6725
    %9303 = vmatpush1.bf16.msra.mxu0 %v6724
    %9304 = vmatprep.subr.bf16.mxu0 %v6697
    %9305 = vmatpush1.bf16.msra.mxu0 %v6696
    %9306 = vmatprep.subr.bf16.mxu0 %v6669
    %9307 = vmatpush1.bf16.msra.mxu0 %v6668
    %9308 = vmatprep.subr.bf16.mxu0 %v6641
    %9309 = vmatpush1.bf16.msra.mxu0 %v6640
    %9310 = vmatprep.subr.bf16.mxu0 %v6613
    %9311 = vmatpush1.bf16.msra.mxu0 %v6612
    %9312 = vmatprep.subr.bf16.mxu0 %v6585
    %9313 = vmatpush1.bf16.msra.mxu0 %v6584
    %9314 = vmatprep.subr.bf16.mxu0 %v6557
    %9315 = vmatpush1.bf16.msra.mxu0 %v6556
    %9316 = vmatprep.subr.bf16.mxu0 %v6977
    %9317 = vmatpush2.bf16.msra.mxu0 %v6976
    %9318 = vmatprep.subr.bf16.mxu0 %v6949
    %9319 = vmatpush2.bf16.msra.mxu0 %v6948
    %9320 = vmatprep.subr.bf16.mxu0 %v6921
    %9321 = vmatpush2.bf16.msra.mxu0 %v6920
    %9322 = vmatprep.subr.bf16.mxu0 %v6893
    %9323 = vmatpush2.bf16.msra.mxu0 %v6892
    %9324 = vmatprep.subr.bf16.mxu0 %v6865
    %9325 = vmatpush2.bf16.msra.mxu0 %v6864
    %9326 = vmatprep.subr.bf16.mxu0 %v6837
    %9327 = vmatpush2.bf16.msra.mxu0 %v6836
    %9328 = vmatprep.subr.bf16.mxu0 %v6809
    %9329 = vmatpush2.bf16.msra.mxu0 %v6808
    %9330 = vmatprep.subr.bf16.mxu0 %v6781
    %9331 = vmatpush2.bf16.msra.mxu0 %v6780
    %9332 = vmatprep.mubr.bf16.mxu0 %v1526
    %9333 = vmatmul.mubr.bf16.gmra.mxu0 %v1525
    %v9334 = vpop.f32.mrf.mxu0
    %v9335 = vadd.f32 %v9294, %v9334
    %v9336 = vpop.f32.mrf.mxu0
    %v9337 = vadd.f32 %v9296, %v9336
    %v9338 = vpop.f32.mrf.mxu0
    %v9339 = vpop.f32.mrf.mxu0
    %9340 = vdwg.mxu0
    %9341 = vmatprep.subr.bf16.mxu0 0
    %9342 = vmatpush1.bf16.msra.mxu0 0
    %9343 = vmatprep.subr.bf16.mxu0 0
    %9344 = vmatpush1.bf16.msra.mxu0 0
    %9345 = vmatprep.subr.bf16.mxu0 0
    %9346 = vmatpush1.bf16.msra.mxu0 0
    %9347 = vmatprep.subr.bf16.mxu0 0
    %9348 = vmatpush1.bf16.msra.mxu0 0
    %9349 = vmatprep.subr.bf16.mxu0 0
    %9350 = vmatpush1.bf16.msra.mxu0 0
    %9351 = vmatprep.subr.bf16.mxu0 0
    %9352 = vmatpush1.bf16.msra.mxu0 0
    %9353 = vmatprep.subr.bf16.mxu0 0
    %9354 = vmatpush1.bf16.msra.mxu0 0
    %9355 = vmatprep.subr.bf16.mxu0 %v7005
    %9356 = vmatpush1.bf16.msra.mxu0 %v7004
    %9357 = vmatprep.subr.bf16.mxu0 0
    %9358 = vmatpush2.bf16.msra.mxu0 0
    %9359 = vmatprep.subr.bf16.mxu0 0
    %9360 = vmatpush2.bf16.msra.mxu0 0
    %9361 = vmatprep.subr.bf16.mxu0 0
    %9362 = vmatpush2.bf16.msra.mxu0 0
    %9363 = vmatprep.subr.bf16.mxu0 0
    %9364 = vmatpush2.bf16.msra.mxu0 0
    %9365 = vmatprep.subr.bf16.mxu0 0
    %9366 = vmatpush2.bf16.msra.mxu0 0
    %9367 = vmatprep.subr.bf16.mxu0 0
    %9368 = vmatpush2.bf16.msra.mxu0 0
    %9369 = vmatprep.subr.bf16.mxu0 0
    %9370 = vmatpush2.bf16.msra.mxu0 0
    %9371 = vmatprep.subr.bf16.mxu0 0
    %9372 = vmatpush2.bf16.msra.mxu0 0
    %9373 = vmatprep.mubr.bf16.mxu0 0
    %9374 = vmatmul.mubr.bf16.gmra.mxu0 %v8396
    %v9375 = vpop.f32.mrf.mxu0
    %v9376 = vadd.f32 %v9335, %v9375
    %v9377 = vpop.f32.mrf.mxu0
    %v9378 = vadd.f32 %v9337, %v9377
    %v9379 = vpop.f32.mrf.mxu0
    %v9380 = vpop.f32.mrf.mxu0
    %9381 = vdwg.mxu0
    %9382 = vmatprep.subr.bf16.mxu0 %v5859
    %9383 = vmatpush1.bf16.msra.mxu0 %v5858
    %9384 = vmatprep.subr.bf16.mxu0 %v5831
    %9385 = vmatpush1.bf16.msra.mxu0 %v5830
    %9386 = vmatprep.subr.bf16.mxu0 %v5803
    %9387 = vmatpush1.bf16.msra.mxu0 %v5802
    %9388 = vmatprep.subr.bf16.mxu0 %v5775
    %9389 = vmatpush1.bf16.msra.mxu0 %v5774
    %9390 = vmatprep.subr.bf16.mxu0 %v5747
    %9391 = vmatpush1.bf16.msra.mxu0 %v5746
    %9392 = vmatprep.subr.bf16.mxu0 %v5719
    %9393 = vmatpush1.bf16.msra.mxu0 %v5718
    %9394 = vmatprep.subr.bf16.mxu0 %v5691
    %9395 = vmatpush1.bf16.msra.mxu0 %v5690
    %9396 = vmatprep.subr.bf16.mxu0 %v5663
    %9397 = vmatpush1.bf16.msra.mxu0 %v5662
    %9398 = vmatprep.subr.bf16.mxu0 %v6083
    %9399 = vmatpush2.bf16.msra.mxu0 %v6082
    %9400 = vmatprep.subr.bf16.mxu0 %v6055
    %9401 = vmatpush2.bf16.msra.mxu0 %v6054
    %9402 = vmatprep.subr.bf16.mxu0 %v6027
    %9403 = vmatpush2.bf16.msra.mxu0 %v6026
    %9404 = vmatprep.subr.bf16.mxu0 %v5999
    %9405 = vmatpush2.bf16.msra.mxu0 %v5998
    %9406 = vmatprep.subr.bf16.mxu0 %v5971
    %9407 = vmatpush2.bf16.msra.mxu0 %v5970
    %9408 = vmatprep.subr.bf16.mxu0 %v5943
    %9409 = vmatpush2.bf16.msra.mxu0 %v5942
    %9410 = vmatprep.subr.bf16.mxu0 %v5915
    %9411 = vmatpush2.bf16.msra.mxu0 %v5914
    %9412 = vmatprep.subr.bf16.mxu0 %v5887
    %9413 = vmatpush2.bf16.msra.mxu0 %v5886
    %9414 = vmatprep.mubr.bf16.mxu0 %v1522
    %9415 = vmatmul.mubr.bf16.gmra.mxu0 %v1521
    %v9416 = vpop.f32.mrf.mxu0
    %v9417 = vadd.f32 0.0, %v9416
    %v9418 = vpop.f32.mrf.mxu0
    %v9419 = vadd.f32 0.0, %v9418
    %v9420 = vpop.f32.mrf.mxu0
    %v9421 = vpop.f32.mrf.mxu0
    %9422 = vdwg.mxu0
    %9423 = vmatprep.subr.bf16.mxu0 %v6307
    %9424 = vmatpush1.bf16.msra.mxu0 %v6306
    %9425 = vmatprep.subr.bf16.mxu0 %v6279
    %9426 = vmatpush1.bf16.msra.mxu0 %v6278
    %9427 = vmatprep.subr.bf16.mxu0 %v6251
    %9428 = vmatpush1.bf16.msra.mxu0 %v6250
    %9429 = vmatprep.subr.bf16.mxu0 %v6223
    %9430 = vmatpush1.bf16.msra.mxu0 %v6222
    %9431 = vmatprep.subr.bf16.mxu0 %v6195
    %9432 = vmatpush1.bf16.msra.mxu0 %v6194
    %9433 = vmatprep.subr.bf16.mxu0 %v6167
    %9434 = vmatpush1.bf16.msra.mxu0 %v6166
    %9435 = vmatprep.subr.bf16.mxu0 %v6139
    %9436 = vmatpush1.bf16.msra.mxu0 %v6138
    %9437 = vmatprep.subr.bf16.mxu0 %v6111
    %9438 = vmatpush1.bf16.msra.mxu0 %v6110
    %9439 = vmatprep.subr.bf16.mxu0 %v6531
    %9440 = vmatpush2.bf16.msra.mxu0 %v6530
    %9441 = vmatprep.subr.bf16.mxu0 %v6503
    %9442 = vmatpush2.bf16.msra.mxu0 %v6502
    %9443 = vmatprep.subr.bf16.mxu0 %v6475
    %9444 = vmatpush2.bf16.msra.mxu0 %v6474
    %9445 = vmatprep.subr.bf16.mxu0 %v6447
    %9446 = vmatpush2.bf16.msra.mxu0 %v6446
    %9447 = vmatprep.subr.bf16.mxu0 %v6419
    %9448 = vmatpush2.bf16.msra.mxu0 %v6418
    %9449 = vmatprep.subr.bf16.mxu0 %v6391
    %9450 = vmatpush2.bf16.msra.mxu0 %v6390
    %9451 = vmatprep.subr.bf16.mxu0 %v6363
    %9452 = vmatpush2.bf16.msra.mxu0 %v6362
    %9453 = vmatprep.subr.bf16.mxu0 %v6335
    %9454 = vmatpush2.bf16.msra.mxu0 %v6334
    %9455 = vmatprep.mubr.bf16.mxu0 %v1524
    %9456 = vmatmul.mubr.bf16.gmra.mxu0 %v1523
    %v9457 = vpop.f32.mrf.mxu0
    %v9458 = vadd.f32 %v9417, %v9457
    %v9459 = vpop.f32.mrf.mxu0
    %v9460 = vadd.f32 %v9419, %v9459
    %v9461 = vpop.f32.mrf.mxu0
    %v9462 = vpop.f32.mrf.mxu0
    %9463 = vdwg.mxu0
    %9464 = vmatprep.subr.bf16.mxu0 %v6755
    %9465 = vmatpush1.bf16.msra.mxu0 %v6754
    %9466 = vmatprep.subr.bf16.mxu0 %v6727
    %9467 = vmatpush1.bf16.msra.mxu0 %v6726
    %9468 = vmatprep.subr.bf16.mxu0 %v6699
    %9469 = vmatpush1.bf16.msra.mxu0 %v6698
    %9470 = vmatprep.subr.bf16.mxu0 %v6671
    %9471 = vmatpush1.bf16.msra.mxu0 %v6670
    %9472 = vmatprep.subr.bf16.mxu0 %v6643
    %9473 = vmatpush1.bf16.msra.mxu0 %v6642
    %9474 = vmatprep.subr.bf16.mxu0 %v6615
    %9475 = vmatpush1.bf16.msra.mxu0 %v6614
    %9476 = vmatprep.subr.bf16.mxu0 %v6587
    %9477 = vmatpush1.bf16.msra.mxu0 %v6586
    %9478 = vmatprep.subr.bf16.mxu0 %v6559
    %9479 = vmatpush1.bf16.msra.mxu0 %v6558
    %9480 = vmatprep.subr.bf16.mxu0 %v6979
    %9481 = vmatpush2.bf16.msra.mxu0 %v6978
    %9482 = vmatprep.subr.bf16.mxu0 %v6951
    %9483 = vmatpush2.bf16.msra.mxu0 %v6950
    %9484 = vmatprep.subr.bf16.mxu0 %v6923
    %9485 = vmatpush2.bf16.msra.mxu0 %v6922
    %9486 = vmatprep.subr.bf16.mxu0 %v6895
    %9487 = vmatpush2.bf16.msra.mxu0 %v6894
    %9488 = vmatprep.subr.bf16.mxu0 %v6867
    %9489 = vmatpush2.bf16.msra.mxu0 %v6866
    %9490 = vmatprep.subr.bf16.mxu0 %v6839
    %9491 = vmatpush2.bf16.msra.mxu0 %v6838
    %9492 = vmatprep.subr.bf16.mxu0 %v6811
    %9493 = vmatpush2.bf16.msra.mxu0 %v6810
    %9494 = vmatprep.subr.bf16.mxu0 %v6783
    %9495 = vmatpush2.bf16.msra.mxu0 %v6782
    %9496 = vmatprep.mubr.bf16.mxu0 %v1526
    %9497 = vmatmul.mubr.bf16.gmra.mxu0 %v1525
    %v9498 = vpop.f32.mrf.mxu0
    %v9499 = vadd.f32 %v9458, %v9498
    %v9500 = vpop.f32.mrf.mxu0
    %v9501 = vadd.f32 %v9460, %v9500
    %v9502 = vpop.f32.mrf.mxu0
    %v9503 = vpop.f32.mrf.mxu0
    %9504 = vdwg.mxu0
    %9505 = vmatprep.subr.bf16.mxu0 0
    %9506 = vmatpush1.bf16.msra.mxu0 0
    %9507 = vmatprep.subr.bf16.mxu0 0
    %9508 = vmatpush1.bf16.msra.mxu0 0
    %9509 = vmatprep.subr.bf16.mxu0 0
    %9510 = vmatpush1.bf16.msra.mxu0 0
    %9511 = vmatprep.subr.bf16.mxu0 0
    %9512 = vmatpush1.bf16.msra.mxu0 0
    %9513 = vmatprep.subr.bf16.mxu0 0
    %9514 = vmatpush1.bf16.msra.mxu0 0
    %9515 = vmatprep.subr.bf16.mxu0 0
    %9516 = vmatpush1.bf16.msra.mxu0 0
    %9517 = vmatprep.subr.bf16.mxu0 0
    %9518 = vmatpush1.bf16.msra.mxu0 0
    %9519 = vmatprep.subr.bf16.mxu0 %v7007
    %9520 = vmatpush1.bf16.msra.mxu0 %v7006
    %9521 = vmatprep.subr.bf16.mxu0 0
    %9522 = vmatpush2.bf16.msra.mxu0 0
    %9523 = vmatprep.subr.bf16.mxu0 0
    %9524 = vmatpush2.bf16.msra.mxu0 0
    %9525 = vmatprep.subr.bf16.mxu0 0
    %9526 = vmatpush2.bf16.msra.mxu0 0
    %9527 = vmatprep.subr.bf16.mxu0 0
    %9528 = vmatpush2.bf16.msra.mxu0 0
    %9529 = vmatprep.subr.bf16.mxu0 0
    %9530 = vmatpush2.bf16.msra.mxu0 0
    %9531 = vmatprep.subr.bf16.mxu0 0
    %9532 = vmatpush2.bf16.msra.mxu0 0
    %9533 = vmatprep.subr.bf16.mxu0 0
    %9534 = vmatpush2.bf16.msra.mxu0 0
    %9535 = vmatprep.subr.bf16.mxu0 0
    %9536 = vmatpush2.bf16.msra.mxu0 0
    %9537 = vmatprep.mubr.bf16.mxu0 0
    %9538 = vmatmul.mubr.bf16.gmra.mxu0 %v8396
    %v9539 = vpop.f32.mrf.mxu0
    %v9540 = vadd.f32 %v9499, %v9539
    %v9541 = vpop.f32.mrf.mxu0
    %v9542 = vadd.f32 %v9501, %v9541
    %v9543 = vpop.f32.mrf.mxu0
    %v9544 = vpop.f32.mrf.mxu0
    %9545 = vdwg.mxu0
    %9546 = vmatprep.subr.bf16.mxu0 %v5861
    %9547 = vmatpush1.bf16.msra.mxu0 %v5860
    %9548 = vmatprep.subr.bf16.mxu0 %v5833
    %9549 = vmatpush1.bf16.msra.mxu0 %v5832
    %9550 = vmatprep.subr.bf16.mxu0 %v5805
    %9551 = vmatpush1.bf16.msra.mxu0 %v5804
    %9552 = vmatprep.subr.bf16.mxu0 %v5777
    %9553 = vmatpush1.bf16.msra.mxu0 %v5776
    %9554 = vmatprep.subr.bf16.mxu0 %v5749
    %9555 = vmatpush1.bf16.msra.mxu0 %v5748
    %9556 = vmatprep.subr.bf16.mxu0 %v5721
    %9557 = vmatpush1.bf16.msra.mxu0 %v5720
    %9558 = vmatprep.subr.bf16.mxu0 %v5693
    %9559 = vmatpush1.bf16.msra.mxu0 %v5692
    %9560 = vmatprep.subr.bf16.mxu0 %v5665
    %9561 = vmatpush1.bf16.msra.mxu0 %v5664
    %9562 = vmatprep.subr.bf16.mxu0 %v6085
    %9563 = vmatpush2.bf16.msra.mxu0 %v6084
    %9564 = vmatprep.subr.bf16.mxu0 %v6057
    %9565 = vmatpush2.bf16.msra.mxu0 %v6056
    %9566 = vmatprep.subr.bf16.mxu0 %v6029
    %9567 = vmatpush2.bf16.msra.mxu0 %v6028
    %9568 = vmatprep.subr.bf16.mxu0 %v6001
    %9569 = vmatpush2.bf16.msra.mxu0 %v6000
    %9570 = vmatprep.subr.bf16.mxu0 %v5973
    %9571 = vmatpush2.bf16.msra.mxu0 %v5972
    %9572 = vmatprep.subr.bf16.mxu0 %v5945
    %9573 = vmatpush2.bf16.msra.mxu0 %v5944
    %9574 = vmatprep.subr.bf16.mxu0 %v5917
    %9575 = vmatpush2.bf16.msra.mxu0 %v5916
    %9576 = vmatprep.subr.bf16.mxu0 %v5889
    %9577 = vmatpush2.bf16.msra.mxu0 %v5888
    %9578 = vmatprep.mubr.bf16.mxu0 %v1522
    %9579 = vmatmul.mubr.bf16.gmra.mxu0 %v1521
    %v9580 = vpop.f32.mrf.mxu0
    %v9581 = vadd.f32 0.0, %v9580
    %v9582 = vpop.f32.mrf.mxu0
    %v9583 = vadd.f32 0.0, %v9582
    %v9584 = vpop.f32.mrf.mxu0
    %v9585 = vpop.f32.mrf.mxu0
    %9586 = vdwg.mxu0
    %9587 = vmatprep.subr.bf16.mxu0 %v6309
    %9588 = vmatpush1.bf16.msra.mxu0 %v6308
    %9589 = vmatprep.subr.bf16.mxu0 %v6281
    %9590 = vmatpush1.bf16.msra.mxu0 %v6280
    %9591 = vmatprep.subr.bf16.mxu0 %v6253
    %9592 = vmatpush1.bf16.msra.mxu0 %v6252
    %9593 = vmatprep.subr.bf16.mxu0 %v6225
    %9594 = vmatpush1.bf16.msra.mxu0 %v6224
    %9595 = vmatprep.subr.bf16.mxu0 %v6197
    %9596 = vmatpush1.bf16.msra.mxu0 %v6196
    %9597 = vmatprep.subr.bf16.mxu0 %v6169
    %9598 = vmatpush1.bf16.msra.mxu0 %v6168
    %9599 = vmatprep.subr.bf16.mxu0 %v6141
    %9600 = vmatpush1.bf16.msra.mxu0 %v6140
    %9601 = vmatprep.subr.bf16.mxu0 %v6113
    %9602 = vmatpush1.bf16.msra.mxu0 %v6112
    %9603 = vmatprep.subr.bf16.mxu0 %v6533
    %9604 = vmatpush2.bf16.msra.mxu0 %v6532
    %9605 = vmatprep.subr.bf16.mxu0 %v6505
    %9606 = vmatpush2.bf16.msra.mxu0 %v6504
    %9607 = vmatprep.subr.bf16.mxu0 %v6477
    %9608 = vmatpush2.bf16.msra.mxu0 %v6476
    %9609 = vmatprep.subr.bf16.mxu0 %v6449
    %9610 = vmatpush2.bf16.msra.mxu0 %v6448
    %9611 = vmatprep.subr.bf16.mxu0 %v6421
    %9612 = vmatpush2.bf16.msra.mxu0 %v6420
    %9613 = vmatprep.subr.bf16.mxu0 %v6393
    %9614 = vmatpush2.bf16.msra.mxu0 %v6392
    %9615 = vmatprep.subr.bf16.mxu0 %v6365
    %9616 = vmatpush2.bf16.msra.mxu0 %v6364
    %9617 = vmatprep.subr.bf16.mxu0 %v6337
    %9618 = vmatpush2.bf16.msra.mxu0 %v6336
    %9619 = vmatprep.mubr.bf16.mxu0 %v1524
    %9620 = vmatmul.mubr.bf16.gmra.mxu0 %v1523
    %v9621 = vpop.f32.mrf.mxu0
    %v9622 = vadd.f32 %v9581, %v9621
    %v9623 = vpop.f32.mrf.mxu0
    %v9624 = vadd.f32 %v9583, %v9623
    %v9625 = vpop.f32.mrf.mxu0
    %v9626 = vpop.f32.mrf.mxu0
    %9627 = vdwg.mxu0
    %9628 = vmatprep.subr.bf16.mxu0 %v6757
    %9629 = vmatpush1.bf16.msra.mxu0 %v6756
    %9630 = vmatprep.subr.bf16.mxu0 %v6729
    %9631 = vmatpush1.bf16.msra.mxu0 %v6728
    %9632 = vmatprep.subr.bf16.mxu0 %v6701
    %9633 = vmatpush1.bf16.msra.mxu0 %v6700
    %9634 = vmatprep.subr.bf16.mxu0 %v6673
    %9635 = vmatpush1.bf16.msra.mxu0 %v6672
    %9636 = vmatprep.subr.bf16.mxu0 %v6645
    %9637 = vmatpush1.bf16.msra.mxu0 %v6644
    %9638 = vmatprep.subr.bf16.mxu0 %v6617
    %9639 = vmatpush1.bf16.msra.mxu0 %v6616
    %9640 = vmatprep.subr.bf16.mxu0 %v6589
    %9641 = vmatpush1.bf16.msra.mxu0 %v6588
    %9642 = vmatprep.subr.bf16.mxu0 %v6561
    %9643 = vmatpush1.bf16.msra.mxu0 %v6560
    %9644 = vmatprep.subr.bf16.mxu0 %v6981
    %9645 = vmatpush2.bf16.msra.mxu0 %v6980
    %9646 = vmatprep.subr.bf16.mxu0 %v6953
    %9647 = vmatpush2.bf16.msra.mxu0 %v6952
    %9648 = vmatprep.subr.bf16.mxu0 %v6925
    %9649 = vmatpush2.bf16.msra.mxu0 %v6924
    %9650 = vmatprep.subr.bf16.mxu0 %v6897
    %9651 = vmatpush2.bf16.msra.mxu0 %v6896
    %9652 = vmatprep.subr.bf16.mxu0 %v6869
    %9653 = vmatpush2.bf16.msra.mxu0 %v6868
    %9654 = vmatprep.subr.bf16.mxu0 %v6841
    %9655 = vmatpush2.bf16.msra.mxu0 %v6840
    %9656 = vmatprep.subr.bf16.mxu0 %v6813
    %9657 = vmatpush2.bf16.msra.mxu0 %v6812
    %9658 = vmatprep.subr.bf16.mxu0 %v6785
    %9659 = vmatpush2.bf16.msra.mxu0 %v6784
    %9660 = vmatprep.mubr.bf16.mxu0 %v1526
    %9661 = vmatmul.mubr.bf16.gmra.mxu0 %v1525
    %v9662 = vpop.f32.mrf.mxu0
    %v9663 = vadd.f32 %v9622, %v9662
    %v9664 = vpop.f32.mrf.mxu0
    %v9665 = vadd.f32 %v9624, %v9664
    %v9666 = vpop.f32.mrf.mxu0
    %v9667 = vpop.f32.mrf.mxu0
    %9668 = vdwg.mxu0
    %9669 = vmatprep.subr.bf16.mxu0 0
    %9670 = vmatpush1.bf16.msra.mxu0 0
    %9671 = vmatprep.subr.bf16.mxu0 0
    %9672 = vmatpush1.bf16.msra.mxu0 0
    %9673 = vmatprep.subr.bf16.mxu0 0
    %9674 = vmatpush1.bf16.msra.mxu0 0
    %9675 = vmatprep.subr.bf16.mxu0 0
    %9676 = vmatpush1.bf16.msra.mxu0 0
    %9677 = vmatprep.subr.bf16.mxu0 0
    %9678 = vmatpush1.bf16.msra.mxu0 0
    %9679 = vmatprep.subr.bf16.mxu0 0
    %9680 = vmatpush1.bf16.msra.mxu0 0
    %9681 = vmatprep.subr.bf16.mxu0 0
    %9682 = vmatpush1.bf16.msra.mxu0 0
    %9683 = vmatprep.subr.bf16.mxu0 %v7009
    %9684 = vmatpush1.bf16.msra.mxu0 %v7008
    %9685 = vmatprep.subr.bf16.mxu0 0
    %9686 = vmatpush2.bf16.msra.mxu0 0
    %9687 = vmatprep.subr.bf16.mxu0 0
    %9688 = vmatpush2.bf16.msra.mxu0 0
    %9689 = vmatprep.subr.bf16.mxu0 0
    %9690 = vmatpush2.bf16.msra.mxu0 0
    %9691 = vmatprep.subr.bf16.mxu0 0
    %9692 = vmatpush2.bf16.msra.mxu0 0
    %9693 = vmatprep.subr.bf16.mxu0 0
    %9694 = vmatpush2.bf16.msra.mxu0 0
    %9695 = vmatprep.subr.bf16.mxu0 0
    %9696 = vmatpush2.bf16.msra.mxu0 0
    %9697 = vmatprep.subr.bf16.mxu0 0
    %9698 = vmatpush2.bf16.msra.mxu0 0
    %9699 = vmatprep.subr.bf16.mxu0 0
    %9700 = vmatpush2.bf16.msra.mxu0 0
    %9701 = vmatprep.mubr.bf16.mxu0 0
    %9702 = vmatmul.mubr.bf16.gmra.mxu0 %v8396
    %v9703 = vpop.f32.mrf.mxu0
    %v9704 = vadd.f32 %v9663, %v9703
    %v9705 = vpop.f32.mrf.mxu0
    %v9706 = vadd.f32 %v9665, %v9705
    %v9707 = vpop.f32.mrf.mxu0
    %v9708 = vpop.f32.mrf.mxu0
    %9709 = vdwg.mxu0
    %9710 = vmatprep.subr.bf16.mxu0 %v5863
    %9711 = vmatpush1.bf16.msra.mxu0 %v5862
    %9712 = vmatprep.subr.bf16.mxu0 %v5835
    %9713 = vmatpush1.bf16.msra.mxu0 %v5834
    %9714 = vmatprep.subr.bf16.mxu0 %v5807
    %9715 = vmatpush1.bf16.msra.mxu0 %v5806
    %9716 = vmatprep.subr.bf16.mxu0 %v5779
    %9717 = vmatpush1.bf16.msra.mxu0 %v5778
    %9718 = vmatprep.subr.bf16.mxu0 %v5751
    %9719 = vmatpush1.bf16.msra.mxu0 %v5750
    %9720 = vmatprep.subr.bf16.mxu0 %v5723
    %9721 = vmatpush1.bf16.msra.mxu0 %v5722
    %9722 = vmatprep.subr.bf16.mxu0 %v5695
    %9723 = vmatpush1.bf16.msra.mxu0 %v5694
    %9724 = vmatprep.subr.bf16.mxu0 %v5667
    %9725 = vmatpush1.bf16.msra.mxu0 %v5666
    %9726 = vmatprep.subr.bf16.mxu0 %v6087
    %9727 = vmatpush2.bf16.msra.mxu0 %v6086
    %9728 = vmatprep.subr.bf16.mxu0 %v6059
    %9729 = vmatpush2.bf16.msra.mxu0 %v6058
    %9730 = vmatprep.subr.bf16.mxu0 %v6031
    %9731 = vmatpush2.bf16.msra.mxu0 %v6030
    %9732 = vmatprep.subr.bf16.mxu0 %v6003
    %9733 = vmatpush2.bf16.msra.mxu0 %v6002
    %9734 = vmatprep.subr.bf16.mxu0 %v5975
    %9735 = vmatpush2.bf16.msra.mxu0 %v5974
    %9736 = vmatprep.subr.bf16.mxu0 %v5947
    %9737 = vmatpush2.bf16.msra.mxu0 %v5946
    %9738 = vmatprep.subr.bf16.mxu0 %v5919
    %9739 = vmatpush2.bf16.msra.mxu0 %v5918
    %9740 = vmatprep.subr.bf16.mxu0 %v5891
    %9741 = vmatpush2.bf16.msra.mxu0 %v5890
    %9742 = vmatprep.mubr.bf16.mxu0 %v1522
    %9743 = vmatmul.mubr.bf16.gmra.mxu0 %v1521
    %v9744 = vpop.f32.mrf.mxu0
    %v9745 = vadd.f32 0.0, %v9744
    %v9746 = vpop.f32.mrf.mxu0
    %v9747 = vadd.f32 0.0, %v9746
    %v9748 = vpop.f32.mrf.mxu0
    %v9749 = vpop.f32.mrf.mxu0
    %9750 = vdwg.mxu0
    %9751 = vmatprep.subr.bf16.mxu0 %v6311
    %9752 = vmatpush1.bf16.msra.mxu0 %v6310
    %9753 = vmatprep.subr.bf16.mxu0 %v6283
    %9754 = vmatpush1.bf16.msra.mxu0 %v6282
    %9755 = vmatprep.subr.bf16.mxu0 %v6255
    %9756 = vmatpush1.bf16.msra.mxu0 %v6254
    %9757 = vmatprep.subr.bf16.mxu0 %v6227
    %9758 = vmatpush1.bf16.msra.mxu0 %v6226
    %9759 = vmatprep.subr.bf16.mxu0 %v6199
    %9760 = vmatpush1.bf16.msra.mxu0 %v6198
    %9761 = vmatprep.subr.bf16.mxu0 %v6171
    %9762 = vmatpush1.bf16.msra.mxu0 %v6170
    %9763 = vmatprep.subr.bf16.mxu0 %v6143
    %9764 = vmatpush1.bf16.msra.mxu0 %v6142
    %9765 = vmatprep.subr.bf16.mxu0 %v6115
    %9766 = vmatpush1.bf16.msra.mxu0 %v6114
    %9767 = vmatprep.subr.bf16.mxu0 %v6535
    %9768 = vmatpush2.bf16.msra.mxu0 %v6534
    %9769 = vmatprep.subr.bf16.mxu0 %v6507
    %9770 = vmatpush2.bf16.msra.mxu0 %v6506
    %9771 = vmatprep.subr.bf16.mxu0 %v6479
    %9772 = vmatpush2.bf16.msra.mxu0 %v6478
    %9773 = vmatprep.subr.bf16.mxu0 %v6451
    %9774 = vmatpush2.bf16.msra.mxu0 %v6450
    %9775 = vmatprep.subr.bf16.mxu0 %v6423
    %9776 = vmatpush2.bf16.msra.mxu0 %v6422
    %9777 = vmatprep.subr.bf16.mxu0 %v6395
    %9778 = vmatpush2.bf16.msra.mxu0 %v6394
    %9779 = vmatprep.subr.bf16.mxu0 %v6367
    %9780 = vmatpush2.bf16.msra.mxu0 %v6366
    %9781 = vmatprep.subr.bf16.mxu0 %v6339
    %9782 = vmatpush2.bf16.msra.mxu0 %v6338
    %9783 = vmatprep.mubr.bf16.mxu0 %v1524
    %9784 = vmatmul.mubr.bf16.gmra.mxu0 %v1523
    %v9785 = vpop.f32.mrf.mxu0
    %v9786 = vadd.f32 %v9745, %v9785
    %v9787 = vpop.f32.mrf.mxu0
    %v9788 = vadd.f32 %v9747, %v9787
    %v9789 = vpop.f32.mrf.mxu0
    %v9790 = vpop.f32.mrf.mxu0
    %9791 = vdwg.mxu0
    %9792 = vmatprep.subr.bf16.mxu0 %v6759
    %9793 = vmatpush1.bf16.msra.mxu0 %v6758
    %9794 = vmatprep.subr.bf16.mxu0 %v6731
    %9795 = vmatpush1.bf16.msra.mxu0 %v6730
    %9796 = vmatprep.subr.bf16.mxu0 %v6703
    %9797 = vmatpush1.bf16.msra.mxu0 %v6702
    %9798 = vmatprep.subr.bf16.mxu0 %v6675
    %9799 = vmatpush1.bf16.msra.mxu0 %v6674
    %9800 = vmatprep.subr.bf16.mxu0 %v6647
    %9801 = vmatpush1.bf16.msra.mxu0 %v6646
    %9802 = vmatprep.subr.bf16.mxu0 %v6619
    %9803 = vmatpush1.bf16.msra.mxu0 %v6618
    %9804 = vmatprep.subr.bf16.mxu0 %v6591
    %9805 = vmatpush1.bf16.msra.mxu0 %v6590
    %9806 = vmatprep.subr.bf16.mxu0 %v6563
    %9807 = vmatpush1.bf16.msra.mxu0 %v6562
    %9808 = vmatprep.subr.bf16.mxu0 %v6983
    %9809 = vmatpush2.bf16.msra.mxu0 %v6982
    %9810 = vmatprep.subr.bf16.mxu0 %v6955
    %9811 = vmatpush2.bf16.msra.mxu0 %v6954
    %9812 = vmatprep.subr.bf16.mxu0 %v6927
    %9813 = vmatpush2.bf16.msra.mxu0 %v6926
    %9814 = vmatprep.subr.bf16.mxu0 %v6899
    %9815 = vmatpush2.bf16.msra.mxu0 %v6898
    %9816 = vmatprep.subr.bf16.mxu0 %v6871
    %9817 = vmatpush2.bf16.msra.mxu0 %v6870
    %9818 = vmatprep.subr.bf16.mxu0 %v6843
    %9819 = vmatpush2.bf16.msra.mxu0 %v6842
    %9820 = vmatprep.subr.bf16.mxu0 %v6815
    %9821 = vmatpush2.bf16.msra.mxu0 %v6814
    %9822 = vmatprep.subr.bf16.mxu0 %v6787
    %9823 = vmatpush2.bf16.msra.mxu0 %v6786
    %9824 = vmatprep.mubr.bf16.mxu0 %v1526
    %9825 = vmatmul.mubr.bf16.gmra.mxu0 %v1525
    %v9826 = vpop.f32.mrf.mxu0
    %v9827 = vadd.f32 %v9786, %v9826
    %v9828 = vpop.f32.mrf.mxu0
    %v9829 = vadd.f32 %v9788, %v9828
    %v9830 = vpop.f32.mrf.mxu0
    %v9831 = vpop.f32.mrf.mxu0
    %9832 = vdwg.mxu0
    %9833 = vmatprep.subr.bf16.mxu0 0
    %9834 = vmatpush1.bf16.msra.mxu0 0
    %9835 = vmatprep.subr.bf16.mxu0 0
    %9836 = vmatpush1.bf16.msra.mxu0 0
    %9837 = vmatprep.subr.bf16.mxu0 0
    %9838 = vmatpush1.bf16.msra.mxu0 0
    %9839 = vmatprep.subr.bf16.mxu0 0
    %9840 = vmatpush1.bf16.msra.mxu0 0
    %9841 = vmatprep.subr.bf16.mxu0 0
    %9842 = vmatpush1.bf16.msra.mxu0 0
    %9843 = vmatprep.subr.bf16.mxu0 0
    %9844 = vmatpush1.bf16.msra.mxu0 0
    %9845 = vmatprep.subr.bf16.mxu0 0
    %9846 = vmatpush1.bf16.msra.mxu0 0
    %9847 = vmatprep.subr.bf16.mxu0 %v7011
    %9848 = vmatpush1.bf16.msra.mxu0 %v7010
    %9849 = vmatprep.subr.bf16.mxu0 0
    %9850 = vmatpush2.bf16.msra.mxu0 0
    %9851 = vmatprep.subr.bf16.mxu0 0
    %9852 = vmatpush2.bf16.msra.mxu0 0
    %9853 = vmatprep.subr.bf16.mxu0 0
    %9854 = vmatpush2.bf16.msra.mxu0 0
    %9855 = vmatprep.subr.bf16.mxu0 0
    %9856 = vmatpush2.bf16.msra.mxu0 0
    %9857 = vmatprep.subr.bf16.mxu0 0
    %9858 = vmatpush2.bf16.msra.mxu0 0
    %9859 = vmatprep.subr.bf16.mxu0 0
    %9860 = vmatpush2.bf16.msra.mxu0 0
    %9861 = vmatprep.subr.bf16.mxu0 0
    %9862 = vmatpush2.bf16.msra.mxu0 0
    %9863 = vmatprep.subr.bf16.mxu0 0
    %9864 = vmatpush2.bf16.msra.mxu0 0
    %9865 = vmatprep.mubr.bf16.mxu0 0
    %9866 = vmatmul.mubr.bf16.gmra.mxu0 %v8396
    %v9867 = vpop.f32.mrf.mxu0
    %v9868 = vadd.f32 %v9827, %v9867
    %v9869 = vpop.f32.mrf.mxu0
    %v9870 = vadd.f32 %v9829, %v9869
    %v9871 = vpop.f32.mrf.mxu0
    %v9872 = vpop.f32.mrf.mxu0
    %9873 = vdwg.mxu0
    %9874 = vmatprep.subr.bf16.mxu0 %v5865
    %9875 = vmatpush1.bf16.msra.mxu0 %v5864
    %9876 = vmatprep.subr.bf16.mxu0 %v5837
    %9877 = vmatpush1.bf16.msra.mxu0 %v5836
    %9878 = vmatprep.subr.bf16.mxu0 %v5809
    %9879 = vmatpush1.bf16.msra.mxu0 %v5808
    %9880 = vmatprep.subr.bf16.mxu0 %v5781
    %9881 = vmatpush1.bf16.msra.mxu0 %v5780
    %9882 = vmatprep.subr.bf16.mxu0 %v5753
    %9883 = vmatpush1.bf16.msra.mxu0 %v5752
    %9884 = vmatprep.subr.bf16.mxu0 %v5725
    %9885 = vmatpush1.bf16.msra.mxu0 %v5724
    %9886 = vmatprep.subr.bf16.mxu0 %v5697
    %9887 = vmatpush1.bf16.msra.mxu0 %v5696
    %9888 = vmatprep.subr.bf16.mxu0 %v5669
    %9889 = vmatpush1.bf16.msra.mxu0 %v5668
    %9890 = vmatprep.subr.bf16.mxu0 %v6089
    %9891 = vmatpush2.bf16.msra.mxu0 %v6088
    %9892 = vmatprep.subr.bf16.mxu0 %v6061
    %9893 = vmatpush2.bf16.msra.mxu0 %v6060
    %9894 = vmatprep.subr.bf16.mxu0 %v6033
    %9895 = vmatpush2.bf16.msra.mxu0 %v6032
    %9896 = vmatprep.subr.bf16.mxu0 %v6005
    %9897 = vmatpush2.bf16.msra.mxu0 %v6004
    %9898 = vmatprep.subr.bf16.mxu0 %v5977
    %9899 = vmatpush2.bf16.msra.mxu0 %v5976
    %9900 = vmatprep.subr.bf16.mxu0 %v5949
    %9901 = vmatpush2.bf16.msra.mxu0 %v5948
    %9902 = vmatprep.subr.bf16.mxu0 %v5921
    %9903 = vmatpush2.bf16.msra.mxu0 %v5920
    %9904 = vmatprep.subr.bf16.mxu0 %v5893
    %9905 = vmatpush2.bf16.msra.mxu0 %v5892
    %9906 = vmatprep.mubr.bf16.mxu0 %v1522
    %9907 = vmatmul.mubr.bf16.gmra.mxu0 %v1521
    %v9908 = vpop.f32.mrf.mxu0
    %v9909 = vadd.f32 0.0, %v9908
    %v9910 = vpop.f32.mrf.mxu0
    %v9911 = vadd.f32 0.0, %v9910
    %v9912 = vpop.f32.mrf.mxu0
    %v9913 = vpop.f32.mrf.mxu0
    %9914 = vdwg.mxu0
    %9915 = vmatprep.subr.bf16.mxu0 %v6313
    %9916 = vmatpush1.bf16.msra.mxu0 %v6312
    %9917 = vmatprep.subr.bf16.mxu0 %v6285
    %9918 = vmatpush1.bf16.msra.mxu0 %v6284
    %9919 = vmatprep.subr.bf16.mxu0 %v6257
    %9920 = vmatpush1.bf16.msra.mxu0 %v6256
    %9921 = vmatprep.subr.bf16.mxu0 %v6229
    %9922 = vmatpush1.bf16.msra.mxu0 %v6228
    %9923 = vmatprep.subr.bf16.mxu0 %v6201
    %9924 = vmatpush1.bf16.msra.mxu0 %v6200
    %9925 = vmatprep.subr.bf16.mxu0 %v6173
    %9926 = vmatpush1.bf16.msra.mxu0 %v6172
    %9927 = vmatprep.subr.bf16.mxu0 %v6145
    %9928 = vmatpush1.bf16.msra.mxu0 %v6144
    %9929 = vmatprep.subr.bf16.mxu0 %v6117
    %9930 = vmatpush1.bf16.msra.mxu0 %v6116
    %9931 = vmatprep.subr.bf16.mxu0 %v6537
    %9932 = vmatpush2.bf16.msra.mxu0 %v6536
    %9933 = vmatprep.subr.bf16.mxu0 %v6509
    %9934 = vmatpush2.bf16.msra.mxu0 %v6508
    %9935 = vmatprep.subr.bf16.mxu0 %v6481
    %9936 = vmatpush2.bf16.msra.mxu0 %v6480
    %9937 = vmatprep.subr.bf16.mxu0 %v6453
    %9938 = vmatpush2.bf16.msra.mxu0 %v6452
    %9939 = vmatprep.subr.bf16.mxu0 %v6425
    %9940 = vmatpush2.bf16.msra.mxu0 %v6424
    %9941 = vmatprep.subr.bf16.mxu0 %v6397
    %9942 = vmatpush2.bf16.msra.mxu0 %v6396
    %9943 = vmatprep.subr.bf16.mxu0 %v6369
    %9944 = vmatpush2.bf16.msra.mxu0 %v6368
    %9945 = vmatprep.subr.bf16.mxu0 %v6341
    %9946 = vmatpush2.bf16.msra.mxu0 %v6340
    %9947 = vmatprep.mubr.bf16.mxu0 %v1524
    %9948 = vmatmul.mubr.bf16.gmra.mxu0 %v1523
    %v9949 = vpop.f32.mrf.mxu0
    %v9950 = vadd.f32 %v9909, %v9949
    %v9951 = vpop.f32.mrf.mxu0
    %v9952 = vadd.f32 %v9911, %v9951
    %v9953 = vpop.f32.mrf.mxu0
    %v9954 = vpop.f32.mrf.mxu0
    %9955 = vdwg.mxu0
    %9956 = vmatprep.subr.bf16.mxu0 %v6761
    %9957 = vmatpush1.bf16.msra.mxu0 %v6760
    %9958 = vmatprep.subr.bf16.mxu0 %v6733
    %9959 = vmatpush1.bf16.msra.mxu0 %v6732
    %9960 = vmatprep.subr.bf16.mxu0 %v6705
    %9961 = vmatpush1.bf16.msra.mxu0 %v6704
    %9962 = vmatprep.subr.bf16.mxu0 %v6677
    %9963 = vmatpush1.bf16.msra.mxu0 %v6676
    %9964 = vmatprep.subr.bf16.mxu0 %v6649
    %9965 = vmatpush1.bf16.msra.mxu0 %v6648
    %9966 = vmatprep.subr.bf16.mxu0 %v6621
    %9967 = vmatpush1.bf16.msra.mxu0 %v6620
    %9968 = vmatprep.subr.bf16.mxu0 %v6593
    %9969 = vmatpush1.bf16.msra.mxu0 %v6592
    %9970 = vmatprep.subr.bf16.mxu0 %v6565
    %9971 = vmatpush1.bf16.msra.mxu0 %v6564
    %9972 = vmatprep.subr.bf16.mxu0 %v6985
    %9973 = vmatpush2.bf16.msra.mxu0 %v6984
    %9974 = vmatprep.subr.bf16.mxu0 %v6957
    %9975 = vmatpush2.bf16.msra.mxu0 %v6956
    %9976 = vmatprep.subr.bf16.mxu0 %v6929
    %9977 = vmatpush2.bf16.msra.mxu0 %v6928
    %9978 = vmatprep.subr.bf16.mxu0 %v6901
    %9979 = vmatpush2.bf16.msra.mxu0 %v6900
    %9980 = vmatprep.subr.bf16.mxu0 %v6873
    %9981 = vmatpush2.bf16.msra.mxu0 %v6872
    %9982 = vmatprep.subr.bf16.mxu0 %v6845
    %9983 = vmatpush2.bf16.msra.mxu0 %v6844
    %9984 = vmatprep.subr.bf16.mxu0 %v6817
    %9985 = vmatpush2.bf16.msra.mxu0 %v6816
    %9986 = vmatprep.subr.bf16.mxu0 %v6789
    %9987 = vmatpush2.bf16.msra.mxu0 %v6788
    %9988 = vmatprep.mubr.bf16.mxu0 %v1526
    %9989 = vmatmul.mubr.bf16.gmra.mxu0 %v1525
    %v9990 = vpop.f32.mrf.mxu0
    %v9991 = vadd.f32 %v9950, %v9990
    %v9992 = vpop.f32.mrf.mxu0
    %v9993 = vadd.f32 %v9952, %v9992
    %v9994 = vpop.f32.mrf.mxu0
    %v9995 = vpop.f32.mrf.mxu0
    %9996 = vdwg.mxu0
    %9997 = vmatprep.subr.bf16.mxu0 0
    %9998 = vmatpush1.bf16.msra.mxu0 0
    %9999 = vmatprep.subr.bf16.mxu0 0
    %10000 = vmatpush1.bf16.msra.mxu0 0
    %10001 = vmatprep.subr.bf16.mxu0 0
    %10002 = vmatpush1.bf16.msra.mxu0 0
    %10003 = vmatprep.subr.bf16.mxu0 0
    %10004 = vmatpush1.bf16.msra.mxu0 0
    %10005 = vmatprep.subr.bf16.mxu0 0
    %10006 = vmatpush1.bf16.msra.mxu0 0
    %10007 = vmatprep.subr.bf16.mxu0 0
    %10008 = vmatpush1.bf16.msra.mxu0 0
    %10009 = vmatprep.subr.bf16.mxu0 0
    %10010 = vmatpush1.bf16.msra.mxu0 0
    %10011 = vmatprep.subr.bf16.mxu0 %v7013
    %10012 = vmatpush1.bf16.msra.mxu0 %v7012
    %10013 = vmatprep.subr.bf16.mxu0 0
    %10014 = vmatpush2.bf16.msra.mxu0 0
    %10015 = vmatprep.subr.bf16.mxu0 0
    %10016 = vmatpush2.bf16.msra.mxu0 0
    %10017 = vmatprep.subr.bf16.mxu0 0
    %10018 = vmatpush2.bf16.msra.mxu0 0
    %10019 = vmatprep.subr.bf16.mxu0 0
    %10020 = vmatpush2.bf16.msra.mxu0 0
    %10021 = vmatprep.subr.bf16.mxu0 0
    %10022 = vmatpush2.bf16.msra.mxu0 0
    %10023 = vmatprep.subr.bf16.mxu0 0
    %10024 = vmatpush2.bf16.msra.mxu0 0
    %10025 = vmatprep.subr.bf16.mxu0 0
    %10026 = vmatpush2.bf16.msra.mxu0 0
    %10027 = vmatprep.subr.bf16.mxu0 0
    %10028 = vmatpush2.bf16.msra.mxu0 0
    %10029 = vmatprep.mubr.bf16.mxu0 0
    %10030 = vmatmul.mubr.bf16.gmra.mxu0 %v8396
    %v10031 = vpop.f32.mrf.mxu0
    %v10032 = vadd.f32 %v9991, %v10031
    %v10033 = vpop.f32.mrf.mxu0
    %v10034 = vadd.f32 %v9993, %v10033
    %v10035 = vpop.f32.mrf.mxu0
    %v10036 = vpop.f32.mrf.mxu0
    %10037 = vdwg.mxu0
    %10038 = vmatprep.subr.bf16.mxu0 %v5867
    %10039 = vmatpush1.bf16.msra.mxu0 %v5866
    %10040 = vmatprep.subr.bf16.mxu0 %v5839
    %10041 = vmatpush1.bf16.msra.mxu0 %v5838
    %10042 = vmatprep.subr.bf16.mxu0 %v5811
    %10043 = vmatpush1.bf16.msra.mxu0 %v5810
    %10044 = vmatprep.subr.bf16.mxu0 %v5783
    %10045 = vmatpush1.bf16.msra.mxu0 %v5782
    %10046 = vmatprep.subr.bf16.mxu0 %v5755
    %10047 = vmatpush1.bf16.msra.mxu0 %v5754
    %10048 = vmatprep.subr.bf16.mxu0 %v5727
    %10049 = vmatpush1.bf16.msra.mxu0 %v5726
    %10050 = vmatprep.subr.bf16.mxu0 %v5699
    %10051 = vmatpush1.bf16.msra.mxu0 %v5698
    %10052 = vmatprep.subr.bf16.mxu0 %v5671
    %10053 = vmatpush1.bf16.msra.mxu0 %v5670
    %10054 = vmatprep.subr.bf16.mxu0 %v6091
    %10055 = vmatpush2.bf16.msra.mxu0 %v6090
    %10056 = vmatprep.subr.bf16.mxu0 %v6063
    %10057 = vmatpush2.bf16.msra.mxu0 %v6062
    %10058 = vmatprep.subr.bf16.mxu0 %v6035
    %10059 = vmatpush2.bf16.msra.mxu0 %v6034
    %10060 = vmatprep.subr.bf16.mxu0 %v6007
    %10061 = vmatpush2.bf16.msra.mxu0 %v6006
    %10062 = vmatprep.subr.bf16.mxu0 %v5979
    %10063 = vmatpush2.bf16.msra.mxu0 %v5978
    %10064 = vmatprep.subr.bf16.mxu0 %v5951
    %10065 = vmatpush2.bf16.msra.mxu0 %v5950
    %10066 = vmatprep.subr.bf16.mxu0 %v5923
    %10067 = vmatpush2.bf16.msra.mxu0 %v5922
    %10068 = vmatprep.subr.bf16.mxu0 %v5895
    %10069 = vmatpush2.bf16.msra.mxu0 %v5894
    %10070 = vmatprep.mubr.bf16.mxu0 %v1522
    %10071 = vmatmul.mubr.bf16.gmra.mxu0 %v1521
    %v10072 = vpop.f32.mrf.mxu0
    %v10073 = vadd.f32 0.0, %v10072
    %v10074 = vpop.f32.mrf.mxu0
    %v10075 = vadd.f32 0.0, %v10074
    %v10076 = vpop.f32.mrf.mxu0
    %v10077 = vpop.f32.mrf.mxu0
    %10078 = vdwg.mxu0
    %10079 = vmatprep.subr.bf16.mxu0 %v6315
    %10080 = vmatpush1.bf16.msra.mxu0 %v6314
    %10081 = vmatprep.subr.bf16.mxu0 %v6287
    %10082 = vmatpush1.bf16.msra.mxu0 %v6286
    %10083 = vmatprep.subr.bf16.mxu0 %v6259
    %10084 = vmatpush1.bf16.msra.mxu0 %v6258
    %10085 = vmatprep.subr.bf16.mxu0 %v6231
    %10086 = vmatpush1.bf16.msra.mxu0 %v6230
    %10087 = vmatprep.subr.bf16.mxu0 %v6203
    %10088 = vmatpush1.bf16.msra.mxu0 %v6202
    %10089 = vmatprep.subr.bf16.mxu0 %v6175
    %10090 = vmatpush1.bf16.msra.mxu0 %v6174
    %10091 = vmatprep.subr.bf16.mxu0 %v6147
    %10092 = vmatpush1.bf16.msra.mxu0 %v6146
    %10093 = vmatprep.subr.bf16.mxu0 %v6119
    %10094 = vmatpush1.bf16.msra.mxu0 %v6118
    %10095 = vmatprep.subr.bf16.mxu0 %v6539
    %10096 = vmatpush2.bf16.msra.mxu0 %v6538
    %10097 = vmatprep.subr.bf16.mxu0 %v6511
    %10098 = vmatpush2.bf16.msra.mxu0 %v6510
    %10099 = vmatprep.subr.bf16.mxu0 %v6483
    %10100 = vmatpush2.bf16.msra.mxu0 %v6482
    %10101 = vmatprep.subr.bf16.mxu0 %v6455
    %10102 = vmatpush2.bf16.msra.mxu0 %v6454
    %10103 = vmatprep.subr.bf16.mxu0 %v6427
    %10104 = vmatpush2.bf16.msra.mxu0 %v6426
    %10105 = vmatprep.subr.bf16.mxu0 %v6399
    %10106 = vmatpush2.bf16.msra.mxu0 %v6398
    %10107 = vmatprep.subr.bf16.mxu0 %v6371
    %10108 = vmatpush2.bf16.msra.mxu0 %v6370
    %10109 = vmatprep.subr.bf16.mxu0 %v6343
    %10110 = vmatpush2.bf16.msra.mxu0 %v6342
    %10111 = vmatprep.mubr.bf16.mxu0 %v1524
    %10112 = vmatmul.mubr.bf16.gmra.mxu0 %v1523
    %v10113 = vpop.f32.mrf.mxu0
    %v10114 = vadd.f32 %v10073, %v10113
    %v10115 = vpop.f32.mrf.mxu0
    %v10116 = vadd.f32 %v10075, %v10115
    %v10117 = vpop.f32.mrf.mxu0
    %v10118 = vpop.f32.mrf.mxu0
    %10119 = vdwg.mxu0
    %10120 = vmatprep.subr.bf16.mxu0 %v6763
    %10121 = vmatpush1.bf16.msra.mxu0 %v6762
    %10122 = vmatprep.subr.bf16.mxu0 %v6735
    %10123 = vmatpush1.bf16.msra.mxu0 %v6734
    %10124 = vmatprep.subr.bf16.mxu0 %v6707
    %10125 = vmatpush1.bf16.msra.mxu0 %v6706
    %10126 = vmatprep.subr.bf16.mxu0 %v6679
    %10127 = vmatpush1.bf16.msra.mxu0 %v6678
    %10128 = vmatprep.subr.bf16.mxu0 %v6651
    %10129 = vmatpush1.bf16.msra.mxu0 %v6650
    %10130 = vmatprep.subr.bf16.mxu0 %v6623
    %10131 = vmatpush1.bf16.msra.mxu0 %v6622
    %10132 = vmatprep.subr.bf16.mxu0 %v6595
    %10133 = vmatpush1.bf16.msra.mxu0 %v6594
    %10134 = vmatprep.subr.bf16.mxu0 %v6567
    %10135 = vmatpush1.bf16.msra.mxu0 %v6566
    %10136 = vmatprep.subr.bf16.mxu0 %v6987
    %10137 = vmatpush2.bf16.msra.mxu0 %v6986
    %10138 = vmatprep.subr.bf16.mxu0 %v6959
    %10139 = vmatpush2.bf16.msra.mxu0 %v6958
    %10140 = vmatprep.subr.bf16.mxu0 %v6931
    %10141 = vmatpush2.bf16.msra.mxu0 %v6930
    %10142 = vmatprep.subr.bf16.mxu0 %v6903
    %10143 = vmatpush2.bf16.msra.mxu0 %v6902
    %10144 = vmatprep.subr.bf16.mxu0 %v6875
    %10145 = vmatpush2.bf16.msra.mxu0 %v6874
    %10146 = vmatprep.subr.bf16.mxu0 %v6847
    %10147 = vmatpush2.bf16.msra.mxu0 %v6846
    %10148 = vmatprep.subr.bf16.mxu0 %v6819
    %10149 = vmatpush2.bf16.msra.mxu0 %v6818
    %10150 = vmatprep.subr.bf16.mxu0 %v6791
    %10151 = vmatpush2.bf16.msra.mxu0 %v6790
    %10152 = vmatprep.mubr.bf16.mxu0 %v1526
    %10153 = vmatmul.mubr.bf16.gmra.mxu0 %v1525
    %v10154 = vpop.f32.mrf.mxu0
    %v10155 = vadd.f32 %v10114, %v10154
    %v10156 = vpop.f32.mrf.mxu0
    %v10157 = vadd.f32 %v10116, %v10156
    %v10158 = vpop.f32.mrf.mxu0
    %v10159 = vpop.f32.mrf.mxu0
    %10160 = vdwg.mxu0
    %10161 = vmatprep.subr.bf16.mxu0 0
    %10162 = vmatpush1.bf16.msra.mxu0 0
    %10163 = vmatprep.subr.bf16.mxu0 0
    %10164 = vmatpush1.bf16.msra.mxu0 0
    %10165 = vmatprep.subr.bf16.mxu0 0
    %10166 = vmatpush1.bf16.msra.mxu0 0
    %10167 = vmatprep.subr.bf16.mxu0 0
    %10168 = vmatpush1.bf16.msra.mxu0 0
    %10169 = vmatprep.subr.bf16.mxu0 0
    %10170 = vmatpush1.bf16.msra.mxu0 0
    %10171 = vmatprep.subr.bf16.mxu0 0
    %10172 = vmatpush1.bf16.msra.mxu0 0
    %10173 = vmatprep.subr.bf16.mxu0 0
    %10174 = vmatpush1.bf16.msra.mxu0 0
    %10175 = vmatprep.subr.bf16.mxu0 %v7015
    %10176 = vmatpush1.bf16.msra.mxu0 %v7014
    %10177 = vmatprep.subr.bf16.mxu0 0
    %10178 = vmatpush2.bf16.msra.mxu0 0
    %10179 = vmatprep.subr.bf16.mxu0 0
    %10180 = vmatpush2.bf16.msra.mxu0 0
    %10181 = vmatprep.subr.bf16.mxu0 0
    %10182 = vmatpush2.bf16.msra.mxu0 0
    %10183 = vmatprep.subr.bf16.mxu0 0
    %10184 = vmatpush2.bf16.msra.mxu0 0
    %10185 = vmatprep.subr.bf16.mxu0 0
    %10186 = vmatpush2.bf16.msra.mxu0 0
    %10187 = vmatprep.subr.bf16.mxu0 0
    %10188 = vmatpush2.bf16.msra.mxu0 0
    %10189 = vmatprep.subr.bf16.mxu0 0
    %10190 = vmatpush2.bf16.msra.mxu0 0
    %10191 = vmatprep.subr.bf16.mxu0 0
    %10192 = vmatpush2.bf16.msra.mxu0 0
    %10193 = vmatprep.mubr.bf16.mxu0 0
    %10194 = vmatmul.mubr.bf16.gmra.mxu0 %v8396
    %v10195 = vpop.f32.mrf.mxu0
    %v10196 = vadd.f32 %v10155, %v10195
    %v10197 = vpop.f32.mrf.mxu0
    %v10198 = vadd.f32 %v10157, %v10197
    %v10199 = vpop.f32.mrf.mxu0
    %v10200 = vpop.f32.mrf.mxu0
    %10201 = vdwg.mxu0
    %10202 = vmatprep.subr.bf16.mxu0 %v5869
    %10203 = vmatpush1.bf16.msra.mxu0 %v5868
    %10204 = vmatprep.subr.bf16.mxu0 %v5841
    %10205 = vmatpush1.bf16.msra.mxu0 %v5840
    %10206 = vmatprep.subr.bf16.mxu0 %v5813
    %10207 = vmatpush1.bf16.msra.mxu0 %v5812
    %10208 = vmatprep.subr.bf16.mxu0 %v5785
    %10209 = vmatpush1.bf16.msra.mxu0 %v5784
    %10210 = vmatprep.subr.bf16.mxu0 %v5757
    %10211 = vmatpush1.bf16.msra.mxu0 %v5756
    %10212 = vmatprep.subr.bf16.mxu0 %v5729
    %10213 = vmatpush1.bf16.msra.mxu0 %v5728
    %10214 = vmatprep.subr.bf16.mxu0 %v5701
    %10215 = vmatpush1.bf16.msra.mxu0 %v5700
    %10216 = vmatprep.subr.bf16.mxu0 %v5673
    %10217 = vmatpush1.bf16.msra.mxu0 %v5672
    %10218 = vmatprep.subr.bf16.mxu0 %v6093
    %10219 = vmatpush2.bf16.msra.mxu0 %v6092
    %10220 = vmatprep.subr.bf16.mxu0 %v6065
    %10221 = vmatpush2.bf16.msra.mxu0 %v6064
    %10222 = vmatprep.subr.bf16.mxu0 %v6037
    %10223 = vmatpush2.bf16.msra.mxu0 %v6036
    %10224 = vmatprep.subr.bf16.mxu0 %v6009
    %10225 = vmatpush2.bf16.msra.mxu0 %v6008
    %10226 = vmatprep.subr.bf16.mxu0 %v5981
    %10227 = vmatpush2.bf16.msra.mxu0 %v5980
    %10228 = vmatprep.subr.bf16.mxu0 %v5953
    %10229 = vmatpush2.bf16.msra.mxu0 %v5952
    %10230 = vmatprep.subr.bf16.mxu0 %v5925
    %10231 = vmatpush2.bf16.msra.mxu0 %v5924
    %10232 = vmatprep.subr.bf16.mxu0 %v5897
    %10233 = vmatpush2.bf16.msra.mxu0 %v5896
    %10234 = vmatprep.mubr.bf16.mxu0 %v1522
    %10235 = vmatmul.mubr.bf16.gmra.mxu0 %v1521
    %v10236 = vpop.f32.mrf.mxu0
    %v10237 = vadd.f32 0.0, %v10236
    %v10238 = vpop.f32.mrf.mxu0
    %v10239 = vadd.f32 0.0, %v10238
    %v10240 = vpop.f32.mrf.mxu0
    %v10241 = vpop.f32.mrf.mxu0
    %10242 = vdwg.mxu0
    %10243 = vmatprep.subr.bf16.mxu0 %v6317
    %10244 = vmatpush1.bf16.msra.mxu0 %v6316
    %10245 = vmatprep.subr.bf16.mxu0 %v6289
    %10246 = vmatpush1.bf16.msra.mxu0 %v6288
    %10247 = vmatprep.subr.bf16.mxu0 %v6261
    %10248 = vmatpush1.bf16.msra.mxu0 %v6260
    %10249 = vmatprep.subr.bf16.mxu0 %v6233
    %10250 = vmatpush1.bf16.msra.mxu0 %v6232
    %10251 = vmatprep.subr.bf16.mxu0 %v6205
    %10252 = vmatpush1.bf16.msra.mxu0 %v6204
    %10253 = vmatprep.subr.bf16.mxu0 %v6177
    %10254 = vmatpush1.bf16.msra.mxu0 %v6176
    %10255 = vmatprep.subr.bf16.mxu0 %v6149
    %10256 = vmatpush1.bf16.msra.mxu0 %v6148
    %10257 = vmatprep.subr.bf16.mxu0 %v6121
    %10258 = vmatpush1.bf16.msra.mxu0 %v6120
    %10259 = vmatprep.subr.bf16.mxu0 %v6541
    %10260 = vmatpush2.bf16.msra.mxu0 %v6540
    %10261 = vmatprep.subr.bf16.mxu0 %v6513
    %10262 = vmatpush2.bf16.msra.mxu0 %v6512
    %10263 = vmatprep.subr.bf16.mxu0 %v6485
    %10264 = vmatpush2.bf16.msra.mxu0 %v6484
    %10265 = vmatprep.subr.bf16.mxu0 %v6457
    %10266 = vmatpush2.bf16.msra.mxu0 %v6456
    %10267 = vmatprep.subr.bf16.mxu0 %v6429
    %10268 = vmatpush2.bf16.msra.mxu0 %v6428
    %10269 = vmatprep.subr.bf16.mxu0 %v6401
    %10270 = vmatpush2.bf16.msra.mxu0 %v6400
    %10271 = vmatprep.subr.bf16.mxu0 %v6373
    %10272 = vmatpush2.bf16.msra.mxu0 %v6372
    %10273 = vmatprep.subr.bf16.mxu0 %v6345
    %10274 = vmatpush2.bf16.msra.mxu0 %v6344
    %10275 = vmatprep.mubr.bf16.mxu0 %v1524
    %10276 = vmatmul.mubr.bf16.gmra.mxu0 %v1523
    %v10277 = vpop.f32.mrf.mxu0
    %v10278 = vadd.f32 %v10237, %v10277
    %v10279 = vpop.f32.mrf.mxu0
    %v10280 = vadd.f32 %v10239, %v10279
    %v10281 = vpop.f32.mrf.mxu0
    %v10282 = vpop.f32.mrf.mxu0
    %10283 = vdwg.mxu0
    %10284 = vmatprep.subr.bf16.mxu0 %v6765
    %10285 = vmatpush1.bf16.msra.mxu0 %v6764
    %10286 = vmatprep.subr.bf16.mxu0 %v6737
    %10287 = vmatpush1.bf16.msra.mxu0 %v6736
    %10288 = vmatprep.subr.bf16.mxu0 %v6709
    %10289 = vmatpush1.bf16.msra.mxu0 %v6708
    %10290 = vmatprep.subr.bf16.mxu0 %v6681
    %10291 = vmatpush1.bf16.msra.mxu0 %v6680
    %10292 = vmatprep.subr.bf16.mxu0 %v6653
    %10293 = vmatpush1.bf16.msra.mxu0 %v6652
    %10294 = vmatprep.subr.bf16.mxu0 %v6625
    %10295 = vmatpush1.bf16.msra.mxu0 %v6624
    %10296 = vmatprep.subr.bf16.mxu0 %v6597
    %10297 = vmatpush1.bf16.msra.mxu0 %v6596
    %10298 = vmatprep.subr.bf16.mxu0 %v6569
    %10299 = vmatpush1.bf16.msra.mxu0 %v6568
    %10300 = vmatprep.subr.bf16.mxu0 %v6989
    %10301 = vmatpush2.bf16.msra.mxu0 %v6988
    %10302 = vmatprep.subr.bf16.mxu0 %v6961
    %10303 = vmatpush2.bf16.msra.mxu0 %v6960
    %10304 = vmatprep.subr.bf16.mxu0 %v6933
    %10305 = vmatpush2.bf16.msra.mxu0 %v6932
    %10306 = vmatprep.subr.bf16.mxu0 %v6905
    %10307 = vmatpush2.bf16.msra.mxu0 %v6904
    %10308 = vmatprep.subr.bf16.mxu0 %v6877
    %10309 = vmatpush2.bf16.msra.mxu0 %v6876
    %10310 = vmatprep.subr.bf16.mxu0 %v6849
    %10311 = vmatpush2.bf16.msra.mxu0 %v6848
    %10312 = vmatprep.subr.bf16.mxu0 %v6821
    %10313 = vmatpush2.bf16.msra.mxu0 %v6820
    %10314 = vmatprep.subr.bf16.mxu0 %v6793
    %10315 = vmatpush2.bf16.msra.mxu0 %v6792
    %10316 = vmatprep.mubr.bf16.mxu0 %v1526
    %10317 = vmatmul.mubr.bf16.gmra.mxu0 %v1525
    %v10318 = vpop.f32.mrf.mxu0
    %v10319 = vadd.f32 %v10278, %v10318
    %v10320 = vpop.f32.mrf.mxu0
    %v10321 = vadd.f32 %v10280, %v10320
    %v10322 = vpop.f32.mrf.mxu0
    %v10323 = vpop.f32.mrf.mxu0
    %10324 = vdwg.mxu0
    %10325 = vmatprep.subr.bf16.mxu0 0
    %10326 = vmatpush1.bf16.msra.mxu0 0
    %10327 = vmatprep.subr.bf16.mxu0 0
    %10328 = vmatpush1.bf16.msra.mxu0 0
    %10329 = vmatprep.subr.bf16.mxu0 0
    %10330 = vmatpush1.bf16.msra.mxu0 0
    %10331 = vmatprep.subr.bf16.mxu0 0
    %10332 = vmatpush1.bf16.msra.mxu0 0
    %10333 = vmatprep.subr.bf16.mxu0 0
    %10334 = vmatpush1.bf16.msra.mxu0 0
    %10335 = vmatprep.subr.bf16.mxu0 0
    %10336 = vmatpush1.bf16.msra.mxu0 0
    %10337 = vmatprep.subr.bf16.mxu0 0
    %10338 = vmatpush1.bf16.msra.mxu0 0
    %10339 = vmatprep.subr.bf16.mxu0 %v7017
    %10340 = vmatpush1.bf16.msra.mxu0 %v7016
    %10341 = vmatprep.subr.bf16.mxu0 0
    %10342 = vmatpush2.bf16.msra.mxu0 0
    %10343 = vmatprep.subr.bf16.mxu0 0
    %10344 = vmatpush2.bf16.msra.mxu0 0
    %10345 = vmatprep.subr.bf16.mxu0 0
    %10346 = vmatpush2.bf16.msra.mxu0 0
    %10347 = vmatprep.subr.bf16.mxu0 0
    %10348 = vmatpush2.bf16.msra.mxu0 0
    %10349 = vmatprep.subr.bf16.mxu0 0
    %10350 = vmatpush2.bf16.msra.mxu0 0
    %10351 = vmatprep.subr.bf16.mxu0 0
    %10352 = vmatpush2.bf16.msra.mxu0 0
    %10353 = vmatprep.subr.bf16.mxu0 0
    %10354 = vmatpush2.bf16.msra.mxu0 0
    %10355 = vmatprep.subr.bf16.mxu0 0
    %10356 = vmatpush2.bf16.msra.mxu0 0
    %10357 = vmatprep.mubr.bf16.mxu0 0
    %10358 = vmatmul.mubr.bf16.gmra.mxu0 %v8396
    %v10359 = vpop.f32.mrf.mxu0
    %v10360 = vadd.f32 %v10319, %v10359
    %v10361 = vpop.f32.mrf.mxu0
    %v10362 = vadd.f32 %v10321, %v10361
    %v10363 = vpop.f32.mrf.mxu0
    %v10364 = vpop.f32.mrf.mxu0
    %10365 = vdwg.mxu0
    %10366 = vmatprep.subr.bf16.mxu0 %v5871
    %10367 = vmatpush1.bf16.msra.mxu0 %v5870
    %10368 = vmatprep.subr.bf16.mxu0 %v5843
    %10369 = vmatpush1.bf16.msra.mxu0 %v5842
    %10370 = vmatprep.subr.bf16.mxu0 %v5815
    %10371 = vmatpush1.bf16.msra.mxu0 %v5814
    %10372 = vmatprep.subr.bf16.mxu0 %v5787
    %10373 = vmatpush1.bf16.msra.mxu0 %v5786
    %10374 = vmatprep.subr.bf16.mxu0 %v5759
    %10375 = vmatpush1.bf16.msra.mxu0 %v5758
    %10376 = vmatprep.subr.bf16.mxu0 %v5731
    %10377 = vmatpush1.bf16.msra.mxu0 %v5730
    %10378 = vmatprep.subr.bf16.mxu0 %v5703
    %10379 = vmatpush1.bf16.msra.mxu0 %v5702
    %10380 = vmatprep.subr.bf16.mxu0 %v5675
    %10381 = vmatpush1.bf16.msra.mxu0 %v5674
    %10382 = vmatprep.subr.bf16.mxu0 %v6095
    %10383 = vmatpush2.bf16.msra.mxu0 %v6094
    %10384 = vmatprep.subr.bf16.mxu0 %v6067
    %10385 = vmatpush2.bf16.msra.mxu0 %v6066
    %10386 = vmatprep.subr.bf16.mxu0 %v6039
    %10387 = vmatpush2.bf16.msra.mxu0 %v6038
    %10388 = vmatprep.subr.bf16.mxu0 %v6011
    %10389 = vmatpush2.bf16.msra.mxu0 %v6010
    %10390 = vmatprep.subr.bf16.mxu0 %v5983
    %10391 = vmatpush2.bf16.msra.mxu0 %v5982
    %10392 = vmatprep.subr.bf16.mxu0 %v5955
    %10393 = vmatpush2.bf16.msra.mxu0 %v5954
    %10394 = vmatprep.subr.bf16.mxu0 %v5927
    %10395 = vmatpush2.bf16.msra.mxu0 %v5926
    %10396 = vmatprep.subr.bf16.mxu0 %v5899
    %10397 = vmatpush2.bf16.msra.mxu0 %v5898
    %10398 = vmatprep.mubr.bf16.mxu0 %v1522
    %10399 = vmatmul.mubr.bf16.gmra.mxu0 %v1521
    %v10400 = vpop.f32.mrf.mxu0
    %v10401 = vadd.f32 0.0, %v10400
    %v10402 = vpop.f32.mrf.mxu0
    %v10403 = vadd.f32 0.0, %v10402
    %v10404 = vpop.f32.mrf.mxu0
    %v10405 = vpop.f32.mrf.mxu0
    %10406 = vdwg.mxu0
    %10407 = vmatprep.subr.bf16.mxu0 %v6319
    %10408 = vmatpush1.bf16.msra.mxu0 %v6318
    %10409 = vmatprep.subr.bf16.mxu0 %v6291
    %10410 = vmatpush1.bf16.msra.mxu0 %v6290
    %10411 = vmatprep.subr.bf16.mxu0 %v6263
    %10412 = vmatpush1.bf16.msra.mxu0 %v6262
    %10413 = vmatprep.subr.bf16.mxu0 %v6235
    %10414 = vmatpush1.bf16.msra.mxu0 %v6234
    %10415 = vmatprep.subr.bf16.mxu0 %v6207
    %10416 = vmatpush1.bf16.msra.mxu0 %v6206
    %10417 = vmatprep.subr.bf16.mxu0 %v6179
    %10418 = vmatpush1.bf16.msra.mxu0 %v6178
    %10419 = vmatprep.subr.bf16.mxu0 %v6151
    %10420 = vmatpush1.bf16.msra.mxu0 %v6150
    %10421 = vmatprep.subr.bf16.mxu0 %v6123
    %10422 = vmatpush1.bf16.msra.mxu0 %v6122
    %10423 = vmatprep.subr.bf16.mxu0 %v6543
    %10424 = vmatpush2.bf16.msra.mxu0 %v6542
    %10425 = vmatprep.subr.bf16.mxu0 %v6515
    %10426 = vmatpush2.bf16.msra.mxu0 %v6514
    %10427 = vmatprep.subr.bf16.mxu0 %v6487
    %10428 = vmatpush2.bf16.msra.mxu0 %v6486
    %10429 = vmatprep.subr.bf16.mxu0 %v6459
    %10430 = vmatpush2.bf16.msra.mxu0 %v6458
    %10431 = vmatprep.subr.bf16.mxu0 %v6431
    %10432 = vmatpush2.bf16.msra.mxu0 %v6430
    %10433 = vmatprep.subr.bf16.mxu0 %v6403
    %10434 = vmatpush2.bf16.msra.mxu0 %v6402
    %10435 = vmatprep.subr.bf16.mxu0 %v6375
    %10436 = vmatpush2.bf16.msra.mxu0 %v6374
    %10437 = vmatprep.subr.bf16.mxu0 %v6347
    %10438 = vmatpush2.bf16.msra.mxu0 %v6346
    %10439 = vmatprep.mubr.bf16.mxu0 %v1524
    %10440 = vmatmul.mubr.bf16.gmra.mxu0 %v1523
    %v10441 = vpop.f32.mrf.mxu0
    %v10442 = vadd.f32 %v10401, %v10441
    %v10443 = vpop.f32.mrf.mxu0
    %v10444 = vadd.f32 %v10403, %v10443
    %v10445 = vpop.f32.mrf.mxu0
    %v10446 = vpop.f32.mrf.mxu0
    %10447 = vdwg.mxu0
    %10448 = vmatprep.subr.bf16.mxu0 %v6767
    %10449 = vmatpush1.bf16.msra.mxu0 %v6766
    %10450 = vmatprep.subr.bf16.mxu0 %v6739
    %10451 = vmatpush1.bf16.msra.mxu0 %v6738
    %10452 = vmatprep.subr.bf16.mxu0 %v6711
    %10453 = vmatpush1.bf16.msra.mxu0 %v6710
    %10454 = vmatprep.subr.bf16.mxu0 %v6683
    %10455 = vmatpush1.bf16.msra.mxu0 %v6682
    %10456 = vmatprep.subr.bf16.mxu0 %v6655
    %10457 = vmatpush1.bf16.msra.mxu0 %v6654
    %10458 = vmatprep.subr.bf16.mxu0 %v6627
    %10459 = vmatpush1.bf16.msra.mxu0 %v6626
    %10460 = vmatprep.subr.bf16.mxu0 %v6599
    %10461 = vmatpush1.bf16.msra.mxu0 %v6598
    %10462 = vmatprep.subr.bf16.mxu0 %v6571
    %10463 = vmatpush1.bf16.msra.mxu0 %v6570
    %10464 = vmatprep.subr.bf16.mxu0 %v6991
    %10465 = vmatpush2.bf16.msra.mxu0 %v6990
    %10466 = vmatprep.subr.bf16.mxu0 %v6963
    %10467 = vmatpush2.bf16.msra.mxu0 %v6962
    %10468 = vmatprep.subr.bf16.mxu0 %v6935
    %10469 = vmatpush2.bf16.msra.mxu0 %v6934
    %10470 = vmatprep.subr.bf16.mxu0 %v6907
    %10471 = vmatpush2.bf16.msra.mxu0 %v6906
    %10472 = vmatprep.subr.bf16.mxu0 %v6879
    %10473 = vmatpush2.bf16.msra.mxu0 %v6878
    %10474 = vmatprep.subr.bf16.mxu0 %v6851
    %10475 = vmatpush2.bf16.msra.mxu0 %v6850
    %10476 = vmatprep.subr.bf16.mxu0 %v6823
    %10477 = vmatpush2.bf16.msra.mxu0 %v6822
    %10478 = vmatprep.subr.bf16.mxu0 %v6795
    %10479 = vmatpush2.bf16.msra.mxu0 %v6794
    %10480 = vmatprep.mubr.bf16.mxu0 %v1526
    %10481 = vmatmul.mubr.bf16.gmra.mxu0 %v1525
    %v10482 = vpop.f32.mrf.mxu0
    %v10483 = vadd.f32 %v10442, %v10482
    %v10484 = vpop.f32.mrf.mxu0
    %v10485 = vadd.f32 %v10444, %v10484
    %v10486 = vpop.f32.mrf.mxu0
    %v10487 = vpop.f32.mrf.mxu0
    %10488 = vdwg.mxu0
    %10489 = vmatprep.subr.bf16.mxu0 0
    %10490 = vmatpush1.bf16.msra.mxu0 0
    %10491 = vmatprep.subr.bf16.mxu0 0
    %10492 = vmatpush1.bf16.msra.mxu0 0
    %10493 = vmatprep.subr.bf16.mxu0 0
    %10494 = vmatpush1.bf16.msra.mxu0 0
    %10495 = vmatprep.subr.bf16.mxu0 0
    %10496 = vmatpush1.bf16.msra.mxu0 0
    %10497 = vmatprep.subr.bf16.mxu0 0
    %10498 = vmatpush1.bf16.msra.mxu0 0
    %10499 = vmatprep.subr.bf16.mxu0 0
    %10500 = vmatpush1.bf16.msra.mxu0 0
    %10501 = vmatprep.subr.bf16.mxu0 0
    %10502 = vmatpush1.bf16.msra.mxu0 0
    %10503 = vmatprep.subr.bf16.mxu0 %v7019
    %10504 = vmatpush1.bf16.msra.mxu0 %v7018
    %10505 = vmatprep.subr.bf16.mxu0 0
    %10506 = vmatpush2.bf16.msra.mxu0 0
    %10507 = vmatprep.subr.bf16.mxu0 0
    %10508 = vmatpush2.bf16.msra.mxu0 0
    %10509 = vmatprep.subr.bf16.mxu0 0
    %10510 = vmatpush2.bf16.msra.mxu0 0
    %10511 = vmatprep.subr.bf16.mxu0 0
    %10512 = vmatpush2.bf16.msra.mxu0 0
    %10513 = vmatprep.subr.bf16.mxu0 0
    %10514 = vmatpush2.bf16.msra.mxu0 0
    %10515 = vmatprep.subr.bf16.mxu0 0
    %10516 = vmatpush2.bf16.msra.mxu0 0
    %10517 = vmatprep.subr.bf16.mxu0 0
    %10518 = vmatpush2.bf16.msra.mxu0 0
    %10519 = vmatprep.subr.bf16.mxu0 0
    %10520 = vmatpush2.bf16.msra.mxu0 0
    %10521 = vmatprep.mubr.bf16.mxu0 0
    %10522 = vmatmul.mubr.bf16.gmra.mxu0 %v8396
    %v10523 = vpop.f32.mrf.mxu0
    %v10524 = vadd.f32 %v10483, %v10523
    %v10525 = vpop.f32.mrf.mxu0
    %v10526 = vadd.f32 %v10485, %v10525
    %v10527 = vpop.f32.mrf.mxu0
    %v10528 = vpop.f32.mrf.mxu0
    %10529 = vdwg.mxu0
    %10530 = vmatprep.subr.bf16.mxu0 %v5873
    %10531 = vmatpush1.bf16.msra.mxu0 %v5872
    %10532 = vmatprep.subr.bf16.mxu0 %v5845
    %10533 = vmatpush1.bf16.msra.mxu0 %v5844
    %10534 = vmatprep.subr.bf16.mxu0 %v5817
    %10535 = vmatpush1.bf16.msra.mxu0 %v5816
    %10536 = vmatprep.subr.bf16.mxu0 %v5789
    %10537 = vmatpush1.bf16.msra.mxu0 %v5788
    %10538 = vmatprep.subr.bf16.mxu0 %v5761
    %10539 = vmatpush1.bf16.msra.mxu0 %v5760
    %10540 = vmatprep.subr.bf16.mxu0 %v5733
    %10541 = vmatpush1.bf16.msra.mxu0 %v5732
    %10542 = vmatprep.subr.bf16.mxu0 %v5705
    %10543 = vmatpush1.bf16.msra.mxu0 %v5704
    %10544 = vmatprep.subr.bf16.mxu0 %v5677
    %10545 = vmatpush1.bf16.msra.mxu0 %v5676
    %10546 = vmatprep.subr.bf16.mxu0 %v6097
    %10547 = vmatpush2.bf16.msra.mxu0 %v6096
    %10548 = vmatprep.subr.bf16.mxu0 %v6069
    %10549 = vmatpush2.bf16.msra.mxu0 %v6068
    %10550 = vmatprep.subr.bf16.mxu0 %v6041
    %10551 = vmatpush2.bf16.msra.mxu0 %v6040
    %10552 = vmatprep.subr.bf16.mxu0 %v6013
    %10553 = vmatpush2.bf16.msra.mxu0 %v6012
    %10554 = vmatprep.subr.bf16.mxu0 %v5985
    %10555 = vmatpush2.bf16.msra.mxu0 %v5984
    %10556 = vmatprep.subr.bf16.mxu0 %v5957
    %10557 = vmatpush2.bf16.msra.mxu0 %v5956
    %10558 = vmatprep.subr.bf16.mxu0 %v5929
    %10559 = vmatpush2.bf16.msra.mxu0 %v5928
    %10560 = vmatprep.subr.bf16.mxu0 %v5901
    %10561 = vmatpush2.bf16.msra.mxu0 %v5900
    %10562 = vmatprep.mubr.bf16.mxu0 %v1522
    %10563 = vmatmul.mubr.bf16.gmra.mxu0 %v1521
    %v10564 = vpop.f32.mrf.mxu0
    %v10565 = vadd.f32 0.0, %v10564
    %v10566 = vpop.f32.mrf.mxu0
    %v10567 = vadd.f32 0.0, %v10566
    %v10568 = vpop.f32.mrf.mxu0
    %v10569 = vpop.f32.mrf.mxu0
    %10570 = vdwg.mxu0
    %10571 = vmatprep.subr.bf16.mxu0 %v6321
    %10572 = vmatpush1.bf16.msra.mxu0 %v6320
    %10573 = vmatprep.subr.bf16.mxu0 %v6293
    %10574 = vmatpush1.bf16.msra.mxu0 %v6292
    %10575 = vmatprep.subr.bf16.mxu0 %v6265
    %10576 = vmatpush1.bf16.msra.mxu0 %v6264
    %10577 = vmatprep.subr.bf16.mxu0 %v6237
    %10578 = vmatpush1.bf16.msra.mxu0 %v6236
    %10579 = vmatprep.subr.bf16.mxu0 %v6209
    %10580 = vmatpush1.bf16.msra.mxu0 %v6208
    %10581 = vmatprep.subr.bf16.mxu0 %v6181
    %10582 = vmatpush1.bf16.msra.mxu0 %v6180
    %10583 = vmatprep.subr.bf16.mxu0 %v6153
    %10584 = vmatpush1.bf16.msra.mxu0 %v6152
    %10585 = vmatprep.subr.bf16.mxu0 %v6125
    %10586 = vmatpush1.bf16.msra.mxu0 %v6124
    %10587 = vmatprep.subr.bf16.mxu0 %v6545
    %10588 = vmatpush2.bf16.msra.mxu0 %v6544
    %10589 = vmatprep.subr.bf16.mxu0 %v6517
    %10590 = vmatpush2.bf16.msra.mxu0 %v6516
    %10591 = vmatprep.subr.bf16.mxu0 %v6489
    %10592 = vmatpush2.bf16.msra.mxu0 %v6488
    %10593 = vmatprep.subr.bf16.mxu0 %v6461
    %10594 = vmatpush2.bf16.msra.mxu0 %v6460
    %10595 = vmatprep.subr.bf16.mxu0 %v6433
    %10596 = vmatpush2.bf16.msra.mxu0 %v6432
    %10597 = vmatprep.subr.bf16.mxu0 %v6405
    %10598 = vmatpush2.bf16.msra.mxu0 %v6404
    %10599 = vmatprep.subr.bf16.mxu0 %v6377
    %10600 = vmatpush2.bf16.msra.mxu0 %v6376
    %10601 = vmatprep.subr.bf16.mxu0 %v6349
    %10602 = vmatpush2.bf16.msra.mxu0 %v6348
    %10603 = vmatprep.mubr.bf16.mxu0 %v1524
    %10604 = vmatmul.mubr.bf16.gmra.mxu0 %v1523
    %v10605 = vpop.f32.mrf.mxu0
    %v10606 = vadd.f32 %v10565, %v10605
    %v10607 = vpop.f32.mrf.mxu0
    %v10608 = vadd.f32 %v10567, %v10607
    %v10609 = vpop.f32.mrf.mxu0
    %v10610 = vpop.f32.mrf.mxu0
    %10611 = vdwg.mxu0
    %10612 = vmatprep.subr.bf16.mxu0 %v6769
    %10613 = vmatpush1.bf16.msra.mxu0 %v6768
    %10614 = vmatprep.subr.bf16.mxu0 %v6741
    %10615 = vmatpush1.bf16.msra.mxu0 %v6740
    %10616 = vmatprep.subr.bf16.mxu0 %v6713
    %10617 = vmatpush1.bf16.msra.mxu0 %v6712
    %10618 = vmatprep.subr.bf16.mxu0 %v6685
    %10619 = vmatpush1.bf16.msra.mxu0 %v6684
    %10620 = vmatprep.subr.bf16.mxu0 %v6657
    %10621 = vmatpush1.bf16.msra.mxu0 %v6656
    %10622 = vmatprep.subr.bf16.mxu0 %v6629
    %10623 = vmatpush1.bf16.msra.mxu0 %v6628
    %10624 = vmatprep.subr.bf16.mxu0 %v6601
    %10625 = vmatpush1.bf16.msra.mxu0 %v6600
    %10626 = vmatprep.subr.bf16.mxu0 %v6573
    %10627 = vmatpush1.bf16.msra.mxu0 %v6572
    %10628 = vmatprep.subr.bf16.mxu0 %v6993
    %10629 = vmatpush2.bf16.msra.mxu0 %v6992
    %10630 = vmatprep.subr.bf16.mxu0 %v6965
    %10631 = vmatpush2.bf16.msra.mxu0 %v6964
    %10632 = vmatprep.subr.bf16.mxu0 %v6937
    %10633 = vmatpush2.bf16.msra.mxu0 %v6936
    %10634 = vmatprep.subr.bf16.mxu0 %v6909
    %10635 = vmatpush2.bf16.msra.mxu0 %v6908
    %10636 = vmatprep.subr.bf16.mxu0 %v6881
    %10637 = vmatpush2.bf16.msra.mxu0 %v6880
    %10638 = vmatprep.subr.bf16.mxu0 %v6853
    %10639 = vmatpush2.bf16.msra.mxu0 %v6852
    %10640 = vmatprep.subr.bf16.mxu0 %v6825
    %10641 = vmatpush2.bf16.msra.mxu0 %v6824
    %10642 = vmatprep.subr.bf16.mxu0 %v6797
    %10643 = vmatpush2.bf16.msra.mxu0 %v6796
    %10644 = vmatprep.mubr.bf16.mxu0 %v1526
    %10645 = vmatmul.mubr.bf16.gmra.mxu0 %v1525
    %v10646 = vpop.f32.mrf.mxu0
    %v10647 = vadd.f32 %v10606, %v10646
    %v10648 = vpop.f32.mrf.mxu0
    %v10649 = vadd.f32 %v10608, %v10648
    %v10650 = vpop.f32.mrf.mxu0
    %v10651 = vpop.f32.mrf.mxu0
    %10652 = vdwg.mxu0
    %10653 = vmatprep.subr.bf16.mxu0 0
    %10654 = vmatpush1.bf16.msra.mxu0 0
    %10655 = vmatprep.subr.bf16.mxu0 0
    %10656 = vmatpush1.bf16.msra.mxu0 0
    %10657 = vmatprep.subr.bf16.mxu0 0
    %10658 = vmatpush1.bf16.msra.mxu0 0
    %10659 = vmatprep.subr.bf16.mxu0 0
    %10660 = vmatpush1.bf16.msra.mxu0 0
    %10661 = vmatprep.subr.bf16.mxu0 0
    %10662 = vmatpush1.bf16.msra.mxu0 0
    %10663 = vmatprep.subr.bf16.mxu0 0
    %10664 = vmatpush1.bf16.msra.mxu0 0
    %10665 = vmatprep.subr.bf16.mxu0 0
    %10666 = vmatpush1.bf16.msra.mxu0 0
    %10667 = vmatprep.subr.bf16.mxu0 %v7021
    %10668 = vmatpush1.bf16.msra.mxu0 %v7020
    %10669 = vmatprep.subr.bf16.mxu0 0
    %10670 = vmatpush2.bf16.msra.mxu0 0
    %10671 = vmatprep.subr.bf16.mxu0 0
    %10672 = vmatpush2.bf16.msra.mxu0 0
    %10673 = vmatprep.subr.bf16.mxu0 0
    %10674 = vmatpush2.bf16.msra.mxu0 0
    %10675 = vmatprep.subr.bf16.mxu0 0
    %10676 = vmatpush2.bf16.msra.mxu0 0
    %10677 = vmatprep.subr.bf16.mxu0 0
    %10678 = vmatpush2.bf16.msra.mxu0 0
    %10679 = vmatprep.subr.bf16.mxu0 0
    %10680 = vmatpush2.bf16.msra.mxu0 0
    %10681 = vmatprep.subr.bf16.mxu0 0
    %10682 = vmatpush2.bf16.msra.mxu0 0
    %10683 = vmatprep.subr.bf16.mxu0 0
    %10684 = vmatpush2.bf16.msra.mxu0 0
    %10685 = vmatprep.mubr.bf16.mxu0 0
    %10686 = vmatmul.mubr.bf16.gmra.mxu0 %v8396
    %v10687 = vpop.f32.mrf.mxu0
    %v10688 = vadd.f32 %v10647, %v10687
    %v10689 = vpop.f32.mrf.mxu0
    %v10690 = vadd.f32 %v10649, %v10689
    %v10691 = vpop.f32.mrf.mxu0
    %v10692 = vpop.f32.mrf.mxu0
    %10693 = vdwg.mxu0
    %v10694 = vld [vmem:[#allocation4] sm:$0xff]
    %v10696 = vlaneseq
    %v10697 = vshrl.u32 %v10696, 7
    %v10698 = vsub.s32 0, %v10697
    %v10699 = vrot.slane %v10694, %v10698
    %v10700 = vlaneseq
    %v10701 = vshrl.u32 %v10700, 7
    %v10702 = vsub.s32 1, %v10701
    %v10703 = vrot.slane %v10694, %v10702
    %v10704 = vlaneseq
    %v10705 = vshrl.u32 %v10704, 7
    %v10706 = vsub.s32 2, %v10705
    %v10707 = vrot.slane %v10694, %v10706
    %v10708 = vlaneseq
    %v10709 = vshrl.u32 %v10708, 7
    %v10710 = vsub.s32 3, %v10709
    %v10711 = vrot.slane %v10694, %v10710
    %v10712 = vlaneseq
    %v10713 = vshrl.u32 %v10712, 7
    %v10714 = vsub.s32 4, %v10713
    %v10715 = vrot.slane %v10694, %v10714
    %v10716 = vlaneseq
    %v10717 = vshrl.u32 %v10716, 7
    %v10718 = vsub.s32 5, %v10717
    %v10719 = vrot.slane %v10694, %v10718
    %v10720 = vlaneseq
    %v10721 = vshrl.u32 %v10720, 7
    %v10722 = vsub.s32 6, %v10721
    %v10723 = vrot.slane %v10694, %v10722
    %v10731 = vadd.f32 %v8556, %v10699
    %v10732 = vadd.f32 %v8558, %v10703
    %v10733 = vadd.f32 %v8720, %v10707
    %v10734 = vadd.f32 %v8722, %v10711
    %v10735 = vadd.f32 %v8884, %v10715
    %v10736 = vadd.f32 %v8886, %v10719
    %v10737 = vadd.f32 %v9048, %v10723
    %v10738 = vmax.f32 %v10731, 0.0
    %v10739 = vmax.f32 %v10732, 0.0
    %v10740 = vmax.f32 %v10733, 0.0
    %v10741 = vmax.f32 %v10734, 0.0
    %v10742 = vmax.f32 %v10735, 0.0
    %v10743 = vmax.f32 %v10736, 0.0
    %v10744 = vmax.f32 %v10737, 0.0
    %v10745 = vadd.f32 %v9050, %v10699
    %v10746 = vadd.f32 %v9212, %v10703
    %v10747 = vadd.f32 %v9214, %v10707
    %v10748 = vadd.f32 %v9376, %v10711
    %v10749 = vadd.f32 %v9378, %v10715
    %v10750 = vadd.f32 %v9540, %v10719
    %v10751 = vadd.f32 %v9542, %v10723
    %v10752 = vmax.f32 %v10745, 0.0
    %v10753 = vmax.f32 %v10746, 0.0
    %v10754 = vmax.f32 %v10747, 0.0
    %v10755 = vmax.f32 %v10748, 0.0
    %v10756 = vmax.f32 %v10749, 0.0
    %v10757 = vmax.f32 %v10750, 0.0
    %v10758 = vmax.f32 %v10751, 0.0
    %v10759 = vadd.f32 %v10738, %v10752
    %v10760 = vadd.f32 %v10739, %v10753
    %v10761 = vadd.f32 %v10740, %v10754
    %v10762 = vadd.f32 %v10741, %v10755
    %v10763 = vadd.f32 %v10742, %v10756
    %v10764 = vadd.f32 %v10743, %v10757
    %v10765 = vadd.f32 %v10744, %v10758
    %v10766 = vadd.f32 %v9704, %v10699
    %v10767 = vadd.f32 %v9706, %v10703
    %v10768 = vadd.f32 %v9868, %v10707
    %v10769 = vadd.f32 %v9870, %v10711
    %v10770 = vadd.f32 %v10032, %v10715
    %v10771 = vadd.f32 %v10034, %v10719
    %v10772 = vadd.f32 %v10196, %v10723
    %v10773 = vmax.f32 %v10766, 0.0
    %v10774 = vmax.f32 %v10767, 0.0
    %v10775 = vmax.f32 %v10768, 0.0
    %v10776 = vmax.f32 %v10769, 0.0
    %v10777 = vmax.f32 %v10770, 0.0
    %v10778 = vmax.f32 %v10771, 0.0
    %v10779 = vmax.f32 %v10772, 0.0
    %v10780 = vadd.f32 %v10759, %v10773
    %v10781 = vadd.f32 %v10760, %v10774
    %v10782 = vadd.f32 %v10761, %v10775
    %v10783 = vadd.f32 %v10762, %v10776
    %v10784 = vadd.f32 %v10763, %v10777
    %v10785 = vadd.f32 %v10764, %v10778
    %v10786 = vadd.f32 %v10765, %v10779
    %v10787 = vadd.f32 %v10198, %v10699
    %v10788 = vadd.f32 %v10360, %v10703
    %v10789 = vadd.f32 %v10362, %v10707
    %v10790 = vadd.f32 %v10524, %v10711
    %v10791 = vadd.f32 %v10526, %v10715
    %v10792 = vadd.f32 %v10688, %v10719
    %v10793 = vadd.f32 %v10690, %v10723
    %v10794 = vmax.f32 %v10787, 0.0
    %v10795 = vmax.f32 %v10788, 0.0
    %v10796 = vmax.f32 %v10789, 0.0
    %v10797 = vmax.f32 %v10790, 0.0
    %v10798 = vmax.f32 %v10791, 0.0
    %v10799 = vmax.f32 %v10792, 0.0
    %v10800 = vmax.f32 %v10793, 0.0
    %v10801 = vadd.f32 %v10780, %v10794
    %v10802 = vadd.f32 %v10781, %v10795
    %v10803 = vadd.f32 %v10782, %v10796
    %v10804 = vadd.f32 %v10783, %v10797
    %v10805 = vadd.f32 %v10784, %v10798
    %v10806 = vadd.f32 %v10785, %v10799
    %v10807 = vadd.f32 %v10786, %v10800
    %v10808 = vpack.c.bf16 %v10801, %v10801
    %v10809 = vpack.c.bf16 %v10802, %v10802
    %v10810 = vpack.c.bf16 %v10803, %v10803
    %v10811 = vpack.c.bf16 %v10804, %v10804
    %v10812 = vpack.c.bf16 %v10805, %v10805
    %v10813 = vpack.c.bf16 %v10806, %v10806
    %v10814 = vpack.c.bf16 %v10807, %v10807
    %v10815 = vld [vmem:[#allocation6] sm:$0xff]
    %v10816 = vld [vmem:[#allocation6 + $0x8] sm:$0xff]
    %v10817 = vld [vmem:[#allocation6 + $0x10] sm:$0xff]
    %v10818 = vld [vmem:[#allocation6 + $0x18] sm:$0xff]
    %v10819 = vld [vmem:[#allocation6 + $0x20] sm:$0xff]
    %v10820 = vld [vmem:[#allocation6 + $0x28] sm:$0xff]
    %v10821 = vld [vmem:[#allocation6 + $0x30] sm:$0xff]
    %v10822 = vld [vmem:[#allocation6 + $0x38] sm:$0xff]
    %v10823 = vld [vmem:[#allocation6 + $0x40] sm:$0xff]
    %v10824 = vld [vmem:[#allocation6 + $0x48] sm:$0xff]
    %v10825 = vld [vmem:[#allocation6 + $0x50] sm:$0xff]
    %v10826 = vld [vmem:[#allocation6 + $0x58] sm:$0xff]
    %v10827 = vld [vmem:[#allocation6 + $0x60] sm:$0xff]
    %v10828 = vld [vmem:[#allocation6 + $0x68] sm:$0xff]
    %v10829 = vld [vmem:[#allocation6 + $0x70] sm:$0xff]
    %v10830 = vld [vmem:[#allocation6 + $0x78] sm:$0xff]
    %v10831 = vld [vmem:[#allocation6 + $0x80] sm:$0xff]
    %v10832 = vld [vmem:[#allocation6 + $0x88] sm:$0xff]
    %v10833 = vld [vmem:[#allocation6 + $0x90] sm:$0xff]
    %v10834 = vld [vmem:[#allocation6 + $0x98] sm:$0xff]
    %v10835 = vld [vmem:[#allocation6 + $0xa0] sm:$0xff]
    %v10836 = vld [vmem:[#allocation6 + $0xa8] sm:$0xff]
    %v10837 = vld [vmem:[#allocation6 + $0xb0] sm:$0xff]
    %v10838 = vld [vmem:[#allocation6 + $0xb8] sm:$0xff]
    %v10839 = vld [vmem:[#allocation6 + $0xc0] sm:$0xff]
    %v10840 = vld [vmem:[#allocation6 + $0xc8] sm:$0xff]
    %v10841 = vld [vmem:[#allocation6 + $0xd0] sm:$0xff]
    %v10842 = vld [vmem:[#allocation6 + $0xd8] sm:$0xff]
    %v10843 = vld [vmem:[#allocation6 + $0xe0] sm:$0xff]
    %v10844 = vld [vmem:[#allocation6 + $0xe8] sm:$0xff]
    %v10845 = vld [vmem:[#allocation6 + $0xf0] sm:$0xff]
    %v10846 = vld [vmem:[#allocation6 + $0xf8] sm:$0xff]
    %v10847 = vld [vmem:[#allocation6 + $0x100] sm:$0xff]
    %v10848 = vld [vmem:[#allocation6 + $0x108] sm:$0xff]
    %v10849 = vld [vmem:[#allocation6 + $0x110] sm:$0xff]
    %v10850 = vld [vmem:[#allocation6 + $0x118] sm:$0xff]
    %v10851 = vld [vmem:[#allocation6 + $0x120] sm:$0xff]
    %v10852 = vld [vmem:[#allocation6 + $0x128] sm:$0xff]
    %v10853 = vld [vmem:[#allocation6 + $0x130] sm:$0xff]
    %v10854 = vld [vmem:[#allocation6 + $0x138] sm:$0xff]
    %v10855 = vld [vmem:[#allocation6 + $0x140] sm:$0xff]
    %v10856 = vld [vmem:[#allocation6 + $0x148] sm:$0xff]
    %v10857 = vld [vmem:[#allocation6 + $0x150] sm:$0xff]
    %v10858 = vld [vmem:[#allocation6 + $0x158] sm:$0xff]
    %v10859 = vld [vmem:[#allocation6 + $0x160] sm:$0xff]
    %v10860 = vld [vmem:[#allocation6 + $0x168] sm:$0xff]
    %v10861 = vld [vmem:[#allocation6 + $0x170] sm:$0xff]
    %v10862 = vld [vmem:[#allocation6 + $0x178] sm:$0xff]
    %v10863 = vld [vmem:[#allocation6 + $0x180] sm:$0xff]
    %v10864 = vld [vmem:[#allocation6 + $0x188] sm:$0xff]
    %v10865 = vld [vmem:[#allocation6 + $0x190] sm:$0xff]
    %v10866 = vld [vmem:[#allocation6 + $0x198] sm:$0xff]
    %v10867 = vld [vmem:[#allocation6 + $0x1a0] sm:$0xff]
    %v10868 = vld [vmem:[#allocation6 + $0x1a8] sm:$0xff]
    %v10869 = vld [vmem:[#allocation6 + $0x1b0] sm:$0xff]
    %v10870 = vld [vmem:[#allocation6 + $0x1b8] sm:$0xff]
    %v10871 = vld [vmem:[#allocation6 + $0x1c0] sm:$0xff]
    %v10872 = vld [vmem:[#allocation6 + $0x1c8] sm:$0xff]
    %v10873 = vld [vmem:[#allocation6 + $0x1d0] sm:$0xff]
    %v10874 = vld [vmem:[#allocation6 + $0x1d8] sm:$0xff]
    %v10875 = vld [vmem:[#allocation6 + $0x1e0] sm:$0xff]
    %v10876 = vld [vmem:[#allocation6 + $0x1e8] sm:$0xff]
    %v10877 = vld [vmem:[#allocation6 + $0x1f0] sm:$0xff]
    %v10878 = vld [vmem:[#allocation6 + $0x1f8] sm:$0xff]
    %v10879 = vld [vmem:[#allocation6 + $0x200] sm:$0xff]
    %v10880 = vld [vmem:[#allocation6 + $0x208] sm:$0xff]
    %v10881 = vld [vmem:[#allocation6 + $0x210] sm:$0xff]
    %v10882 = vld [vmem:[#allocation6 + $0x218] sm:$0xff]
    %v10883 = vld [vmem:[#allocation6 + $0x220] sm:$0xff]
    %v10884 = vld [vmem:[#allocation6 + $0x228] sm:$0xff]
    %v10885 = vld [vmem:[#allocation6 + $0x230] sm:$0xff]
    %v10886 = vld [vmem:[#allocation6 + $0x238] sm:$0xff]
    %v10887 = vld [vmem:[#allocation6 + $0x240] sm:$0xff]
    %v10888 = vld [vmem:[#allocation6 + $0x248] sm:$0xff]
    %v10889 = vld [vmem:[#allocation6 + $0x250] sm:$0xff]
    %v10890 = vld [vmem:[#allocation6 + $0x258] sm:$0xff]
    %v10891 = vld [vmem:[#allocation6 + $0x260] sm:$0xff]
    %v10892 = vld [vmem:[#allocation6 + $0x268] sm:$0xff]
    %v10893 = vld [vmem:[#allocation6 + $0x270] sm:$0xff]
    %v10894 = vld [vmem:[#allocation6 + $0x278] sm:$0xff]
    %v10895 = vld [vmem:[#allocation6 + $0x280] sm:$0xff]
    %v10896 = vld [vmem:[#allocation6 + $0x288] sm:$0xff]
    %v10897 = vld [vmem:[#allocation6 + $0x290] sm:$0xff]
    %v10898 = vld [vmem:[#allocation6 + $0x298] sm:$0xff]
    %v10899 = vld [vmem:[#allocation6 + $0x2a0] sm:$0xff]
    %v10900 = vld [vmem:[#allocation6 + $0x2a8] sm:$0xff]
    %v10901 = vld [vmem:[#allocation6 + $0x2b0] sm:$0xff]
    %v10902 = vld [vmem:[#allocation6 + $0x2b8] sm:$0xff]
    %v10903 = vld [vmem:[#allocation6 + $0x2c0] sm:$0xff]
    %v10904 = vld [vmem:[#allocation6 + $0x2c8] sm:$0xff]
    %v10905 = vld [vmem:[#allocation6 + $0x2d0] sm:$0xff]
    %v10906 = vld [vmem:[#allocation6 + $0x2d8] sm:$0xff]
    %v10907 = vld [vmem:[#allocation6 + $0x2e0] sm:$0xff]
    %v10908 = vld [vmem:[#allocation6 + $0x2e8] sm:$0xff]
    %v10909 = vld [vmem:[#allocation6 + $0x2f0] sm:$0xff]
    %v10910 = vld [vmem:[#allocation6 + $0x2f8] sm:$0xff]
    %v10911 = vld [vmem:[#allocation6 + $0x300] sm:$0xff]
    %v10912 = vld [vmem:[#allocation6 + $0x308] sm:$0xff]
    %v10913 = vld [vmem:[#allocation6 + $0x310] sm:$0xff]
    %v10914 = vld [vmem:[#allocation6 + $0x318] sm:$0xff]
    %v10915 = vld [vmem:[#allocation6 + $0x320] sm:$0xff]
    %v10916 = vld [vmem:[#allocation6 + $0x328] sm:$0xff]
    %v10917 = vld [vmem:[#allocation6 + $0x330] sm:$0xff]
    %v10918 = vld [vmem:[#allocation6 + $0x338] sm:$0xff]
    %v10919 = vld [vmem:[#allocation6 + $0x340] sm:$0xff]
    %v10920 = vld [vmem:[#allocation6 + $0x348] sm:$0xff]
    %v10921 = vld [vmem:[#allocation6 + $0x350] sm:$0xff]
    %v10922 = vld [vmem:[#allocation6 + $0x358] sm:$0xff]
    %v10923 = vld [vmem:[#allocation6 + $0x360] sm:$0xff]
    %v10924 = vld [vmem:[#allocation6 + $0x368] sm:$0xff]
    %v10925 = vld [vmem:[#allocation6 + $0x370] sm:$0xff]
    %v10926 = vld [vmem:[#allocation6 + $0x378] sm:$0xff]
    %v10927 = vld [vmem:[#allocation6 + $0x380] sm:$0xff]
    %v10928 = vld [vmem:[#allocation6 + $0x388] sm:$0xff]
    %v10929 = vld [vmem:[#allocation6 + $0x390] sm:$0xff]
    %v10930 = vld [vmem:[#allocation6 + $0x398] sm:$0xff]
    %v10931 = vld [vmem:[#allocation6 + $0x3a0] sm:$0xff]
    %v10932 = vld [vmem:[#allocation6 + $0x3a8] sm:$0xff]
    %v10933 = vld [vmem:[#allocation6 + $0x3b0] sm:$0xff]
    %v10934 = vld [vmem:[#allocation6 + $0x3b8] sm:$0xff]
    %v10935 = vld [vmem:[#allocation6 + $0x3c0] sm:$0xff]
    %v10936 = vld [vmem:[#allocation6 + $0x3c8] sm:$0xff]
    %v10937 = vld [vmem:[#allocation6 + $0x3d0] sm:$0xff]
    %v10938 = vld [vmem:[#allocation6 + $0x3d8] sm:$0xff]
    %v10939 = vld [vmem:[#allocation6 + $0x3e0] sm:$0xff]
    %v10940 = vld [vmem:[#allocation6 + $0x3e8] sm:$0xff]
    %v10941 = vld [vmem:[#allocation6 + $0x3f0] sm:$0xff]
    %v10942 = vld [vmem:[#allocation6 + $0x3f8] sm:$0xff]
    %v10943 = vld [vmem:[#allocation6 + $0x400] sm:$0xff]
    %v10944 = vld [vmem:[#allocation6 + $0x408] sm:$0xff]
    %v10945 = vld [vmem:[#allocation6 + $0x410] sm:$0xff]
    %v10946 = vld [vmem:[#allocation6 + $0x418] sm:$0xff]
    %v10947 = vld [vmem:[#allocation6 + $0x420] sm:$0xff]
    %v10948 = vld [vmem:[#allocation6 + $0x428] sm:$0xff]
    %v10949 = vld [vmem:[#allocation6 + $0x430] sm:$0xff]
    %v10950 = vld [vmem:[#allocation6 + $0x438] sm:$0xff]
    %v10951 = vld [vmem:[#allocation6 + $0x440] sm:$0xff]
    %v10952 = vld [vmem:[#allocation6 + $0x448] sm:$0xff]
    %v10953 = vld [vmem:[#allocation6 + $0x450] sm:$0xff]
    %v10954 = vld [vmem:[#allocation6 + $0x458] sm:$0xff]
    %v10955 = vld [vmem:[#allocation6 + $0x460] sm:$0xff]
    %v10956 = vld [vmem:[#allocation6 + $0x468] sm:$0xff]
    %v10957 = vld [vmem:[#allocation6 + $0x470] sm:$0xff]
    %v10958 = vld [vmem:[#allocation6 + $0x478] sm:$0xff]
    %v10959 = vld [vmem:[#allocation6 + $0x480] sm:$0xff]
    %v10960 = vld [vmem:[#allocation6 + $0x488] sm:$0xff]
    %v10961 = vld [vmem:[#allocation6 + $0x490] sm:$0xff]
    %v10962 = vld [vmem:[#allocation6 + $0x498] sm:$0xff]
    %v10963 = vld [vmem:[#allocation6 + $0x4a0] sm:$0xff]
    %v10964 = vld [vmem:[#allocation6 + $0x4a8] sm:$0xff]
    %v10965 = vld [vmem:[#allocation6 + $0x4b0] sm:$0xff]
    %v10966 = vld [vmem:[#allocation6 + $0x4b8] sm:$0xff]
    %v10967 = vld [vmem:[#allocation6 + $0x4c0] sm:$0xff]
    %v10968 = vld [vmem:[#allocation6 + $0x4c8] sm:$0xff]
    %v10969 = vld [vmem:[#allocation6 + $0x4d0] sm:$0xff]
    %v10970 = vld [vmem:[#allocation6 + $0x4d8] sm:$0xff]
    %v10971 = vld [vmem:[#allocation6 + $0x4e0] sm:$0xff]
    %v10972 = vld [vmem:[#allocation6 + $0x4e8] sm:$0xff]
    %v10973 = vld [vmem:[#allocation6 + $0x4f0] sm:$0xff]
    %v10974 = vld [vmem:[#allocation6 + $0x4f8] sm:$0xff]
    %v10975 = vld [vmem:[#allocation6 + $0x500] sm:$0xff]
    %v10976 = vld [vmem:[#allocation6 + $0x508] sm:$0xff]
    %v10977 = vld [vmem:[#allocation6 + $0x510] sm:$0xff]
    %v10978 = vld [vmem:[#allocation6 + $0x518] sm:$0xff]
    %v10979 = vld [vmem:[#allocation6 + $0x520] sm:$0xff]
    %v10980 = vld [vmem:[#allocation6 + $0x528] sm:$0xff]
    %v10981 = vld [vmem:[#allocation6 + $0x530] sm:$0xff]
    %v10982 = vld [vmem:[#allocation6 + $0x538] sm:$0xff]
    %v10983 = vld [vmem:[#allocation6 + $0x540] sm:$0xff]
    %v10984 = vld [vmem:[#allocation6 + $0x548] sm:$0xff]
    %v10985 = vld [vmem:[#allocation6 + $0x550] sm:$0xff]
    %v10986 = vld [vmem:[#allocation6 + $0x558] sm:$0xff]
    %v10987 = vld [vmem:[#allocation6 + $0x560] sm:$0xff]
    %v10988 = vld [vmem:[#allocation6 + $0x568] sm:$0xff]
    %v10989 = vld [vmem:[#allocation6 + $0x570] sm:$0xff]
    %v10990 = vld [vmem:[#allocation6 + $0x578] sm:$0xff]
    %v10991 = vld [vmem:[#allocation6 + $0x580] sm:$0xff]
    %v10992 = vld [vmem:[#allocation6 + $0x588] sm:$0xff]
    %v10993 = vld [vmem:[#allocation6 + $0x590] sm:$0xff]
    %v10994 = vld [vmem:[#allocation6 + $0x598] sm:$0xff]
    %v10995 = vld [vmem:[#allocation6 + $0x5a0] sm:$0xff]
    %v10996 = vld [vmem:[#allocation6 + $0x5a8] sm:$0xff]
    %v10997 = vld [vmem:[#allocation6 + $0x5b0] sm:$0xff]
    %v10998 = vld [vmem:[#allocation6 + $0x5b8] sm:$0xff]
    %v10999 = vld [vmem:[#allocation6 + $0x5c0] sm:$0xff]
    %v11000 = vld [vmem:[#allocation6 + $0x5c8] sm:$0xff]
    %v11001 = vld [vmem:[#allocation6 + $0x5d0] sm:$0xff]
    %v11002 = vld [vmem:[#allocation6 + $0x5d8] sm:$0xff]
    %v11003 = vld [vmem:[#allocation6 + $0x5e0] sm:$0xff]
    %v11004 = vld [vmem:[#allocation6 + $0x5e8] sm:$0xff]
    %v11005 = vld [vmem:[#allocation6 + $0x5f0] sm:$0xff]
    %v11006 = vld [vmem:[#allocation6 + $0x5f8] sm:$0xff]
    %v11007 = vld [vmem:[#allocation6 + $0x600] sm:$0xff]
    %v11008 = vld [vmem:[#allocation6 + $0x608] sm:$0xff]
    %v11009 = vld [vmem:[#allocation6 + $0x610] sm:$0xff]
    %v11010 = vld [vmem:[#allocation6 + $0x618] sm:$0xff]
    %v11011 = vld [vmem:[#allocation6 + $0x620] sm:$0xff]
    %v11012 = vld [vmem:[#allocation6 + $0x628] sm:$0xff]
    %v11013 = vld [vmem:[#allocation6 + $0x630] sm:$0xff]
    %v11014 = vld [vmem:[#allocation6 + $0x638] sm:$0xff]
    %v11015 = vld [vmem:[#allocation6 + $0x640] sm:$0xff]
    %v11016 = vld [vmem:[#allocation6 + $0x648] sm:$0xff]
    %v11017 = vld [vmem:[#allocation6 + $0x650] sm:$0xff]
    %v11018 = vld [vmem:[#allocation6 + $0x658] sm:$0xff]
    %v11019 = vld [vmem:[#allocation6 + $0x660] sm:$0xff]
    %v11020 = vld [vmem:[#allocation6 + $0x668] sm:$0xff]
    %v11021 = vld [vmem:[#allocation6 + $0x670] sm:$0xff]
    %v11022 = vld [vmem:[#allocation6 + $0x678] sm:$0xff]
    %v11023 = vld [vmem:[#allocation6 + $0x680] sm:$0xff]
    %v11024 = vld [vmem:[#allocation6 + $0x688] sm:$0xff]
    %v11025 = vld [vmem:[#allocation6 + $0x690] sm:$0xff]
    %v11026 = vld [vmem:[#allocation6 + $0x698] sm:$0xff]
    %v11027 = vld [vmem:[#allocation6 + $0x6a0] sm:$0xff]
    %v11028 = vld [vmem:[#allocation6 + $0x6a8] sm:$0xff]
    %v11029 = vld [vmem:[#allocation6 + $0x6b0] sm:$0xff]
    %v11030 = vld [vmem:[#allocation6 + $0x6b8] sm:$0xff]
    %v11031 = vld [vmem:[#allocation6 + $0x6c0] sm:$0xff]
    %v11032 = vld [vmem:[#allocation6 + $0x6c8] sm:$0xff]
    %v11033 = vld [vmem:[#allocation6 + $0x6d0] sm:$0xff]
    %v11034 = vld [vmem:[#allocation6 + $0x6d8] sm:$0xff]
    %v11035 = vld [vmem:[#allocation6 + $0x6e0] sm:$0xff]
    %v11036 = vld [vmem:[#allocation6 + $0x6e8] sm:$0xff]
    %v11037 = vld [vmem:[#allocation6 + $0x6f0] sm:$0xff]
    %v11038 = vld [vmem:[#allocation6 + $0x6f8] sm:$0xff]
    %v11039 = vld [vmem:[#allocation6 + $0x700] sm:$0xff]
    %v11040 = vld [vmem:[#allocation6 + $0x708] sm:$0xff]
    %v11041 = vld [vmem:[#allocation6 + $0x710] sm:$0xff]
    %v11042 = vld [vmem:[#allocation6 + $0x718] sm:$0xff]
    %v11043 = vld [vmem:[#allocation6 + $0x720] sm:$0xff]
    %v11044 = vld [vmem:[#allocation6 + $0x728] sm:$0xff]
    %v11045 = vld [vmem:[#allocation6 + $0x730] sm:$0xff]
    %v11046 = vld [vmem:[#allocation6 + $0x738] sm:$0xff]
    %v11047 = vld [vmem:[#allocation6 + $0x740] sm:$0xff]
    %v11048 = vld [vmem:[#allocation6 + $0x748] sm:$0xff]
    %v11049 = vld [vmem:[#allocation6 + $0x750] sm:$0xff]
    %v11050 = vld [vmem:[#allocation6 + $0x758] sm:$0xff]
    %v11051 = vld [vmem:[#allocation6 + $0x760] sm:$0xff]
    %v11052 = vld [vmem:[#allocation6 + $0x768] sm:$0xff]
    %v11053 = vld [vmem:[#allocation6 + $0x770] sm:$0xff]
    %v11054 = vld [vmem:[#allocation6 + $0x778] sm:$0xff]
    %v11055 = vld [vmem:[#allocation6 + $0x780] sm:$0xff]
    %v11056 = vld [vmem:[#allocation6 + $0x788] sm:$0xff]
    %v11057 = vld [vmem:[#allocation6 + $0x790] sm:$0xff]
    %v11058 = vld [vmem:[#allocation6 + $0x798] sm:$0xff]
    %v11059 = vld [vmem:[#allocation6 + $0x7a0] sm:$0xff]
    %v11060 = vld [vmem:[#allocation6 + $0x7a8] sm:$0xff]
    %v11061 = vld [vmem:[#allocation6 + $0x7b0] sm:$0xff]
    %v11062 = vld [vmem:[#allocation6 + $0x7b8] sm:$0xff]
    %v11063 = vld [vmem:[#allocation6 + $0x7c0] sm:$0xff]
    %v11064 = vld [vmem:[#allocation6 + $0x7c8] sm:$0xff]
    %v11065 = vld [vmem:[#allocation6 + $0x7d0] sm:$0xff]
    %v11066 = vld [vmem:[#allocation6 + $0x7d8] sm:$0xff]
    %v11067 = vld [vmem:[#allocation6 + $0x7e0] sm:$0xff]
    %v11068 = vld [vmem:[#allocation6 + $0x7e8] sm:$0xff]
    %v11069 = vld [vmem:[#allocation6 + $0x7f0] sm:$0xff]
    %v11070 = vld [vmem:[#allocation6 + $0x7f8] sm:$0xff]
    %v11071 = vld [vmem:[#allocation6 + $0x800] sm:$0xff]
    %v11072 = vld [vmem:[#allocation6 + $0x808] sm:$0xff]
    %v11073 = vld [vmem:[#allocation6 + $0x810] sm:$0xff]
    %v11074 = vld [vmem:[#allocation6 + $0x818] sm:$0xff]
    %v11075 = vld [vmem:[#allocation6 + $0x820] sm:$0xff]
    %v11076 = vld [vmem:[#allocation6 + $0x828] sm:$0xff]
    %v11077 = vld [vmem:[#allocation6 + $0x830] sm:$0xff]
    %v11078 = vld [vmem:[#allocation6 + $0x838] sm:$0xff]
    %v11079 = vld [vmem:[#allocation6 + $0x840] sm:$0xff]
    %v11080 = vld [vmem:[#allocation6 + $0x848] sm:$0xff]
    %v11081 = vld [vmem:[#allocation6 + $0x850] sm:$0xff]
    %v11082 = vld [vmem:[#allocation6 + $0x858] sm:$0xff]
    %v11083 = vld [vmem:[#allocation6 + $0x860] sm:$0xff]
    %v11084 = vld [vmem:[#allocation6 + $0x868] sm:$0xff]
    %v11085 = vld [vmem:[#allocation6 + $0x870] sm:$0xff]
    %v11086 = vld [vmem:[#allocation6 + $0x878] sm:$0xff]
    %v11087 = vld [vmem:[#allocation6 + $0x880] sm:$0xff]
    %v11088 = vld [vmem:[#allocation6 + $0x888] sm:$0xff]
    %v11089 = vld [vmem:[#allocation6 + $0x890] sm:$0xff]
    %v11090 = vld [vmem:[#allocation6 + $0x898] sm:$0xff]
    %v11091 = vld [vmem:[#allocation6 + $0x8a0] sm:$0xff]
    %v11092 = vld [vmem:[#allocation6 + $0x8a8] sm:$0xff]
    %v11093 = vld [vmem:[#allocation6 + $0x8b0] sm:$0xff]
    %v11094 = vld [vmem:[#allocation6 + $0x8b8] sm:$0xff]
    %v11095 = vld [vmem:[#allocation6 + $0x8c0] sm:$0xff]
    %v11096 = vld [vmem:[#allocation6 + $0x8c8] sm:$0xff]
    %v11097 = vld [vmem:[#allocation6 + $0x8d0] sm:$0xff]
    %v11098 = vld [vmem:[#allocation6 + $0x8d8] sm:$0xff]
    %v11099 = vld [vmem:[#allocation6 + $0x8e0] sm:$0xff]
    %v11100 = vld [vmem:[#allocation6 + $0x8e8] sm:$0xff]
    %v11101 = vld [vmem:[#allocation6 + $0x8f0] sm:$0xff]
    %v11102 = vld [vmem:[#allocation6 + $0x8f8] sm:$0xff]
    %v11103 = vld [vmem:[#allocation6 + $0x900] sm:$0xff]
    %v11104 = vld [vmem:[#allocation6 + $0x908] sm:$0xff]
    %v11105 = vld [vmem:[#allocation6 + $0x910] sm:$0xff]
    %v11106 = vld [vmem:[#allocation6 + $0x918] sm:$0xff]
    %v11107 = vld [vmem:[#allocation6 + $0x920] sm:$0xff]
    %v11108 = vld [vmem:[#allocation6 + $0x928] sm:$0xff]
    %v11109 = vld [vmem:[#allocation6 + $0x930] sm:$0xff]
    %v11110 = vld [vmem:[#allocation6 + $0x938] sm:$0xff]
    %v11111 = vld [vmem:[#allocation6 + $0x940] sm:$0xff]
    %v11112 = vld [vmem:[#allocation6 + $0x948] sm:$0xff]
    %v11113 = vld [vmem:[#allocation6 + $0x950] sm:$0xff]
    %v11114 = vld [vmem:[#allocation6 + $0x958] sm:$0xff]
    %v11115 = vld [vmem:[#allocation6 + $0x960] sm:$0xff]
    %v11116 = vld [vmem:[#allocation6 + $0x968] sm:$0xff]
    %v11117 = vld [vmem:[#allocation6 + $0x970] sm:$0xff]
    %v11118 = vld [vmem:[#allocation6 + $0x978] sm:$0xff]
    %v11119 = vld [vmem:[#allocation6 + $0x980] sm:$0xff]
    %v11120 = vld [vmem:[#allocation6 + $0x988] sm:$0xff]
    %v11121 = vld [vmem:[#allocation6 + $0x990] sm:$0xff]
    %v11122 = vld [vmem:[#allocation6 + $0x998] sm:$0xff]
    %v11123 = vld [vmem:[#allocation6 + $0x9a0] sm:$0xff]
    %v11124 = vld [vmem:[#allocation6 + $0x9a8] sm:$0xff]
    %v11125 = vld [vmem:[#allocation6 + $0x9b0] sm:$0xff]
    %v11126 = vld [vmem:[#allocation6 + $0x9b8] sm:$0xff]
    %v11127 = vld [vmem:[#allocation6 + $0x9c0] sm:$0xff]
    %v11128 = vld [vmem:[#allocation6 + $0x9c8] sm:$0xff]
    %v11129 = vld [vmem:[#allocation6 + $0x9d0] sm:$0xff]
    %v11130 = vld [vmem:[#allocation6 + $0x9d8] sm:$0xff]
    %v11131 = vld [vmem:[#allocation6 + $0x9e0] sm:$0xff]
    %v11132 = vld [vmem:[#allocation6 + $0x9e8] sm:$0xff]
    %v11133 = vld [vmem:[#allocation6 + $0x9f0] sm:$0xff]
    %v11134 = vld [vmem:[#allocation6 + $0x9f8] sm:$0xff]
    %v11135 = vld [vmem:[#allocation6 + $0xa00] sm:$0xff]
    %v11136 = vld [vmem:[#allocation6 + $0xa08] sm:$0xff]
    %v11137 = vld [vmem:[#allocation6 + $0xa10] sm:$0xff]
    %v11138 = vld [vmem:[#allocation6 + $0xa18] sm:$0xff]
    %v11139 = vld [vmem:[#allocation6 + $0xa20] sm:$0xff]
    %v11140 = vld [vmem:[#allocation6 + $0xa28] sm:$0xff]
    %v11141 = vld [vmem:[#allocation6 + $0xa30] sm:$0xff]
    %v11142 = vld [vmem:[#allocation6 + $0xa38] sm:$0xff]
    %v11143 = vld [vmem:[#allocation6 + $0xa40] sm:$0xff]
    %v11144 = vld [vmem:[#allocation6 + $0xa48] sm:$0xff]
    %v11145 = vld [vmem:[#allocation6 + $0xa50] sm:$0xff]
    %v11146 = vld [vmem:[#allocation6 + $0xa58] sm:$0xff]
    %v11147 = vld [vmem:[#allocation6 + $0xa60] sm:$0xff]
    %v11148 = vld [vmem:[#allocation6 + $0xa68] sm:$0xff]
    %v11149 = vld [vmem:[#allocation6 + $0xa70] sm:$0xff]
    %v11150 = vld [vmem:[#allocation6 + $0xa78] sm:$0xff]
    %v11151 = vld [vmem:[#allocation6 + $0xa80] sm:$0xff]
    %v11152 = vld [vmem:[#allocation6 + $0xa88] sm:$0xff]
    %v11153 = vld [vmem:[#allocation6 + $0xa90] sm:$0xff]
    %v11154 = vld [vmem:[#allocation6 + $0xa98] sm:$0xff]
    %v11155 = vld [vmem:[#allocation6 + $0xaa0] sm:$0xff]
    %v11156 = vld [vmem:[#allocation6 + $0xaa8] sm:$0xff]
    %v11157 = vld [vmem:[#allocation6 + $0xab0] sm:$0xff]
    %v11158 = vld [vmem:[#allocation6 + $0xab8] sm:$0xff]
    %v11159 = vld [vmem:[#allocation6 + $0xac0] sm:$0xff]
    %v11160 = vld [vmem:[#allocation6 + $0xac8] sm:$0xff]
    %v11161 = vld [vmem:[#allocation6 + $0xad0] sm:$0xff]
    %v11162 = vld [vmem:[#allocation6 + $0xad8] sm:$0xff]
    %v11163 = vld [vmem:[#allocation6 + $0xae0] sm:$0xff]
    %v11164 = vld [vmem:[#allocation6 + $0xae8] sm:$0xff]
    %v11165 = vld [vmem:[#allocation6 + $0xaf0] sm:$0xff]
    %v11166 = vld [vmem:[#allocation6 + $0xaf8] sm:$0xff]
    %v11167 = vld [vmem:[#allocation6 + $0xb00] sm:$0xff]
    %v11168 = vld [vmem:[#allocation6 + $0xb08] sm:$0xff]
    %v11169 = vld [vmem:[#allocation6 + $0xb10] sm:$0xff]
    %v11170 = vld [vmem:[#allocation6 + $0xb18] sm:$0xff]
    %v11171 = vld [vmem:[#allocation6 + $0xb20] sm:$0xff]
    %v11172 = vld [vmem:[#allocation6 + $0xb28] sm:$0xff]
    %v11173 = vld [vmem:[#allocation6 + $0xb30] sm:$0xff]
    %v11174 = vld [vmem:[#allocation6 + $0xb38] sm:$0xff]
    %v11175 = vld [vmem:[#allocation6 + $0xb40] sm:$0xff]
    %v11176 = vld [vmem:[#allocation6 + $0xb48] sm:$0xff]
    %v11177 = vld [vmem:[#allocation6 + $0xb50] sm:$0xff]
    %v11178 = vld [vmem:[#allocation6 + $0xb58] sm:$0xff]
    %v11179 = vld [vmem:[#allocation6 + $0xb60] sm:$0xff]
    %v11180 = vld [vmem:[#allocation6 + $0xb68] sm:$0xff]
    %v11181 = vld [vmem:[#allocation6 + $0xb70] sm:$0xff]
    %v11182 = vld [vmem:[#allocation6 + $0xb78] sm:$0xff]
    %v11183 = vld [vmem:[#allocation6 + $0xb80] sm:$0xff]
    %v11184 = vld [vmem:[#allocation6 + $0xb88] sm:$0xff]
    %v11185 = vld [vmem:[#allocation6 + $0xb90] sm:$0xff]
    %v11186 = vld [vmem:[#allocation6 + $0xb98] sm:$0xff]
    %v11187 = vld [vmem:[#allocation6 + $0xba0] sm:$0xff]
    %v11188 = vld [vmem:[#allocation6 + $0xba8] sm:$0xff]
    %v11189 = vld [vmem:[#allocation6 + $0xbb0] sm:$0xff]
    %v11190 = vld [vmem:[#allocation6 + $0xbb8] sm:$0xff]
    %v11191 = vld [vmem:[#allocation6 + $0xbc0] sm:$0xff]
    %v11192 = vld [vmem:[#allocation6 + $0xbc8] sm:$0xff]
    %v11193 = vld [vmem:[#allocation6 + $0xbd0] sm:$0xff]
    %v11194 = vld [vmem:[#allocation6 + $0xbd8] sm:$0xff]
    %v11195 = vld [vmem:[#allocation6 + $0xbe0] sm:$0xff]
    %v11196 = vld [vmem:[#allocation6 + $0xbe8] sm:$0xff]
    %v11197 = vld [vmem:[#allocation6 + $0xbf0] sm:$0xff]
    %v11198 = vld [vmem:[#allocation6 + $0xbf8] sm:$0xff]
    %v11199 = vld [vmem:[#allocation6 + $0xc00] sm:$0xff]
    %v11200 = vld [vmem:[#allocation6 + $0xc08] sm:$0xff]
    %v11201 = vld [vmem:[#allocation6 + $0xc10] sm:$0xff]
    %v11202 = vld [vmem:[#allocation6 + $0xc18] sm:$0xff]
    %v11203 = vld [vmem:[#allocation6 + $0xc20] sm:$0xff]
    %v11204 = vld [vmem:[#allocation6 + $0xc28] sm:$0xff]
    %v11205 = vld [vmem:[#allocation6 + $0xc30] sm:$0xff]
    %v11206 = vld [vmem:[#allocation6 + $0xc38] sm:$0xff]
    %v11207 = vld [vmem:[#allocation6 + $0xc40] sm:$0xff]
    %v11208 = vld [vmem:[#allocation6 + $0xc48] sm:$0xff]
    %v11209 = vld [vmem:[#allocation6 + $0xc50] sm:$0xff]
    %v11210 = vld [vmem:[#allocation6 + $0xc58] sm:$0xff]
    %v11211 = vld [vmem:[#allocation6 + $0xc60] sm:$0xff]
    %v11212 = vld [vmem:[#allocation6 + $0xc68] sm:$0xff]
    %v11213 = vld [vmem:[#allocation6 + $0xc70] sm:$0xff]
    %v11214 = vld [vmem:[#allocation6 + $0xc78] sm:$0xff]
    %v11215 = vld [vmem:[#allocation6 + $0xc80] sm:$0xff]
    %v11216 = vld [vmem:[#allocation6 + $0xc88] sm:$0xff]
    %v11217 = vld [vmem:[#allocation6 + $0xc90] sm:$0xff]
    %v11218 = vld [vmem:[#allocation6 + $0xc98] sm:$0xff]
    %v11219 = vld [vmem:[#allocation6 + $0xca0] sm:$0xff]
    %v11220 = vld [vmem:[#allocation6 + $0xca8] sm:$0xff]
    %v11221 = vld [vmem:[#allocation6 + $0xcb0] sm:$0xff]
    %v11222 = vld [vmem:[#allocation6 + $0xcb8] sm:$0xff]
    %v11223 = vld [vmem:[#allocation6 + $0xcc0] sm:$0xff]
    %v11224 = vld [vmem:[#allocation6 + $0xcc8] sm:$0xff]
    %v11225 = vld [vmem:[#allocation6 + $0xcd0] sm:$0xff]
    %v11226 = vld [vmem:[#allocation6 + $0xcd8] sm:$0xff]
    %v11227 = vld [vmem:[#allocation6 + $0xce0] sm:$0xff]
    %v11228 = vld [vmem:[#allocation6 + $0xce8] sm:$0xff]
    %v11229 = vld [vmem:[#allocation6 + $0xcf0] sm:$0xff]
    %v11230 = vld [vmem:[#allocation6 + $0xcf8] sm:$0xff]
    %v11231 = vld [vmem:[#allocation6 + $0xd00] sm:$0xff]
    %v11232 = vld [vmem:[#allocation6 + $0xd08] sm:$0xff]
    %v11233 = vld [vmem:[#allocation6 + $0xd10] sm:$0xff]
    %v11234 = vld [vmem:[#allocation6 + $0xd18] sm:$0xff]
    %v11235 = vld [vmem:[#allocation6 + $0xd20] sm:$0xff]
    %v11236 = vld [vmem:[#allocation6 + $0xd28] sm:$0xff]
    %v11237 = vld [vmem:[#allocation6 + $0xd30] sm:$0xff]
    %v11238 = vld [vmem:[#allocation6 + $0xd38] sm:$0xff]
    %v11239 = vld [vmem:[#allocation6 + $0xd40] sm:$0xff]
    %v11240 = vld [vmem:[#allocation6 + $0xd48] sm:$0xff]
    %v11241 = vld [vmem:[#allocation6 + $0xd50] sm:$0xff]
    %v11242 = vld [vmem:[#allocation6 + $0xd58] sm:$0xff]
    %v11243 = vld [vmem:[#allocation6 + $0xd60] sm:$0xff]
    %v11244 = vld [vmem:[#allocation6 + $0xd68] sm:$0xff]
    %v11245 = vld [vmem:[#allocation6 + $0xd70] sm:$0xff]
    %v11246 = vld [vmem:[#allocation6 + $0xd78] sm:$0xff]
    %v11247 = vld [vmem:[#allocation6 + $0xd80] sm:$0xff]
    %v11248 = vld [vmem:[#allocation6 + $0xd88] sm:$0xff]
    %v11249 = vld [vmem:[#allocation6 + $0xd90] sm:$0xff]
    %v11250 = vld [vmem:[#allocation6 + $0xd98] sm:$0xff]
    %v11251 = vld [vmem:[#allocation6 + $0xda0] sm:$0xff]
    %v11252 = vld [vmem:[#allocation6 + $0xda8] sm:$0xff]
    %v11253 = vld [vmem:[#allocation6 + $0xdb0] sm:$0xff]
    %v11254 = vld [vmem:[#allocation6 + $0xdb8] sm:$0xff]
    %v11255 = vld [vmem:[#allocation6 + $0xdc0] sm:$0xff]
    %v11256 = vld [vmem:[#allocation6 + $0xdc8] sm:$0xff]
    %v11257 = vld [vmem:[#allocation6 + $0xdd0] sm:$0xff]
    %v11258 = vld [vmem:[#allocation6 + $0xdd8] sm:$0xff]
    %v11259 = vld [vmem:[#allocation6 + $0xde0] sm:$0xff]
    %v11260 = vld [vmem:[#allocation6 + $0xde8] sm:$0xff]
    %v11261 = vld [vmem:[#allocation6 + $0xdf0] sm:$0xff]
    %v11262 = vld [vmem:[#allocation6 + $0xdf8] sm:$0xff]
    %v11711 = vunpack.c.l.b16 %v10815
    %v11712 = vunpack.c.h.b16 %v10815
    %v11713 = vunpack.c.l.b16 %v10816
    %v11714 = vunpack.c.h.b16 %v10816
    %v11715 = vunpack.c.l.b16 %v10817
    %v11716 = vunpack.c.h.b16 %v10817
    %v11717 = vunpack.c.l.b16 %v10818
    %v11718 = vunpack.c.h.b16 %v10818
    %v11719 = vunpack.c.l.b16 %v10819
    %v11720 = vunpack.c.h.b16 %v10819
    %v11721 = vunpack.c.l.b16 %v10820
    %v11722 = vunpack.c.h.b16 %v10820
    %v11723 = vunpack.c.l.b16 %v10821
    %v11724 = vunpack.c.h.b16 %v10821
    %v11725 = vunpack.c.l.b16 %v10822
    %v11726 = vunpack.c.h.b16 %v10822
    %v11727 = vunpack.c.l.b16 %v10823
    %v11728 = vunpack.c.h.b16 %v10823
    %v11729 = vunpack.c.l.b16 %v10824
    %v11730 = vunpack.c.h.b16 %v10824
    %v11731 = vunpack.c.l.b16 %v10825
    %v11732 = vunpack.c.h.b16 %v10825
    %v11733 = vunpack.c.l.b16 %v10826
    %v11734 = vunpack.c.h.b16 %v10826
    %v11735 = vunpack.c.l.b16 %v10827
    %v11736 = vunpack.c.h.b16 %v10827
    %v11737 = vunpack.c.l.b16 %v10828
    %v11738 = vunpack.c.h.b16 %v10828
    %v11739 = vunpack.c.l.b16 %v10829
    %v11740 = vunpack.c.h.b16 %v10829
    %v11741 = vunpack.c.l.b16 %v10830
    %v11742 = vunpack.c.h.b16 %v10830
    %v11743 = vunpack.c.l.b16 %v10831
    %v11744 = vunpack.c.h.b16 %v10831
    %v11745 = vunpack.c.l.b16 %v10832
    %v11746 = vunpack.c.h.b16 %v10832
    %v11747 = vunpack.c.l.b16 %v10833
    %v11748 = vunpack.c.h.b16 %v10833
    %v11749 = vunpack.c.l.b16 %v10834
    %v11750 = vunpack.c.h.b16 %v10834
    %v11751 = vunpack.c.l.b16 %v10835
    %v11752 = vunpack.c.h.b16 %v10835
    %v11753 = vunpack.c.l.b16 %v10836
    %v11754 = vunpack.c.h.b16 %v10836
    %v11755 = vunpack.c.l.b16 %v10837
    %v11756 = vunpack.c.h.b16 %v10837
    %v11757 = vunpack.c.l.b16 %v10838
    %v11758 = vunpack.c.h.b16 %v10838
    %v11759 = vunpack.c.l.b16 %v10839
    %v11760 = vunpack.c.h.b16 %v10839
    %v11761 = vunpack.c.l.b16 %v10840
    %v11762 = vunpack.c.h.b16 %v10840
    %v11763 = vunpack.c.l.b16 %v10841
    %v11764 = vunpack.c.h.b16 %v10841
    %v11765 = vunpack.c.l.b16 %v10842
    %v11766 = vunpack.c.h.b16 %v10842
    %v11767 = vunpack.c.l.b16 %v10843
    %v11768 = vunpack.c.h.b16 %v10843
    %v11769 = vunpack.c.l.b16 %v10844
    %v11770 = vunpack.c.h.b16 %v10844
    %v11771 = vunpack.c.l.b16 %v10845
    %v11772 = vunpack.c.h.b16 %v10845
    %v11773 = vunpack.c.l.b16 %v10846
    %v11774 = vunpack.c.h.b16 %v10846
    %v11775 = vunpack.c.l.b16 %v10847
    %v11776 = vunpack.c.h.b16 %v10847
    %v11777 = vunpack.c.l.b16 %v10848
    %v11778 = vunpack.c.h.b16 %v10848
    %v11779 = vunpack.c.l.b16 %v10849
    %v11780 = vunpack.c.h.b16 %v10849
    %v11781 = vunpack.c.l.b16 %v10850
    %v11782 = vunpack.c.h.b16 %v10850
    %v11783 = vunpack.c.l.b16 %v10851
    %v11784 = vunpack.c.h.b16 %v10851
    %v11785 = vunpack.c.l.b16 %v10852
    %v11786 = vunpack.c.h.b16 %v10852
    %v11787 = vunpack.c.l.b16 %v10853
    %v11788 = vunpack.c.h.b16 %v10853
    %v11789 = vunpack.c.l.b16 %v10854
    %v11790 = vunpack.c.h.b16 %v10854
    %v11791 = vunpack.c.l.b16 %v10855
    %v11792 = vunpack.c.h.b16 %v10855
    %v11793 = vunpack.c.l.b16 %v10856
    %v11794 = vunpack.c.h.b16 %v10856
    %v11795 = vunpack.c.l.b16 %v10857
    %v11796 = vunpack.c.h.b16 %v10857
    %v11797 = vunpack.c.l.b16 %v10858
    %v11798 = vunpack.c.h.b16 %v10858
    %v11799 = vunpack.c.l.b16 %v10859
    %v11800 = vunpack.c.h.b16 %v10859
    %v11801 = vunpack.c.l.b16 %v10860
    %v11802 = vunpack.c.h.b16 %v10860
    %v11803 = vunpack.c.l.b16 %v10861
    %v11804 = vunpack.c.h.b16 %v10861
    %v11805 = vunpack.c.l.b16 %v10862
    %v11806 = vunpack.c.h.b16 %v10862
    %v11807 = vunpack.c.l.b16 %v10863
    %v11808 = vunpack.c.h.b16 %v10863
    %v11809 = vunpack.c.l.b16 %v10864
    %v11810 = vunpack.c.h.b16 %v10864
    %v11811 = vunpack.c.l.b16 %v10865
    %v11812 = vunpack.c.h.b16 %v10865
    %v11813 = vunpack.c.l.b16 %v10866
    %v11814 = vunpack.c.h.b16 %v10866
    %v11815 = vunpack.c.l.b16 %v10867
    %v11816 = vunpack.c.h.b16 %v10867
    %v11817 = vunpack.c.l.b16 %v10868
    %v11818 = vunpack.c.h.b16 %v10868
    %v11819 = vunpack.c.l.b16 %v10869
    %v11820 = vunpack.c.h.b16 %v10869
    %v11821 = vunpack.c.l.b16 %v10870
    %v11822 = vunpack.c.h.b16 %v10870
    %v11823 = vunpack.c.l.b16 %v10871
    %v11824 = vunpack.c.h.b16 %v10871
    %v11825 = vunpack.c.l.b16 %v10872
    %v11826 = vunpack.c.h.b16 %v10872
    %v11827 = vunpack.c.l.b16 %v10873
    %v11828 = vunpack.c.h.b16 %v10873
    %v11829 = vunpack.c.l.b16 %v10874
    %v11830 = vunpack.c.h.b16 %v10874
    %v11831 = vunpack.c.l.b16 %v10875
    %v11832 = vunpack.c.h.b16 %v10875
    %v11833 = vunpack.c.l.b16 %v10876
    %v11834 = vunpack.c.h.b16 %v10876
    %v11835 = vunpack.c.l.b16 %v10877
    %v11836 = vunpack.c.h.b16 %v10877
    %v11837 = vunpack.c.l.b16 %v10878
    %v11838 = vunpack.c.h.b16 %v10878
    %v11839 = vunpack.c.l.b16 %v10879
    %v11840 = vunpack.c.h.b16 %v10879
    %v11841 = vunpack.c.l.b16 %v10880
    %v11842 = vunpack.c.h.b16 %v10880
    %v11843 = vunpack.c.l.b16 %v10881
    %v11844 = vunpack.c.h.b16 %v10881
    %v11845 = vunpack.c.l.b16 %v10882
    %v11846 = vunpack.c.h.b16 %v10882
    %v11847 = vunpack.c.l.b16 %v10883
    %v11848 = vunpack.c.h.b16 %v10883
    %v11849 = vunpack.c.l.b16 %v10884
    %v11850 = vunpack.c.h.b16 %v10884
    %v11851 = vunpack.c.l.b16 %v10885
    %v11852 = vunpack.c.h.b16 %v10885
    %v11853 = vunpack.c.l.b16 %v10886
    %v11854 = vunpack.c.h.b16 %v10886
    %v11855 = vunpack.c.l.b16 %v10887
    %v11856 = vunpack.c.h.b16 %v10887
    %v11857 = vunpack.c.l.b16 %v10888
    %v11858 = vunpack.c.h.b16 %v10888
    %v11859 = vunpack.c.l.b16 %v10889
    %v11860 = vunpack.c.h.b16 %v10889
    %v11861 = vunpack.c.l.b16 %v10890
    %v11862 = vunpack.c.h.b16 %v10890
    %v11863 = vunpack.c.l.b16 %v10891
    %v11864 = vunpack.c.h.b16 %v10891
    %v11865 = vunpack.c.l.b16 %v10892
    %v11866 = vunpack.c.h.b16 %v10892
    %v11867 = vunpack.c.l.b16 %v10893
    %v11868 = vunpack.c.h.b16 %v10893
    %v11869 = vunpack.c.l.b16 %v10894
    %v11870 = vunpack.c.h.b16 %v10894
    %v11871 = vunpack.c.l.b16 %v10895
    %v11872 = vunpack.c.h.b16 %v10895
    %v11873 = vunpack.c.l.b16 %v10896
    %v11874 = vunpack.c.h.b16 %v10896
    %v11875 = vunpack.c.l.b16 %v10897
    %v11876 = vunpack.c.h.b16 %v10897
    %v11877 = vunpack.c.l.b16 %v10898
    %v11878 = vunpack.c.h.b16 %v10898
    %v11879 = vunpack.c.l.b16 %v10899
    %v11880 = vunpack.c.h.b16 %v10899
    %v11881 = vunpack.c.l.b16 %v10900
    %v11882 = vunpack.c.h.b16 %v10900
    %v11883 = vunpack.c.l.b16 %v10901
    %v11884 = vunpack.c.h.b16 %v10901
    %v11885 = vunpack.c.l.b16 %v10902
    %v11886 = vunpack.c.h.b16 %v10902
    %v11887 = vunpack.c.l.b16 %v10903
    %v11888 = vunpack.c.h.b16 %v10903
    %v11889 = vunpack.c.l.b16 %v10904
    %v11890 = vunpack.c.h.b16 %v10904
    %v11891 = vunpack.c.l.b16 %v10905
    %v11892 = vunpack.c.h.b16 %v10905
    %v11893 = vunpack.c.l.b16 %v10906
    %v11894 = vunpack.c.h.b16 %v10906
    %v11895 = vunpack.c.l.b16 %v10907
    %v11896 = vunpack.c.h.b16 %v10907
    %v11897 = vunpack.c.l.b16 %v10908
    %v11898 = vunpack.c.h.b16 %v10908
    %v11899 = vunpack.c.l.b16 %v10909
    %v11900 = vunpack.c.h.b16 %v10909
    %v11901 = vunpack.c.l.b16 %v10910
    %v11902 = vunpack.c.h.b16 %v10910
    %v11903 = vunpack.c.l.b16 %v10911
    %v11904 = vunpack.c.h.b16 %v10911
    %v11905 = vunpack.c.l.b16 %v10912
    %v11906 = vunpack.c.h.b16 %v10912
    %v11907 = vunpack.c.l.b16 %v10913
    %v11908 = vunpack.c.h.b16 %v10913
    %v11909 = vunpack.c.l.b16 %v10914
    %v11910 = vunpack.c.h.b16 %v10914
    %v11911 = vunpack.c.l.b16 %v10915
    %v11912 = vunpack.c.h.b16 %v10915
    %v11913 = vunpack.c.l.b16 %v10916
    %v11914 = vunpack.c.h.b16 %v10916
    %v11915 = vunpack.c.l.b16 %v10917
    %v11916 = vunpack.c.h.b16 %v10917
    %v11917 = vunpack.c.l.b16 %v10918
    %v11918 = vunpack.c.h.b16 %v10918
    %v11919 = vunpack.c.l.b16 %v10919
    %v11920 = vunpack.c.h.b16 %v10919
    %v11921 = vunpack.c.l.b16 %v10920
    %v11922 = vunpack.c.h.b16 %v10920
    %v11923 = vunpack.c.l.b16 %v10921
    %v11924 = vunpack.c.h.b16 %v10921
    %v11925 = vunpack.c.l.b16 %v10922
    %v11926 = vunpack.c.h.b16 %v10922
    %v11927 = vunpack.c.l.b16 %v10923
    %v11928 = vunpack.c.h.b16 %v10923
    %v11929 = vunpack.c.l.b16 %v10924
    %v11930 = vunpack.c.h.b16 %v10924
    %v11931 = vunpack.c.l.b16 %v10925
    %v11932 = vunpack.c.h.b16 %v10925
    %v11933 = vunpack.c.l.b16 %v10926
    %v11934 = vunpack.c.h.b16 %v10926
    %v11935 = vunpack.c.l.b16 %v10927
    %v11936 = vunpack.c.h.b16 %v10927
    %v11937 = vunpack.c.l.b16 %v10928
    %v11938 = vunpack.c.h.b16 %v10928
    %v11939 = vunpack.c.l.b16 %v10929
    %v11940 = vunpack.c.h.b16 %v10929
    %v11941 = vunpack.c.l.b16 %v10930
    %v11942 = vunpack.c.h.b16 %v10930
    %v11943 = vunpack.c.l.b16 %v10931
    %v11944 = vunpack.c.h.b16 %v10931
    %v11945 = vunpack.c.l.b16 %v10932
    %v11946 = vunpack.c.h.b16 %v10932
    %v11947 = vunpack.c.l.b16 %v10933
    %v11948 = vunpack.c.h.b16 %v10933
    %v11949 = vunpack.c.l.b16 %v10934
    %v11950 = vunpack.c.h.b16 %v10934
    %v11951 = vunpack.c.l.b16 %v10935
    %v11952 = vunpack.c.h.b16 %v10935
    %v11953 = vunpack.c.l.b16 %v10936
    %v11954 = vunpack.c.h.b16 %v10936
    %v11955 = vunpack.c.l.b16 %v10937
    %v11956 = vunpack.c.h.b16 %v10937
    %v11957 = vunpack.c.l.b16 %v10938
    %v11958 = vunpack.c.h.b16 %v10938
    %v11959 = vunpack.c.l.b16 %v10939
    %v11960 = vunpack.c.h.b16 %v10939
    %v11961 = vunpack.c.l.b16 %v10940
    %v11962 = vunpack.c.h.b16 %v10940
    %v11963 = vunpack.c.l.b16 %v10941
    %v11964 = vunpack.c.h.b16 %v10941
    %v11965 = vunpack.c.l.b16 %v10942
    %v11966 = vunpack.c.h.b16 %v10942
    %v11967 = vunpack.c.l.b16 %v10943
    %v11968 = vunpack.c.h.b16 %v10943
    %v11969 = vunpack.c.l.b16 %v10944
    %v11970 = vunpack.c.h.b16 %v10944
    %v11971 = vunpack.c.l.b16 %v10945
    %v11972 = vunpack.c.h.b16 %v10945
    %v11973 = vunpack.c.l.b16 %v10946
    %v11974 = vunpack.c.h.b16 %v10946
    %v11975 = vunpack.c.l.b16 %v10947
    %v11976 = vunpack.c.h.b16 %v10947
    %v11977 = vunpack.c.l.b16 %v10948
    %v11978 = vunpack.c.h.b16 %v10948
    %v11979 = vunpack.c.l.b16 %v10949
    %v11980 = vunpack.c.h.b16 %v10949
    %v11981 = vunpack.c.l.b16 %v10950
    %v11982 = vunpack.c.h.b16 %v10950
    %v11983 = vunpack.c.l.b16 %v10951
    %v11984 = vunpack.c.h.b16 %v10951
    %v11985 = vunpack.c.l.b16 %v10952
    %v11986 = vunpack.c.h.b16 %v10952
    %v11987 = vunpack.c.l.b16 %v10953
    %v11988 = vunpack.c.h.b16 %v10953
    %v11989 = vunpack.c.l.b16 %v10954
    %v11990 = vunpack.c.h.b16 %v10954
    %v11991 = vunpack.c.l.b16 %v10955
    %v11992 = vunpack.c.h.b16 %v10955
    %v11993 = vunpack.c.l.b16 %v10956
    %v11994 = vunpack.c.h.b16 %v10956
    %v11995 = vunpack.c.l.b16 %v10957
    %v11996 = vunpack.c.h.b16 %v10957
    %v11997 = vunpack.c.l.b16 %v10958
    %v11998 = vunpack.c.h.b16 %v10958
    %v11999 = vunpack.c.l.b16 %v10959
    %v12000 = vunpack.c.h.b16 %v10959
    %v12001 = vunpack.c.l.b16 %v10960
    %v12002 = vunpack.c.h.b16 %v10960
    %v12003 = vunpack.c.l.b16 %v10961
    %v12004 = vunpack.c.h.b16 %v10961
    %v12005 = vunpack.c.l.b16 %v10962
    %v12006 = vunpack.c.h.b16 %v10962
    %v12007 = vunpack.c.l.b16 %v10963
    %v12008 = vunpack.c.h.b16 %v10963
    %v12009 = vunpack.c.l.b16 %v10964
    %v12010 = vunpack.c.h.b16 %v10964
    %v12011 = vunpack.c.l.b16 %v10965
    %v12012 = vunpack.c.h.b16 %v10965
    %v12013 = vunpack.c.l.b16 %v10966
    %v12014 = vunpack.c.h.b16 %v10966
    %v12015 = vunpack.c.l.b16 %v10967
    %v12016 = vunpack.c.h.b16 %v10967
    %v12017 = vunpack.c.l.b16 %v10968
    %v12018 = vunpack.c.h.b16 %v10968
    %v12019 = vunpack.c.l.b16 %v10969
    %v12020 = vunpack.c.h.b16 %v10969
    %v12021 = vunpack.c.l.b16 %v10970
    %v12022 = vunpack.c.h.b16 %v10970
    %v12023 = vunpack.c.l.b16 %v10971
    %v12024 = vunpack.c.h.b16 %v10971
    %v12025 = vunpack.c.l.b16 %v10972
    %v12026 = vunpack.c.h.b16 %v10972
    %v12027 = vunpack.c.l.b16 %v10973
    %v12028 = vunpack.c.h.b16 %v10973
    %v12029 = vunpack.c.l.b16 %v10974
    %v12030 = vunpack.c.h.b16 %v10974
    %v12031 = vunpack.c.l.b16 %v10975
    %v12032 = vunpack.c.h.b16 %v10975
    %v12033 = vunpack.c.l.b16 %v10976
    %v12034 = vunpack.c.h.b16 %v10976
    %v12035 = vunpack.c.l.b16 %v10977
    %v12036 = vunpack.c.h.b16 %v10977
    %v12037 = vunpack.c.l.b16 %v10978
    %v12038 = vunpack.c.h.b16 %v10978
    %v12039 = vunpack.c.l.b16 %v10979
    %v12040 = vunpack.c.h.b16 %v10979
    %v12041 = vunpack.c.l.b16 %v10980
    %v12042 = vunpack.c.h.b16 %v10980
    %v12043 = vunpack.c.l.b16 %v10981
    %v12044 = vunpack.c.h.b16 %v10981
    %v12045 = vunpack.c.l.b16 %v10982
    %v12046 = vunpack.c.h.b16 %v10982
    %v12047 = vunpack.c.l.b16 %v10983
    %v12048 = vunpack.c.h.b16 %v10983
    %v12049 = vunpack.c.l.b16 %v10984
    %v12050 = vunpack.c.h.b16 %v10984
    %v12051 = vunpack.c.l.b16 %v10985
    %v12052 = vunpack.c.h.b16 %v10985
    %v12053 = vunpack.c.l.b16 %v10986
    %v12054 = vunpack.c.h.b16 %v10986
    %v12055 = vunpack.c.l.b16 %v10987
    %v12056 = vunpack.c.h.b16 %v10987
    %v12057 = vunpack.c.l.b16 %v10988
    %v12058 = vunpack.c.h.b16 %v10988
    %v12059 = vunpack.c.l.b16 %v10989
    %v12060 = vunpack.c.h.b16 %v10989
    %v12061 = vunpack.c.l.b16 %v10990
    %v12062 = vunpack.c.h.b16 %v10990
    %v12063 = vunpack.c.l.b16 %v10991
    %v12064 = vunpack.c.h.b16 %v10991
    %v12065 = vunpack.c.l.b16 %v10992
    %v12066 = vunpack.c.h.b16 %v10992
    %v12067 = vunpack.c.l.b16 %v10993
    %v12068 = vunpack.c.h.b16 %v10993
    %v12069 = vunpack.c.l.b16 %v10994
    %v12070 = vunpack.c.h.b16 %v10994
    %v12071 = vunpack.c.l.b16 %v10995
    %v12072 = vunpack.c.h.b16 %v10995
    %v12073 = vunpack.c.l.b16 %v10996
    %v12074 = vunpack.c.h.b16 %v10996
    %v12075 = vunpack.c.l.b16 %v10997
    %v12076 = vunpack.c.h.b16 %v10997
    %v12077 = vunpack.c.l.b16 %v10998
    %v12078 = vunpack.c.h.b16 %v10998
    %v12079 = vunpack.c.l.b16 %v10999
    %v12080 = vunpack.c.h.b16 %v10999
    %v12081 = vunpack.c.l.b16 %v11000
    %v12082 = vunpack.c.h.b16 %v11000
    %v12083 = vunpack.c.l.b16 %v11001
    %v12084 = vunpack.c.h.b16 %v11001
    %v12085 = vunpack.c.l.b16 %v11002
    %v12086 = vunpack.c.h.b16 %v11002
    %v12087 = vunpack.c.l.b16 %v11003
    %v12088 = vunpack.c.h.b16 %v11003
    %v12089 = vunpack.c.l.b16 %v11004
    %v12090 = vunpack.c.h.b16 %v11004
    %v12091 = vunpack.c.l.b16 %v11005
    %v12092 = vunpack.c.h.b16 %v11005
    %v12093 = vunpack.c.l.b16 %v11006
    %v12094 = vunpack.c.h.b16 %v11006
    %v12095 = vunpack.c.l.b16 %v11007
    %v12096 = vunpack.c.h.b16 %v11007
    %v12097 = vunpack.c.l.b16 %v11008
    %v12098 = vunpack.c.h.b16 %v11008
    %v12099 = vunpack.c.l.b16 %v11009
    %v12100 = vunpack.c.h.b16 %v11009
    %v12101 = vunpack.c.l.b16 %v11010
    %v12102 = vunpack.c.h.b16 %v11010
    %v12103 = vunpack.c.l.b16 %v11011
    %v12104 = vunpack.c.h.b16 %v11011
    %v12105 = vunpack.c.l.b16 %v11012
    %v12106 = vunpack.c.h.b16 %v11012
    %v12107 = vunpack.c.l.b16 %v11013
    %v12108 = vunpack.c.h.b16 %v11013
    %v12109 = vunpack.c.l.b16 %v11014
    %v12110 = vunpack.c.h.b16 %v11014
    %v12111 = vunpack.c.l.b16 %v11015
    %v12112 = vunpack.c.h.b16 %v11015
    %v12113 = vunpack.c.l.b16 %v11016
    %v12114 = vunpack.c.h.b16 %v11016
    %v12115 = vunpack.c.l.b16 %v11017
    %v12116 = vunpack.c.h.b16 %v11017
    %v12117 = vunpack.c.l.b16 %v11018
    %v12118 = vunpack.c.h.b16 %v11018
    %v12119 = vunpack.c.l.b16 %v11019
    %v12120 = vunpack.c.h.b16 %v11019
    %v12121 = vunpack.c.l.b16 %v11020
    %v12122 = vunpack.c.h.b16 %v11020
    %v12123 = vunpack.c.l.b16 %v11021
    %v12124 = vunpack.c.h.b16 %v11021
    %v12125 = vunpack.c.l.b16 %v11022
    %v12126 = vunpack.c.h.b16 %v11022
    %v12127 = vunpack.c.l.b16 %v11023
    %v12128 = vunpack.c.h.b16 %v11023
    %v12129 = vunpack.c.l.b16 %v11024
    %v12130 = vunpack.c.h.b16 %v11024
    %v12131 = vunpack.c.l.b16 %v11025
    %v12132 = vunpack.c.h.b16 %v11025
    %v12133 = vunpack.c.l.b16 %v11026
    %v12134 = vunpack.c.h.b16 %v11026
    %v12135 = vunpack.c.l.b16 %v11027
    %v12136 = vunpack.c.h.b16 %v11027
    %v12137 = vunpack.c.l.b16 %v11028
    %v12138 = vunpack.c.h.b16 %v11028
    %v12139 = vunpack.c.l.b16 %v11029
    %v12140 = vunpack.c.h.b16 %v11029
    %v12141 = vunpack.c.l.b16 %v11030
    %v12142 = vunpack.c.h.b16 %v11030
    %v12143 = vunpack.c.l.b16 %v11031
    %v12144 = vunpack.c.h.b16 %v11031
    %v12145 = vunpack.c.l.b16 %v11032
    %v12146 = vunpack.c.h.b16 %v11032
    %v12147 = vunpack.c.l.b16 %v11033
    %v12148 = vunpack.c.h.b16 %v11033
    %v12149 = vunpack.c.l.b16 %v11034
    %v12150 = vunpack.c.h.b16 %v11034
    %v12151 = vunpack.c.l.b16 %v11035
    %v12152 = vunpack.c.h.b16 %v11035
    %v12153 = vunpack.c.l.b16 %v11036
    %v12154 = vunpack.c.h.b16 %v11036
    %v12155 = vunpack.c.l.b16 %v11037
    %v12156 = vunpack.c.h.b16 %v11037
    %v12157 = vunpack.c.l.b16 %v11038
    %v12158 = vunpack.c.h.b16 %v11038
    %v12159 = vunpack.c.l.b16 %v11039
    %v12160 = vunpack.c.h.b16 %v11039
    %v12161 = vunpack.c.l.b16 %v11040
    %v12162 = vunpack.c.h.b16 %v11040
    %v12163 = vunpack.c.l.b16 %v11041
    %v12164 = vunpack.c.h.b16 %v11041
    %v12165 = vunpack.c.l.b16 %v11042
    %v12166 = vunpack.c.h.b16 %v11042
    %v12167 = vunpack.c.l.b16 %v11043
    %v12168 = vunpack.c.h.b16 %v11043
    %v12169 = vunpack.c.l.b16 %v11044
    %v12170 = vunpack.c.h.b16 %v11044
    %v12171 = vunpack.c.l.b16 %v11045
    %v12172 = vunpack.c.h.b16 %v11045
    %v12173 = vunpack.c.l.b16 %v11046
    %v12174 = vunpack.c.h.b16 %v11046
    %v12175 = vunpack.c.l.b16 %v11047
    %v12176 = vunpack.c.h.b16 %v11047
    %v12177 = vunpack.c.l.b16 %v11048
    %v12178 = vunpack.c.h.b16 %v11048
    %v12179 = vunpack.c.l.b16 %v11049
    %v12180 = vunpack.c.h.b16 %v11049
    %v12181 = vunpack.c.l.b16 %v11050
    %v12182 = vunpack.c.h.b16 %v11050
    %v12183 = vunpack.c.l.b16 %v11051
    %v12184 = vunpack.c.h.b16 %v11051
    %v12185 = vunpack.c.l.b16 %v11052
    %v12186 = vunpack.c.h.b16 %v11052
    %v12187 = vunpack.c.l.b16 %v11053
    %v12188 = vunpack.c.h.b16 %v11053
    %v12189 = vunpack.c.l.b16 %v11054
    %v12190 = vunpack.c.h.b16 %v11054
    %v12191 = vunpack.c.l.b16 %v11055
    %v12192 = vunpack.c.h.b16 %v11055
    %v12193 = vunpack.c.l.b16 %v11056
    %v12194 = vunpack.c.h.b16 %v11056
    %v12195 = vunpack.c.l.b16 %v11057
    %v12196 = vunpack.c.h.b16 %v11057
    %v12197 = vunpack.c.l.b16 %v11058
    %v12198 = vunpack.c.h.b16 %v11058
    %v12199 = vunpack.c.l.b16 %v11059
    %v12200 = vunpack.c.h.b16 %v11059
    %v12201 = vunpack.c.l.b16 %v11060
    %v12202 = vunpack.c.h.b16 %v11060
    %v12203 = vunpack.c.l.b16 %v11061
    %v12204 = vunpack.c.h.b16 %v11061
    %v12205 = vunpack.c.l.b16 %v11062
    %v12206 = vunpack.c.h.b16 %v11062
    %v12207 = vunpack.c.l.b16 %v11063
    %v12208 = vunpack.c.h.b16 %v11063
    %v12209 = vunpack.c.l.b16 %v11064
    %v12210 = vunpack.c.h.b16 %v11064
    %v12211 = vunpack.c.l.b16 %v11065
    %v12212 = vunpack.c.h.b16 %v11065
    %v12213 = vunpack.c.l.b16 %v11066
    %v12214 = vunpack.c.h.b16 %v11066
    %v12215 = vunpack.c.l.b16 %v11067
    %v12216 = vunpack.c.h.b16 %v11067
    %v12217 = vunpack.c.l.b16 %v11068
    %v12218 = vunpack.c.h.b16 %v11068
    %v12219 = vunpack.c.l.b16 %v11069
    %v12220 = vunpack.c.h.b16 %v11069
    %v12221 = vunpack.c.l.b16 %v11070
    %v12222 = vunpack.c.h.b16 %v11070
    %v12223 = vunpack.c.l.b16 %v11071
    %v12224 = vunpack.c.h.b16 %v11071
    %v12225 = vunpack.c.l.b16 %v11072
    %v12226 = vunpack.c.h.b16 %v11072
    %v12227 = vunpack.c.l.b16 %v11073
    %v12228 = vunpack.c.h.b16 %v11073
    %v12229 = vunpack.c.l.b16 %v11074
    %v12230 = vunpack.c.h.b16 %v11074
    %v12231 = vunpack.c.l.b16 %v11075
    %v12232 = vunpack.c.h.b16 %v11075
    %v12233 = vunpack.c.l.b16 %v11076
    %v12234 = vunpack.c.h.b16 %v11076
    %v12235 = vunpack.c.l.b16 %v11077
    %v12236 = vunpack.c.h.b16 %v11077
    %v12237 = vunpack.c.l.b16 %v11078
    %v12238 = vunpack.c.h.b16 %v11078
    %v12239 = vunpack.c.l.b16 %v11079
    %v12240 = vunpack.c.h.b16 %v11079
    %v12241 = vunpack.c.l.b16 %v11080
    %v12242 = vunpack.c.h.b16 %v11080
    %v12243 = vunpack.c.l.b16 %v11081
    %v12244 = vunpack.c.h.b16 %v11081
    %v12245 = vunpack.c.l.b16 %v11082
    %v12246 = vunpack.c.h.b16 %v11082
    %v12247 = vunpack.c.l.b16 %v11083
    %v12248 = vunpack.c.h.b16 %v11083
    %v12249 = vunpack.c.l.b16 %v11084
    %v12250 = vunpack.c.h.b16 %v11084
    %v12251 = vunpack.c.l.b16 %v11085
    %v12252 = vunpack.c.h.b16 %v11085
    %v12253 = vunpack.c.l.b16 %v11086
    %v12254 = vunpack.c.h.b16 %v11086
    %v12255 = vunpack.c.l.b16 %v11087
    %v12256 = vunpack.c.h.b16 %v11087
    %v12257 = vunpack.c.l.b16 %v11088
    %v12258 = vunpack.c.h.b16 %v11088
    %v12259 = vunpack.c.l.b16 %v11089
    %v12260 = vunpack.c.h.b16 %v11089
    %v12261 = vunpack.c.l.b16 %v11090
    %v12262 = vunpack.c.h.b16 %v11090
    %v12263 = vunpack.c.l.b16 %v11091
    %v12264 = vunpack.c.h.b16 %v11091
    %v12265 = vunpack.c.l.b16 %v11092
    %v12266 = vunpack.c.h.b16 %v11092
    %v12267 = vunpack.c.l.b16 %v11093
    %v12268 = vunpack.c.h.b16 %v11093
    %v12269 = vunpack.c.l.b16 %v11094
    %v12270 = vunpack.c.h.b16 %v11094
    %v12271 = vunpack.c.l.b16 %v11095
    %v12272 = vunpack.c.h.b16 %v11095
    %v12273 = vunpack.c.l.b16 %v11096
    %v12274 = vunpack.c.h.b16 %v11096
    %v12275 = vunpack.c.l.b16 %v11097
    %v12276 = vunpack.c.h.b16 %v11097
    %v12277 = vunpack.c.l.b16 %v11098
    %v12278 = vunpack.c.h.b16 %v11098
    %v12279 = vunpack.c.l.b16 %v11099
    %v12280 = vunpack.c.h.b16 %v11099
    %v12281 = vunpack.c.l.b16 %v11100
    %v12282 = vunpack.c.h.b16 %v11100
    %v12283 = vunpack.c.l.b16 %v11101
    %v12284 = vunpack.c.h.b16 %v11101
    %v12285 = vunpack.c.l.b16 %v11102
    %v12286 = vunpack.c.h.b16 %v11102
    %v12287 = vunpack.c.l.b16 %v11103
    %v12288 = vunpack.c.h.b16 %v11103
    %v12289 = vunpack.c.l.b16 %v11104
    %v12290 = vunpack.c.h.b16 %v11104
    %v12291 = vunpack.c.l.b16 %v11105
    %v12292 = vunpack.c.h.b16 %v11105
    %v12293 = vunpack.c.l.b16 %v11106
    %v12294 = vunpack.c.h.b16 %v11106
    %v12295 = vunpack.c.l.b16 %v11107
    %v12296 = vunpack.c.h.b16 %v11107
    %v12297 = vunpack.c.l.b16 %v11108
    %v12298 = vunpack.c.h.b16 %v11108
    %v12299 = vunpack.c.l.b16 %v11109
    %v12300 = vunpack.c.h.b16 %v11109
    %v12301 = vunpack.c.l.b16 %v11110
    %v12302 = vunpack.c.h.b16 %v11110
    %v12303 = vunpack.c.l.b16 %v11111
    %v12304 = vunpack.c.h.b16 %v11111
    %v12305 = vunpack.c.l.b16 %v11112
    %v12306 = vunpack.c.h.b16 %v11112
    %v12307 = vunpack.c.l.b16 %v11113
    %v12308 = vunpack.c.h.b16 %v11113
    %v12309 = vunpack.c.l.b16 %v11114
    %v12310 = vunpack.c.h.b16 %v11114
    %v12311 = vunpack.c.l.b16 %v11115
    %v12312 = vunpack.c.h.b16 %v11115
    %v12313 = vunpack.c.l.b16 %v11116
    %v12314 = vunpack.c.h.b16 %v11116
    %v12315 = vunpack.c.l.b16 %v11117
    %v12316 = vunpack.c.h.b16 %v11117
    %v12317 = vunpack.c.l.b16 %v11118
    %v12318 = vunpack.c.h.b16 %v11118
    %v12319 = vunpack.c.l.b16 %v11119
    %v12320 = vunpack.c.h.b16 %v11119
    %v12321 = vunpack.c.l.b16 %v11120
    %v12322 = vunpack.c.h.b16 %v11120
    %v12323 = vunpack.c.l.b16 %v11121
    %v12324 = vunpack.c.h.b16 %v11121
    %v12325 = vunpack.c.l.b16 %v11122
    %v12326 = vunpack.c.h.b16 %v11122
    %v12327 = vunpack.c.l.b16 %v11123
    %v12328 = vunpack.c.h.b16 %v11123
    %v12329 = vunpack.c.l.b16 %v11124
    %v12330 = vunpack.c.h.b16 %v11124
    %v12331 = vunpack.c.l.b16 %v11125
    %v12332 = vunpack.c.h.b16 %v11125
    %v12333 = vunpack.c.l.b16 %v11126
    %v12334 = vunpack.c.h.b16 %v11126
    %v12335 = vunpack.c.l.b16 %v11127
    %v12336 = vunpack.c.h.b16 %v11127
    %v12337 = vunpack.c.l.b16 %v11128
    %v12338 = vunpack.c.h.b16 %v11128
    %v12339 = vunpack.c.l.b16 %v11129
    %v12340 = vunpack.c.h.b16 %v11129
    %v12341 = vunpack.c.l.b16 %v11130
    %v12342 = vunpack.c.h.b16 %v11130
    %v12343 = vunpack.c.l.b16 %v11131
    %v12344 = vunpack.c.h.b16 %v11131
    %v12345 = vunpack.c.l.b16 %v11132
    %v12346 = vunpack.c.h.b16 %v11132
    %v12347 = vunpack.c.l.b16 %v11133
    %v12348 = vunpack.c.h.b16 %v11133
    %v12349 = vunpack.c.l.b16 %v11134
    %v12350 = vunpack.c.h.b16 %v11134
    %v12351 = vunpack.c.l.b16 %v11135
    %v12352 = vunpack.c.h.b16 %v11135
    %v12353 = vunpack.c.l.b16 %v11136
    %v12354 = vunpack.c.h.b16 %v11136
    %v12355 = vunpack.c.l.b16 %v11137
    %v12356 = vunpack.c.h.b16 %v11137
    %v12357 = vunpack.c.l.b16 %v11138
    %v12358 = vunpack.c.h.b16 %v11138
    %v12359 = vunpack.c.l.b16 %v11139
    %v12360 = vunpack.c.h.b16 %v11139
    %v12361 = vunpack.c.l.b16 %v11140
    %v12362 = vunpack.c.h.b16 %v11140
    %v12363 = vunpack.c.l.b16 %v11141
    %v12364 = vunpack.c.h.b16 %v11141
    %v12365 = vunpack.c.l.b16 %v11142
    %v12366 = vunpack.c.h.b16 %v11142
    %v12367 = vunpack.c.l.b16 %v11143
    %v12368 = vunpack.c.h.b16 %v11143
    %v12369 = vunpack.c.l.b16 %v11144
    %v12370 = vunpack.c.h.b16 %v11144
    %v12371 = vunpack.c.l.b16 %v11145
    %v12372 = vunpack.c.h.b16 %v11145
    %v12373 = vunpack.c.l.b16 %v11146
    %v12374 = vunpack.c.h.b16 %v11146
    %v12375 = vunpack.c.l.b16 %v11147
    %v12376 = vunpack.c.h.b16 %v11147
    %v12377 = vunpack.c.l.b16 %v11148
    %v12378 = vunpack.c.h.b16 %v11148
    %v12379 = vunpack.c.l.b16 %v11149
    %v12380 = vunpack.c.h.b16 %v11149
    %v12381 = vunpack.c.l.b16 %v11150
    %v12382 = vunpack.c.h.b16 %v11150
    %v12383 = vunpack.c.l.b16 %v11151
    %v12384 = vunpack.c.h.b16 %v11151
    %v12385 = vunpack.c.l.b16 %v11152
    %v12386 = vunpack.c.h.b16 %v11152
    %v12387 = vunpack.c.l.b16 %v11153
    %v12388 = vunpack.c.h.b16 %v11153
    %v12389 = vunpack.c.l.b16 %v11154
    %v12390 = vunpack.c.h.b16 %v11154
    %v12391 = vunpack.c.l.b16 %v11155
    %v12392 = vunpack.c.h.b16 %v11155
    %v12393 = vunpack.c.l.b16 %v11156
    %v12394 = vunpack.c.h.b16 %v11156
    %v12395 = vunpack.c.l.b16 %v11157
    %v12396 = vunpack.c.h.b16 %v11157
    %v12397 = vunpack.c.l.b16 %v11158
    %v12398 = vunpack.c.h.b16 %v11158
    %v12399 = vunpack.c.l.b16 %v11159
    %v12400 = vunpack.c.h.b16 %v11159
    %v12401 = vunpack.c.l.b16 %v11160
    %v12402 = vunpack.c.h.b16 %v11160
    %v12403 = vunpack.c.l.b16 %v11161
    %v12404 = vunpack.c.h.b16 %v11161
    %v12405 = vunpack.c.l.b16 %v11162
    %v12406 = vunpack.c.h.b16 %v11162
    %v12407 = vunpack.c.l.b16 %v11163
    %v12408 = vunpack.c.h.b16 %v11163
    %v12409 = vunpack.c.l.b16 %v11164
    %v12410 = vunpack.c.h.b16 %v11164
    %v12411 = vunpack.c.l.b16 %v11165
    %v12412 = vunpack.c.h.b16 %v11165
    %v12413 = vunpack.c.l.b16 %v11166
    %v12414 = vunpack.c.h.b16 %v11166
    %v12415 = vunpack.c.l.b16 %v11167
    %v12416 = vunpack.c.h.b16 %v11167
    %v12417 = vunpack.c.l.b16 %v11168
    %v12418 = vunpack.c.h.b16 %v11168
    %v12419 = vunpack.c.l.b16 %v11169
    %v12420 = vunpack.c.h.b16 %v11169
    %v12421 = vunpack.c.l.b16 %v11170
    %v12422 = vunpack.c.h.b16 %v11170
    %v12423 = vunpack.c.l.b16 %v11171
    %v12424 = vunpack.c.h.b16 %v11171
    %v12425 = vunpack.c.l.b16 %v11172
    %v12426 = vunpack.c.h.b16 %v11172
    %v12427 = vunpack.c.l.b16 %v11173
    %v12428 = vunpack.c.h.b16 %v11173
    %v12429 = vunpack.c.l.b16 %v11174
    %v12430 = vunpack.c.h.b16 %v11174
    %v12431 = vunpack.c.l.b16 %v11175
    %v12432 = vunpack.c.h.b16 %v11175
    %v12433 = vunpack.c.l.b16 %v11176
    %v12434 = vunpack.c.h.b16 %v11176
    %v12435 = vunpack.c.l.b16 %v11177
    %v12436 = vunpack.c.h.b16 %v11177
    %v12437 = vunpack.c.l.b16 %v11178
    %v12438 = vunpack.c.h.b16 %v11178
    %v12439 = vunpack.c.l.b16 %v11179
    %v12440 = vunpack.c.h.b16 %v11179
    %v12441 = vunpack.c.l.b16 %v11180
    %v12442 = vunpack.c.h.b16 %v11180
    %v12443 = vunpack.c.l.b16 %v11181
    %v12444 = vunpack.c.h.b16 %v11181
    %v12445 = vunpack.c.l.b16 %v11182
    %v12446 = vunpack.c.h.b16 %v11182
    %v12447 = vunpack.c.l.b16 %v11183
    %v12448 = vunpack.c.h.b16 %v11183
    %v12449 = vunpack.c.l.b16 %v11184
    %v12450 = vunpack.c.h.b16 %v11184
    %v12451 = vunpack.c.l.b16 %v11185
    %v12452 = vunpack.c.h.b16 %v11185
    %v12453 = vunpack.c.l.b16 %v11186
    %v12454 = vunpack.c.h.b16 %v11186
    %v12455 = vunpack.c.l.b16 %v11187
    %v12456 = vunpack.c.h.b16 %v11187
    %v12457 = vunpack.c.l.b16 %v11188
    %v12458 = vunpack.c.h.b16 %v11188
    %v12459 = vunpack.c.l.b16 %v11189
    %v12460 = vunpack.c.h.b16 %v11189
    %v12461 = vunpack.c.l.b16 %v11190
    %v12462 = vunpack.c.h.b16 %v11190
    %v12463 = vunpack.c.l.b16 %v11191
    %v12464 = vunpack.c.h.b16 %v11191
    %v12465 = vunpack.c.l.b16 %v11192
    %v12466 = vunpack.c.h.b16 %v11192
    %v12467 = vunpack.c.l.b16 %v11193
    %v12468 = vunpack.c.h.b16 %v11193
    %v12469 = vunpack.c.l.b16 %v11194
    %v12470 = vunpack.c.h.b16 %v11194
    %v12471 = vunpack.c.l.b16 %v11195
    %v12472 = vunpack.c.h.b16 %v11195
    %v12473 = vunpack.c.l.b16 %v11196
    %v12474 = vunpack.c.h.b16 %v11196
    %v12475 = vunpack.c.l.b16 %v11197
    %v12476 = vunpack.c.h.b16 %v11197
    %v12477 = vunpack.c.l.b16 %v11198
    %v12478 = vunpack.c.h.b16 %v11198
    %v12479 = vunpack.c.l.b16 %v11199
    %v12480 = vunpack.c.h.b16 %v11199
    %v12481 = vunpack.c.l.b16 %v11200
    %v12482 = vunpack.c.h.b16 %v11200
    %v12483 = vunpack.c.l.b16 %v11201
    %v12484 = vunpack.c.h.b16 %v11201
    %v12485 = vunpack.c.l.b16 %v11202
    %v12486 = vunpack.c.h.b16 %v11202
    %v12487 = vunpack.c.l.b16 %v11203
    %v12488 = vunpack.c.h.b16 %v11203
    %v12489 = vunpack.c.l.b16 %v11204
    %v12490 = vunpack.c.h.b16 %v11204
    %v12491 = vunpack.c.l.b16 %v11205
    %v12492 = vunpack.c.h.b16 %v11205
    %v12493 = vunpack.c.l.b16 %v11206
    %v12494 = vunpack.c.h.b16 %v11206
    %v12495 = vunpack.c.l.b16 %v11207
    %v12496 = vunpack.c.h.b16 %v11207
    %v12497 = vunpack.c.l.b16 %v11208
    %v12498 = vunpack.c.h.b16 %v11208
    %v12499 = vunpack.c.l.b16 %v11209
    %v12500 = vunpack.c.h.b16 %v11209
    %v12501 = vunpack.c.l.b16 %v11210
    %v12502 = vunpack.c.h.b16 %v11210
    %v12503 = vunpack.c.l.b16 %v11211
    %v12504 = vunpack.c.h.b16 %v11211
    %v12505 = vunpack.c.l.b16 %v11212
    %v12506 = vunpack.c.h.b16 %v11212
    %v12507 = vunpack.c.l.b16 %v11213
    %v12508 = vunpack.c.h.b16 %v11213
    %v12509 = vunpack.c.l.b16 %v11214
    %v12510 = vunpack.c.h.b16 %v11214
    %v12511 = vunpack.c.l.b16 %v11215
    %v12512 = vunpack.c.h.b16 %v11215
    %v12513 = vunpack.c.l.b16 %v11216
    %v12514 = vunpack.c.h.b16 %v11216
    %v12515 = vunpack.c.l.b16 %v11217
    %v12516 = vunpack.c.h.b16 %v11217
    %v12517 = vunpack.c.l.b16 %v11218
    %v12518 = vunpack.c.h.b16 %v11218
    %v12519 = vunpack.c.l.b16 %v11219
    %v12520 = vunpack.c.h.b16 %v11219
    %v12521 = vunpack.c.l.b16 %v11220
    %v12522 = vunpack.c.h.b16 %v11220
    %v12523 = vunpack.c.l.b16 %v11221
    %v12524 = vunpack.c.h.b16 %v11221
    %v12525 = vunpack.c.l.b16 %v11222
    %v12526 = vunpack.c.h.b16 %v11222
    %v12527 = vunpack.c.l.b16 %v11223
    %v12528 = vunpack.c.h.b16 %v11223
    %v12529 = vunpack.c.l.b16 %v11224
    %v12530 = vunpack.c.h.b16 %v11224
    %v12531 = vunpack.c.l.b16 %v11225
    %v12532 = vunpack.c.h.b16 %v11225
    %v12533 = vunpack.c.l.b16 %v11226
    %v12534 = vunpack.c.h.b16 %v11226
    %v12535 = vunpack.c.l.b16 %v11227
    %v12536 = vunpack.c.h.b16 %v11227
    %v12537 = vunpack.c.l.b16 %v11228
    %v12538 = vunpack.c.h.b16 %v11228
    %v12539 = vunpack.c.l.b16 %v11229
    %v12540 = vunpack.c.h.b16 %v11229
    %v12541 = vunpack.c.l.b16 %v11230
    %v12542 = vunpack.c.h.b16 %v11230
    %v12543 = vunpack.c.l.b16 %v11231
    %v12544 = vunpack.c.h.b16 %v11231
    %v12545 = vunpack.c.l.b16 %v11232
    %v12546 = vunpack.c.h.b16 %v11232
    %v12547 = vunpack.c.l.b16 %v11233
    %v12548 = vunpack.c.h.b16 %v11233
    %v12549 = vunpack.c.l.b16 %v11234
    %v12550 = vunpack.c.h.b16 %v11234
    %v12551 = vunpack.c.l.b16 %v11235
    %v12552 = vunpack.c.h.b16 %v11235
    %v12553 = vunpack.c.l.b16 %v11236
    %v12554 = vunpack.c.h.b16 %v11236
    %v12555 = vunpack.c.l.b16 %v11237
    %v12556 = vunpack.c.h.b16 %v11237
    %v12557 = vunpack.c.l.b16 %v11238
    %v12558 = vunpack.c.h.b16 %v11238
    %v12559 = vunpack.c.l.b16 %v11239
    %v12560 = vunpack.c.h.b16 %v11239
    %v12561 = vunpack.c.l.b16 %v11240
    %v12562 = vunpack.c.h.b16 %v11240
    %v12563 = vunpack.c.l.b16 %v11241
    %v12564 = vunpack.c.h.b16 %v11241
    %v12565 = vunpack.c.l.b16 %v11242
    %v12566 = vunpack.c.h.b16 %v11242
    %v12567 = vunpack.c.l.b16 %v11243
    %v12568 = vunpack.c.h.b16 %v11243
    %v12569 = vunpack.c.l.b16 %v11244
    %v12570 = vunpack.c.h.b16 %v11244
    %v12571 = vunpack.c.l.b16 %v11245
    %v12572 = vunpack.c.h.b16 %v11245
    %v12573 = vunpack.c.l.b16 %v11246
    %v12574 = vunpack.c.h.b16 %v11246
    %v12575 = vunpack.c.l.b16 %v11247
    %v12576 = vunpack.c.h.b16 %v11247
    %v12577 = vunpack.c.l.b16 %v11248
    %v12578 = vunpack.c.h.b16 %v11248
    %v12579 = vunpack.c.l.b16 %v11249
    %v12580 = vunpack.c.h.b16 %v11249
    %v12581 = vunpack.c.l.b16 %v11250
    %v12582 = vunpack.c.h.b16 %v11250
    %v12583 = vunpack.c.l.b16 %v11251
    %v12584 = vunpack.c.h.b16 %v11251
    %v12585 = vunpack.c.l.b16 %v11252
    %v12586 = vunpack.c.h.b16 %v11252
    %v12587 = vunpack.c.l.b16 %v11253
    %v12588 = vunpack.c.h.b16 %v11253
    %v12589 = vunpack.c.l.b16 %v11254
    %v12590 = vunpack.c.h.b16 %v11254
    %v12591 = vunpack.c.l.b16 %v11255
    %v12592 = vunpack.c.h.b16 %v11255
    %v12593 = vunpack.c.l.b16 %v11256
    %v12594 = vunpack.c.h.b16 %v11256
    %v12595 = vunpack.c.l.b16 %v11257
    %v12596 = vunpack.c.h.b16 %v11257
    %v12597 = vunpack.c.l.b16 %v11258
    %v12598 = vunpack.c.h.b16 %v11258
    %v12599 = vunpack.c.l.b16 %v11259
    %v12600 = vunpack.c.h.b16 %v11259
    %v12601 = vunpack.c.l.b16 %v11260
    %v12602 = vunpack.c.h.b16 %v11260
    %v12603 = vunpack.c.l.b16 %v11261
    %v12604 = vunpack.c.h.b16 %v11261
    %v12605 = vunpack.c.l.b16 %v11262
    %v12606 = vunpack.c.h.b16 %v11262
    %v12607 = vpack.c.b16 %v11719, %v11711
    %v12608 = vpack.c.b16 %v11720, %v11712
    %v12609 = vpack.c.b16 %v11721, %v11713
    %v12610 = vpack.c.b16 %v11722, %v11714
    %v12611 = vpack.c.b16 %v11723, %v11715
    %v12612 = vpack.c.b16 %v11724, %v11716
    %v12613 = vpack.c.b16 %v11725, %v11717
    %v12614 = vpack.c.b16 %v11726, %v11718
    %v12615 = vpack.c.b16 %v11735, %v11727
    %v12616 = vpack.c.b16 %v11736, %v11728
    %v12617 = vpack.c.b16 %v11737, %v11729
    %v12618 = vpack.c.b16 %v11738, %v11730
    %v12619 = vpack.c.b16 %v11739, %v11731
    %v12620 = vpack.c.b16 %v11740, %v11732
    %v12621 = vpack.c.b16 %v11741, %v11733
    %v12622 = vpack.c.b16 %v11742, %v11734
    %v12623 = vpack.c.b16 %v11751, %v11743
    %v12624 = vpack.c.b16 %v11752, %v11744
    %v12625 = vpack.c.b16 %v11753, %v11745
    %v12626 = vpack.c.b16 %v11754, %v11746
    %v12627 = vpack.c.b16 %v11755, %v11747
    %v12628 = vpack.c.b16 %v11756, %v11748
    %v12629 = vpack.c.b16 %v11757, %v11749
    %v12630 = vpack.c.b16 %v11758, %v11750
    %v12631 = vpack.c.b16 %v11767, %v11759
    %v12632 = vpack.c.b16 %v11768, %v11760
    %v12633 = vpack.c.b16 %v11769, %v11761
    %v12634 = vpack.c.b16 %v11770, %v11762
    %v12635 = vpack.c.b16 %v11771, %v11763
    %v12636 = vpack.c.b16 %v11772, %v11764
    %v12637 = vpack.c.b16 %v11773, %v11765
    %v12638 = vpack.c.b16 %v11774, %v11766
    %v12639 = vpack.c.b16 %v11783, %v11775
    %v12640 = vpack.c.b16 %v11784, %v11776
    %v12641 = vpack.c.b16 %v11785, %v11777
    %v12642 = vpack.c.b16 %v11786, %v11778
    %v12643 = vpack.c.b16 %v11787, %v11779
    %v12644 = vpack.c.b16 %v11788, %v11780
    %v12645 = vpack.c.b16 %v11789, %v11781
    %v12646 = vpack.c.b16 %v11790, %v11782
    %v12647 = vpack.c.b16 %v11799, %v11791
    %v12648 = vpack.c.b16 %v11800, %v11792
    %v12649 = vpack.c.b16 %v11801, %v11793
    %v12650 = vpack.c.b16 %v11802, %v11794
    %v12651 = vpack.c.b16 %v11803, %v11795
    %v12652 = vpack.c.b16 %v11804, %v11796
    %v12653 = vpack.c.b16 %v11805, %v11797
    %v12654 = vpack.c.b16 %v11806, %v11798
    %v12655 = vpack.c.b16 %v11815, %v11807
    %v12656 = vpack.c.b16 %v11816, %v11808
    %v12657 = vpack.c.b16 %v11817, %v11809
    %v12658 = vpack.c.b16 %v11818, %v11810
    %v12659 = vpack.c.b16 %v11819, %v11811
    %v12660 = vpack.c.b16 %v11820, %v11812
    %v12661 = vpack.c.b16 %v11821, %v11813
    %v12662 = vpack.c.b16 %v11822, %v11814
    %v12663 = vpack.c.b16 %v11831, %v11823
    %v12664 = vpack.c.b16 %v11832, %v11824
    %v12665 = vpack.c.b16 %v11833, %v11825
    %v12666 = vpack.c.b16 %v11834, %v11826
    %v12667 = vpack.c.b16 %v11835, %v11827
    %v12668 = vpack.c.b16 %v11836, %v11828
    %v12669 = vpack.c.b16 %v11837, %v11829
    %v12670 = vpack.c.b16 %v11838, %v11830
    %v12671 = vpack.c.b16 %v11847, %v11839
    %v12672 = vpack.c.b16 %v11848, %v11840
    %v12673 = vpack.c.b16 %v11849, %v11841
    %v12674 = vpack.c.b16 %v11850, %v11842
    %v12675 = vpack.c.b16 %v11851, %v11843
    %v12676 = vpack.c.b16 %v11852, %v11844
    %v12677 = vpack.c.b16 %v11853, %v11845
    %v12678 = vpack.c.b16 %v11854, %v11846
    %v12679 = vpack.c.b16 %v11863, %v11855
    %v12680 = vpack.c.b16 %v11864, %v11856
    %v12681 = vpack.c.b16 %v11865, %v11857
    %v12682 = vpack.c.b16 %v11866, %v11858
    %v12683 = vpack.c.b16 %v11867, %v11859
    %v12684 = vpack.c.b16 %v11868, %v11860
    %v12685 = vpack.c.b16 %v11869, %v11861
    %v12686 = vpack.c.b16 %v11870, %v11862
    %v12687 = vpack.c.b16 %v11879, %v11871
    %v12688 = vpack.c.b16 %v11880, %v11872
    %v12689 = vpack.c.b16 %v11881, %v11873
    %v12690 = vpack.c.b16 %v11882, %v11874
    %v12691 = vpack.c.b16 %v11883, %v11875
    %v12692 = vpack.c.b16 %v11884, %v11876
    %v12693 = vpack.c.b16 %v11885, %v11877
    %v12694 = vpack.c.b16 %v11886, %v11878
    %v12695 = vpack.c.b16 %v11895, %v11887
    %v12696 = vpack.c.b16 %v11896, %v11888
    %v12697 = vpack.c.b16 %v11897, %v11889
    %v12698 = vpack.c.b16 %v11898, %v11890
    %v12699 = vpack.c.b16 %v11899, %v11891
    %v12700 = vpack.c.b16 %v11900, %v11892
    %v12701 = vpack.c.b16 %v11901, %v11893
    %v12702 = vpack.c.b16 %v11902, %v11894
    %v12703 = vpack.c.b16 %v11911, %v11903
    %v12704 = vpack.c.b16 %v11912, %v11904
    %v12705 = vpack.c.b16 %v11913, %v11905
    %v12706 = vpack.c.b16 %v11914, %v11906
    %v12707 = vpack.c.b16 %v11915, %v11907
    %v12708 = vpack.c.b16 %v11916, %v11908
    %v12709 = vpack.c.b16 %v11917, %v11909
    %v12710 = vpack.c.b16 %v11918, %v11910
    %v12711 = vpack.c.b16 %v11927, %v11919
    %v12712 = vpack.c.b16 %v11928, %v11920
    %v12713 = vpack.c.b16 %v11929, %v11921
    %v12714 = vpack.c.b16 %v11930, %v11922
    %v12715 = vpack.c.b16 %v11931, %v11923
    %v12716 = vpack.c.b16 %v11932, %v11924
    %v12717 = vpack.c.b16 %v11933, %v11925
    %v12718 = vpack.c.b16 %v11934, %v11926
    %v12719 = vpack.c.b16 %v11943, %v11935
    %v12720 = vpack.c.b16 %v11944, %v11936
    %v12721 = vpack.c.b16 %v11945, %v11937
    %v12722 = vpack.c.b16 %v11946, %v11938
    %v12723 = vpack.c.b16 %v11947, %v11939
    %v12724 = vpack.c.b16 %v11948, %v11940
    %v12725 = vpack.c.b16 %v11949, %v11941
    %v12726 = vpack.c.b16 %v11950, %v11942
    %v12727 = vpack.c.b16 %v11959, %v11951
    %v12728 = vpack.c.b16 %v11960, %v11952
    %v12729 = vpack.c.b16 %v11961, %v11953
    %v12730 = vpack.c.b16 %v11962, %v11954
    %v12731 = vpack.c.b16 %v11963, %v11955
    %v12732 = vpack.c.b16 %v11964, %v11956
    %v12733 = vpack.c.b16 %v11965, %v11957
    %v12734 = vpack.c.b16 %v11966, %v11958
    %v12735 = vpack.c.b16 %v11975, %v11967
    %v12736 = vpack.c.b16 %v11976, %v11968
    %v12737 = vpack.c.b16 %v11977, %v11969
    %v12738 = vpack.c.b16 %v11978, %v11970
    %v12739 = vpack.c.b16 %v11979, %v11971
    %v12740 = vpack.c.b16 %v11980, %v11972
    %v12741 = vpack.c.b16 %v11981, %v11973
    %v12742 = vpack.c.b16 %v11982, %v11974
    %v12743 = vpack.c.b16 %v11991, %v11983
    %v12744 = vpack.c.b16 %v11992, %v11984
    %v12745 = vpack.c.b16 %v11993, %v11985
    %v12746 = vpack.c.b16 %v11994, %v11986
    %v12747 = vpack.c.b16 %v11995, %v11987
    %v12748 = vpack.c.b16 %v11996, %v11988
    %v12749 = vpack.c.b16 %v11997, %v11989
    %v12750 = vpack.c.b16 %v11998, %v11990
    %v12751 = vpack.c.b16 %v12007, %v11999
    %v12752 = vpack.c.b16 %v12008, %v12000
    %v12753 = vpack.c.b16 %v12009, %v12001
    %v12754 = vpack.c.b16 %v12010, %v12002
    %v12755 = vpack.c.b16 %v12011, %v12003
    %v12756 = vpack.c.b16 %v12012, %v12004
    %v12757 = vpack.c.b16 %v12013, %v12005
    %v12758 = vpack.c.b16 %v12014, %v12006
    %v12759 = vpack.c.b16 %v12023, %v12015
    %v12760 = vpack.c.b16 %v12024, %v12016
    %v12761 = vpack.c.b16 %v12025, %v12017
    %v12762 = vpack.c.b16 %v12026, %v12018
    %v12763 = vpack.c.b16 %v12027, %v12019
    %v12764 = vpack.c.b16 %v12028, %v12020
    %v12765 = vpack.c.b16 %v12029, %v12021
    %v12766 = vpack.c.b16 %v12030, %v12022
    %v12767 = vpack.c.b16 %v12039, %v12031
    %v12768 = vpack.c.b16 %v12040, %v12032
    %v12769 = vpack.c.b16 %v12041, %v12033
    %v12770 = vpack.c.b16 %v12042, %v12034
    %v12771 = vpack.c.b16 %v12043, %v12035
    %v12772 = vpack.c.b16 %v12044, %v12036
    %v12773 = vpack.c.b16 %v12045, %v12037
    %v12774 = vpack.c.b16 %v12046, %v12038
    %v12775 = vpack.c.b16 %v12055, %v12047
    %v12776 = vpack.c.b16 %v12056, %v12048
    %v12777 = vpack.c.b16 %v12057, %v12049
    %v12778 = vpack.c.b16 %v12058, %v12050
    %v12779 = vpack.c.b16 %v12059, %v12051
    %v12780 = vpack.c.b16 %v12060, %v12052
    %v12781 = vpack.c.b16 %v12061, %v12053
    %v12782 = vpack.c.b16 %v12062, %v12054
    %v12783 = vpack.c.b16 %v12071, %v12063
    %v12784 = vpack.c.b16 %v12072, %v12064
    %v12785 = vpack.c.b16 %v12073, %v12065
    %v12786 = vpack.c.b16 %v12074, %v12066
    %v12787 = vpack.c.b16 %v12075, %v12067
    %v12788 = vpack.c.b16 %v12076, %v12068
    %v12789 = vpack.c.b16 %v12077, %v12069
    %v12790 = vpack.c.b16 %v12078, %v12070
    %v12791 = vpack.c.b16 %v12087, %v12079
    %v12792 = vpack.c.b16 %v12088, %v12080
    %v12793 = vpack.c.b16 %v12089, %v12081
    %v12794 = vpack.c.b16 %v12090, %v12082
    %v12795 = vpack.c.b16 %v12091, %v12083
    %v12796 = vpack.c.b16 %v12092, %v12084
    %v12797 = vpack.c.b16 %v12093, %v12085
    %v12798 = vpack.c.b16 %v12094, %v12086
    %v12799 = vpack.c.b16 %v12103, %v12095
    %v12800 = vpack.c.b16 %v12104, %v12096
    %v12801 = vpack.c.b16 %v12105, %v12097
    %v12802 = vpack.c.b16 %v12106, %v12098
    %v12803 = vpack.c.b16 %v12107, %v12099
    %v12804 = vpack.c.b16 %v12108, %v12100
    %v12805 = vpack.c.b16 %v12109, %v12101
    %v12806 = vpack.c.b16 %v12110, %v12102
    %v12807 = vpack.c.b16 %v12119, %v12111
    %v12808 = vpack.c.b16 %v12120, %v12112
    %v12809 = vpack.c.b16 %v12121, %v12113
    %v12810 = vpack.c.b16 %v12122, %v12114
    %v12811 = vpack.c.b16 %v12123, %v12115
    %v12812 = vpack.c.b16 %v12124, %v12116
    %v12813 = vpack.c.b16 %v12125, %v12117
    %v12814 = vpack.c.b16 %v12126, %v12118
    %v12815 = vpack.c.b16 %v12135, %v12127
    %v12816 = vpack.c.b16 %v12136, %v12128
    %v12817 = vpack.c.b16 %v12137, %v12129
    %v12818 = vpack.c.b16 %v12138, %v12130
    %v12819 = vpack.c.b16 %v12139, %v12131
    %v12820 = vpack.c.b16 %v12140, %v12132
    %v12821 = vpack.c.b16 %v12141, %v12133
    %v12822 = vpack.c.b16 %v12142, %v12134
    %v12823 = vpack.c.b16 %v12151, %v12143
    %v12824 = vpack.c.b16 %v12152, %v12144
    %v12825 = vpack.c.b16 %v12153, %v12145
    %v12826 = vpack.c.b16 %v12154, %v12146
    %v12827 = vpack.c.b16 %v12155, %v12147
    %v12828 = vpack.c.b16 %v12156, %v12148
    %v12829 = vpack.c.b16 %v12157, %v12149
    %v12830 = vpack.c.b16 %v12158, %v12150
    %v12831 = vpack.c.b16 %v12167, %v12159
    %v12832 = vpack.c.b16 %v12168, %v12160
    %v12833 = vpack.c.b16 %v12169, %v12161
    %v12834 = vpack.c.b16 %v12170, %v12162
    %v12835 = vpack.c.b16 %v12171, %v12163
    %v12836 = vpack.c.b16 %v12172, %v12164
    %v12837 = vpack.c.b16 %v12173, %v12165
    %v12838 = vpack.c.b16 %v12174, %v12166
    %v12839 = vpack.c.b16 %v12183, %v12175
    %v12840 = vpack.c.b16 %v12184, %v12176
    %v12841 = vpack.c.b16 %v12185, %v12177
    %v12842 = vpack.c.b16 %v12186, %v12178
    %v12843 = vpack.c.b16 %v12187, %v12179
    %v12844 = vpack.c.b16 %v12188, %v12180
    %v12845 = vpack.c.b16 %v12189, %v12181
    %v12846 = vpack.c.b16 %v12190, %v12182
    %v12847 = vpack.c.b16 %v12199, %v12191
    %v12848 = vpack.c.b16 %v12200, %v12192
    %v12849 = vpack.c.b16 %v12201, %v12193
    %v12850 = vpack.c.b16 %v12202, %v12194
    %v12851 = vpack.c.b16 %v12203, %v12195
    %v12852 = vpack.c.b16 %v12204, %v12196
    %v12853 = vpack.c.b16 %v12205, %v12197
    %v12854 = vpack.c.b16 %v12206, %v12198
    %v12855 = vpack.c.b16 %v12215, %v12207
    %v12856 = vpack.c.b16 %v12216, %v12208
    %v12857 = vpack.c.b16 %v12217, %v12209
    %v12858 = vpack.c.b16 %v12218, %v12210
    %v12859 = vpack.c.b16 %v12219, %v12211
    %v12860 = vpack.c.b16 %v12220, %v12212
    %v12861 = vpack.c.b16 %v12221, %v12213
    %v12862 = vpack.c.b16 %v12222, %v12214
    %v12863 = vpack.c.b16 %v12231, %v12223
    %v12864 = vpack.c.b16 %v12232, %v12224
    %v12865 = vpack.c.b16 %v12233, %v12225
    %v12866 = vpack.c.b16 %v12234, %v12226
    %v12867 = vpack.c.b16 %v12235, %v12227
    %v12868 = vpack.c.b16 %v12236, %v12228
    %v12869 = vpack.c.b16 %v12237, %v12229
    %v12870 = vpack.c.b16 %v12238, %v12230
    %v12871 = vpack.c.b16 %v12247, %v12239
    %v12872 = vpack.c.b16 %v12248, %v12240
    %v12873 = vpack.c.b16 %v12249, %v12241
    %v12874 = vpack.c.b16 %v12250, %v12242
    %v12875 = vpack.c.b16 %v12251, %v12243
    %v12876 = vpack.c.b16 %v12252, %v12244
    %v12877 = vpack.c.b16 %v12253, %v12245
    %v12878 = vpack.c.b16 %v12254, %v12246
    %v12879 = vpack.c.b16 %v12263, %v12255
    %v12880 = vpack.c.b16 %v12264, %v12256
    %v12881 = vpack.c.b16 %v12265, %v12257
    %v12882 = vpack.c.b16 %v12266, %v12258
    %v12883 = vpack.c.b16 %v12267, %v12259
    %v12884 = vpack.c.b16 %v12268, %v12260
    %v12885 = vpack.c.b16 %v12269, %v12261
    %v12886 = vpack.c.b16 %v12270, %v12262
    %v12887 = vpack.c.b16 %v12279, %v12271
    %v12888 = vpack.c.b16 %v12280, %v12272
    %v12889 = vpack.c.b16 %v12281, %v12273
    %v12890 = vpack.c.b16 %v12282, %v12274
    %v12891 = vpack.c.b16 %v12283, %v12275
    %v12892 = vpack.c.b16 %v12284, %v12276
    %v12893 = vpack.c.b16 %v12285, %v12277
    %v12894 = vpack.c.b16 %v12286, %v12278
    %v12895 = vpack.c.b16 %v12295, %v12287
    %v12896 = vpack.c.b16 %v12296, %v12288
    %v12897 = vpack.c.b16 %v12297, %v12289
    %v12898 = vpack.c.b16 %v12298, %v12290
    %v12899 = vpack.c.b16 %v12299, %v12291
    %v12900 = vpack.c.b16 %v12300, %v12292
    %v12901 = vpack.c.b16 %v12301, %v12293
    %v12902 = vpack.c.b16 %v12302, %v12294
    %v12903 = vpack.c.b16 %v12311, %v12303
    %v12904 = vpack.c.b16 %v12312, %v12304
    %v12905 = vpack.c.b16 %v12313, %v12305
    %v12906 = vpack.c.b16 %v12314, %v12306
    %v12907 = vpack.c.b16 %v12315, %v12307
    %v12908 = vpack.c.b16 %v12316, %v12308
    %v12909 = vpack.c.b16 %v12317, %v12309
    %v12910 = vpack.c.b16 %v12318, %v12310
    %v12911 = vpack.c.b16 %v12327, %v12319
    %v12912 = vpack.c.b16 %v12328, %v12320
    %v12913 = vpack.c.b16 %v12329, %v12321
    %v12914 = vpack.c.b16 %v12330, %v12322
    %v12915 = vpack.c.b16 %v12331, %v12323
    %v12916 = vpack.c.b16 %v12332, %v12324
    %v12917 = vpack.c.b16 %v12333, %v12325
    %v12918 = vpack.c.b16 %v12334, %v12326
    %v12919 = vpack.c.b16 %v12343, %v12335
    %v12920 = vpack.c.b16 %v12344, %v12336
    %v12921 = vpack.c.b16 %v12345, %v12337
    %v12922 = vpack.c.b16 %v12346, %v12338
    %v12923 = vpack.c.b16 %v12347, %v12339
    %v12924 = vpack.c.b16 %v12348, %v12340
    %v12925 = vpack.c.b16 %v12349, %v12341
    %v12926 = vpack.c.b16 %v12350, %v12342
    %v12927 = vpack.c.b16 %v12359, %v12351
    %v12928 = vpack.c.b16 %v12360, %v12352
    %v12929 = vpack.c.b16 %v12361, %v12353
    %v12930 = vpack.c.b16 %v12362, %v12354
    %v12931 = vpack.c.b16 %v12363, %v12355
    %v12932 = vpack.c.b16 %v12364, %v12356
    %v12933 = vpack.c.b16 %v12365, %v12357
    %v12934 = vpack.c.b16 %v12366, %v12358
    %v12935 = vpack.c.b16 %v12375, %v12367
    %v12936 = vpack.c.b16 %v12376, %v12368
    %v12937 = vpack.c.b16 %v12377, %v12369
    %v12938 = vpack.c.b16 %v12378, %v12370
    %v12939 = vpack.c.b16 %v12379, %v12371
    %v12940 = vpack.c.b16 %v12380, %v12372
    %v12941 = vpack.c.b16 %v12381, %v12373
    %v12942 = vpack.c.b16 %v12382, %v12374
    %v12943 = vpack.c.b16 %v12391, %v12383
    %v12944 = vpack.c.b16 %v12392, %v12384
    %v12945 = vpack.c.b16 %v12393, %v12385
    %v12946 = vpack.c.b16 %v12394, %v12386
    %v12947 = vpack.c.b16 %v12395, %v12387
    %v12948 = vpack.c.b16 %v12396, %v12388
    %v12949 = vpack.c.b16 %v12397, %v12389
    %v12950 = vpack.c.b16 %v12398, %v12390
    %v12951 = vpack.c.b16 %v12407, %v12399
    %v12952 = vpack.c.b16 %v12408, %v12400
    %v12953 = vpack.c.b16 %v12409, %v12401
    %v12954 = vpack.c.b16 %v12410, %v12402
    %v12955 = vpack.c.b16 %v12411, %v12403
    %v12956 = vpack.c.b16 %v12412, %v12404
    %v12957 = vpack.c.b16 %v12413, %v12405
    %v12958 = vpack.c.b16 %v12414, %v12406
    %v12959 = vpack.c.b16 %v12423, %v12415
    %v12960 = vpack.c.b16 %v12424, %v12416
    %v12961 = vpack.c.b16 %v12425, %v12417
    %v12962 = vpack.c.b16 %v12426, %v12418
    %v12963 = vpack.c.b16 %v12427, %v12419
    %v12964 = vpack.c.b16 %v12428, %v12420
    %v12965 = vpack.c.b16 %v12429, %v12421
    %v12966 = vpack.c.b16 %v12430, %v12422
    %v12967 = vpack.c.b16 %v12439, %v12431
    %v12968 = vpack.c.b16 %v12440, %v12432
    %v12969 = vpack.c.b16 %v12441, %v12433
    %v12970 = vpack.c.b16 %v12442, %v12434
    %v12971 = vpack.c.b16 %v12443, %v12435
    %v12972 = vpack.c.b16 %v12444, %v12436
    %v12973 = vpack.c.b16 %v12445, %v12437
    %v12974 = vpack.c.b16 %v12446, %v12438
    %v12975 = vpack.c.b16 %v12455, %v12447
    %v12976 = vpack.c.b16 %v12456, %v12448
    %v12977 = vpack.c.b16 %v12457, %v12449
    %v12978 = vpack.c.b16 %v12458, %v12450
    %v12979 = vpack.c.b16 %v12459, %v12451
    %v12980 = vpack.c.b16 %v12460, %v12452
    %v12981 = vpack.c.b16 %v12461, %v12453
    %v12982 = vpack.c.b16 %v12462, %v12454
    %v12983 = vpack.c.b16 %v12471, %v12463
    %v12984 = vpack.c.b16 %v12472, %v12464
    %v12985 = vpack.c.b16 %v12473, %v12465
    %v12986 = vpack.c.b16 %v12474, %v12466
    %v12987 = vpack.c.b16 %v12475, %v12467
    %v12988 = vpack.c.b16 %v12476, %v12468
    %v12989 = vpack.c.b16 %v12477, %v12469
    %v12990 = vpack.c.b16 %v12478, %v12470
    %v12991 = vpack.c.b16 %v12487, %v12479
    %v12992 = vpack.c.b16 %v12488, %v12480
    %v12993 = vpack.c.b16 %v12489, %v12481
    %v12994 = vpack.c.b16 %v12490, %v12482
    %v12995 = vpack.c.b16 %v12491, %v12483
    %v12996 = vpack.c.b16 %v12492, %v12484
    %v12997 = vpack.c.b16 %v12493, %v12485
    %v12998 = vpack.c.b16 %v12494, %v12486
    %v12999 = vpack.c.b16 %v12503, %v12495
    %v13000 = vpack.c.b16 %v12504, %v12496
    %v13001 = vpack.c.b16 %v12505, %v12497
    %v13002 = vpack.c.b16 %v12506, %v12498
    %v13003 = vpack.c.b16 %v12507, %v12499
    %v13004 = vpack.c.b16 %v12508, %v12500
    %v13005 = vpack.c.b16 %v12509, %v12501
    %v13006 = vpack.c.b16 %v12510, %v12502
    %v13007 = vpack.c.b16 %v12519, %v12511
    %v13008 = vpack.c.b16 %v12520, %v12512
    %v13009 = vpack.c.b16 %v12521, %v12513
    %v13010 = vpack.c.b16 %v12522, %v12514
    %v13011 = vpack.c.b16 %v12523, %v12515
    %v13012 = vpack.c.b16 %v12524, %v12516
    %v13013 = vpack.c.b16 %v12525, %v12517
    %v13014 = vpack.c.b16 %v12526, %v12518
    %v13015 = vpack.c.b16 %v12535, %v12527
    %v13016 = vpack.c.b16 %v12536, %v12528
    %v13017 = vpack.c.b16 %v12537, %v12529
    %v13018 = vpack.c.b16 %v12538, %v12530
    %v13019 = vpack.c.b16 %v12539, %v12531
    %v13020 = vpack.c.b16 %v12540, %v12532
    %v13021 = vpack.c.b16 %v12541, %v12533
    %v13022 = vpack.c.b16 %v12542, %v12534
    %v13023 = vpack.c.b16 %v12551, %v12543
    %v13024 = vpack.c.b16 %v12552, %v12544
    %v13025 = vpack.c.b16 %v12553, %v12545
    %v13026 = vpack.c.b16 %v12554, %v12546
    %v13027 = vpack.c.b16 %v12555, %v12547
    %v13028 = vpack.c.b16 %v12556, %v12548
    %v13029 = vpack.c.b16 %v12557, %v12549
    %v13030 = vpack.c.b16 %v12558, %v12550
    %v13031 = vpack.c.b16 %v12567, %v12559
    %v13032 = vpack.c.b16 %v12568, %v12560
    %v13033 = vpack.c.b16 %v12569, %v12561
    %v13034 = vpack.c.b16 %v12570, %v12562
    %v13035 = vpack.c.b16 %v12571, %v12563
    %v13036 = vpack.c.b16 %v12572, %v12564
    %v13037 = vpack.c.b16 %v12573, %v12565
    %v13038 = vpack.c.b16 %v12574, %v12566
    %v13039 = vpack.c.b16 %v12583, %v12575
    %v13040 = vpack.c.b16 %v12584, %v12576
    %v13041 = vpack.c.b16 %v12585, %v12577
    %v13042 = vpack.c.b16 %v12586, %v12578
    %v13043 = vpack.c.b16 %v12587, %v12579
    %v13044 = vpack.c.b16 %v12588, %v12580
    %v13045 = vpack.c.b16 %v12589, %v12581
    %v13046 = vpack.c.b16 %v12590, %v12582
    %v13047 = vpack.c.b16 %v12599, %v12591
    %v13048 = vpack.c.b16 %v12600, %v12592
    %v13049 = vpack.c.b16 %v12601, %v12593
    %v13050 = vpack.c.b16 %v12602, %v12594
    %v13051 = vpack.c.b16 %v12603, %v12595
    %v13052 = vpack.c.b16 %v12604, %v12596
    %v13053 = vpack.c.b16 %v12605, %v12597
    %v13054 = vpack.c.b16 %v12606, %v12598
    %13503 = vmatprep.subr.bf16.mxu0 %v12664
    %13504 = vmatpush1.bf16.msra.mxu0 %v12663
    %13505 = vmatprep.subr.bf16.mxu0 %v12656
    %13506 = vmatpush1.bf16.msra.mxu0 %v12655
    %13507 = vmatprep.subr.bf16.mxu0 %v12648
    %13508 = vmatpush1.bf16.msra.mxu0 %v12647
    %13509 = vmatprep.subr.bf16.mxu0 %v12640
    %13510 = vmatpush1.bf16.msra.mxu0 %v12639
    %13511 = vmatprep.subr.bf16.mxu0 %v12632
    %13512 = vmatpush1.bf16.msra.mxu0 %v12631
    %13513 = vmatprep.subr.bf16.mxu0 %v12624
    %13514 = vmatpush1.bf16.msra.mxu0 %v12623
    %13515 = vmatprep.subr.bf16.mxu0 %v12616
    %13516 = vmatpush1.bf16.msra.mxu0 %v12615
    %13517 = vmatprep.subr.bf16.mxu0 %v12608
    %13518 = vmatpush1.bf16.msra.mxu0 %v12607
    %13519 = vmatprep.subr.bf16.mxu0 %v12728
    %13520 = vmatpush2.bf16.msra.mxu0 %v12727
    %13521 = vmatprep.subr.bf16.mxu0 %v12720
    %13522 = vmatpush2.bf16.msra.mxu0 %v12719
    %13523 = vmatprep.subr.bf16.mxu0 %v12712
    %13524 = vmatpush2.bf16.msra.mxu0 %v12711
    %13525 = vmatprep.subr.bf16.mxu0 %v12704
    %13526 = vmatpush2.bf16.msra.mxu0 %v12703
    %13527 = vmatprep.subr.bf16.mxu0 %v12696
    %13528 = vmatpush2.bf16.msra.mxu0 %v12695
    %13529 = vmatprep.subr.bf16.mxu0 %v12688
    %13530 = vmatpush2.bf16.msra.mxu0 %v12687
    %13531 = vmatprep.subr.bf16.mxu0 %v12680
    %13532 = vmatpush2.bf16.msra.mxu0 %v12679
    %13533 = vmatprep.subr.bf16.mxu0 %v12672
    %13534 = vmatpush2.bf16.msra.mxu0 %v12671
    %13535 = vmatprep.mubr.bf16.mxu0 %v10809
    %13536 = vmatmul.mubr.bf16.gmra.mxu0 %v10808
    %v13537 = vpop.f32.mrf.mxu0
    %v13538 = vadd.f32 0.0, %v13537
    %v13539 = vpop.f32.mrf.mxu0
    %v13540 = vadd.f32 0.0, %v13539
    %v13541 = vpop.f32.mrf.mxu0
    %v13542 = vpop.f32.mrf.mxu0
    %13543 = vdwg.mxu0
    %13544 = vmatprep.subr.bf16.mxu0 %v12792
    %13545 = vmatpush1.bf16.msra.mxu0 %v12791
    %13546 = vmatprep.subr.bf16.mxu0 %v12784
    %13547 = vmatpush1.bf16.msra.mxu0 %v12783
    %13548 = vmatprep.subr.bf16.mxu0 %v12776
    %13549 = vmatpush1.bf16.msra.mxu0 %v12775
    %13550 = vmatprep.subr.bf16.mxu0 %v12768
    %13551 = vmatpush1.bf16.msra.mxu0 %v12767
    %13552 = vmatprep.subr.bf16.mxu0 %v12760
    %13553 = vmatpush1.bf16.msra.mxu0 %v12759
    %13554 = vmatprep.subr.bf16.mxu0 %v12752
    %13555 = vmatpush1.bf16.msra.mxu0 %v12751
    %13556 = vmatprep.subr.bf16.mxu0 %v12744
    %13557 = vmatpush1.bf16.msra.mxu0 %v12743
    %13558 = vmatprep.subr.bf16.mxu0 %v12736
    %13559 = vmatpush1.bf16.msra.mxu0 %v12735
    %13560 = vmatprep.subr.bf16.mxu0 %v12856
    %13561 = vmatpush2.bf16.msra.mxu0 %v12855
    %13562 = vmatprep.subr.bf16.mxu0 %v12848
    %13563 = vmatpush2.bf16.msra.mxu0 %v12847
    %13564 = vmatprep.subr.bf16.mxu0 %v12840
    %13565 = vmatpush2.bf16.msra.mxu0 %v12839
    %13566 = vmatprep.subr.bf16.mxu0 %v12832
    %13567 = vmatpush2.bf16.msra.mxu0 %v12831
    %13568 = vmatprep.subr.bf16.mxu0 %v12824
    %13569 = vmatpush2.bf16.msra.mxu0 %v12823
    %13570 = vmatprep.subr.bf16.mxu0 %v12816
    %13571 = vmatpush2.bf16.msra.mxu0 %v12815
    %13572 = vmatprep.subr.bf16.mxu0 %v12808
    %13573 = vmatpush2.bf16.msra.mxu0 %v12807
    %13574 = vmatprep.subr.bf16.mxu0 %v12800
    %13575 = vmatpush2.bf16.msra.mxu0 %v12799
    %13576 = vmatprep.mubr.bf16.mxu0 %v10811
    %13577 = vmatmul.mubr.bf16.gmra.mxu0 %v10810
    %v13578 = vpop.f32.mrf.mxu0
    %v13579 = vadd.f32 %v13538, %v13578
    %v13580 = vpop.f32.mrf.mxu0
    %v13581 = vadd.f32 %v13540, %v13580
    %v13582 = vpop.f32.mrf.mxu0
    %v13583 = vpop.f32.mrf.mxu0
    %13584 = vdwg.mxu0
    %13585 = vmatprep.subr.bf16.mxu0 %v12920
    %13586 = vmatpush1.bf16.msra.mxu0 %v12919
    %13587 = vmatprep.subr.bf16.mxu0 %v12912
    %13588 = vmatpush1.bf16.msra.mxu0 %v12911
    %13589 = vmatprep.subr.bf16.mxu0 %v12904
    %13590 = vmatpush1.bf16.msra.mxu0 %v12903
    %13591 = vmatprep.subr.bf16.mxu0 %v12896
    %13592 = vmatpush1.bf16.msra.mxu0 %v12895
    %13593 = vmatprep.subr.bf16.mxu0 %v12888
    %13594 = vmatpush1.bf16.msra.mxu0 %v12887
    %13595 = vmatprep.subr.bf16.mxu0 %v12880
    %13596 = vmatpush1.bf16.msra.mxu0 %v12879
    %13597 = vmatprep.subr.bf16.mxu0 %v12872
    %13598 = vmatpush1.bf16.msra.mxu0 %v12871
    %13599 = vmatprep.subr.bf16.mxu0 %v12864
    %13600 = vmatpush1.bf16.msra.mxu0 %v12863
    %13601 = vmatprep.subr.bf16.mxu0 %v12984
    %13602 = vmatpush2.bf16.msra.mxu0 %v12983
    %13603 = vmatprep.subr.bf16.mxu0 %v12976
    %13604 = vmatpush2.bf16.msra.mxu0 %v12975
    %13605 = vmatprep.subr.bf16.mxu0 %v12968
    %13606 = vmatpush2.bf16.msra.mxu0 %v12967
    %13607 = vmatprep.subr.bf16.mxu0 %v12960
    %13608 = vmatpush2.bf16.msra.mxu0 %v12959
    %13609 = vmatprep.subr.bf16.mxu0 %v12952
    %13610 = vmatpush2.bf16.msra.mxu0 %v12951
    %13611 = vmatprep.subr.bf16.mxu0 %v12944
    %13612 = vmatpush2.bf16.msra.mxu0 %v12943
    %13613 = vmatprep.subr.bf16.mxu0 %v12936
    %13614 = vmatpush2.bf16.msra.mxu0 %v12935
    %13615 = vmatprep.subr.bf16.mxu0 %v12928
    %13616 = vmatpush2.bf16.msra.mxu0 %v12927
    %13617 = vmatprep.mubr.bf16.mxu0 %v10813
    %13618 = vmatmul.mubr.bf16.gmra.mxu0 %v10812
    %v13619 = vpop.f32.mrf.mxu0
    %v13620 = vadd.f32 %v13579, %v13619
    %v13621 = vpop.f32.mrf.mxu0
    %v13622 = vadd.f32 %v13581, %v13621
    %v13623 = vpop.f32.mrf.mxu0
    %v13624 = vpop.f32.mrf.mxu0
    %13625 = vdwg.mxu0
    %13626 = vmatprep.subr.bf16.mxu0 %v13048
    %13627 = vmatpush1.bf16.msra.mxu0 %v13047
    %13628 = vmatprep.subr.bf16.mxu0 %v13040
    %13629 = vmatpush1.bf16.msra.mxu0 %v13039
    %13630 = vmatprep.subr.bf16.mxu0 %v13032
    %13631 = vmatpush1.bf16.msra.mxu0 %v13031
    %13632 = vmatprep.subr.bf16.mxu0 %v13024
    %13633 = vmatpush1.bf16.msra.mxu0 %v13023
    %13634 = vmatprep.subr.bf16.mxu0 %v13016
    %13635 = vmatpush1.bf16.msra.mxu0 %v13015
    %13636 = vmatprep.subr.bf16.mxu0 %v13008
    %13637 = vmatpush1.bf16.msra.mxu0 %v13007
    %13638 = vmatprep.subr.bf16.mxu0 %v13000
    %13639 = vmatpush1.bf16.msra.mxu0 %v12999
    %13640 = vmatprep.subr.bf16.mxu0 %v12992
    %13641 = vmatpush1.bf16.msra.mxu0 %v12991
    %13642 = vmatprep.subr.bf16.mxu0 0
    %13643 = vmatpush2.bf16.msra.mxu0 0
    %13644 = vmatprep.subr.bf16.mxu0 0
    %13645 = vmatpush2.bf16.msra.mxu0 0
    %13646 = vmatprep.subr.bf16.mxu0 0
    %13647 = vmatpush2.bf16.msra.mxu0 0
    %13648 = vmatprep.subr.bf16.mxu0 0
    %13649 = vmatpush2.bf16.msra.mxu0 0
    %13650 = vmatprep.subr.bf16.mxu0 0
    %13651 = vmatpush2.bf16.msra.mxu0 0
    %13652 = vmatprep.subr.bf16.mxu0 0
    %13653 = vmatpush2.bf16.msra.mxu0 0
    %13654 = vmatprep.subr.bf16.mxu0 0
    %13655 = vmatpush2.bf16.msra.mxu0 0
    %13656 = vmatprep.subr.bf16.mxu0 0
    %13657 = vmatpush2.bf16.msra.mxu0 0
    %13658 = vmatprep.mubr.bf16.mxu0 0
    %13659 = vmatmul.mubr.bf16.gmra.mxu0 %v10814
    %v13660 = vpop.f32.mrf.mxu0
    %v13661 = vadd.f32 %v13620, %v13660
    %v13662 = vpop.f32.mrf.mxu0
    %v13663 = vadd.f32 %v13622, %v13662
    %v13664 = vpop.f32.mrf.mxu0
    %v13665 = vpop.f32.mrf.mxu0
    %13666 = vdwg.mxu0
    %13667 = vmatprep.subr.bf16.mxu0 %v12666
    %13668 = vmatpush1.bf16.msra.mxu0 %v12665
    %13669 = vmatprep.subr.bf16.mxu0 %v12658
    %13670 = vmatpush1.bf16.msra.mxu0 %v12657
    %13671 = vmatprep.subr.bf16.mxu0 %v12650
    %13672 = vmatpush1.bf16.msra.mxu0 %v12649
    %13673 = vmatprep.subr.bf16.mxu0 %v12642
    %13674 = vmatpush1.bf16.msra.mxu0 %v12641
    %13675 = vmatprep.subr.bf16.mxu0 %v12634
    %13676 = vmatpush1.bf16.msra.mxu0 %v12633
    %13677 = vmatprep.subr.bf16.mxu0 %v12626
    %13678 = vmatpush1.bf16.msra.mxu0 %v12625
    %13679 = vmatprep.subr.bf16.mxu0 %v12618
    %13680 = vmatpush1.bf16.msra.mxu0 %v12617
    %13681 = vmatprep.subr.bf16.mxu0 %v12610
    %13682 = vmatpush1.bf16.msra.mxu0 %v12609
    %13683 = vmatprep.subr.bf16.mxu0 %v12730
    %13684 = vmatpush2.bf16.msra.mxu0 %v12729
    %13685 = vmatprep.subr.bf16.mxu0 %v12722
    %13686 = vmatpush2.bf16.msra.mxu0 %v12721
    %13687 = vmatprep.subr.bf16.mxu0 %v12714
    %13688 = vmatpush2.bf16.msra.mxu0 %v12713
    %13689 = vmatprep.subr.bf16.mxu0 %v12706
    %13690 = vmatpush2.bf16.msra.mxu0 %v12705
    %13691 = vmatprep.subr.bf16.mxu0 %v12698
    %13692 = vmatpush2.bf16.msra.mxu0 %v12697
    %13693 = vmatprep.subr.bf16.mxu0 %v12690
    %13694 = vmatpush2.bf16.msra.mxu0 %v12689
    %13695 = vmatprep.subr.bf16.mxu0 %v12682
    %13696 = vmatpush2.bf16.msra.mxu0 %v12681
    %13697 = vmatprep.subr.bf16.mxu0 %v12674
    %13698 = vmatpush2.bf16.msra.mxu0 %v12673
    %13699 = vmatprep.mubr.bf16.mxu0 %v10809
    %13700 = vmatmul.mubr.bf16.gmra.mxu0 %v10808
    %v13701 = vpop.f32.mrf.mxu0
    %v13702 = vadd.f32 0.0, %v13701
    %v13703 = vpop.f32.mrf.mxu0
    %v13704 = vadd.f32 0.0, %v13703
    %v13705 = vpop.f32.mrf.mxu0
    %v13706 = vpop.f32.mrf.mxu0
    %13707 = vdwg.mxu0
    %13708 = vmatprep.subr.bf16.mxu0 %v12794
    %13709 = vmatpush1.bf16.msra.mxu0 %v12793
    %13710 = vmatprep.subr.bf16.mxu0 %v12786
    %13711 = vmatpush1.bf16.msra.mxu0 %v12785
    %13712 = vmatprep.subr.bf16.mxu0 %v12778
    %13713 = vmatpush1.bf16.msra.mxu0 %v12777
    %13714 = vmatprep.subr.bf16.mxu0 %v12770
    %13715 = vmatpush1.bf16.msra.mxu0 %v12769
    %13716 = vmatprep.subr.bf16.mxu0 %v12762
    %13717 = vmatpush1.bf16.msra.mxu0 %v12761
    %13718 = vmatprep.subr.bf16.mxu0 %v12754
    %13719 = vmatpush1.bf16.msra.mxu0 %v12753
    %13720 = vmatprep.subr.bf16.mxu0 %v12746
    %13721 = vmatpush1.bf16.msra.mxu0 %v12745
    %13722 = vmatprep.subr.bf16.mxu0 %v12738
    %13723 = vmatpush1.bf16.msra.mxu0 %v12737
    %13724 = vmatprep.subr.bf16.mxu0 %v12858
    %13725 = vmatpush2.bf16.msra.mxu0 %v12857
    %13726 = vmatprep.subr.bf16.mxu0 %v12850
    %13727 = vmatpush2.bf16.msra.mxu0 %v12849
    %13728 = vmatprep.subr.bf16.mxu0 %v12842
    %13729 = vmatpush2.bf16.msra.mxu0 %v12841
    %13730 = vmatprep.subr.bf16.mxu0 %v12834
    %13731 = vmatpush2.bf16.msra.mxu0 %v12833
    %13732 = vmatprep.subr.bf16.mxu0 %v12826
    %13733 = vmatpush2.bf16.msra.mxu0 %v12825
    %13734 = vmatprep.subr.bf16.mxu0 %v12818
    %13735 = vmatpush2.bf16.msra.mxu0 %v12817
    %13736 = vmatprep.subr.bf16.mxu0 %v12810
    %13737 = vmatpush2.bf16.msra.mxu0 %v12809
    %13738 = vmatprep.subr.bf16.mxu0 %v12802
    %13739 = vmatpush2.bf16.msra.mxu0 %v12801
    %13740 = vmatprep.mubr.bf16.mxu0 %v10811
    %13741 = vmatmul.mubr.bf16.gmra.mxu0 %v10810
    %v13742 = vpop.f32.mrf.mxu0
    %v13743 = vadd.f32 %v13702, %v13742
    %v13744 = vpop.f32.mrf.mxu0
    %v13745 = vadd.f32 %v13704, %v13744
    %v13746 = vpop.f32.mrf.mxu0
    %v13747 = vpop.f32.mrf.mxu0
    %13748 = vdwg.mxu0
    %13749 = vmatprep.subr.bf16.mxu0 %v12922
    %13750 = vmatpush1.bf16.msra.mxu0 %v12921
    %13751 = vmatprep.subr.bf16.mxu0 %v12914
    %13752 = vmatpush1.bf16.msra.mxu0 %v12913
    %13753 = vmatprep.subr.bf16.mxu0 %v12906
    %13754 = vmatpush1.bf16.msra.mxu0 %v12905
    %13755 = vmatprep.subr.bf16.mxu0 %v12898
    %13756 = vmatpush1.bf16.msra.mxu0 %v12897
    %13757 = vmatprep.subr.bf16.mxu0 %v12890
    %13758 = vmatpush1.bf16.msra.mxu0 %v12889
    %13759 = vmatprep.subr.bf16.mxu0 %v12882
    %13760 = vmatpush1.bf16.msra.mxu0 %v12881
    %13761 = vmatprep.subr.bf16.mxu0 %v12874
    %13762 = vmatpush1.bf16.msra.mxu0 %v12873
    %13763 = vmatprep.subr.bf16.mxu0 %v12866
    %13764 = vmatpush1.bf16.msra.mxu0 %v12865
    %13765 = vmatprep.subr.bf16.mxu0 %v12986
    %13766 = vmatpush2.bf16.msra.mxu0 %v12985
    %13767 = vmatprep.subr.bf16.mxu0 %v12978
    %13768 = vmatpush2.bf16.msra.mxu0 %v12977
    %13769 = vmatprep.subr.bf16.mxu0 %v12970
    %13770 = vmatpush2.bf16.msra.mxu0 %v12969
    %13771 = vmatprep.subr.bf16.mxu0 %v12962
    %13772 = vmatpush2.bf16.msra.mxu0 %v12961
    %13773 = vmatprep.subr.bf16.mxu0 %v12954
    %13774 = vmatpush2.bf16.msra.mxu0 %v12953
    %13775 = vmatprep.subr.bf16.mxu0 %v12946
    %13776 = vmatpush2.bf16.msra.mxu0 %v12945
    %13777 = vmatprep.subr.bf16.mxu0 %v12938
    %13778 = vmatpush2.bf16.msra.mxu0 %v12937
    %13779 = vmatprep.subr.bf16.mxu0 %v12930
    %13780 = vmatpush2.bf16.msra.mxu0 %v12929
    %13781 = vmatprep.mubr.bf16.mxu0 %v10813
    %13782 = vmatmul.mubr.bf16.gmra.mxu0 %v10812
    %v13783 = vpop.f32.mrf.mxu0
    %v13784 = vadd.f32 %v13743, %v13783
    %v13785 = vpop.f32.mrf.mxu0
    %v13786 = vadd.f32 %v13745, %v13785
    %v13787 = vpop.f32.mrf.mxu0
    %v13788 = vpop.f32.mrf.mxu0
    %13789 = vdwg.mxu0
    %13790 = vmatprep.subr.bf16.mxu0 %v13050
    %13791 = vmatpush1.bf16.msra.mxu0 %v13049
    %13792 = vmatprep.subr.bf16.mxu0 %v13042
    %13793 = vmatpush1.bf16.msra.mxu0 %v13041
    %13794 = vmatprep.subr.bf16.mxu0 %v13034
    %13795 = vmatpush1.bf16.msra.mxu0 %v13033
    %13796 = vmatprep.subr.bf16.mxu0 %v13026
    %13797 = vmatpush1.bf16.msra.mxu0 %v13025
    %13798 = vmatprep.subr.bf16.mxu0 %v13018
    %13799 = vmatpush1.bf16.msra.mxu0 %v13017
    %13800 = vmatprep.subr.bf16.mxu0 %v13010
    %13801 = vmatpush1.bf16.msra.mxu0 %v13009
    %13802 = vmatprep.subr.bf16.mxu0 %v13002
    %13803 = vmatpush1.bf16.msra.mxu0 %v13001
    %13804 = vmatprep.subr.bf16.mxu0 %v12994
    %13805 = vmatpush1.bf16.msra.mxu0 %v12993
    %13806 = vmatprep.subr.bf16.mxu0 0
    %13807 = vmatpush2.bf16.msra.mxu0 0
    %13808 = vmatprep.subr.bf16.mxu0 0
    %13809 = vmatpush2.bf16.msra.mxu0 0
    %13810 = vmatprep.subr.bf16.mxu0 0
    %13811 = vmatpush2.bf16.msra.mxu0 0
    %13812 = vmatprep.subr.bf16.mxu0 0
    %13813 = vmatpush2.bf16.msra.mxu0 0
    %13814 = vmatprep.subr.bf16.mxu0 0
    %13815 = vmatpush2.bf16.msra.mxu0 0
    %13816 = vmatprep.subr.bf16.mxu0 0
    %13817 = vmatpush2.bf16.msra.mxu0 0
    %13818 = vmatprep.subr.bf16.mxu0 0
    %13819 = vmatpush2.bf16.msra.mxu0 0
    %13820 = vmatprep.subr.bf16.mxu0 0
    %13821 = vmatpush2.bf16.msra.mxu0 0
    %13822 = vmatprep.mubr.bf16.mxu0 0
    %13823 = vmatmul.mubr.bf16.gmra.mxu0 %v10814
    %v13824 = vpop.f32.mrf.mxu0
    %v13825 = vadd.f32 %v13784, %v13824
    %v13826 = vpop.f32.mrf.mxu0
    %v13827 = vadd.f32 %v13786, %v13826
    %v13828 = vpop.f32.mrf.mxu0
    %v13829 = vpop.f32.mrf.mxu0
    %13830 = vdwg.mxu0
    %13831 = vmatprep.subr.bf16.mxu0 %v12668
    %13832 = vmatpush1.bf16.msra.mxu0 %v12667
    %13833 = vmatprep.subr.bf16.mxu0 %v12660
    %13834 = vmatpush1.bf16.msra.mxu0 %v12659
    %13835 = vmatprep.subr.bf16.mxu0 %v12652
    %13836 = vmatpush1.bf16.msra.mxu0 %v12651
    %13837 = vmatprep.subr.bf16.mxu0 %v12644
    %13838 = vmatpush1.bf16.msra.mxu0 %v12643
    %13839 = vmatprep.subr.bf16.mxu0 %v12636
    %13840 = vmatpush1.bf16.msra.mxu0 %v12635
    %13841 = vmatprep.subr.bf16.mxu0 %v12628
    %13842 = vmatpush1.bf16.msra.mxu0 %v12627
    %13843 = vmatprep.subr.bf16.mxu0 %v12620
    %13844 = vmatpush1.bf16.msra.mxu0 %v12619
    %13845 = vmatprep.subr.bf16.mxu0 %v12612
    %13846 = vmatpush1.bf16.msra.mxu0 %v12611
    %13847 = vmatprep.subr.bf16.mxu0 %v12732
    %13848 = vmatpush2.bf16.msra.mxu0 %v12731
    %13849 = vmatprep.subr.bf16.mxu0 %v12724
    %13850 = vmatpush2.bf16.msra.mxu0 %v12723
    %13851 = vmatprep.subr.bf16.mxu0 %v12716
    %13852 = vmatpush2.bf16.msra.mxu0 %v12715
    %13853 = vmatprep.subr.bf16.mxu0 %v12708
    %13854 = vmatpush2.bf16.msra.mxu0 %v12707
    %13855 = vmatprep.subr.bf16.mxu0 %v12700
    %13856 = vmatpush2.bf16.msra.mxu0 %v12699
    %13857 = vmatprep.subr.bf16.mxu0 %v12692
    %13858 = vmatpush2.bf16.msra.mxu0 %v12691
    %13859 = vmatprep.subr.bf16.mxu0 %v12684
    %13860 = vmatpush2.bf16.msra.mxu0 %v12683
    %13861 = vmatprep.subr.bf16.mxu0 %v12676
    %13862 = vmatpush2.bf16.msra.mxu0 %v12675
    %13863 = vmatprep.mubr.bf16.mxu0 %v10809
    %13864 = vmatmul.mubr.bf16.gmra.mxu0 %v10808
    %v13865 = vpop.f32.mrf.mxu0
    %v13866 = vadd.f32 0.0, %v13865
    %v13867 = vpop.f32.mrf.mxu0
    %v13868 = vadd.f32 0.0, %v13867
    %v13869 = vpop.f32.mrf.mxu0
    %v13870 = vpop.f32.mrf.mxu0
    %13871 = vdwg.mxu0
    %13872 = vmatprep.subr.bf16.mxu0 %v12796
    %13873 = vmatpush1.bf16.msra.mxu0 %v12795
    %13874 = vmatprep.subr.bf16.mxu0 %v12788
    %13875 = vmatpush1.bf16.msra.mxu0 %v12787
    %13876 = vmatprep.subr.bf16.mxu0 %v12780
    %13877 = vmatpush1.bf16.msra.mxu0 %v12779
    %13878 = vmatprep.subr.bf16.mxu0 %v12772
    %13879 = vmatpush1.bf16.msra.mxu0 %v12771
    %13880 = vmatprep.subr.bf16.mxu0 %v12764
    %13881 = vmatpush1.bf16.msra.mxu0 %v12763
    %13882 = vmatprep.subr.bf16.mxu0 %v12756
    %13883 = vmatpush1.bf16.msra.mxu0 %v12755
    %13884 = vmatprep.subr.bf16.mxu0 %v12748
    %13885 = vmatpush1.bf16.msra.mxu0 %v12747
    %13886 = vmatprep.subr.bf16.mxu0 %v12740
    %13887 = vmatpush1.bf16.msra.mxu0 %v12739
    %13888 = vmatprep.subr.bf16.mxu0 %v12860
    %13889 = vmatpush2.bf16.msra.mxu0 %v12859
    %13890 = vmatprep.subr.bf16.mxu0 %v12852
    %13891 = vmatpush2.bf16.msra.mxu0 %v12851
    %13892 = vmatprep.subr.bf16.mxu0 %v12844
    %13893 = vmatpush2.bf16.msra.mxu0 %v12843
    %13894 = vmatprep.subr.bf16.mxu0 %v12836
    %13895 = vmatpush2.bf16.msra.mxu0 %v12835
    %13896 = vmatprep.subr.bf16.mxu0 %v12828
    %13897 = vmatpush2.bf16.msra.mxu0 %v12827
    %13898 = vmatprep.subr.bf16.mxu0 %v12820
    %13899 = vmatpush2.bf16.msra.mxu0 %v12819
    %13900 = vmatprep.subr.bf16.mxu0 %v12812
    %13901 = vmatpush2.bf16.msra.mxu0 %v12811
    %13902 = vmatprep.subr.bf16.mxu0 %v12804
    %13903 = vmatpush2.bf16.msra.mxu0 %v12803
    %13904 = vmatprep.mubr.bf16.mxu0 %v10811
    %13905 = vmatmul.mubr.bf16.gmra.mxu0 %v10810
    %v13906 = vpop.f32.mrf.mxu0
    %v13907 = vadd.f32 %v13866, %v13906
    %v13908 = vpop.f32.mrf.mxu0
    %v13909 = vadd.f32 %v13868, %v13908
    %v13910 = vpop.f32.mrf.mxu0
    %v13911 = vpop.f32.mrf.mxu0
    %13912 = vdwg.mxu0
    %13913 = vmatprep.subr.bf16.mxu0 %v12924
    %13914 = vmatpush1.bf16.msra.mxu0 %v12923
    %13915 = vmatprep.subr.bf16.mxu0 %v12916
    %13916 = vmatpush1.bf16.msra.mxu0 %v12915
    %13917 = vmatprep.subr.bf16.mxu0 %v12908
    %13918 = vmatpush1.bf16.msra.mxu0 %v12907
    %13919 = vmatprep.subr.bf16.mxu0 %v12900
    %13920 = vmatpush1.bf16.msra.mxu0 %v12899
    %13921 = vmatprep.subr.bf16.mxu0 %v12892
    %13922 = vmatpush1.bf16.msra.mxu0 %v12891
    %13923 = vmatprep.subr.bf16.mxu0 %v12884
    %13924 = vmatpush1.bf16.msra.mxu0 %v12883
    %13925 = vmatprep.subr.bf16.mxu0 %v12876
    %13926 = vmatpush1.bf16.msra.mxu0 %v12875
    %13927 = vmatprep.subr.bf16.mxu0 %v12868
    %13928 = vmatpush1.bf16.msra.mxu0 %v12867
    %13929 = vmatprep.subr.bf16.mxu0 %v12988
    %13930 = vmatpush2.bf16.msra.mxu0 %v12987
    %13931 = vmatprep.subr.bf16.mxu0 %v12980
    %13932 = vmatpush2.bf16.msra.mxu0 %v12979
    %13933 = vmatprep.subr.bf16.mxu0 %v12972
    %13934 = vmatpush2.bf16.msra.mxu0 %v12971
    %13935 = vmatprep.subr.bf16.mxu0 %v12964
    %13936 = vmatpush2.bf16.msra.mxu0 %v12963
    %13937 = vmatprep.subr.bf16.mxu0 %v12956
    %13938 = vmatpush2.bf16.msra.mxu0 %v12955
    %13939 = vmatprep.subr.bf16.mxu0 %v12948
    %13940 = vmatpush2.bf16.msra.mxu0 %v12947
    %13941 = vmatprep.subr.bf16.mxu0 %v12940
    %13942 = vmatpush2.bf16.msra.mxu0 %v12939
    %13943 = vmatprep.subr.bf16.mxu0 %v12932
    %13944 = vmatpush2.bf16.msra.mxu0 %v12931
    %13945 = vmatprep.mubr.bf16.mxu0 %v10813
    %13946 = vmatmul.mubr.bf16.gmra.mxu0 %v10812
    %v13947 = vpop.f32.mrf.mxu0
    %v13948 = vadd.f32 %v13907, %v13947
    %v13949 = vpop.f32.mrf.mxu0
    %v13950 = vadd.f32 %v13909, %v13949
    %v13951 = vpop.f32.mrf.mxu0
    %v13952 = vpop.f32.mrf.mxu0
    %13953 = vdwg.mxu0
    %13954 = vmatprep.subr.bf16.mxu0 %v13052
    %13955 = vmatpush1.bf16.msra.mxu0 %v13051
    %13956 = vmatprep.subr.bf16.mxu0 %v13044
    %13957 = vmatpush1.bf16.msra.mxu0 %v13043
    %13958 = vmatprep.subr.bf16.mxu0 %v13036
    %13959 = vmatpush1.bf16.msra.mxu0 %v13035
    %13960 = vmatprep.subr.bf16.mxu0 %v13028
    %13961 = vmatpush1.bf16.msra.mxu0 %v13027
    %13962 = vmatprep.subr.bf16.mxu0 %v13020
    %13963 = vmatpush1.bf16.msra.mxu0 %v13019
    %13964 = vmatprep.subr.bf16.mxu0 %v13012
    %13965 = vmatpush1.bf16.msra.mxu0 %v13011
    %13966 = vmatprep.subr.bf16.mxu0 %v13004
    %13967 = vmatpush1.bf16.msra.mxu0 %v13003
    %13968 = vmatprep.subr.bf16.mxu0 %v12996
    %13969 = vmatpush1.bf16.msra.mxu0 %v12995
    %13970 = vmatprep.subr.bf16.mxu0 0
    %13971 = vmatpush2.bf16.msra.mxu0 0
    %13972 = vmatprep.subr.bf16.mxu0 0
    %13973 = vmatpush2.bf16.msra.mxu0 0
    %13974 = vmatprep.subr.bf16.mxu0 0
    %13975 = vmatpush2.bf16.msra.mxu0 0
    %13976 = vmatprep.subr.bf16.mxu0 0
    %13977 = vmatpush2.bf16.msra.mxu0 0
    %13978 = vmatprep.subr.bf16.mxu0 0
    %13979 = vmatpush2.bf16.msra.mxu0 0
    %13980 = vmatprep.subr.bf16.mxu0 0
    %13981 = vmatpush2.bf16.msra.mxu0 0
    %13982 = vmatprep.subr.bf16.mxu0 0
    %13983 = vmatpush2.bf16.msra.mxu0 0
    %13984 = vmatprep.subr.bf16.mxu0 0
    %13985 = vmatpush2.bf16.msra.mxu0 0
    %13986 = vmatprep.mubr.bf16.mxu0 0
    %13987 = vmatmul.mubr.bf16.gmra.mxu0 %v10814
    %v13988 = vpop.f32.mrf.mxu0
    %v13989 = vadd.f32 %v13948, %v13988
    %v13990 = vpop.f32.mrf.mxu0
    %v13991 = vadd.f32 %v13950, %v13990
    %v13992 = vpop.f32.mrf.mxu0
    %v13993 = vpop.f32.mrf.mxu0
    %13994 = vdwg.mxu0
    %13995 = vmatprep.subr.bf16.mxu0 %v12670
    %13996 = vmatpush1.bf16.msra.mxu0 %v12669
    %13997 = vmatprep.subr.bf16.mxu0 %v12662
    %13998 = vmatpush1.bf16.msra.mxu0 %v12661
    %13999 = vmatprep.subr.bf16.mxu0 %v12654
    %14000 = vmatpush1.bf16.msra.mxu0 %v12653
    %14001 = vmatprep.subr.bf16.mxu0 %v12646
    %14002 = vmatpush1.bf16.msra.mxu0 %v12645
    %14003 = vmatprep.subr.bf16.mxu0 %v12638
    %14004 = vmatpush1.bf16.msra.mxu0 %v12637
    %14005 = vmatprep.subr.bf16.mxu0 %v12630
    %14006 = vmatpush1.bf16.msra.mxu0 %v12629
    %14007 = vmatprep.subr.bf16.mxu0 %v12622
    %14008 = vmatpush1.bf16.msra.mxu0 %v12621
    %14009 = vmatprep.subr.bf16.mxu0 %v12614
    %14010 = vmatpush1.bf16.msra.mxu0 %v12613
    %14011 = vmatprep.subr.bf16.mxu0 %v12734
    %14012 = vmatpush2.bf16.msra.mxu0 %v12733
    %14013 = vmatprep.subr.bf16.mxu0 %v12726
    %14014 = vmatpush2.bf16.msra.mxu0 %v12725
    %14015 = vmatprep.subr.bf16.mxu0 %v12718
    %14016 = vmatpush2.bf16.msra.mxu0 %v12717
    %14017 = vmatprep.subr.bf16.mxu0 %v12710
    %14018 = vmatpush2.bf16.msra.mxu0 %v12709
    %14019 = vmatprep.subr.bf16.mxu0 %v12702
    %14020 = vmatpush2.bf16.msra.mxu0 %v12701
    %14021 = vmatprep.subr.bf16.mxu0 %v12694
    %14022 = vmatpush2.bf16.msra.mxu0 %v12693
    %14023 = vmatprep.subr.bf16.mxu0 %v12686
    %14024 = vmatpush2.bf16.msra.mxu0 %v12685
    %14025 = vmatprep.subr.bf16.mxu0 %v12678
    %14026 = vmatpush2.bf16.msra.mxu0 %v12677
    %14027 = vmatprep.mubr.bf16.mxu0 %v10809
    %14028 = vmatmul.mubr.bf16.gmra.mxu0 %v10808
    %v14029 = vpop.f32.mrf.mxu0
    %v14030 = vadd.f32 0.0, %v14029
    %v14031 = vpop.f32.mrf.mxu0
    %v14032 = vadd.f32 0.0, %v14031
    %v14033 = vpop.f32.mrf.mxu0
    %v14034 = vpop.f32.mrf.mxu0
    %14035 = vdwg.mxu0
    %14036 = vmatprep.subr.bf16.mxu0 %v12798
    %14037 = vmatpush1.bf16.msra.mxu0 %v12797
    %14038 = vmatprep.subr.bf16.mxu0 %v12790
    %14039 = vmatpush1.bf16.msra.mxu0 %v12789
    %14040 = vmatprep.subr.bf16.mxu0 %v12782
    %14041 = vmatpush1.bf16.msra.mxu0 %v12781
    %14042 = vmatprep.subr.bf16.mxu0 %v12774
    %14043 = vmatpush1.bf16.msra.mxu0 %v12773
    %14044 = vmatprep.subr.bf16.mxu0 %v12766
    %14045 = vmatpush1.bf16.msra.mxu0 %v12765
    %14046 = vmatprep.subr.bf16.mxu0 %v12758
    %14047 = vmatpush1.bf16.msra.mxu0 %v12757
    %14048 = vmatprep.subr.bf16.mxu0 %v12750
    %14049 = vmatpush1.bf16.msra.mxu0 %v12749
    %14050 = vmatprep.subr.bf16.mxu0 %v12742
    %14051 = vmatpush1.bf16.msra.mxu0 %v12741
    %14052 = vmatprep.subr.bf16.mxu0 %v12862
    %14053 = vmatpush2.bf16.msra.mxu0 %v12861
    %14054 = vmatprep.subr.bf16.mxu0 %v12854
    %14055 = vmatpush2.bf16.msra.mxu0 %v12853
    %14056 = vmatprep.subr.bf16.mxu0 %v12846
    %14057 = vmatpush2.bf16.msra.mxu0 %v12845
    %14058 = vmatprep.subr.bf16.mxu0 %v12838
    %14059 = vmatpush2.bf16.msra.mxu0 %v12837
    %14060 = vmatprep.subr.bf16.mxu0 %v12830
    %14061 = vmatpush2.bf16.msra.mxu0 %v12829
    %14062 = vmatprep.subr.bf16.mxu0 %v12822
    %14063 = vmatpush2.bf16.msra.mxu0 %v12821
    %14064 = vmatprep.subr.bf16.mxu0 %v12814
    %14065 = vmatpush2.bf16.msra.mxu0 %v12813
    %14066 = vmatprep.subr.bf16.mxu0 %v12806
    %14067 = vmatpush2.bf16.msra.mxu0 %v12805
    %14068 = vmatprep.mubr.bf16.mxu0 %v10811
    %14069 = vmatmul.mubr.bf16.gmra.mxu0 %v10810
    %v14070 = vpop.f32.mrf.mxu0
    %v14071 = vadd.f32 %v14030, %v14070
    %v14072 = vpop.f32.mrf.mxu0
    %v14073 = vadd.f32 %v14032, %v14072
    %v14074 = vpop.f32.mrf.mxu0
    %v14075 = vpop.f32.mrf.mxu0
    %14076 = vdwg.mxu0
    %14077 = vmatprep.subr.bf16.mxu0 %v12926
    %14078 = vmatpush1.bf16.msra.mxu0 %v12925
    %14079 = vmatprep.subr.bf16.mxu0 %v12918
    %14080 = vmatpush1.bf16.msra.mxu0 %v12917
    %14081 = vmatprep.subr.bf16.mxu0 %v12910
    %14082 = vmatpush1.bf16.msra.mxu0 %v12909
    %14083 = vmatprep.subr.bf16.mxu0 %v12902
    %14084 = vmatpush1.bf16.msra.mxu0 %v12901
    %14085 = vmatprep.subr.bf16.mxu0 %v12894
    %14086 = vmatpush1.bf16.msra.mxu0 %v12893
    %14087 = vmatprep.subr.bf16.mxu0 %v12886
    %14088 = vmatpush1.bf16.msra.mxu0 %v12885
    %14089 = vmatprep.subr.bf16.mxu0 %v12878
    %14090 = vmatpush1.bf16.msra.mxu0 %v12877
    %14091 = vmatprep.subr.bf16.mxu0 %v12870
    %14092 = vmatpush1.bf16.msra.mxu0 %v12869
    %14093 = vmatprep.subr.bf16.mxu0 %v12990
    %14094 = vmatpush2.bf16.msra.mxu0 %v12989
    %14095 = vmatprep.subr.bf16.mxu0 %v12982
    %14096 = vmatpush2.bf16.msra.mxu0 %v12981
    %14097 = vmatprep.subr.bf16.mxu0 %v12974
    %14098 = vmatpush2.bf16.msra.mxu0 %v12973
    %14099 = vmatprep.subr.bf16.mxu0 %v12966
    %14100 = vmatpush2.bf16.msra.mxu0 %v12965
    %14101 = vmatprep.subr.bf16.mxu0 %v12958
    %14102 = vmatpush2.bf16.msra.mxu0 %v12957
    %14103 = vmatprep.subr.bf16.mxu0 %v12950
    %14104 = vmatpush2.bf16.msra.mxu0 %v12949
    %14105 = vmatprep.subr.bf16.mxu0 %v12942
    %14106 = vmatpush2.bf16.msra.mxu0 %v12941
    %14107 = vmatprep.subr.bf16.mxu0 %v12934
    %14108 = vmatpush2.bf16.msra.mxu0 %v12933
    %14109 = vmatprep.mubr.bf16.mxu0 %v10813
    %14110 = vmatmul.mubr.bf16.gmra.mxu0 %v10812
    %v14111 = vpop.f32.mrf.mxu0
    %v14112 = vadd.f32 %v14071, %v14111
    %v14113 = vpop.f32.mrf.mxu0
    %v14114 = vadd.f32 %v14073, %v14113
    %v14115 = vpop.f32.mrf.mxu0
    %v14116 = vpop.f32.mrf.mxu0
    %14117 = vdwg.mxu0
    %14118 = vmatprep.subr.bf16.mxu0 %v13054
    %14119 = vmatpush1.bf16.msra.mxu0 %v13053
    %14120 = vmatprep.subr.bf16.mxu0 %v13046
    %14121 = vmatpush1.bf16.msra.mxu0 %v13045
    %14122 = vmatprep.subr.bf16.mxu0 %v13038
    %14123 = vmatpush1.bf16.msra.mxu0 %v13037
    %14124 = vmatprep.subr.bf16.mxu0 %v13030
    %14125 = vmatpush1.bf16.msra.mxu0 %v13029
    %14126 = vmatprep.subr.bf16.mxu0 %v13022
    %14127 = vmatpush1.bf16.msra.mxu0 %v13021
    %14128 = vmatprep.subr.bf16.mxu0 %v13014
    %14129 = vmatpush1.bf16.msra.mxu0 %v13013
    %14130 = vmatprep.subr.bf16.mxu0 %v13006
    %14131 = vmatpush1.bf16.msra.mxu0 %v13005
    %14132 = vmatprep.subr.bf16.mxu0 %v12998
    %14133 = vmatpush1.bf16.msra.mxu0 %v12997
    %14134 = vmatprep.subr.bf16.mxu0 0
    %14135 = vmatpush2.bf16.msra.mxu0 0
    %14136 = vmatprep.subr.bf16.mxu0 0
    %14137 = vmatpush2.bf16.msra.mxu0 0
    %14138 = vmatprep.subr.bf16.mxu0 0
    %14139 = vmatpush2.bf16.msra.mxu0 0
    %14140 = vmatprep.subr.bf16.mxu0 0
    %14141 = vmatpush2.bf16.msra.mxu0 0
    %14142 = vmatprep.subr.bf16.mxu0 0
    %14143 = vmatpush2.bf16.msra.mxu0 0
    %14144 = vmatprep.subr.bf16.mxu0 0
    %14145 = vmatpush2.bf16.msra.mxu0 0
    %14146 = vmatprep.subr.bf16.mxu0 0
    %14147 = vmatpush2.bf16.msra.mxu0 0
    %14148 = vmatprep.subr.bf16.mxu0 0
    %14149 = vmatpush2.bf16.msra.mxu0 0
    %14150 = vmatprep.mubr.bf16.mxu0 0
    %14151 = vmatmul.mubr.bf16.gmra.mxu0 %v10814
    %v14152 = vpop.f32.mrf.mxu0
    %v14153 = vadd.f32 %v14112, %v14152
    %v14154 = vpop.f32.mrf.mxu0
    %v14155 = vadd.f32 %v14114, %v14154
    %v14156 = vpop.f32.mrf.mxu0
    %v14157 = vpop.f32.mrf.mxu0
    %14158 = vdwg.mxu0
    %v14159 = vld [vmem:[#allocation7] sm:$0x3]
    %v14161 = vlaneseq
    %v14162 = vshrl.u32 %v14161, 7
    %v14163 = vsub.s32 0, %v14162
    %v14164 = vrot.slane %v14159, %v14163
    %v14165 = vlaneseq
    %v14166 = vshrl.u32 %v14165, 7
    %v14167 = vsub.s32 1, %v14166
    %v14168 = vrot.slane %v14159, %v14167
    %v14171 = vadd.f32 %v13661, %v14164
    %v14172 = vadd.f32 %v13663, %v14168
    %v14173 = vmax.f32 %v14171, 0.0
    %v14174 = vmax.f32 %v14172, 0.0
    %v14175 = vadd.f32 %v13825, %v14164
    %v14176 = vadd.f32 %v13827, %v14168
    %v14177 = vmax.f32 %v14175, 0.0
    %v14178 = vmax.f32 %v14176, 0.0
    %v14179 = vadd.f32 %v14173, %v14177
    %v14180 = vadd.f32 %v14174, %v14178
    %v14181 = vadd.f32 %v13989, %v14164
    %v14182 = vadd.f32 %v13991, %v14168
    %v14183 = vmax.f32 %v14181, 0.0
    %v14184 = vmax.f32 %v14182, 0.0
    %v14185 = vadd.f32 %v14179, %v14183
    %v14186 = vadd.f32 %v14180, %v14184
    %v14187 = vadd.f32 %v14153, %v14164
    %v14188 = vadd.f32 %v14155, %v14168
    %v14189 = vmax.f32 %v14187, 0.0
    %v14190 = vmax.f32 %v14188, 0.0
    %v14191 = vadd.f32 %v14185, %v14189
    %v14192 = vadd.f32 %v14186, %v14190
    %v14193 = vpack.c.bf16 %v14191, %v14191
    %v14194 = vpack.c.bf16 %v14192, %v14192
    %v14195 = vld [vmem:[#allocation9] sm:$0xf]
    %v14196 = vld [vmem:[#allocation9 + $0x4] sm:$0xf]
    %v14197 = vld [vmem:[#allocation9 + $0x8] sm:$0xf]
    %v14198 = vld [vmem:[#allocation9 + $0xc] sm:$0xf]
    %v14199 = vld [vmem:[#allocation9 + $0x10] sm:$0xf]
    %v14200 = vld [vmem:[#allocation9 + $0x14] sm:$0xf]
    %v14201 = vld [vmem:[#allocation9 + $0x18] sm:$0xf]
    %v14202 = vld [vmem:[#allocation9 + $0x1c] sm:$0xf]
    %v14203 = vld [vmem:[#allocation9 + $0x20] sm:$0xf]
    %v14204 = vld [vmem:[#allocation9 + $0x24] sm:$0xf]
    %v14205 = vld [vmem:[#allocation9 + $0x28] sm:$0xf]
    %v14206 = vld [vmem:[#allocation9 + $0x2c] sm:$0xf]
    %v14207 = vld [vmem:[#allocation9 + $0x30] sm:$0xf]
    %v14208 = vld [vmem:[#allocation9 + $0x34] sm:$0xf]
    %v14209 = vld [vmem:[#allocation9 + $0x38] sm:$0xf]
    %v14210 = vld [vmem:[#allocation9 + $0x3c] sm:$0xf]
    %v14211 = vld [vmem:[#allocation9 + $0x40] sm:$0xf]
    %v14212 = vld [vmem:[#allocation9 + $0x44] sm:$0xf]
    %v14213 = vld [vmem:[#allocation9 + $0x48] sm:$0xf]
    %v14214 = vld [vmem:[#allocation9 + $0x4c] sm:$0xf]
    %v14215 = vld [vmem:[#allocation9 + $0x50] sm:$0xf]
    %v14216 = vld [vmem:[#allocation9 + $0x54] sm:$0xf]
    %v14217 = vld [vmem:[#allocation9 + $0x58] sm:$0xf]
    %v14218 = vld [vmem:[#allocation9 + $0x5c] sm:$0xf]
    %v14219 = vld [vmem:[#allocation9 + $0x60] sm:$0xf]
    %v14220 = vld [vmem:[#allocation9 + $0x64] sm:$0xf]
    %v14221 = vld [vmem:[#allocation9 + $0x68] sm:$0xf]
    %v14222 = vld [vmem:[#allocation9 + $0x6c] sm:$0xf]
    %v14223 = vld [vmem:[#allocation9 + $0x70] sm:$0xf]
    %v14224 = vld [vmem:[#allocation9 + $0x74] sm:$0xf]
    %v14225 = vld [vmem:[#allocation9 + $0x78] sm:$0xf]
    %v14226 = vld [vmem:[#allocation9 + $0x7c] sm:$0xf]
    %v14227 = vld [vmem:[#allocation10] sm:$0x1]
    %v14229 = vlaneseq
    %v14230 = vshrl.u32 %v14229, 7
    %v14231 = vsub.s32 0, %v14230
    %v14232 = vrot.slane %v14227, %v14231
    %v14266 = vunpack.c.l.b16 %v14195
    %v14267 = vunpack.c.l.b16 %v14196
    %v14268 = vunpack.c.l.b16 %v14197
    %v14269 = vunpack.c.l.b16 %v14198
    %v14270 = vunpack.c.l.b16 %v14199
    %v14271 = vunpack.c.l.b16 %v14200
    %v14272 = vunpack.c.l.b16 %v14201
    %v14273 = vunpack.c.l.b16 %v14202
    %v14274 = vunpack.c.l.b16 %v14203
    %v14275 = vunpack.c.l.b16 %v14204
    %v14276 = vunpack.c.l.b16 %v14205
    %v14277 = vunpack.c.l.b16 %v14206
    %v14278 = vunpack.c.l.b16 %v14207
    %v14279 = vunpack.c.l.b16 %v14208
    %v14280 = vunpack.c.l.b16 %v14209
    %v14281 = vunpack.c.l.b16 %v14210
    %v14282 = vunpack.c.l.b16 %v14211
    %v14283 = vunpack.c.l.b16 %v14212
    %v14284 = vunpack.c.l.b16 %v14213
    %v14285 = vunpack.c.l.b16 %v14214
    %v14286 = vunpack.c.l.b16 %v14215
    %v14287 = vunpack.c.l.b16 %v14216
    %v14288 = vunpack.c.l.b16 %v14217
    %v14289 = vunpack.c.l.b16 %v14218
    %v14290 = vunpack.c.l.b16 %v14219
    %v14291 = vunpack.c.l.b16 %v14220
    %v14292 = vunpack.c.l.b16 %v14221
    %v14293 = vunpack.c.l.b16 %v14222
    %v14294 = vunpack.c.l.b16 %v14223
    %v14295 = vunpack.c.l.b16 %v14224
    %v14296 = vunpack.c.l.b16 %v14225
    %v14297 = vunpack.c.l.b16 %v14226
    %v14298 = vpack.c.b16 %v14267, %v14266
    %v14299 = vpack.c.b16 %v14269, %v14268
    %v14300 = vpack.c.b16 %v14271, %v14270
    %v14301 = vpack.c.b16 %v14273, %v14272
    %v14302 = vpack.c.b16 %v14275, %v14274
    %v14303 = vpack.c.b16 %v14277, %v14276
    %v14304 = vpack.c.b16 %v14279, %v14278
    %v14305 = vpack.c.b16 %v14281, %v14280
    %v14306 = vpack.c.b16 %v14283, %v14282
    %v14307 = vpack.c.b16 %v14285, %v14284
    %v14308 = vpack.c.b16 %v14287, %v14286
    %v14309 = vpack.c.b16 %v14289, %v14288
    %v14310 = vpack.c.b16 %v14291, %v14290
    %v14311 = vpack.c.b16 %v14293, %v14292
    %v14312 = vpack.c.b16 %v14295, %v14294
    %v14313 = vpack.c.b16 %v14297, %v14296
    %14330 = vmatprep.subr.bf16.mxu0 0
    %14331 = vmatpush1.bf16.msra.mxu0 %v14305
    %14332 = vmatprep.subr.bf16.mxu0 0
    %14333 = vmatpush1.bf16.msra.mxu0 %v14304
    %14334 = vmatprep.subr.bf16.mxu0 0
    %14335 = vmatpush1.bf16.msra.mxu0 %v14303
    %14336 = vmatprep.subr.bf16.mxu0 0
    %14337 = vmatpush1.bf16.msra.mxu0 %v14302
    %14338 = vmatprep.subr.bf16.mxu0 0
    %14339 = vmatpush1.bf16.msra.mxu0 %v14301
    %14340 = vmatprep.subr.bf16.mxu0 0
    %14341 = vmatpush1.bf16.msra.mxu0 %v14300
    %14342 = vmatprep.subr.bf16.mxu0 0
    %14343 = vmatpush1.bf16.msra.mxu0 %v14299
    %14344 = vmatprep.subr.bf16.mxu0 0
    %14345 = vmatpush1.bf16.msra.mxu0 %v14298
    %14346 = vmatprep.subr.bf16.mxu0 0
    %14347 = vmatpush2.bf16.msra.mxu0 %v14313
    %14348 = vmatprep.subr.bf16.mxu0 0
    %14349 = vmatpush2.bf16.msra.mxu0 %v14312
    %14350 = vmatprep.subr.bf16.mxu0 0
    %14351 = vmatpush2.bf16.msra.mxu0 %v14311
    %14352 = vmatprep.subr.bf16.mxu0 0
    %14353 = vmatpush2.bf16.msra.mxu0 %v14310
    %14354 = vmatprep.subr.bf16.mxu0 0
    %14355 = vmatpush2.bf16.msra.mxu0 %v14309
    %14356 = vmatprep.subr.bf16.mxu0 0
    %14357 = vmatpush2.bf16.msra.mxu0 %v14308
    %14358 = vmatprep.subr.bf16.mxu0 0
    %14359 = vmatpush2.bf16.msra.mxu0 %v14307
    %14360 = vmatprep.subr.bf16.mxu0 0
    %14361 = vmatpush2.bf16.msra.mxu0 %v14306
    %14362 = vmatprep.mubr.bf16.mxu0 %v14194
    %14363 = vmatmul.mubr.bf16.gmra.mxu0 %v14193
    %v14364 = vpop.f32.mrf.mxu0
    %v14365 = vadd.f32 %v14232, %v14364
    %v14366 = vpop.f32.mrf.mxu0
    %v14367 = vpop.f32.mrf.mxu0
    %v14368 = vpop.f32.mrf.mxu0
    %14369 = vdwg.mxu0
    %v14370 = vmax.f32 %v14365, 0.0
    %v14371 = vpack.c.bf16 %v14370, %v14370
    %v14372 = vld [vmem:[#allocation12] sm:$0xf]
    %v14373 = vld [vmem:[#allocation12 + $0x4] sm:$0xf]
    %v14374 = vld [vmem:[#allocation12 + $0x8] sm:$0xf]
    %v14375 = vld [vmem:[#allocation12 + $0xc] sm:$0xf]
    %v14376 = vld [vmem:[#allocation12 + $0x10] sm:$0xf]
    %v14377 = vld [vmem:[#allocation12 + $0x14] sm:$0xf]
    %v14378 = vld [vmem:[#allocation12 + $0x18] sm:$0xf]
    %v14379 = vld [vmem:[#allocation12 + $0x1c] sm:$0xf]
    %v14380 = vld [vmem:[#allocation12 + $0x20] sm:$0xf]
    %v14381 = vld [vmem:[#allocation12 + $0x24] sm:$0xf]
    %v14382 = vld [vmem:[#allocation12 + $0x28] sm:$0xf]
    %v14383 = vld [vmem:[#allocation12 + $0x2c] sm:$0xf]
    %v14384 = vld [vmem:[#allocation12 + $0x30] sm:$0xf]
    %v14385 = vld [vmem:[#allocation12 + $0x34] sm:$0xf]
    %v14386 = vld [vmem:[#allocation12 + $0x38] sm:$0xf]
    %v14387 = vld [vmem:[#allocation12 + $0x3c] sm:$0xf]
    %v14388 = vld [vmem:[#allocation13] sm:$0x1]
    %v14390 = vlaneseq
    %v14391 = vshrl.u32 %v14390, 7
    %v14392 = vsub.s32 0, %v14391
    %v14393 = vrot.slane %v14388, %v14392
    %v14411 = vunpack.c.l.b16 %v14372
    %v14412 = vunpack.c.l.b16 %v14373
    %v14413 = vunpack.c.l.b16 %v14374
    %v14414 = vunpack.c.l.b16 %v14375
    %v14415 = vunpack.c.l.b16 %v14376
    %v14416 = vunpack.c.l.b16 %v14377
    %v14417 = vunpack.c.l.b16 %v14378
    %v14418 = vunpack.c.l.b16 %v14379
    %v14419 = vunpack.c.l.b16 %v14380
    %v14420 = vunpack.c.l.b16 %v14381
    %v14421 = vunpack.c.l.b16 %v14382
    %v14422 = vunpack.c.l.b16 %v14383
    %v14423 = vunpack.c.l.b16 %v14384
    %v14424 = vunpack.c.l.b16 %v14385
    %v14425 = vunpack.c.l.b16 %v14386
    %v14426 = vunpack.c.l.b16 %v14387
    %v14427 = vpack.c.b16 %v14412, %v14411
    %v14428 = vpack.c.b16 %v14414, %v14413
    %v14429 = vpack.c.b16 %v14416, %v14415
    %v14430 = vpack.c.b16 %v14418, %v14417
    %v14431 = vpack.c.b16 %v14420, %v14419
    %v14432 = vpack.c.b16 %v14422, %v14421
    %v14433 = vpack.c.b16 %v14424, %v14423
    %v14434 = vpack.c.b16 %v14426, %v14425
    %14443 = vmatprep.subr.bf16.mxu0 0
    %14444 = vmatpush1.bf16.msra.mxu0 %v14434
    %14445 = vmatprep.subr.bf16.mxu0 0
    %14446 = vmatpush1.bf16.msra.mxu0 %v14433
    %14447 = vmatprep.subr.bf16.mxu0 0
    %14448 = vmatpush1.bf16.msra.mxu0 %v14432
    %14449 = vmatprep.subr.bf16.mxu0 0
    %14450 = vmatpush1.bf16.msra.mxu0 %v14431
    %14451 = vmatprep.subr.bf16.mxu0 0
    %14452 = vmatpush1.bf16.msra.mxu0 %v14430
    %14453 = vmatprep.subr.bf16.mxu0 0
    %14454 = vmatpush1.bf16.msra.mxu0 %v14429
    %14455 = vmatprep.subr.bf16.mxu0 0
    %14456 = vmatpush1.bf16.msra.mxu0 %v14428
    %14457 = vmatprep.subr.bf16.mxu0 0
    %14458 = vmatpush1.bf16.msra.mxu0 %v14427
    %14459 = vmatprep.subr.bf16.mxu0 0
    %14460 = vmatpush2.bf16.msra.mxu0 0
    %14461 = vmatprep.subr.bf16.mxu0 0
    %14462 = vmatpush2.bf16.msra.mxu0 0
    %14463 = vmatprep.subr.bf16.mxu0 0
    %14464 = vmatpush2.bf16.msra.mxu0 0
    %14465 = vmatprep.subr.bf16.mxu0 0
    %14466 = vmatpush2.bf16.msra.mxu0 0
    %14467 = vmatprep.subr.bf16.mxu0 0
    %14468 = vmatpush2.bf16.msra.mxu0 0
    %14469 = vmatprep.subr.bf16.mxu0 0
    %14470 = vmatpush2.bf16.msra.mxu0 0
    %14471 = vmatprep.subr.bf16.mxu0 0
    %14472 = vmatpush2.bf16.msra.mxu0 0
    %14473 = vmatprep.subr.bf16.mxu0 0
    %14474 = vmatpush2.bf16.msra.mxu0 0
    %14475 = vmatprep.mubr.bf16.mxu0 0
    %14476 = vmatmul.mubr.bf16.gmra.mxu0 %v14371
    %v14477 = vpop.f32.mrf.mxu0
    %v14478 = vadd.f32 %v14393, %v14477
    %v14479 = vpop.f32.mrf.mxu0
    %v14480 = vpop.f32.mrf.mxu0
    %v14481 = vpop.f32.mrf.mxu0
    %14482 = vdwg.mxu0
    %14483 = vst [vmem:[%s9] sm:$0xff] %v14478
    // Predicated region
    $region70: #{full_model_with_extractor.1} parent=1 // pred_check
      _
    $region71: #{full_model_with_extractor.1} parent=1 // pred_check_branch
      %14485 = sbr.rel (0) target = $region73
    $region72: #{full_model_with_extractor.1} parent=1 // pred_region
      _
    $region73: #{full_model_with_extractor.1} parent=1 // pred_fallthru
      _
    // Predicated region
    $region74: #{full_model_with_extractor.1} parent=1 // pred_check
      _
    $region75: #{full_model_with_extractor.1} parent=1 // pred_check_branch
      %14487 = sbr.rel (0) target = $region77
    $region76: #{full_model_with_extractor.1} parent=1 // pred_region
      _
    $region77: #{full_model_with_extractor.1} parent=1 // pred_fallthru
      _
    %14488 = vsyncpa [#allocation3], 1
    %14489 = vsyncpa [#allocation5], 1
    %14490 = vsyncpa [#allocation8], 1
    %14491 = vsyncpa [#allocation11], 1
    %14492 = vsyncpa [#allocation14], 1

</llo_original>
